<compile_context>
chip_gen: v7x
topology: tpu7x:2x2x1
jax: 0.10.0
libtpu: 0.0.40
codegen_flags: <defaults>
</compile_context>

<pallas_src>
import functools

import jax
import jax.numpy as jnp
from jax.experimental import pallas as pl
from jax.experimental.pallas import tpu as pltpu


def _round_up(x, m):
    return ((x + m - 1) // m) * m


def _vmem_capacity_bytes():
    """Physical per-core VMEM (v5e/v6e: 128 MiB, v7x: 64 MiB); safe fallback."""
    try:
        cap = int(pltpu.get_tpu_info().vmem_capacity_bytes)
        if cap > 0:
            return cap
    except Exception:
        pass
    return 64 * 2**20


def _plan(H, Wp, Cin, Cout, in_isz, out_isz, budget, *, row_tile=None, k_block=None):
    """Pick (row tile TH, K block TC, #K blocks) so the double-buffered working
    set fits the VMEM budget. Prefers a single K block (no accumulator
    round-trip) and the largest row tile (least halo / weight re-fetch)."""

    def working_set(th, tc, nk):
        m_in, m_out = (th + 3) * Wp, th * Wp
        byt = 2 * m_in * tc * in_isz            # activation tile (double-buffered)
        byt += 2 * 9 * tc * Cout * in_isz       # 9-tap weight slab (double-buffered)
        byt += 2 * m_out * Cout * out_isz       # output tile (double-buffered)
        byt += 2 * Cout * 4                     # bias
        if nk > 1:
            byt += m_out * Cout * 4             # f32 accumulator scratch
        return byt

    if k_block is None:
        tc_cands = [(Cin, 1)]                   # single K block: K = Cin
        k128 = _round_up(Cin, 128)
        tc_cands += [(tc, -(-k128 // tc))
                     for tc in (1536, 1024, 768, 512, 384, 256, 128) if tc < k128]
    else:                                       # explicit override (Cin or mult of 128)
        kp = _round_up(Cin, k_block)
        tc_cands = [(k_block, kp // k_block)]

    if row_tile is None:
        th_cands, th = [H], H
        while th > 8:                           # power-of-two-ish splits, floor 8 rows
            th = max(8, (th + 1) // 2)
            th_cands.append(th)
    else:
        th_cands = [min(int(row_tile), H)]

    for tc, nk in tc_cands:
        for th in th_cands:
            if working_set(th, tc, nk) <= budget:
                return th, tc, nk, working_set(th, tc, nk)
    tc, nk = tc_cands[-1]
    th = th_cands[-1]
    return th, tc, nk, working_set(th, tc, nk)


def _conv3x3_kernel(x_ref, w_ref, b_ref, o_ref, *scratch, img_wp, single_k):
    # x_ref : (1, 1, (TH+3)*Wp, TC)  one halo'd, flattened row tile of the slab
    # w_ref : (9, TC, Cout)          per-tap weight slab (tap index = dy*3 + dx)
    # b_ref : (1, Cout) f32          bias
    # o_ref : (1, 1, TH*Wp, Cout)    output tile (resident across the K axis)
    m_out = o_ref.shape[2]
    xv = x_ref[0, 0]                            # (m_in, TC), already VMEM-resident

    def tap(t):
        dy, dx = divmod(t, 3)                   # flat row/col offset of this tap
        off = dy * img_wp + dx
        lhs = xv[off:off + m_out, :]
        return jnp.dot(lhs, w_ref[t], preferred_element_type=jnp.float32)

    if single_k:
        # Common case (K = Cin fits one block): accumulate in registers,
        # initialize from the first tap (no zero fill), store exactly once.
        acc = tap(0)
        for t in range(1, 9):
            acc = acc + tap(t)
        y = jnp.maximum(acc + b_ref[...], 0.0)
        o_ref[...] = y.reshape(o_ref.shape).astype(o_ref.dtype)
    else:
        acc_ref, = scratch
        kc = pl.program_id(2)

        @pl.when(kc == 0)
        def _():
            acc_ref[...] = jnp.zeros_like(acc_ref)

        acc = acc_ref[...]
        for t in range(9):
            acc = acc + tap(t)
        acc_ref[...] = acc

        @pl.when(kc == pl.num_programs(2) - 1)
        def _():
            y = jnp.maximum(acc_ref[...] + b_ref[...], 0.0)
            o_ref[...] = y.reshape(o_ref.shape).astype(o_ref.dtype)


def _build_slab(xs_nhwc, TH, n_t, Wp, compute_dtype):
    """Zero-padded, channel-concatenated, halo-row-tiled, flattened conv input
    of shape (N, n_t, (TH+3)*Wp, Cin). Pad + concat + cast + tiling fuse into a
    single XLA materialization (the 1x slab replaces the old 3x W-fold)."""
    N, H, W = xs_nhwc[0].shape[:3]
    x = xs_nhwc[0] if len(xs_nhwc) == 1 else jnp.concatenate(xs_nhwc, axis=-1)
    Cin = x.shape[-1]
    rows = n_t * TH + 3                  # 1 top pad + H rows + bottom pad/overhang
    x = jnp.pad(x.astype(compute_dtype),
                ((0, 0), (1, rows - 1 - H), (1, Wp - 1 - W), (0, 0)))
    if n_t == 1:
        tiles = x[:, None]
    else:                                # duplicate the small per-tile row halo
        tiles = jnp.stack([x[:, t * TH:t * TH + TH + 3] for t in range(n_t)], axis=1)
    return tiles.reshape(N, n_t, (TH + 3) * Wp, Cin)


def conv3x3_relu(xs_nhwc, w_hwio, b, *, out_dtype, compute_dtype=jnp.bfloat16,
                 row_tile=None, k_block=None):
    """3x3 / stride-1 / pad-1 conv (cross-correlation, as nn.Conv2d) + bias + ReLU.

    `xs_nhwc` is a list of NHWC tensors whose channel concatenation is the conv
    input; the concat is fused into the padded-slab build (never its own HBM
    tensor). The conv runs as 9 MXU matmuls (one per kernel tap, K = Cin)
    against flat row/col-shifted views of the VMEM-resident flattened slab.
    """
    N, H, W = xs_nhwc[0].shape[:3]
    Cin = sum(int(x.shape[-1]) for x in xs_nhwc)
    Cout = int(w_hwio.shape[-1])
    assert w_hwio.shape == (3, 3, Cin, Cout)

    Wp = _round_up(W + 2, 8)             # padded width; keeps dy offsets 8-aligned
    in_isz = jnp.dtype(compute_dtype).itemsize
    out_isz = jnp.dtype(out_dtype).itemsize

    cap = _vmem_capacity_bytes()
    budget = (3 * cap) // 4              # ~48 MiB on v7x, ~96 MiB on v5e/v6e
    TH, TC, n_k, need = _plan(H, Wp, Cin, Cout, in_isz, out_isz, budget,
                              row_tile=row_tile, k_block=k_block)
    n_t = -(-H // TH)
    KFp = n_k * TC

    # --- HBM-side glue (one pass): pad + fused concat + halo tiles + flatten ---
    slab = _build_slab(xs_nhwc, TH, n_t, Wp, compute_dtype)   # (N,n_t,(TH+3)*Wp,Cin)
    wk = w_hwio.reshape(9, Cin, Cout).astype(compute_dtype)   # (dy*3+dx, Cin, Cout)
    if KFp > Cin:                                             # zero-pad blocked K
        slab = jnp.pad(slab, ((0, 0), (0, 0), (0, 0), (0, KFp - Cin)))
        wk = jnp.pad(wk, ((0, 0), (0, KFp - Cin), (0, 0)))
    b2 = b.reshape(1, Cout).astype(jnp.float32)

    m_in, m_out = (TH + 3) * Wp, TH * Wp
    single_k = (n_k == 1)
    kernel = functools.partial(_conv3x3_kernel, img_wp=Wp, single_k=single_k)
    scratch = [] if single_k else [pltpu.VMEM((m_out, Cout), jnp.float32)]
    # Capacity-aware scoped-VMEM limit: always >= the planned working set.
    vmem_limit = int(min(cap * 9 // 10, max(need * 5 // 4, 32 * 2**20)))

    # NOTE: at real UNet channel counts Cout >= 128 so the output store is
    # lane-dense; at the tiny demo Cout the masked store is accepted rather than
    # paying a 16x HBM-byte inflation to pad the channel dim.
    out = pl.pallas_call(
        kernel,
        out_shape=jax.ShapeDtypeStruct((N, n_t, m_out, Cout), out_dtype),
        grid_spec=pltpu.PrefetchScalarGridSpec(
            num_scalar_prefetch=0,
            grid=(N, n_t, n_k),                 # (batch, row tile, K reduction)
            in_specs=[
                pl.BlockSpec((1, 1, m_in, TC), lambda n, t, k: (n, t, 0, k)),
                pl.BlockSpec((9, TC, Cout), lambda n, t, k: (0, k, 0)),
                pl.BlockSpec((1, Cout), lambda n, t, k: (0, 0)),
            ],
            out_specs=pl.BlockSpec((1, 1, m_out, Cout), lambda n, t, k: (n, t, 0, 0)),
            scratch_shapes=scratch,
        ),
        compiler_params=pltpu.CompilerParams(
            dimension_semantics=("parallel", "parallel", "arbitrary"),
            vmem_limit_bytes=vmem_limit,
        ),
    )(slab, wk, b2)

    # Drop padded columns / row-tile overhang: (N, n_t, TH*Wp, Cout) -> NHWC.
    out = out.reshape(N, n_t * TH, Wp, Cout)[:, :H, :W, :]
    return out


def bilinear_upsample_2x_align_corners(x_nhwc):
    """nn.Upsample(scale_factor=2, mode='bilinear', align_corners=True), NHWC."""
    N, H, W, C = x_nhwc.shape
    Ho, Wo = 2 * H, 2 * W
    ys = jnp.arange(Ho, dtype=jnp.float32) * (H - 1) / (Ho - 1)
    xs = jnp.arange(Wo, dtype=jnp.float32) * (W - 1) / (Wo - 1)
    y0 = jnp.floor(ys).astype(jnp.int32)
    x0 = jnp.floor(xs).astype(jnp.int32)
    y1 = jnp.minimum(y0 + 1, H - 1)
    x1 = jnp.minimum(x0 + 1, W - 1)
    wy = (ys - y0.astype(jnp.float32))[None, :, None, None]
    wx = (xs - x0.astype(jnp.float32))[None, None, :, None]
    rows = x_nhwc[:, y0, :, :] * (1.0 - wy) + x_nhwc[:, y1, :, :] * wy
    out = rows[:, :, x0, :] * (1.0 - wx) + rows[:, :, x1, :] * wx
    return out.astype(x_nhwc.dtype)


def _pad_or_crop_hw(x, target_h, target_w):
    """F.pad semantics for the H/W dims of an NHWC tensor (negative pad = crop)."""
    _, H, W, _ = x.shape
    dY, dX = target_h - H, target_w - W
    top, left = dY // 2, dX // 2
    bottom, right = dY - top, dX - left

    def one(v, lo, hi, axis):
        if lo < 0:
            v = jax.lax.slice_in_dim(v, -lo, v.shape[axis], axis=axis)
            lo = 0
        if hi < 0:
            v = jax.lax.slice_in_dim(v, 0, v.shape[axis] + hi, axis=axis)
            hi = 0
        if lo or hi:
            pads = [(0, 0)] * v.ndim
            pads[axis] = (lo, hi)
            v = jnp.pad(v, pads)
        return v

    return one(one(x, top, bottom, 1), left, right, 2)


def up_cat_forward(params, x1_nchw, x2_nchw, *, compute_dtype=jnp.bfloat16):
    """Up_cat.forward(x1, x2) with bilinear=True. Inputs/outputs are NCHW."""
    x1 = jnp.transpose(x1_nchw, (0, 2, 3, 1))   # NCHW -> NHWC (XLA glue)
    x2 = jnp.transpose(x2_nchw, (0, 2, 3, 1))

    # TODO(synk): ConvTranspose2d path (bilinear=False) not implemented; the
    #             module default bilinear=True is the implemented path.
    x1 = bilinear_upsample_2x_align_corners(x1)
    x1 = _pad_or_crop_hw(x1, x2.shape[1], x2.shape[2])   # F.pad (negative = crop)

    # torch.cat([x2, x1], dim=1) is fused into the first conv's slab build.
    h = conv3x3_relu([x2, x1], params["w1"], params["b1"],
                     out_dtype=compute_dtype, compute_dtype=compute_dtype)
    # TODO(synk): conv1->conv2 fusion in one pallas_call (halo'd VMEM h tile)
    #             not implemented; h round-trips HBM once in bf16.
    h = conv3x3_relu([h], params["w2"], params["b2"],
                     out_dtype=jnp.float32, compute_dtype=compute_dtype)
    return jnp.transpose(h, (0, 3, 1, 2))       # NHWC -> NCHW


def init_params(key, in_channels, out_channels):
    """Deterministic Conv2d-style init (uniform +-1/sqrt(fan_in)), weights HWIO."""
    k1, k2, k3, k4 = jax.random.split(key, 4)

    def conv_init(kw, kb, cin, cout):
        fan_in = cin * 9
        bound = 1.0 / (fan_in ** 0.5)
        w_oihw = jax.random.uniform(kw, (cout, cin, 3, 3), jnp.float32, -bound, bound)
        bb = jax.random.uniform(kb, (cout,), jnp.float32, -bound, bound)
        return jnp.transpose(w_oihw, (2, 3, 1, 0)), bb   # OIHW -> HWIO

    w1, b1 = conv_init(k1, k2, in_channels, out_channels)
    w2, b2 = conv_init(k3, k4, out_channels, out_channels)
    return {"w1": w1, "b1": b1, "w2": w2, "b2": b2}


if __name__ == "__main__":
    key = jax.random.PRNGKey(0)
    kx1, kx2, kp, kx3, kw3, kb3 = jax.random.split(key, 6)

    N, C1, H1, W1 = 2, 4, 8, 8      # x1: lower-resolution feature (upsampled 2x)
    C2, H2, W2 = 4, 16, 16          # x2: skip connection
    in_channels = C1 + C2           # channels after concat = 8
    out_channels = 8

    x1 = jax.random.normal(kx1, (N, C1, H1, W1), jnp.float32)
    x2 = jax.random.normal(kx2, (N, C2, H2, W2), jnp.float32)
    params = init_params(kp, in_channels, out_channels)

    # Performance path: bf16 streaming, f32 accumulation.
    fwd_bf16 = jax.jit(functools.partial(up_cat_forward, params,
                                         compute_dtype=jnp.bfloat16))
    out = jax.block_until_ready(fwd_bf16(x1, x2))
    assert out.shape == (N, out_channels, H2, W2)
    assert out.dtype == jnp.float32

    # f32-compute run of the same Pallas path for a tight correctness check.
    fwd_f32 = jax.jit(functools.partial(up_cat_forward, params,
                                        compute_dtype=jnp.float32))
    out_f32 = jax.block_until_ready(fwd_f32(x1, x2))

    def lax_conv_relu(x, w, bb):
        y = jax.lax.conv_general_dilated(
            x, w, (1, 1), "SAME", dimension_numbers=("NHWC", "HWIO", "NHWC"))
        return jnp.maximum(y + bb, 0.0)

    def ref_forward(x1_nchw, x2_nchw):
        a = jnp.transpose(x1_nchw, (0, 2, 3, 1))
        b = jnp.transpose(x2_nchw, (0, 2, 3, 1))
        a = bilinear_upsample_2x_align_corners(a)
        a = _pad_or_crop_hw(a, b.shape[1], b.shape[2])
        x = jnp.concatenate([b, a], axis=-1)
        hh = lax_conv_relu(x, params["w1"], params["b1"])
        hh = lax_conv_relu(hh, params["w2"], params["b2"])
        return jnp.transpose(hh, (0, 3, 1, 2))

    ref = jax.block_until_ready(jax.jit(ref_forward)(x1, x2))

    err_f32 = float(jnp.max(jnp.abs(out_f32 - ref)))
    assert jnp.allclose(out_f32, ref, atol=5e-4, rtol=5e-4), err_f32
    err_bf16 = float(jnp.max(jnp.abs(out - ref)))
    assert jnp.allclose(out, ref, atol=1e-1, rtol=1e-1), err_bf16

    # Structural check of the spatially-tiled + K-blocked path (halo'd row
    # tiles on a "parallel" axis, multi-step K reduction with f32 VMEM acc).
    Ct, Co, Ht, Wt = 192, 16, 8, 8
    xt = jax.random.normal(kx3, (1, Ht, Wt, Ct), jnp.float32)
    wt = jax.random.normal(kw3, (3, 3, Ct, Co), jnp.float32) * 0.05
    bt = jax.random.normal(kb3, (Co,), jnp.float32) * 0.05
    tiled_fn = jax.jit(functools.partial(
        conv3x3_relu, out_dtype=jnp.float32, compute_dtype=jnp.float32,
        row_tile=4, k_block=128))
    tiled = jax.block_until_ready(tiled_fn([xt], wt, bt))
    ref_t = jax.block_until_ready(jax.jit(lax_conv_relu)(xt, wt, bt))
    err_t = float(jnp.max(jnp.abs(tiled - ref_t)))
    assert jnp.allclose(tiled, ref_t, atol=5e-2, rtol=5e-2), err_t

    print("KERNEL_OK")
</pallas_src>

<mosaic_0001>
module attributes {stable_mosaic.version = 11 : i64} {
  func.func @_conv3x3_kernel(%arg0: i32, %arg1: i32, %arg2: i32, %arg3: memref<1x1x456x8xbf16, #tpu.memory_space<vmem>>, %arg4: memref<9x8x8xbf16, #tpu.memory_space<vmem>>, %arg5: memref<1x8xf32, #tpu.memory_space<vmem>>, %arg6: memref<1x1x384x8xbf16, #tpu.memory_space<vmem>>) attributes {dimension_semantics = [#tpu.dimension_semantics<parallel>, #tpu.dimension_semantics<parallel>, #tpu.dimension_semantics<arbitrary>], iteration_bounds = array<i64: 2, 1, 1>, scalar_prefetch = 0 : i64, scratch_operands = 0 : i64, tpu.core_type = #tpu.core_type<tc>, window_params = [{transform_indices = @transform_0, window_bounds = array<i64: 1, 1, 456, 8>}, {transform_indices = @transform_1, window_bounds = array<i64: 9, 8, 8>}, {pipeline_mode = #tpu.pipeline_mode<synchronous>, transform_indices = @transform_2, window_bounds = array<i64: 1, 8>}, {transform_indices = @transform_3, window_bounds = array<i64: 1, 1, 384, 8>}]} {
    %c0 = arith.constant 0 : index
    %c0_0 = arith.constant 0 : index
    %c0_1 = arith.constant 0 : index
    %c0_2 = arith.constant 0 : index
    %0 = vector.load %arg3[%c0, %c0_0, %c0_1, %c0_2] : memref<1x1x456x8xbf16, #tpu.memory_space<vmem>>, vector<1x1x456x8xbf16>
    %1 = vector.shape_cast %0 : vector<1x1x456x8xbf16> to vector<456x8xbf16>
    %2 = vector.extract_strided_slice %1 {offsets = [0, 0], sizes = [384, 8], strides = [1, 1]} : vector<456x8xbf16> to vector<384x8xbf16>
    %c0_3 = arith.constant 0 : index
    %c0_4 = arith.constant 0 : index
    %c0_5 = arith.constant 0 : index
    %3 = vector.load %arg4[%c0_3, %c0_4, %c0_5] : memref<9x8x8xbf16, #tpu.memory_space<vmem>>, vector<1x8x8xbf16>
    %4 = vector.shape_cast %3 : vector<1x8x8xbf16> to vector<8x8xbf16>
    %cst = arith.constant dense<0.000000e+00> : vector<384x8xf32>
    %5 = tpu.matmul %2, %4, %cst {dimension_numbers = #tpu.dot_dimension_numbers<[1], [0], [0], [1], [0, 0, 1, 1], [], []>} : vector<384x8xbf16>, vector<8x8xbf16>, vector<384x8xf32> -> vector<384x8xf32>
    %6 = vector.extract_strided_slice %1 {offsets = [1, 0], sizes = [384, 8], strides = [1, 1]} : vector<456x8xbf16> to vector<384x8xbf16>
    %c1 = arith.constant 1 : index
    %c0_6 = arith.constant 0 : index
    %c0_7 = arith.constant 0 : index
    %7 = vector.load %arg4[%c1, %c0_6, %c0_7] : memref<9x8x8xbf16, #tpu.memory_space<vmem>>, vector<1x8x8xbf16>
    %8 = vector.shape_cast %7 : vector<1x8x8xbf16> to vector<8x8xbf16>
    %cst_8 = arith.constant dense<0.000000e+00> : vector<384x8xf32>
    %9 = tpu.matmul %6, %8, %cst_8 {dimension_numbers = #tpu.dot_dimension_numbers<[1], [0], [0], [1], [0, 0, 1, 1], [], []>} : vector<384x8xbf16>, vector<8x8xbf16>, vector<384x8xf32> -> vector<384x8xf32>
    %10 = arith.addf %5, %9 : vector<384x8xf32>
    %11 = vector.extract_strided_slice %1 {offsets = [2, 0], sizes = [384, 8], strides = [1, 1]} : vector<456x8xbf16> to vector<384x8xbf16>
    %c2 = arith.constant 2 : index
    %c0_9 = arith.constant 0 : index
    %c0_10 = arith.constant 0 : index
    %12 = vector.load %arg4[%c2, %c0_9, %c0_10] : memref<9x8x8xbf16, #tpu.memory_space<vmem>>, vector<1x8x8xbf16>
    %13 = vector.shape_cast %12 : vector<1x8x8xbf16> to vector<8x8xbf16>
    %cst_11 = arith.constant dense<0.000000e+00> : vector<384x8xf32>
    %14 = tpu.matmul %11, %13, %cst_11 {dimension_numbers = #tpu.dot_dimension_numbers<[1], [0], [0], [1], [0, 0, 1, 1], [], []>} : vector<384x8xbf16>, vector<8x8xbf16>, vector<384x8xf32> -> vector<384x8xf32>
    %15 = arith.addf %10, %14 : vector<384x8xf32>
    %16 = vector.extract_strided_slice %1 {offsets = [24, 0], sizes = [384, 8], strides = [1, 1]} : vector<456x8xbf16> to vector<384x8xbf16>
    %c3 = arith.constant 3 : index
    %c0_12 = arith.constant 0 : index
    %c0_13 = arith.constant 0 : index
    %17 = vector.load %arg4[%c3, %c0_12, %c0_13] : memref<9x8x8xbf16, #tpu.memory_space<vmem>>, vector<1x8x8xbf16>
    %18 = vector.shape_cast %17 : vector<1x8x8xbf16> to vector<8x8xbf16>
    %cst_14 = arith.constant dense<0.000000e+00> : vector<384x8xf32>
    %19 = tpu.matmul %16, %18, %cst_14 {dimension_numbers = #tpu.dot_dimension_numbers<[1], [0], [0], [1], [0, 0, 1, 1], [], []>} : vector<384x8xbf16>, vector<8x8xbf16>, vector<384x8xf32> -> vector<384x8xf32>
    %20 = arith.addf %15, %19 : vector<384x8xf32>
    %21 = vector.extract_strided_slice %1 {offsets = [25, 0], sizes = [384, 8], strides = [1, 1]} : vector<456x8xbf16> to vector<384x8xbf16>
    %c4 = arith.constant 4 : index
    %c0_15 = arith.constant 0 : index
    %c0_16 = arith.constant 0 : index
    %22 = vector.load %arg4[%c4, %c0_15, %c0_16] : memref<9x8x8xbf16, #tpu.memory_space<vmem>>, vector<1x8x8xbf16>
    %23 = vector.shape_cast %22 : vector<1x8x8xbf16> to vector<8x8xbf16>
    %cst_17 = arith.constant dense<0.000000e+00> : vector<384x8xf32>
    %24 = tpu.matmul %21, %23, %cst_17 {dimension_numbers = #tpu.dot_dimension_numbers<[1], [0], [0], [1], [0, 0, 1, 1], [], []>} : vector<384x8xbf16>, vector<8x8xbf16>, vector<384x8xf32> -> vector<384x8xf32>
    %25 = arith.addf %20, %24 : vector<384x8xf32>
    %26 = vector.extract_strided_slice %1 {offsets = [26, 0], sizes = [384, 8], strides = [1, 1]} : vector<456x8xbf16> to vector<384x8xbf16>
    %c5 = arith.constant 5 : index
    %c0_18 = arith.constant 0 : index
    %c0_19 = arith.constant 0 : index
    %27 = vector.load %arg4[%c5, %c0_18, %c0_19] : memref<9x8x8xbf16, #tpu.memory_space<vmem>>, vector<1x8x8xbf16>
    %28 = vector.shape_cast %27 : vector<1x8x8xbf16> to vector<8x8xbf16>
    %cst_20 = arith.constant dense<0.000000e+00> : vector<384x8xf32>
    %29 = tpu.matmul %26, %28, %cst_20 {dimension_numbers = #tpu.dot_dimension_numbers<[1], [0], [0], [1], [0, 0, 1, 1], [], []>} : vector<384x8xbf16>, vector<8x8xbf16>, vector<384x8xf32> -> vector<384x8xf32>
    %30 = arith.addf %25, %29 : vector<384x8xf32>
    %31 = vector.extract_strided_slice %1 {offsets = [48, 0], sizes = [384, 8], strides = [1, 1]} : vector<456x8xbf16> to vector<384x8xbf16>
    %c6 = arith.constant 6 : index
    %c0_21 = arith.constant 0 : index
    %c0_22 = arith.constant 0 : index
    %32 = vector.load %arg4[%c6, %c0_21, %c0_22] : memref<9x8x8xbf16, #tpu.memory_space<vmem>>, vector<1x8x8xbf16>
    %33 = vector.shape_cast %32 : vector<1x8x8xbf16> to vector<8x8xbf16>
    %cst_23 = arith.constant dense<0.000000e+00> : vector<384x8xf32>
    %34 = tpu.matmul %31, %33, %cst_23 {dimension_numbers = #tpu.dot_dimension_numbers<[1], [0], [0], [1], [0, 0, 1, 1], [], []>} : vector<384x8xbf16>, vector<8x8xbf16>, vector<384x8xf32> -> vector<384x8xf32>
    %35 = arith.addf %30, %34 : vector<384x8xf32>
    %36 = vector.extract_strided_slice %1 {offsets = [49, 0], sizes = [384, 8], strides = [1, 1]} : vector<456x8xbf16> to vector<384x8xbf16>
    %c7 = arith.constant 7 : index
    %c0_24 = arith.constant 0 : index
    %c0_25 = arith.constant 0 : index
    %37 = vector.load %arg4[%c7, %c0_24, %c0_25] : memref<9x8x8xbf16, #tpu.memory_space<vmem>>, vector<1x8x8xbf16>
    %38 = vector.shape_cast %37 : vector<1x8x8xbf16> to vector<8x8xbf16>
    %cst_26 = arith.constant dense<0.000000e+00> : vector<384x8xf32>
    %39 = tpu.matmul %36, %38, %cst_26 {dimension_numbers = #tpu.dot_dimension_numbers<[1], [0], [0], [1], [0, 0, 1, 1], [], []>} : vector<384x8xbf16>, vector<8x8xbf16>, vector<384x8xf32> -> vector<384x8xf32>
    %40 = arith.addf %35, %39 : vector<384x8xf32>
    %41 = vector.extract_strided_slice %1 {offsets = [50, 0], sizes = [384, 8], strides = [1, 1]} : vector<456x8xbf16> to vector<384x8xbf16>
    %c8 = arith.constant 8 : index
    %c0_27 = arith.constant 0 : index
    %c0_28 = arith.constant 0 : index
    %42 = vector.load %arg4[%c8, %c0_27, %c0_28] : memref<9x8x8xbf16, #tpu.memory_space<vmem>>, vector<1x8x8xbf16>
    %43 = vector.shape_cast %42 : vector<1x8x8xbf16> to vector<8x8xbf16>
    %cst_29 = arith.constant dense<0.000000e+00> : vector<384x8xf32>
    %44 = tpu.matmul %41, %43, %cst_29 {dimension_numbers = #tpu.dot_dimension_numbers<[1], [0], [0], [1], [0, 0, 1, 1], [], []>} : vector<384x8xbf16>, vector<8x8xbf16>, vector<384x8xf32> -> vector<384x8xf32>
    %45 = arith.addf %40, %44 : vector<384x8xf32>
    %c0_30 = arith.constant 0 : index
    %c0_31 = arith.constant 0 : index
    %46 = vector.load %arg5[%c0_30, %c0_31] : memref<1x8xf32, #tpu.memory_space<vmem>>, vector<1x8xf32>
    %47 = vector.broadcast %46 : vector<1x8xf32> to vector<384x8xf32>
    %48 = arith.addf %45, %47 : vector<384x8xf32>
    %cst_32 = arith.constant 0.000000e+00 : f32
    %49 = vector.broadcast %cst_32 : f32 to vector<384x8xf32>
    %50 = arith.maximumf %48, %49 : vector<384x8xf32>
    %51 = vector.shape_cast %50 : vector<384x8xf32> to vector<1x1x384x8xf32>
    %52 = arith.truncf %51 : vector<1x1x384x8xf32> to vector<1x1x384x8xbf16>
    %c0_33 = arith.constant 0 : index
    %c0_34 = arith.constant 0 : index
    %c0_35 = arith.constant 0 : index
    %c0_36 = arith.constant 0 : index
    %53 = vector.load %arg6[%c0_33, %c0_34, %c0_35, %c0_36] : memref<1x1x384x8xbf16, #tpu.memory_space<vmem>>, vector<1x1x384x8xbf16>
    tpu.vector_store %arg6[%c0_33, %c0_34, %c0_35, %c0_36], %52 {strides = array<i32>} : memref<1x1x384x8xbf16, #tpu.memory_space<vmem>>, vector<1x1x384x8xbf16>,
    return
  }
  func.func @transform_0(%arg0: i32, %arg1: i32, %arg2: i32) -> (i32, i32, i32, i32) {
    %c0_i32 = arith.constant 0 : i32
    %c0_i32_0 = arith.constant 0 : i32
    return %arg0, %arg1, %c0_i32, %arg2 : i32, i32, i32, i32
  }
  func.func @transform_1(%arg0: i32, %arg1: i32, %arg2: i32) -> (i32, i32, i32) {
    %c0_i32 = arith.constant 0 : i32
    %c0_i32_0 = arith.constant 0 : i32
    %c0_i32_1 = arith.constant 0 : i32
    return %c0_i32, %arg2, %c0_i32_0 : i32, i32, i32
  }
  func.func @transform_2(%arg0: i32, %arg1: i32, %arg2: i32) -> (i32, i32) {
    %c0_i32 = arith.constant 0 : i32
    %c0_i32_0 = arith.constant 0 : i32
    %c0_i32_1 = arith.constant 0 : i32
    return %c0_i32, %c0_i32_0 : i32, i32
  }
  func.func @transform_3(%arg0: i32, %arg1: i32, %arg2: i32) -> (i32, i32, i32, i32) {
    %c0_i32 = arith.constant 0 : i32
    %c0_i32_0 = arith.constant 0 : i32
    %c0_i32_1 = arith.constant 0 : i32
    return %arg0, %arg1, %c0_i32, %c0_i32_0 : i32, i32, i32, i32
  }
}

module attributes {stable_mosaic.version = 11 : i64} {
  func.func @_conv3x3_kernel(%arg0: i32, %arg1: i32, %arg2: i32, %arg3: memref<1x1x456x8xbf16, #tpu.memory_space<vmem>>, %arg4: memref<9x8x8xbf16, #tpu.memory_space<vmem>>, %arg5: memref<1x8xf32, #tpu.memory_space<vmem>>, %arg6: memref<1x1x384x8xf32, #tpu.memory_space<vmem>>) attributes {dimension_semantics = [#tpu.dimension_semantics<parallel>, #tpu.dimension_semantics<parallel>, #tpu.dimension_semantics<arbitrary>], iteration_bounds = array<i64: 2, 1, 1>, scalar_prefetch = 0 : i64, scratch_operands = 0 : i64, tpu.core_type = #tpu.core_type<tc>, window_params = [{transform_indices = @transform_0, window_bounds = array<i64: 1, 1, 456, 8>}, {transform_indices = @transform_1, window_bounds = array<i64: 9, 8, 8>}, {pipeline_mode = #tpu.pipeline_mode<synchronous>, transform_indices = @transform_2, window_bounds = array<i64: 1, 8>}, {transform_indices = @transform_3, window_bounds = array<i64: 1, 1, 384, 8>}]} {
    %c0 = arith.constant 0 : index
    %c0_0 = arith.constant 0 : index
    %c0_1 = arith.constant 0 : index
    %c0_2 = arith.constant 0 : index
    %0 = vector.load %arg3[%c0, %c0_0, %c0_1, %c0_2] : memref<1x1x456x8xbf16, #tpu.memory_space<vmem>>, vector<1x1x456x8xbf16>
    %1 = vector.shape_cast %0 : vector<1x1x456x8xbf16> to vector<456x8xbf16>
    %2 = vector.extract_strided_slice %1 {offsets = [0, 0], sizes = [384, 8], strides = [1, 1]} : vector<456x8xbf16> to vector<384x8xbf16>
    %c0_3 = arith.constant 0 : index
    %c0_4 = arith.constant 0 : index
    %c0_5 = arith.constant 0 : index
    %3 = vector.load %arg4[%c0_3, %c0_4, %c0_5] : memref<9x8x8xbf16, #tpu.memory_space<vmem>>, vector<1x8x8xbf16>
    %4 = vector.shape_cast %3 : vector<1x8x8xbf16> to vector<8x8xbf16>
    %cst = arith.constant dense<0.000000e+00> : vector<384x8xf32>
    %5 = tpu.matmul %2, %4, %cst {dimension_numbers = #tpu.dot_dimension_numbers<[1], [0], [0], [1], [0, 0, 1, 1], [], []>} : vector<384x8xbf16>, vector<8x8xbf16>, vector<384x8xf32> -> vector<384x8xf32>
    %6 = vector.extract_strided_slice %1 {offsets = [1, 0], sizes = [384, 8], strides = [1, 1]} : vector<456x8xbf16> to vector<384x8xbf16>
    %c1 = arith.constant 1 : index
    %c0_6 = arith.constant 0 : index
    %c0_7 = arith.constant 0 : index
    %7 = vector.load %arg4[%c1, %c0_6, %c0_7] : memref<9x8x8xbf16, #tpu.memory_space<vmem>>, vector<1x8x8xbf16>
    %8 = vector.shape_cast %7 : vector<1x8x8xbf16> to vector<8x8xbf16>
    %cst_8 = arith.constant dense<0.000000e+00> : vector<384x8xf32>
    %9 = tpu.matmul %6, %8, %cst_8 {dimension_numbers = #tpu.dot_dimension_numbers<[1], [0], [0], [1], [0, 0, 1, 1], [], []>} : vector<384x8xbf16>, vector<8x8xbf16>, vector<384x8xf32> -> vector<384x8xf32>
    %10 = arith.addf %5, %9 : vector<384x8xf32>
    %11 = vector.extract_strided_slice %1 {offsets = [2, 0], sizes = [384, 8], strides = [1, 1]} : vector<456x8xbf16> to vector<384x8xbf16>
    %c2 = arith.constant 2 : index
    %c0_9 = arith.constant 0 : index
    %c0_10 = arith.constant 0 : index
    %12 = vector.load %arg4[%c2, %c0_9, %c0_10] : memref<9x8x8xbf16, #tpu.memory_space<vmem>>, vector<1x8x8xbf16>
    %13 = vector.shape_cast %12 : vector<1x8x8xbf16> to vector<8x8xbf16>
    %cst_11 = arith.constant dense<0.000000e+00> : vector<384x8xf32>
    %14 = tpu.matmul %11, %13, %cst_11 {dimension_numbers = #tpu.dot_dimension_numbers<[1], [0], [0], [1], [0, 0, 1, 1], [], []>} : vector<384x8xbf16>, vector<8x8xbf16>, vector<384x8xf32> -> vector<384x8xf32>
    %15 = arith.addf %10, %14 : vector<384x8xf32>
    %16 = vector.extract_strided_slice %1 {offsets = [24, 0], sizes = [384, 8], strides = [1, 1]} : vector<456x8xbf16> to vector<384x8xbf16>
    %c3 = arith.constant 3 : index
    %c0_12 = arith.constant 0 : index
    %c0_13 = arith.constant 0 : index
    %17 = vector.load %arg4[%c3, %c0_12, %c0_13] : memref<9x8x8xbf16, #tpu.memory_space<vmem>>, vector<1x8x8xbf16>
    %18 = vector.shape_cast %17 : vector<1x8x8xbf16> to vector<8x8xbf16>
    %cst_14 = arith.constant dense<0.000000e+00> : vector<384x8xf32>
    %19 = tpu.matmul %16, %18, %cst_14 {dimension_numbers = #tpu.dot_dimension_numbers<[1], [0], [0], [1], [0, 0, 1, 1], [], []>} : vector<384x8xbf16>, vector<8x8xbf16>, vector<384x8xf32> -> vector<384x8xf32>
    %20 = arith.addf %15, %19 : vector<384x8xf32>
    %21 = vector.extract_strided_slice %1 {offsets = [25, 0], sizes = [384, 8], strides = [1, 1]} : vector<456x8xbf16> to vector<384x8xbf16>
    %c4 = arith.constant 4 : index
    %c0_15 = arith.constant 0 : index
    %c0_16 = arith.constant 0 : index
    %22 = vector.load %arg4[%c4, %c0_15, %c0_16] : memref<9x8x8xbf16, #tpu.memory_space<vmem>>, vector<1x8x8xbf16>
    %23 = vector.shape_cast %22 : vector<1x8x8xbf16> to vector<8x8xbf16>
    %cst_17 = arith.constant dense<0.000000e+00> : vector<384x8xf32>
    %24 = tpu.matmul %21, %23, %cst_17 {dimension_numbers = #tpu.dot_dimension_numbers<[1], [0], [0], [1], [0, 0, 1, 1], [], []>} : vector<384x8xbf16>, vector<8x8xbf16>, vector<384x8xf32> -> vector<384x8xf32>
    %25 = arith.addf %20, %24 : vector<384x8xf32>
    %26 = vector.extract_strided_slice %1 {offsets = [26, 0], sizes = [384, 8], strides = [1, 1]} : vector<456x8xbf16> to vector<384x8xbf16>
    %c5 = arith.constant 5 : index
    %c0_18 = arith.constant 0 : index
    %c0_19 = arith.constant 0 : index
    %27 = vector.load %arg4[%c5, %c0_18, %c0_19] : memref<9x8x8xbf16, #tpu.memory_space<vmem>>, vector<1x8x8xbf16>
    %28 = vector.shape_cast %27 : vector<1x8x8xbf16> to vector<8x8xbf16>
    %cst_20 = arith.constant dense<0.000000e+00> : vector<384x8xf32>
    %29 = tpu.matmul %26, %28, %cst_20 {dimension_numbers = #tpu.dot_dimension_numbers<[1], [0], [0], [1], [0, 0, 1, 1], [], []>} : vector<384x8xbf16>, vector<8x8xbf16>, vector<384x8xf32> -> vector<384x8xf32>
    %30 = arith.addf %25, %29 : vector<384x8xf32>
    %31 = vector.extract_strided_slice %1 {offsets = [48, 0], sizes = [384, 8], strides = [1, 1]} : vector<456x8xbf16> to vector<384x8xbf16>
    %c6 = arith.constant 6 : index
    %c0_21 = arith.constant 0 : index
    %c0_22 = arith.constant 0 : index
    %32 = vector.load %arg4[%c6, %c0_21, %c0_22] : memref<9x8x8xbf16, #tpu.memory_space<vmem>>, vector<1x8x8xbf16>
    %33 = vector.shape_cast %32 : vector<1x8x8xbf16> to vector<8x8xbf16>
    %cst_23 = arith.constant dense<0.000000e+00> : vector<384x8xf32>
    %34 = tpu.matmul %31, %33, %cst_23 {dimension_numbers = #tpu.dot_dimension_numbers<[1], [0], [0], [1], [0, 0, 1, 1], [], []>} : vector<384x8xbf16>, vector<8x8xbf16>, vector<384x8xf32> -> vector<384x8xf32>
    %35 = arith.addf %30, %34 : vector<384x8xf32>
    %36 = vector.extract_strided_slice %1 {offsets = [49, 0], sizes = [384, 8], strides = [1, 1]} : vector<456x8xbf16> to vector<384x8xbf16>
    %c7 = arith.constant 7 : index
    %c0_24 = arith.constant 0 : index
    %c0_25 = arith.constant 0 : index
    %37 = vector.load %arg4[%c7, %c0_24, %c0_25] : memref<9x8x8xbf16, #tpu.memory_space<vmem>>, vector<1x8x8xbf16>
    %38 = vector.shape_cast %37 : vector<1x8x8xbf16> to vector<8x8xbf16>
    %cst_26 = arith.constant dense<0.000000e+00> : vector<384x8xf32>
    %39 = tpu.matmul %36, %38, %cst_26 {dimension_numbers = #tpu.dot_dimension_numbers<[1], [0], [0], [1], [0, 0, 1, 1], [], []>} : vector<384x8xbf16>, vector<8x8xbf16>, vector<384x8xf32> -> vector<384x8xf32>
    %40 = arith.addf %35, %39 : vector<384x8xf32>
    %41 = vector.extract_strided_slice %1 {offsets = [50, 0], sizes = [384, 8], strides = [1, 1]} : vector<456x8xbf16> to vector<384x8xbf16>
    %c8 = arith.constant 8 : index
    %c0_27 = arith.constant 0 : index
    %c0_28 = arith.constant 0 : index
    %42 = vector.load %arg4[%c8, %c0_27, %c0_28] : memref<9x8x8xbf16, #tpu.memory_space<vmem>>, vector<1x8x8xbf16>
    %43 = vector.shape_cast %42 : vector<1x8x8xbf16> to vector<8x8xbf16>
    %cst_29 = arith.constant dense<0.000000e+00> : vector<384x8xf32>
    %44 = tpu.matmul %41, %43, %cst_29 {dimension_numbers = #tpu.dot_dimension_numbers<[1], [0], [0], [1], [0, 0, 1, 1], [], []>} : vector<384x8xbf16>, vector<8x8xbf16>, vector<384x8xf32> -> vector<384x8xf32>
    %45 = arith.addf %40, %44 : vector<384x8xf32>
    %c0_30 = arith.constant 0 : index
    %c0_31 = arith.constant 0 : index
    %46 = vector.load %arg5[%c0_30, %c0_31] : memref<1x8xf32, #tpu.memory_space<vmem>>, vector<1x8xf32>
    %47 = vector.broadcast %46 : vector<1x8xf32> to vector<384x8xf32>
    %48 = arith.addf %45, %47 : vector<384x8xf32>
    %cst_32 = arith.constant 0.000000e+00 : f32
    %49 = vector.broadcast %cst_32 : f32 to vector<384x8xf32>
    %50 = arith.maximumf %48, %49 : vector<384x8xf32>
    %51 = vector.shape_cast %50 : vector<384x8xf32> to vector<1x1x384x8xf32>
    %c0_33 = arith.constant 0 : index
    %c0_34 = arith.constant 0 : index
    %c0_35 = arith.constant 0 : index
    %c0_36 = arith.constant 0 : index
    %52 = vector.load %arg6[%c0_33, %c0_34, %c0_35, %c0_36] : memref<1x1x384x8xf32, #tpu.memory_space<vmem>>, vector<1x1x384x8xf32>
    tpu.vector_store %arg6[%c0_33, %c0_34, %c0_35, %c0_36], %51 {strides = array<i32>} : memref<1x1x384x8xf32, #tpu.memory_space<vmem>>, vector<1x1x384x8xf32>,
    return
  }
  func.func @transform_0(%arg0: i32, %arg1: i32, %arg2: i32) -> (i32, i32, i32, i32) {
    %c0_i32 = arith.constant 0 : i32
    %c0_i32_0 = arith.constant 0 : i32
    return %arg0, %arg1, %c0_i32, %arg2 : i32, i32, i32, i32
  }
  func.func @transform_1(%arg0: i32, %arg1: i32, %arg2: i32) -> (i32, i32, i32) {
    %c0_i32 = arith.constant 0 : i32
    %c0_i32_0 = arith.constant 0 : i32
    %c0_i32_1 = arith.constant 0 : i32
    return %c0_i32, %arg2, %c0_i32_0 : i32, i32, i32
  }
  func.func @transform_2(%arg0: i32, %arg1: i32, %arg2: i32) -> (i32, i32) {
    %c0_i32 = arith.constant 0 : i32
    %c0_i32_0 = arith.constant 0 : i32
    %c0_i32_1 = arith.constant 0 : i32
    return %c0_i32, %c0_i32_0 : i32, i32
  }
  func.func @transform_3(%arg0: i32, %arg1: i32, %arg2: i32) -> (i32, i32, i32, i32) {
    %c0_i32 = arith.constant 0 : i32
    %c0_i32_0 = arith.constant 0 : i32
    %c0_i32_1 = arith.constant 0 : i32
    return %arg0, %arg1, %c0_i32, %c0_i32_0 : i32, i32, i32, i32
  }
}

</mosaic_0001>

<llo_original>
// kernel: up_cat_forward.3
$region0: #{up_cat_forward.3}
  #allocation0 [shape = 'u32[]', space=smem, size = 0x4, offset = 0x4, fixed_abs, tag = 'smem constant byte address 0x4 - core index']
  #allocation1 [shape = 'u32[144,128]{1,0:T(1,128)}', space=vmem, size = 0x12000, scoped, tag = 'internal scratch']
  %s0 = inlined_call_operand.vmem [shape: bf16[2,1,456,8], index: 0, kind: input, shape index: {}]
  %s1 = inlined_call_operand.vmem [shape: bf16[9,8,8], index: 1, kind: input, shape index: {}]
  %s2 = inlined_call_operand.vmem [shape: f32[1,8], index: 2, kind: input, shape index: {}]
  %s3 = inlined_call_operand.vmem [shape: f32[2,1,384,8], index: 3, kind: output, shape index: {}]
  %s4 = sld [smem:[#allocation0]]
  $region45: #{up_cat_forward.3} parent=0
    _
  %s6 = ssub.s32 1, %s4
  %s7 = scalar_select 0, %s6, %s4
  loop: start=0, step=1, limit=4
  $region2: #{up_cat_forward.3} parent=0 // loop_pre_header
    _
  $region3: #{up_cat_forward.3} parent=0 // loop_header
    %s9 = sphi 0, %s13
    %p10 = scmp.ge.s32.totalorder %s9, 4
    %s16 = sphi 0, %s35
    %s17 = sphi 0, %s31
    %s18 = sphi 0, %s27
    %s19 = sphi 0, %s16
    %s20 = sphi 0, %s17
    %s21 = sphi 0, %s18
    %s22 = sphi 0, %s19
    %s23 = sphi 0, %s20
    %s24 = sphi 0, %s21
    %s42 = sphi 0, %s44
    %s45 = sphi 0, %s42
    %s46 = sphi 0, %s45
    %s62 = sphi 0, %s46
    %s68 = sphi 0, %s70
    %s71 = sphi 0, %s68
    %s72 = sphi 0, %s71
    %s88 = sphi 0, %s72
    %s92 = sphi 0, %s92
    %s94 = sphi 0, %s92
    %s95 = sphi 0, %s94
    %s109 = sphi 0, %s95
    %s117 = sphi 0, %s119
    %s120 = sphi 0, %s117
    %s121 = sphi 0, %s120
    %s137 = sphi 0, %s121
  $region4: #{up_cat_forward.3} parent=0 // loop_header_branch
    %12 = sbr.rel (%p10) target = $region8
  $region5: #{up_cat_forward.3} parent=0 // loop_body
    %s14 = ssub.s32 %s9, 1
    %s15 = ssub.s32 %s9, 2
    %s25 = sadd.s32 1, %s18
    %p26 = scmp.ge.s32.totalorder %s25, 1
    %s27 = scalar_select %p26, 0, %s25
    %s28 = sadd.s32 1, %s17
    %s29 = scalar_select %p26, %s28, %s17
    %p30 = scmp.ge.s32.totalorder %s29, 1
    %s31 = scalar_select %p30, 0, %s29
    %s32 = sadd.s32 1, %s16
    %s33 = scalar_select %p30, %s32, %s16
    %p34 = scmp.ge.s32.totalorder %s33, 2
    %s35 = scalar_select %p34, 0, %s33
    %s36 = ssub.s32 %s16, %s35
    %s37 = ssub.s32 %s17, %s31
    %s38 = sor.u32 %s36, %s37
    %s39 = ssub.s32 %s18, %s27
    %s40 = sor.u32 %s38, %s39
    %p41 = scmp.eq.s32.totalorder %s40, 0
    %s43 = sadd.s32 %s42, 1
    %s44 = scalar_select %p41, %s42, %s43
    %p47 = pneg %p41
    %p48 = scmp.eq.s32.totalorder %s9, 1
    %p49 = por %p47, %p48
    %p50 = scmp.ne.s32.totalorder %s42, %s45
    %p51 = scmp.eq.s32.totalorder %s9, 0
    %p52 = por %p50, %p51
    %p53 = scmp.ne.s32.totalorder %s42, %s45
    %p54 = scmp.eq.s32.totalorder %s14, 1
    %p55 = por %p53, %p54
    %p56 = scmp.ne.s32.totalorder %s45, %s46
    %p57 = scmp.eq.s32.totalorder %s14, 0
    %p58 = por %p56, %p57
    %p59 = scmp.ne.s32.totalorder %s45, %s46
    %p60 = scmp.eq.s32.totalorder %s15, 1
    %p61 = por %p59, %p60
    %p63 = scmp.ne.s32.totalorder %s46, %s62
    %p64 = scmp.eq.s32.totalorder %s15, 0
    %p65 = por %p63, %p64
    %s66 = ssub.s32 %s18, %s27
    %p67 = scmp.eq.s32.totalorder %s66, 0
    %s69 = sadd.s32 %s68, 1
    %s70 = scalar_select %p67, %s68, %s69
    %p73 = pneg %p67
    %p74 = scmp.eq.s32.totalorder %s9, 1
    %p75 = por %p73, %p74
    %p76 = scmp.ne.s32.totalorder %s68, %s71
    %p77 = scmp.eq.s32.totalorder %s9, 0
    %p78 = por %p76, %p77
    %p79 = scmp.ne.s32.totalorder %s68, %s71
    %p80 = scmp.eq.s32.totalorder %s14, 1
    %p81 = por %p79, %p80
    %p82 = scmp.ne.s32.totalorder %s71, %s72
    %p83 = scmp.eq.s32.totalorder %s14, 0
    %p84 = por %p82, %p83
    %p85 = scmp.ne.s32.totalorder %s71, %s72
    %p86 = scmp.eq.s32.totalorder %s15, 1
    %p87 = por %p85, %p86
    %p89 = scmp.ne.s32.totalorder %s72, %s88
    %p90 = scmp.eq.s32.totalorder %s15, 0
    %p91 = por %p89, %p90
    %s93 = sadd.s32 %s92, 1
    %p96 = scmp.eq.s32.totalorder %s9, 1
    %p97 = scmp.ne.s32.totalorder %s92, %s94
    %p98 = scmp.eq.s32.totalorder %s9, 0
    %p99 = por %p97, %p98
    %p100 = scmp.ne.s32.totalorder %s92, %s94
    %p101 = scmp.eq.s32.totalorder %s14, 1
    %p102 = por %p100, %p101
    %p103 = scmp.ne.s32.totalorder %s94, %s95
    %p104 = scmp.eq.s32.totalorder %s14, 0
    %p105 = por %p103, %p104
    %p106 = scmp.ne.s32.totalorder %s94, %s95
    %p107 = scmp.eq.s32.totalorder %s15, 1
    %p108 = por %p106, %p107
    %p110 = scmp.ne.s32.totalorder %s95, %s109
    %p111 = scmp.eq.s32.totalorder %s15, 0
    %p112 = por %p110, %p111
    %s113 = ssub.s32 %s16, %s35
    %s114 = ssub.s32 %s17, %s31
    %s115 = sor.u32 %s113, %s114
    %p116 = scmp.eq.s32.totalorder %s115, 0
    %s118 = sadd.s32 %s117, 1
    %s119 = scalar_select %p116, %s117, %s118
    %p122 = pneg %p116
    %p123 = scmp.eq.s32.totalorder %s9, 1
    %p124 = por %p122, %p123
    %p125 = scmp.ne.s32.totalorder %s117, %s120
    %p126 = scmp.eq.s32.totalorder %s9, 0
    %p127 = por %p125, %p126
    %p128 = scmp.ne.s32.totalorder %s117, %s120
    %p129 = scmp.eq.s32.totalorder %s14, 1
    %p130 = por %p128, %p129
    %p131 = scmp.ne.s32.totalorder %s120, %s121
    %p132 = scmp.eq.s32.totalorder %s14, 0
    %p133 = por %p131, %p132
    %p134 = scmp.ne.s32.totalorder %s120, %s121
    %p135 = scmp.eq.s32.totalorder %s15, 1
    %p136 = por %p134, %p135
    %p138 = scmp.ne.s32.totalorder %s121, %s137
    %p139 = scmp.eq.s32.totalorder %s15, 0
    %p140 = por %p138, %p139
    %p141 = scmp.le.s32.totalorder 1, %s9
    %p142 = scmp.lt.s32.totalorder %s9, 3
    %p143 = pnand %p141, %p142
    %p144 = pneg %p143
    // Predicated region
    $region9: #{up_cat_forward.3} parent=5 // pred_check
      _
    $region10: #{up_cat_forward.3} parent=5 // pred_check_branch
      %146 = sbr.rel (%p143) target = $region12
    $region11: #{up_cat_forward.3} parent=5 // pred_region
      %s147 = ssub.s32 %s9, 1
      // Predicated region
      $region13: #{up_cat_forward.3} parent=11 // pred_check
        %p148 = pneg %p84
      $region14: #{up_cat_forward.3} parent=11 // pred_check_branch
        %150 = sbr.rel (%p148) target = $region16
      $region15: #{up_cat_forward.3} parent=11 // pred_region
        %p151 = scmp.lt.s32.totalorder %s21, 0
        %s152 = scalar_select %p151, %s21, 0
        %s153 = smul.addr %s152, 4
        %s154 = scalar_lea.vmem %s1, %s153
      $region16: #{up_cat_forward.3} parent=11 // pred_fallthru
        _
      // Predicated region
      $region17: #{up_cat_forward.3} parent=11 // pred_check
        %p155 = pneg %p105
      $region18: #{up_cat_forward.3} parent=11 // pred_check_branch
        %157 = sbr.rel (%p155) target = $region20
      $region19: #{up_cat_forward.3} parent=11 // pred_region
        _
      $region20: #{up_cat_forward.3} parent=11 // pred_fallthru
        _
    $region12: #{up_cat_forward.3} parent=5 // pred_fallthru
      _
    %p158 = scmp.lt.s32.totalorder %s9, 2
    // Predicated region
    $region21: #{up_cat_forward.3} parent=5 // pred_check
      %p159 = pneg %p158
    $region22: #{up_cat_forward.3} parent=5 // pred_check_branch
      %161 = sbr.rel (%p159) target = $region24
    $region23: #{up_cat_forward.3} parent=5 // pred_region
      // Predicated region
      $region25: #{up_cat_forward.3} parent=23 // pred_check
        %p162 = pneg %p52
      $region26: #{up_cat_forward.3} parent=23 // pred_check_branch
        %164 = sbr.rel (%p162) target = $region28
      $region27: #{up_cat_forward.3} parent=23 // pred_region
        %p165 = scmp.lt.s32.totalorder %s16, 1
        %s166 = scalar_select %p165, %s16, 1
        %p167 = scmp.lt.s32.totalorder %s17, 0
        %s168 = scalar_select %p167, %s17, 0
        %p169 = scmp.lt.s32.totalorder %s18, 0
        %s170 = scalar_select %p169, %s18, 0
        %s171 = smul.addr %s168, 57
        %s172 = sadd.s32 %s170, %s171
        %s173 = smul.addr %s166, 57
        %s174 = sadd.s32 %s172, %s173
        %s175 = smul.addr %s174, 4
        %s176 = scalar_lea.vmem %s0, %s175
      $region28: #{up_cat_forward.3} parent=23 // pred_fallthru
        _
    $region24: #{up_cat_forward.3} parent=5 // pred_fallthru
      _
    %p177 = scmp.le.s32.totalorder 1, %s9
    %p178 = scmp.lt.s32.totalorder %s9, 3
    %p179 = pnand %p177, %p178
    %p180 = pneg %p179
    // Predicated region
    $region29: #{up_cat_forward.3} parent=5 // pred_check
      _
    $region30: #{up_cat_forward.3} parent=5 // pred_check_branch
      %182 = sbr.rel (%p179) target = $region32
    $region31: #{up_cat_forward.3} parent=5 // pred_region
      %s183 = ssub.s32 %s9, 1
      %p184 = scmp.lt.s32.totalorder %s19, 1
      %s185 = scalar_select %p184, %s19, 1
      %p186 = scmp.lt.s32.totalorder %s20, 0
      %s187 = scalar_select %p186, %s20, 0
      %p188 = scmp.lt.s32.totalorder %s21, 0
      %s189 = scalar_select %p188, %s21, 0
      %s190 = smul.addr %s187, 57
      %s191 = sadd.s32 %s189, %s190
      %s192 = smul.addr %s185, 57
      %s193 = sadd.s32 %s191, %s192
      %s194 = smul.addr %s193, 4
      %s195 = scalar_lea.vmem %s0, %s194
      %p196 = pneg %p58
      %p197 = pneg %p55
      %p198 = scmp.lt.s32.totalorder %s21, 0
      %s199 = scalar_select %p198, %s21, 0
      %s200 = smul.addr %s199, 4
      %s201 = scalar_lea.vmem %s1, %s200
      %p202 = pneg %p84
      %p203 = pneg %p81
      %p204 = pneg %p105
      %p205 = pneg %p102
      %p206 = pneg %p133
      %p207 = pneg %p130
      %p208 = scmp.lt.s32.totalorder %s19, 1
      %s209 = scalar_select %p208, %s19, 1
      %p210 = scmp.lt.s32.totalorder %s20, 0
      %s211 = scalar_select %p210, %s20, 0
      %s212 = smul.addr %s211, 48
      %s213 = smul.addr %s209, 48
      %s214 = sadd.s32 %s212, %s213
      %s215 = smul.addr %s214, 8
      %s216 = scalar_lea.vmem %s3, %s215
      %p217 = scmp.lt.s32.totalorder %s19, 1
      %s218 = scalar_select %p217, %s19, 1
      %p219 = scmp.lt.s32.totalorder %s20, 0
      %s220 = scalar_select %p219, %s20, 0
      %p221 = scmp.lt.s32.totalorder %s21, 0
      %s222 = scalar_select %p221, %s21, 0
      %s223 = smul.addr %s220, 57
      %s224 = sadd.s32 %s222, %s223
      %s225 = smul.addr %s218, 57
      %s226 = sadd.s32 %s224, %s225
      %s227 = smul.addr %s226, 4
      %s228 = scalar_lea.vmem %s0, %s227
      %p229 = scmp.lt.s32.totalorder %s21, 0
      %s230 = scalar_select %p229, %s21, 0
      %s231 = smul.addr %s230, 4
      %s232 = scalar_lea.vmem %s1, %s231
      %p233 = scmp.lt.s32.totalorder %s19, 1
      %s234 = scalar_select %p233, %s19, 1
      %p235 = scmp.lt.s32.totalorder %s20, 0
      %s236 = scalar_select %p235, %s20, 0
      %s237 = smul.addr %s236, 48
      %s238 = smul.addr %s234, 48
      %s239 = sadd.s32 %s237, %s238
      %s240 = smul.addr %s239, 8
      %s241 = scalar_lea.vmem %s3, %s240
      %v243 = vld [vmem:[%s228] sm:$0xf]
      %v244 = vld [vmem:[%s228 + $0x4] sm:$0xf]
      %v245 = vld [vmem:[%s228 + $0x8] sm:$0xf]
      %v246 = vld [vmem:[%s228 + $0xc] sm:$0xf]
      %v247 = vld [vmem:[%s228 + $0x10] sm:$0xf]
      %v248 = vld [vmem:[%s228 + $0x14] sm:$0xf]
      %v249 = vld [vmem:[%s228 + $0x18] sm:$0xf]
      %v250 = vld [vmem:[%s228 + $0x1c] sm:$0xf]
      %v251 = vld [vmem:[%s228 + $0x20] sm:$0xf]
      %v252 = vld [vmem:[%s228 + $0x24] sm:$0xf]
      %v253 = vld [vmem:[%s228 + $0x28] sm:$0xf]
      %v254 = vld [vmem:[%s228 + $0x2c] sm:$0xf]
      %v255 = vld [vmem:[%s228 + $0x30] sm:$0xf]
      %v256 = vld [vmem:[%s228 + $0x34] sm:$0xf]
      %v257 = vld [vmem:[%s228 + $0x38] sm:$0xf]
      %v258 = vld [vmem:[%s228 + $0x3c] sm:$0xf]
      %v259 = vld [vmem:[%s228 + $0x40] sm:$0xf]
      %v260 = vld [vmem:[%s228 + $0x44] sm:$0xf]
      %v261 = vld [vmem:[%s228 + $0x48] sm:$0xf]
      %v262 = vld [vmem:[%s228 + $0x4c] sm:$0xf]
      %v263 = vld [vmem:[%s228 + $0x50] sm:$0xf]
      %v264 = vld [vmem:[%s228 + $0x54] sm:$0xf]
      %v265 = vld [vmem:[%s228 + $0x58] sm:$0xf]
      %v266 = vld [vmem:[%s228 + $0x5c] sm:$0xf]
      %v267 = vld [vmem:[%s228 + $0x60] sm:$0xf]
      %v268 = vld [vmem:[%s228 + $0x64] sm:$0xf]
      %v269 = vld [vmem:[%s228 + $0x68] sm:$0xf]
      %v270 = vld [vmem:[%s228 + $0x6c] sm:$0xf]
      %v271 = vld [vmem:[%s228 + $0x70] sm:$0xf]
      %v272 = vld [vmem:[%s228 + $0x74] sm:$0xf]
      %v273 = vld [vmem:[%s228 + $0x78] sm:$0xf]
      %v274 = vld [vmem:[%s228 + $0x7c] sm:$0xf]
      %v275 = vld [vmem:[%s228 + $0x80] sm:$0xf]
      %v276 = vld [vmem:[%s228 + $0x84] sm:$0xf]
      %v277 = vld [vmem:[%s228 + $0x88] sm:$0xf]
      %v278 = vld [vmem:[%s228 + $0x8c] sm:$0xf]
      %v279 = vld [vmem:[%s228 + $0x90] sm:$0xf]
      %v280 = vld [vmem:[%s228 + $0x94] sm:$0xf]
      %v281 = vld [vmem:[%s228 + $0x98] sm:$0xf]
      %v282 = vld [vmem:[%s228 + $0x9c] sm:$0xf]
      %v283 = vld [vmem:[%s228 + $0xa0] sm:$0xf]
      %v284 = vld [vmem:[%s228 + $0xa4] sm:$0xf]
      %v285 = vld [vmem:[%s228 + $0xa8] sm:$0xf]
      %v286 = vld [vmem:[%s228 + $0xac] sm:$0xf]
      %v287 = vld [vmem:[%s228 + $0xb0] sm:$0xf]
      %v288 = vld [vmem:[%s228 + $0xb4] sm:$0xf]
      %v289 = vld [vmem:[%s228 + $0xb8] sm:$0xf]
      %v290 = vld [vmem:[%s228 + $0xbc] sm:$0xf]
      %v291 = vld [vmem:[%s228 + $0xc0] sm:$0xf]
      %v292 = vld [vmem:[%s228 + $0xc4] sm:$0xf]
      %v293 = vld [vmem:[%s228 + $0xc8] sm:$0xf]
      %v294 = vld [vmem:[%s228 + $0xcc] sm:$0xf]
      %v295 = vld [vmem:[%s228 + $0xd0] sm:$0xf]
      %v296 = vld [vmem:[%s228 + $0xd4] sm:$0xf]
      %v297 = vld [vmem:[%s228 + $0xd8] sm:$0xf]
      %v298 = vld [vmem:[%s232] sm:$0xf]
      %s299 = scalar_lea.vmem %s232, 4
      %v300 = vld [vmem:[%s299] sm:$0xf]
      %v350 = vunpack.c.l.b16 %v243
      %v351 = vunpack.c.l.b16 %v244
      %v352 = vunpack.c.l.b16 %v245
      %v353 = vunpack.c.l.b16 %v246
      %v354 = vunpack.c.l.b16 %v247
      %v355 = vunpack.c.l.b16 %v248
      %v356 = vunpack.c.l.b16 %v249
      %v357 = vunpack.c.l.b16 %v250
      %v358 = vunpack.c.l.b16 %v251
      %v359 = vunpack.c.l.b16 %v252
      %v360 = vunpack.c.l.b16 %v253
      %v361 = vunpack.c.l.b16 %v254
      %v362 = vunpack.c.l.b16 %v255
      %v363 = vunpack.c.l.b16 %v256
      %v364 = vunpack.c.l.b16 %v257
      %v365 = vunpack.c.l.b16 %v258
      %v366 = vunpack.c.l.b16 %v259
      %v367 = vunpack.c.l.b16 %v260
      %v368 = vunpack.c.l.b16 %v261
      %v369 = vunpack.c.l.b16 %v262
      %v370 = vunpack.c.l.b16 %v263
      %v371 = vunpack.c.l.b16 %v264
      %v372 = vunpack.c.l.b16 %v265
      %v373 = vunpack.c.l.b16 %v266
      %v374 = vunpack.c.l.b16 %v267
      %v375 = vunpack.c.l.b16 %v268
      %v376 = vunpack.c.l.b16 %v269
      %v377 = vunpack.c.l.b16 %v270
      %v378 = vunpack.c.l.b16 %v271
      %v379 = vunpack.c.l.b16 %v272
      %v380 = vunpack.c.l.b16 %v273
      %v381 = vunpack.c.l.b16 %v274
      %v382 = vunpack.c.l.b16 %v275
      %v383 = vunpack.c.l.b16 %v276
      %v384 = vunpack.c.l.b16 %v277
      %v385 = vunpack.c.l.b16 %v278
      %v386 = vunpack.c.l.b16 %v279
      %v387 = vunpack.c.l.b16 %v280
      %v388 = vunpack.c.l.b16 %v281
      %v389 = vunpack.c.l.b16 %v282
      %v390 = vunpack.c.l.b16 %v283
      %v391 = vunpack.c.l.b16 %v284
      %v392 = vunpack.c.l.b16 %v285
      %v393 = vunpack.c.l.b16 %v286
      %v394 = vunpack.c.l.b16 %v287
      %v395 = vunpack.c.l.b16 %v288
      %v396 = vunpack.c.l.b16 %v289
      %v397 = vunpack.c.l.b16 %v290
      %v398 = vunpack.c.l.b16 %v291
      %v399 = vpack.c.b16 %v351, %v350
      %v400 = vpack.c.b16 %v353, %v352
      %v401 = vpack.c.b16 %v355, %v354
      %v402 = vpack.c.b16 %v357, %v356
      %v403 = vpack.c.b16 %v359, %v358
      %v404 = vpack.c.b16 %v361, %v360
      %v405 = vpack.c.b16 %v363, %v362
      %v406 = vpack.c.b16 %v365, %v364
      %v407 = vpack.c.b16 %v367, %v366
      %v408 = vpack.c.b16 %v369, %v368
      %v409 = vpack.c.b16 %v371, %v370
      %v410 = vpack.c.b16 %v373, %v372
      %v411 = vpack.c.b16 %v375, %v374
      %v412 = vpack.c.b16 %v377, %v376
      %v413 = vpack.c.b16 %v379, %v378
      %v414 = vpack.c.b16 %v381, %v380
      %v415 = vpack.c.b16 %v383, %v382
      %v416 = vpack.c.b16 %v385, %v384
      %v417 = vpack.c.b16 %v387, %v386
      %v418 = vpack.c.b16 %v389, %v388
      %v419 = vpack.c.b16 %v391, %v390
      %v420 = vpack.c.b16 %v393, %v392
      %v421 = vpack.c.b16 %v395, %v394
      %v422 = vpack.c.b16 %v397, %v396
      %v423 = vpack.c.b16 %v398, %v398
      %vm424 = vsmask.f32 7424
      %v426 = vshrl.u32 %v399, 16
      %v428 = vshll.u32 %v399, 16
      %v430 = vrot.slane %v428, 1
      %v431 = vor.u32 %v426, %v430
      %v433 = vshll.u32 %v400, 16
      %v435 = vrot.slane %v433, 1
      %v436 = vsel %vm424, %v431, %v435
      %v437 = vshrl.u32 %v400, 16
      %v439 = vor.u32 %v437, %v435
      %v441 = vshll.u32 %v401, 16
      %v443 = vrot.slane %v441, 1
      %v444 = vsel %vm424, %v439, %v443
      %v445 = vshrl.u32 %v401, 16
      %v447 = vor.u32 %v445, %v443
      %v449 = vshll.u32 %v402, 16
      %v451 = vrot.slane %v449, 1
      %v452 = vsel %vm424, %v447, %v451
      %v453 = vshrl.u32 %v402, 16
      %v455 = vor.u32 %v453, %v451
      %v457 = vshll.u32 %v403, 16
      %v459 = vrot.slane %v457, 1
      %v460 = vsel %vm424, %v455, %v459
      %v461 = vshrl.u32 %v403, 16
      %v463 = vor.u32 %v461, %v459
      %v465 = vshll.u32 %v404, 16
      %v467 = vrot.slane %v465, 1
      %v468 = vsel %vm424, %v463, %v467
      %v469 = vshrl.u32 %v404, 16
      %v471 = vor.u32 %v469, %v467
      %v473 = vshll.u32 %v405, 16
      %v475 = vrot.slane %v473, 1
      %v476 = vsel %vm424, %v471, %v475
      %v477 = vshrl.u32 %v405, 16
      %v479 = vor.u32 %v477, %v475
      %v481 = vshll.u32 %v406, 16
      %v483 = vrot.slane %v481, 1
      %v484 = vsel %vm424, %v479, %v483
      %v485 = vshrl.u32 %v406, 16
      %v487 = vor.u32 %v485, %v483
      %v489 = vshll.u32 %v407, 16
      %v491 = vrot.slane %v489, 1
      %v492 = vsel %vm424, %v487, %v491
      %v493 = vshrl.u32 %v407, 16
      %v495 = vor.u32 %v493, %v491
      %v497 = vshll.u32 %v408, 16
      %v499 = vrot.slane %v497, 1
      %v500 = vsel %vm424, %v495, %v499
      %v501 = vshrl.u32 %v408, 16
      %v503 = vor.u32 %v501, %v499
      %v505 = vshll.u32 %v409, 16
      %v507 = vrot.slane %v505, 1
      %v508 = vsel %vm424, %v503, %v507
      %v509 = vshrl.u32 %v409, 16
      %v511 = vor.u32 %v509, %v507
      %v513 = vshll.u32 %v410, 16
      %v515 = vrot.slane %v513, 1
      %v516 = vsel %vm424, %v511, %v515
      %v517 = vshrl.u32 %v410, 16
      %v519 = vor.u32 %v517, %v515
      %v521 = vshll.u32 %v411, 16
      %v523 = vrot.slane %v521, 1
      %v524 = vsel %vm424, %v519, %v523
      %v525 = vshrl.u32 %v411, 16
      %v527 = vor.u32 %v525, %v523
      %v529 = vshll.u32 %v412, 16
      %v531 = vrot.slane %v529, 1
      %v532 = vsel %vm424, %v527, %v531
      %v533 = vshrl.u32 %v412, 16
      %v535 = vor.u32 %v533, %v531
      %v537 = vshll.u32 %v413, 16
      %v539 = vrot.slane %v537, 1
      %v540 = vsel %vm424, %v535, %v539
      %v541 = vshrl.u32 %v413, 16
      %v543 = vor.u32 %v541, %v539
      %v545 = vshll.u32 %v414, 16
      %v547 = vrot.slane %v545, 1
      %v548 = vsel %vm424, %v543, %v547
      %v549 = vshrl.u32 %v414, 16
      %v551 = vor.u32 %v549, %v547
      %v553 = vshll.u32 %v415, 16
      %v555 = vrot.slane %v553, 1
      %v556 = vsel %vm424, %v551, %v555
      %v557 = vshrl.u32 %v415, 16
      %v559 = vor.u32 %v557, %v555
      %v561 = vshll.u32 %v416, 16
      %v563 = vrot.slane %v561, 1
      %v564 = vsel %vm424, %v559, %v563
      %v565 = vshrl.u32 %v416, 16
      %v567 = vor.u32 %v565, %v563
      %v569 = vshll.u32 %v417, 16
      %v571 = vrot.slane %v569, 1
      %v572 = vsel %vm424, %v567, %v571
      %v573 = vshrl.u32 %v417, 16
      %v575 = vor.u32 %v573, %v571
      %v577 = vshll.u32 %v418, 16
      %v579 = vrot.slane %v577, 1
      %v580 = vsel %vm424, %v575, %v579
      %v581 = vshrl.u32 %v418, 16
      %v583 = vor.u32 %v581, %v579
      %v585 = vshll.u32 %v419, 16
      %v587 = vrot.slane %v585, 1
      %v588 = vsel %vm424, %v583, %v587
      %v589 = vshrl.u32 %v419, 16
      %v591 = vor.u32 %v589, %v587
      %v593 = vshll.u32 %v420, 16
      %v595 = vrot.slane %v593, 1
      %v596 = vsel %vm424, %v591, %v595
      %v597 = vshrl.u32 %v420, 16
      %v599 = vor.u32 %v597, %v595
      %v601 = vshll.u32 %v421, 16
      %v603 = vrot.slane %v601, 1
      %v604 = vsel %vm424, %v599, %v603
      %v605 = vshrl.u32 %v421, 16
      %v607 = vor.u32 %v605, %v603
      %v609 = vshll.u32 %v422, 16
      %v611 = vrot.slane %v609, 1
      %v612 = vsel %vm424, %v607, %v611
      %v613 = vshrl.u32 %v422, 16
      %v615 = vor.u32 %v613, %v611
      %v617 = vshll.u32 %v423, 16
      %v619 = vrot.slane %v617, 1
      %v620 = vsel %vm424, %v615, %v619
      %vm621 = vcmask 64512
      %v623 = vsel %vm621, %v436, 0
      %v626 = vsel %vm621, %v444, 0
      %v629 = vsel %vm621, %v452, 0
      %v632 = vsel %vm621, %v460, 0
      %v635 = vsel %vm621, %v468, 0
      %v638 = vsel %vm621, %v476, 0
      %v641 = vsel %vm621, %v484, 0
      %v644 = vsel %vm621, %v492, 0
      %v647 = vsel %vm621, %v500, 0
      %v650 = vsel %vm621, %v508, 0
      %v653 = vsel %vm621, %v516, 0
      %v656 = vsel %vm621, %v524, 0
      %v659 = vsel %vm621, %v532, 0
      %v662 = vsel %vm621, %v540, 0
      %v665 = vsel %vm621, %v548, 0
      %v668 = vsel %vm621, %v556, 0
      %v671 = vsel %vm621, %v564, 0
      %v674 = vsel %vm621, %v572, 0
      %v677 = vsel %vm621, %v580, 0
      %v680 = vsel %vm621, %v588, 0
      %v683 = vsel %vm621, %v596, 0
      %v686 = vsel %vm621, %v604, 0
      %v689 = vsel %vm621, %v612, 0
      %v692 = vsel %vm621, %v620, 0
      %vm694 = vcmask 1043456
      %v696 = vsel %vm694, %v300, 0
      %698 = vmatprep.subr.bf16.mxu0 0
      %699 = vmatpush1.bf16.msra.mxu0 %v696
      %700 = vmatprep.subr.bf16.mxu0 0
      %701 = vmatpush1.bf16.msra.mxu0 0
      %702 = vmatprep.subr.bf16.mxu0 0
      %703 = vmatpush1.bf16.msra.mxu0 0
      %704 = vmatprep.subr.bf16.mxu0 0
      %705 = vmatpush1.bf16.msra.mxu0 0
      %706 = vmatprep.subr.bf16.mxu0 0
      %707 = vmatpush1.bf16.msra.mxu0 0
      %708 = vmatprep.subr.bf16.mxu0 0
      %709 = vmatpush1.bf16.msra.mxu0 0
      %710 = vmatprep.subr.bf16.mxu0 0
      %711 = vmatpush1.bf16.msra.mxu0 0
      %712 = vmatprep.subr.bf16.mxu0 0
      %713 = vmatpush1.bf16.msra.mxu0 0
      %714 = vmatprep.subr.bf16.mxu0 0
      %715 = vmatpush1.bf16.msra.mxu0 0
      %716 = vmatprep.subr.bf16.mxu0 0
      %717 = vmatpush1.bf16.msra.mxu0 0
      %718 = vmatprep.subr.bf16.mxu0 0
      %719 = vmatpush1.bf16.msra.mxu0 0
      %720 = vmatprep.subr.bf16.mxu0 0
      %721 = vmatpush1.bf16.msra.mxu0 0
      %722 = vmatprep.subr.bf16.mxu0 0
      %723 = vmatpush1.bf16.msra.mxu0 0
      %724 = vmatprep.subr.bf16.mxu0 0
      %725 = vmatpush1.bf16.msra.mxu0 0
      %726 = vmatprep.subr.bf16.mxu0 0
      %727 = vmatpush1.bf16.msra.mxu0 0
      %728 = vmatprep.subr.bf16.mxu0 0
      %729 = vmatpush1.bf16.msra.mxu0 0
      %730 = vmatprep.mubr.bf16.mxu0 0
      %731 = vmatmul.mubr.bf16.gmra.mrb[0].mxu0 %v623
      %v732 = vpop.f32.mrb[0].mxu0
      %v733 = vadd.f32 0.0, %v732
      %v734 = vpop.f32.mrb[0].mxu0
      %v735 = vpop.f32.mrb[0].mxu0
      %v736 = vadd.f32 0.0, %v735
      %v737 = vpop.f32.mrb[0].mxu0
      %738 = vmatprep.mubr.bf16.mxu0 0
      %739 = vmatmul.mubr.bf16.gmra.mrb[0].mxu0 %v626
      %v740 = vpop.f32.mrb[0].mxu0
      %v741 = vadd.f32 0.0, %v740
      %v742 = vpop.f32.mrb[0].mxu0
      %v743 = vpop.f32.mrb[0].mxu0
      %v744 = vadd.f32 0.0, %v743
      %v745 = vpop.f32.mrb[0].mxu0
      %746 = vmatprep.mubr.bf16.mxu0 0
      %747 = vmatmul.mubr.bf16.gmra.mrb[0].mxu0 %v629
      %v748 = vpop.f32.mrb[0].mxu0
      %v749 = vadd.f32 0.0, %v748
      %v750 = vpop.f32.mrb[0].mxu0
      %v751 = vpop.f32.mrb[0].mxu0
      %v752 = vadd.f32 0.0, %v751
      %v753 = vpop.f32.mrb[0].mxu0
      %754 = vmatprep.mubr.bf16.mxu0 0
      %755 = vmatmul.mubr.bf16.gmra.mrb[0].mxu0 %v632
      %v756 = vpop.f32.mrb[0].mxu0
      %v757 = vadd.f32 0.0, %v756
      %v758 = vpop.f32.mrb[0].mxu0
      %v759 = vpop.f32.mrb[0].mxu0
      %v760 = vadd.f32 0.0, %v759
      %v761 = vpop.f32.mrb[0].mxu0
      %762 = vmatprep.mubr.bf16.mxu0 0
      %763 = vmatmul.mubr.bf16.gmra.mrb[0].mxu0 %v635
      %v764 = vpop.f32.mrb[0].mxu0
      %v765 = vadd.f32 0.0, %v764
      %v766 = vpop.f32.mrb[0].mxu0
      %v767 = vpop.f32.mrb[0].mxu0
      %v768 = vadd.f32 0.0, %v767
      %v769 = vpop.f32.mrb[0].mxu0
      %770 = vmatprep.mubr.bf16.mxu0 0
      %771 = vmatmul.mubr.bf16.gmra.mrb[0].mxu0 %v638
      %v772 = vpop.f32.mrb[0].mxu0
      %v773 = vadd.f32 0.0, %v772
      %v774 = vpop.f32.mrb[0].mxu0
      %v775 = vpop.f32.mrb[0].mxu0
      %v776 = vadd.f32 0.0, %v775
      %v777 = vpop.f32.mrb[0].mxu0
      %778 = vmatprep.mubr.bf16.mxu0 0
      %779 = vmatmul.mubr.bf16.gmra.mrb[0].mxu0 %v641
      %v780 = vpop.f32.mrb[0].mxu0
      %v781 = vadd.f32 0.0, %v780
      %v782 = vpop.f32.mrb[0].mxu0
      %v783 = vpop.f32.mrb[0].mxu0
      %v784 = vadd.f32 0.0, %v783
      %v785 = vpop.f32.mrb[0].mxu0
      %786 = vmatprep.mubr.bf16.mxu0 0
      %787 = vmatmul.mubr.bf16.gmra.mrb[0].mxu0 %v644
      %v788 = vpop.f32.mrb[0].mxu0
      %v789 = vadd.f32 0.0, %v788
      %v790 = vpop.f32.mrb[0].mxu0
      %v791 = vpop.f32.mrb[0].mxu0
      %v792 = vadd.f32 0.0, %v791
      %v793 = vpop.f32.mrb[0].mxu0
      %794 = vmatprep.mubr.bf16.mxu0 0
      %795 = vmatmul.mubr.bf16.gmra.mrb[0].mxu0 %v647
      %v796 = vpop.f32.mrb[0].mxu0
      %v797 = vadd.f32 0.0, %v796
      %v798 = vpop.f32.mrb[0].mxu0
      %v799 = vpop.f32.mrb[0].mxu0
      %v800 = vadd.f32 0.0, %v799
      %v801 = vpop.f32.mrb[0].mxu0
      %802 = vmatprep.mubr.bf16.mxu0 0
      %803 = vmatmul.mubr.bf16.gmra.mrb[0].mxu0 %v650
      %v804 = vpop.f32.mrb[0].mxu0
      %v805 = vadd.f32 0.0, %v804
      %v806 = vpop.f32.mrb[0].mxu0
      %v807 = vpop.f32.mrb[0].mxu0
      %v808 = vadd.f32 0.0, %v807
      %v809 = vpop.f32.mrb[0].mxu0
      %810 = vmatprep.mubr.bf16.mxu0 0
      %811 = vmatmul.mubr.bf16.gmra.mrb[0].mxu0 %v653
      %v812 = vpop.f32.mrb[0].mxu0
      %v813 = vadd.f32 0.0, %v812
      %v814 = vpop.f32.mrb[0].mxu0
      %v815 = vpop.f32.mrb[0].mxu0
      %v816 = vadd.f32 0.0, %v815
      %v817 = vpop.f32.mrb[0].mxu0
      %818 = vmatprep.mubr.bf16.mxu0 0
      %819 = vmatmul.mubr.bf16.gmra.mrb[0].mxu0 %v656
      %v820 = vpop.f32.mrb[0].mxu0
      %v821 = vadd.f32 0.0, %v820
      %v822 = vpop.f32.mrb[0].mxu0
      %v823 = vpop.f32.mrb[0].mxu0
      %v824 = vadd.f32 0.0, %v823
      %v825 = vpop.f32.mrb[0].mxu0
      %826 = vmatprep.mubr.bf16.mxu0 0
      %827 = vmatmul.mubr.bf16.gmra.mrb[0].mxu0 %v659
      %v828 = vpop.f32.mrb[0].mxu0
      %v829 = vadd.f32 0.0, %v828
      %v830 = vpop.f32.mrb[0].mxu0
      %v831 = vpop.f32.mrb[0].mxu0
      %v832 = vadd.f32 0.0, %v831
      %v833 = vpop.f32.mrb[0].mxu0
      %834 = vmatprep.mubr.bf16.mxu0 0
      %835 = vmatmul.mubr.bf16.gmra.mrb[0].mxu0 %v662
      %v836 = vpop.f32.mrb[0].mxu0
      %v837 = vadd.f32 0.0, %v836
      %v838 = vpop.f32.mrb[0].mxu0
      %v839 = vpop.f32.mrb[0].mxu0
      %v840 = vadd.f32 0.0, %v839
      %v841 = vpop.f32.mrb[0].mxu0
      %842 = vmatprep.mubr.bf16.mxu0 0
      %843 = vmatmul.mubr.bf16.gmra.mrb[0].mxu0 %v665
      %v844 = vpop.f32.mrb[0].mxu0
      %v845 = vadd.f32 0.0, %v844
      %v846 = vpop.f32.mrb[0].mxu0
      %v847 = vpop.f32.mrb[0].mxu0
      %v848 = vadd.f32 0.0, %v847
      %v849 = vpop.f32.mrb[0].mxu0
      %850 = vmatprep.mubr.bf16.mxu0 0
      %851 = vmatmul.mubr.bf16.gmra.mrb[0].mxu0 %v668
      %v852 = vpop.f32.mrb[0].mxu0
      %v853 = vadd.f32 0.0, %v852
      %v854 = vpop.f32.mrb[0].mxu0
      %v855 = vpop.f32.mrb[0].mxu0
      %v856 = vadd.f32 0.0, %v855
      %v857 = vpop.f32.mrb[0].mxu0
      %858 = vmatprep.mubr.bf16.mxu0 0
      %859 = vmatmul.mubr.bf16.gmra.mrb[0].mxu0 %v671
      %v860 = vpop.f32.mrb[0].mxu0
      %v861 = vadd.f32 0.0, %v860
      %v862 = vpop.f32.mrb[0].mxu0
      %v863 = vpop.f32.mrb[0].mxu0
      %v864 = vadd.f32 0.0, %v863
      %v865 = vpop.f32.mrb[0].mxu0
      %866 = vmatprep.mubr.bf16.mxu0 0
      %867 = vmatmul.mubr.bf16.gmra.mrb[0].mxu0 %v674
      %v868 = vpop.f32.mrb[0].mxu0
      %v869 = vadd.f32 0.0, %v868
      %v870 = vpop.f32.mrb[0].mxu0
      %v871 = vpop.f32.mrb[0].mxu0
      %v872 = vadd.f32 0.0, %v871
      %v873 = vpop.f32.mrb[0].mxu0
      %874 = vmatprep.mubr.bf16.mxu0 0
      %875 = vmatmul.mubr.bf16.gmra.mrb[0].mxu0 %v677
      %v876 = vpop.f32.mrb[0].mxu0
      %v877 = vadd.f32 0.0, %v876
      %v878 = vpop.f32.mrb[0].mxu0
      %v879 = vpop.f32.mrb[0].mxu0
      %v880 = vadd.f32 0.0, %v879
      %v881 = vpop.f32.mrb[0].mxu0
      %882 = vmatprep.mubr.bf16.mxu0 0
      %883 = vmatmul.mubr.bf16.gmra.mrb[0].mxu0 %v680
      %v884 = vpop.f32.mrb[0].mxu0
      %v885 = vadd.f32 0.0, %v884
      %v886 = vpop.f32.mrb[0].mxu0
      %v887 = vpop.f32.mrb[0].mxu0
      %v888 = vadd.f32 0.0, %v887
      %v889 = vpop.f32.mrb[0].mxu0
      %890 = vmatprep.mubr.bf16.mxu0 0
      %891 = vmatmul.mubr.bf16.gmra.mrb[0].mxu0 %v683
      %v892 = vpop.f32.mrb[0].mxu0
      %v893 = vadd.f32 0.0, %v892
      %v894 = vpop.f32.mrb[0].mxu0
      %v895 = vpop.f32.mrb[0].mxu0
      %v896 = vadd.f32 0.0, %v895
      %v897 = vpop.f32.mrb[0].mxu0
      %898 = vmatprep.mubr.bf16.mxu0 0
      %899 = vmatmul.mubr.bf16.gmra.mrb[0].mxu0 %v686
      %v900 = vpop.f32.mrb[0].mxu0
      %v901 = vadd.f32 0.0, %v900
      %v902 = vpop.f32.mrb[0].mxu0
      %v903 = vpop.f32.mrb[0].mxu0
      %v904 = vadd.f32 0.0, %v903
      %v905 = vpop.f32.mrb[0].mxu0
      %906 = vmatprep.mubr.bf16.mxu0 0
      %907 = vmatmul.mubr.bf16.gmra.mrb[0].mxu0 %v689
      %v908 = vpop.f32.mrb[0].mxu0
      %v909 = vadd.f32 0.0, %v908
      %v910 = vpop.f32.mrb[0].mxu0
      %v911 = vpop.f32.mrb[0].mxu0
      %v912 = vadd.f32 0.0, %v911
      %v913 = vpop.f32.mrb[0].mxu0
      %914 = vmatprep.mubr.bf16.mxu0 0
      %915 = vmatmul.mubr.bf16.gmra.mrb[0].mxu0 %v692
      %v916 = vpop.f32.mrb[0].mxu0
      %v917 = vadd.f32 0.0, %v916
      %v918 = vpop.f32.mrb[0].mxu0
      %v919 = vpop.f32.mrb[0].mxu0
      %v920 = vadd.f32 0.0, %v919
      %v921 = vpop.f32.mrb[0].mxu0
      %922 = vdwg.mxu0
      %v923 = vsel %vm621, %v399, 0
      %v925 = vsel %vm621, %v400, 0
      %v927 = vsel %vm621, %v401, 0
      %v929 = vsel %vm621, %v402, 0
      %v931 = vsel %vm621, %v403, 0
      %v933 = vsel %vm621, %v404, 0
      %v935 = vsel %vm621, %v405, 0
      %v937 = vsel %vm621, %v406, 0
      %v939 = vsel %vm621, %v407, 0
      %v941 = vsel %vm621, %v408, 0
      %v943 = vsel %vm621, %v409, 0
      %v945 = vsel %vm621, %v410, 0
      %v947 = vsel %vm621, %v411, 0
      %v949 = vsel %vm621, %v412, 0
      %v951 = vsel %vm621, %v413, 0
      %v953 = vsel %vm621, %v414, 0
      %v955 = vsel %vm621, %v415, 0
      %v957 = vsel %vm621, %v416, 0
      %v959 = vsel %vm621, %v417, 0
      %v961 = vsel %vm621, %v418, 0
      %v963 = vsel %vm621, %v419, 0
      %v965 = vsel %vm621, %v420, 0
      %v967 = vsel %vm621, %v421, 0
      %v969 = vsel %vm621, %v422, 0
      %v972 = vsel %vm694, %v298, 0
      %974 = vmatprep.subr.bf16.mxu0 0
      %975 = vmatpush1.bf16.msra.mxu0 %v972
      %976 = vmatprep.subr.bf16.mxu0 0
      %977 = vmatpush1.bf16.msra.mxu0 0
      %978 = vmatprep.subr.bf16.mxu0 0
      %979 = vmatpush1.bf16.msra.mxu0 0
      %980 = vmatprep.subr.bf16.mxu0 0
      %981 = vmatpush1.bf16.msra.mxu0 0
      %982 = vmatprep.subr.bf16.mxu0 0
      %983 = vmatpush1.bf16.msra.mxu0 0
      %984 = vmatprep.subr.bf16.mxu0 0
      %985 = vmatpush1.bf16.msra.mxu0 0
      %986 = vmatprep.subr.bf16.mxu0 0
      %987 = vmatpush1.bf16.msra.mxu0 0
      %988 = vmatprep.subr.bf16.mxu0 0
      %989 = vmatpush1.bf16.msra.mxu0 0
      %990 = vmatprep.subr.bf16.mxu0 0
      %991 = vmatpush1.bf16.msra.mxu0 0
      %992 = vmatprep.subr.bf16.mxu0 0
      %993 = vmatpush1.bf16.msra.mxu0 0
      %994 = vmatprep.subr.bf16.mxu0 0
      %995 = vmatpush1.bf16.msra.mxu0 0
      %996 = vmatprep.subr.bf16.mxu0 0
      %997 = vmatpush1.bf16.msra.mxu0 0
      %998 = vmatprep.subr.bf16.mxu0 0
      %999 = vmatpush1.bf16.msra.mxu0 0
      %1000 = vmatprep.subr.bf16.mxu0 0
      %1001 = vmatpush1.bf16.msra.mxu0 0
      %1002 = vmatprep.subr.bf16.mxu0 0
      %1003 = vmatpush1.bf16.msra.mxu0 0
      %1004 = vmatprep.subr.bf16.mxu0 0
      %1005 = vmatpush1.bf16.msra.mxu0 0
      %1006 = vmatprep.mubr.bf16.mxu0 0
      %1007 = vmatmul.mubr.bf16.gmra.mrb[0].mxu0 %v923
      %v1008 = vpop.f32.mrb[0].mxu0
      %v1009 = vadd.f32 %v733, %v1008
      %v1010 = vpop.f32.mrb[0].mxu0
      %v1011 = vpop.f32.mrb[0].mxu0
      %v1012 = vadd.f32 %v736, %v1011
      %v1013 = vpop.f32.mrb[0].mxu0
      %1014 = vmatprep.mubr.bf16.mxu0 0
      %1015 = vmatmul.mubr.bf16.gmra.mrb[0].mxu0 %v925
      %v1016 = vpop.f32.mrb[0].mxu0
      %v1017 = vadd.f32 %v741, %v1016
      %v1018 = vpop.f32.mrb[0].mxu0
      %v1019 = vpop.f32.mrb[0].mxu0
      %v1020 = vadd.f32 %v744, %v1019
      %v1021 = vpop.f32.mrb[0].mxu0
      %1022 = vmatprep.mubr.bf16.mxu0 0
      %1023 = vmatmul.mubr.bf16.gmra.mrb[0].mxu0 %v927
      %v1024 = vpop.f32.mrb[0].mxu0
      %v1025 = vadd.f32 %v749, %v1024
      %v1026 = vpop.f32.mrb[0].mxu0
      %v1027 = vpop.f32.mrb[0].mxu0
      %v1028 = vadd.f32 %v752, %v1027
      %v1029 = vpop.f32.mrb[0].mxu0
      %1030 = vmatprep.mubr.bf16.mxu0 0
      %1031 = vmatmul.mubr.bf16.gmra.mrb[0].mxu0 %v929
      %v1032 = vpop.f32.mrb[0].mxu0
      %v1033 = vadd.f32 %v757, %v1032
      %v1034 = vpop.f32.mrb[0].mxu0
      %v1035 = vpop.f32.mrb[0].mxu0
      %v1036 = vadd.f32 %v760, %v1035
      %v1037 = vpop.f32.mrb[0].mxu0
      %1038 = vmatprep.mubr.bf16.mxu0 0
      %1039 = vmatmul.mubr.bf16.gmra.mrb[0].mxu0 %v931
      %v1040 = vpop.f32.mrb[0].mxu0
      %v1041 = vadd.f32 %v765, %v1040
      %v1042 = vpop.f32.mrb[0].mxu0
      %v1043 = vpop.f32.mrb[0].mxu0
      %v1044 = vadd.f32 %v768, %v1043
      %v1045 = vpop.f32.mrb[0].mxu0
      %1046 = vmatprep.mubr.bf16.mxu0 0
      %1047 = vmatmul.mubr.bf16.gmra.mrb[0].mxu0 %v933
      %v1048 = vpop.f32.mrb[0].mxu0
      %v1049 = vadd.f32 %v773, %v1048
      %v1050 = vpop.f32.mrb[0].mxu0
      %v1051 = vpop.f32.mrb[0].mxu0
      %v1052 = vadd.f32 %v776, %v1051
      %v1053 = vpop.f32.mrb[0].mxu0
      %1054 = vmatprep.mubr.bf16.mxu0 0
      %1055 = vmatmul.mubr.bf16.gmra.mrb[0].mxu0 %v935
      %v1056 = vpop.f32.mrb[0].mxu0
      %v1057 = vadd.f32 %v781, %v1056
      %v1058 = vpop.f32.mrb[0].mxu0
      %v1059 = vpop.f32.mrb[0].mxu0
      %v1060 = vadd.f32 %v784, %v1059
      %v1061 = vpop.f32.mrb[0].mxu0
      %1062 = vmatprep.mubr.bf16.mxu0 0
      %1063 = vmatmul.mubr.bf16.gmra.mrb[0].mxu0 %v937
      %v1064 = vpop.f32.mrb[0].mxu0
      %v1065 = vadd.f32 %v789, %v1064
      %v1066 = vpop.f32.mrb[0].mxu0
      %v1067 = vpop.f32.mrb[0].mxu0
      %v1068 = vadd.f32 %v792, %v1067
      %v1069 = vpop.f32.mrb[0].mxu0
      %1070 = vmatprep.mubr.bf16.mxu0 0
      %1071 = vmatmul.mubr.bf16.gmra.mrb[0].mxu0 %v939
      %v1072 = vpop.f32.mrb[0].mxu0
      %v1073 = vadd.f32 %v797, %v1072
      %v1074 = vpop.f32.mrb[0].mxu0
      %v1075 = vpop.f32.mrb[0].mxu0
      %v1076 = vadd.f32 %v800, %v1075
      %v1077 = vpop.f32.mrb[0].mxu0
      %1078 = vmatprep.mubr.bf16.mxu0 0
      %1079 = vmatmul.mubr.bf16.gmra.mrb[0].mxu0 %v941
      %v1080 = vpop.f32.mrb[0].mxu0
      %v1081 = vadd.f32 %v805, %v1080
      %v1082 = vpop.f32.mrb[0].mxu0
      %v1083 = vpop.f32.mrb[0].mxu0
      %v1084 = vadd.f32 %v808, %v1083
      %v1085 = vpop.f32.mrb[0].mxu0
      %1086 = vmatprep.mubr.bf16.mxu0 0
      %1087 = vmatmul.mubr.bf16.gmra.mrb[0].mxu0 %v943
      %v1088 = vpop.f32.mrb[0].mxu0
      %v1089 = vadd.f32 %v813, %v1088
      %v1090 = vpop.f32.mrb[0].mxu0
      %v1091 = vpop.f32.mrb[0].mxu0
      %v1092 = vadd.f32 %v816, %v1091
      %v1093 = vpop.f32.mrb[0].mxu0
      %1094 = vmatprep.mubr.bf16.mxu0 0
      %1095 = vmatmul.mubr.bf16.gmra.mrb[0].mxu0 %v945
      %v1096 = vpop.f32.mrb[0].mxu0
      %v1097 = vadd.f32 %v821, %v1096
      %v1098 = vpop.f32.mrb[0].mxu0
      %v1099 = vpop.f32.mrb[0].mxu0
      %v1100 = vadd.f32 %v824, %v1099
      %v1101 = vpop.f32.mrb[0].mxu0
      %1102 = vmatprep.mubr.bf16.mxu0 0
      %1103 = vmatmul.mubr.bf16.gmra.mrb[0].mxu0 %v947
      %v1104 = vpop.f32.mrb[0].mxu0
      %v1105 = vadd.f32 %v829, %v1104
      %v1106 = vpop.f32.mrb[0].mxu0
      %v1107 = vpop.f32.mrb[0].mxu0
      %v1108 = vadd.f32 %v832, %v1107
      %v1109 = vpop.f32.mrb[0].mxu0
      %1110 = vmatprep.mubr.bf16.mxu0 0
      %1111 = vmatmul.mubr.bf16.gmra.mrb[0].mxu0 %v949
      %v1112 = vpop.f32.mrb[0].mxu0
      %v1113 = vadd.f32 %v837, %v1112
      %v1114 = vpop.f32.mrb[0].mxu0
      %v1115 = vpop.f32.mrb[0].mxu0
      %v1116 = vadd.f32 %v840, %v1115
      %v1117 = vpop.f32.mrb[0].mxu0
      %1118 = vmatprep.mubr.bf16.mxu0 0
      %1119 = vmatmul.mubr.bf16.gmra.mrb[0].mxu0 %v951
      %v1120 = vpop.f32.mrb[0].mxu0
      %v1121 = vadd.f32 %v845, %v1120
      %v1122 = vpop.f32.mrb[0].mxu0
      %v1123 = vpop.f32.mrb[0].mxu0
      %v1124 = vadd.f32 %v848, %v1123
      %v1125 = vpop.f32.mrb[0].mxu0
      %1126 = vmatprep.mubr.bf16.mxu0 0
      %1127 = vmatmul.mubr.bf16.gmra.mrb[0].mxu0 %v953
      %v1128 = vpop.f32.mrb[0].mxu0
      %v1129 = vadd.f32 %v853, %v1128
      %v1130 = vpop.f32.mrb[0].mxu0
      %v1131 = vpop.f32.mrb[0].mxu0
      %v1132 = vadd.f32 %v856, %v1131
      %v1133 = vpop.f32.mrb[0].mxu0
      %1134 = vmatprep.mubr.bf16.mxu0 0
      %1135 = vmatmul.mubr.bf16.gmra.mrb[0].mxu0 %v955
      %v1136 = vpop.f32.mrb[0].mxu0
      %v1137 = vadd.f32 %v861, %v1136
      %v1138 = vpop.f32.mrb[0].mxu0
      %v1139 = vpop.f32.mrb[0].mxu0
      %v1140 = vadd.f32 %v864, %v1139
      %v1141 = vpop.f32.mrb[0].mxu0
      %1142 = vmatprep.mubr.bf16.mxu0 0
      %1143 = vmatmul.mubr.bf16.gmra.mrb[0].mxu0 %v957
      %v1144 = vpop.f32.mrb[0].mxu0
      %v1145 = vadd.f32 %v869, %v1144
      %v1146 = vpop.f32.mrb[0].mxu0
      %v1147 = vpop.f32.mrb[0].mxu0
      %v1148 = vadd.f32 %v872, %v1147
      %v1149 = vpop.f32.mrb[0].mxu0
      %1150 = vmatprep.mubr.bf16.mxu0 0
      %1151 = vmatmul.mubr.bf16.gmra.mrb[0].mxu0 %v959
      %v1152 = vpop.f32.mrb[0].mxu0
      %v1153 = vadd.f32 %v877, %v1152
      %v1154 = vpop.f32.mrb[0].mxu0
      %v1155 = vpop.f32.mrb[0].mxu0
      %v1156 = vadd.f32 %v880, %v1155
      %v1157 = vpop.f32.mrb[0].mxu0
      %1158 = vmatprep.mubr.bf16.mxu0 0
      %1159 = vmatmul.mubr.bf16.gmra.mrb[0].mxu0 %v961
      %v1160 = vpop.f32.mrb[0].mxu0
      %v1161 = vadd.f32 %v885, %v1160
      %v1162 = vpop.f32.mrb[0].mxu0
      %v1163 = vpop.f32.mrb[0].mxu0
      %v1164 = vadd.f32 %v888, %v1163
      %v1165 = vpop.f32.mrb[0].mxu0
      %1166 = vmatprep.mubr.bf16.mxu0 0
      %1167 = vmatmul.mubr.bf16.gmra.mrb[0].mxu0 %v963
      %v1168 = vpop.f32.mrb[0].mxu0
      %v1169 = vadd.f32 %v893, %v1168
      %v1170 = vpop.f32.mrb[0].mxu0
      %v1171 = vpop.f32.mrb[0].mxu0
      %v1172 = vadd.f32 %v896, %v1171
      %v1173 = vpop.f32.mrb[0].mxu0
      %1174 = vmatprep.mubr.bf16.mxu0 0
      %1175 = vmatmul.mubr.bf16.gmra.mrb[0].mxu0 %v965
      %v1176 = vpop.f32.mrb[0].mxu0
      %v1177 = vadd.f32 %v901, %v1176
      %v1178 = vpop.f32.mrb[0].mxu0
      %v1179 = vpop.f32.mrb[0].mxu0
      %v1180 = vadd.f32 %v904, %v1179
      %v1181 = vpop.f32.mrb[0].mxu0
      %1182 = vmatprep.mubr.bf16.mxu0 0
      %1183 = vmatmul.mubr.bf16.gmra.mrb[0].mxu0 %v967
      %v1184 = vpop.f32.mrb[0].mxu0
      %v1185 = vadd.f32 %v909, %v1184
      %v1186 = vpop.f32.mrb[0].mxu0
      %v1187 = vpop.f32.mrb[0].mxu0
      %v1188 = vadd.f32 %v912, %v1187
      %v1189 = vpop.f32.mrb[0].mxu0
      %1190 = vmatprep.mubr.bf16.mxu0 0
      %1191 = vmatmul.mubr.bf16.gmra.mrb[0].mxu0 %v969
      %v1192 = vpop.f32.mrb[0].mxu0
      %v1193 = vadd.f32 %v917, %v1192
      %v1194 = vpop.f32.mrb[0].mxu0
      %v1195 = vpop.f32.mrb[0].mxu0
      %v1196 = vadd.f32 %v920, %v1195
      %v1197 = vpop.f32.mrb[0].mxu0
      %1198 = vdwg.mxu0
      %s1199 = scalar_lea.vmem %s232, 8
      %v1200 = vld [vmem:[%s1199] sm:$0xf]
      %vm1201 = vcmask 1046528
      %v1202 = vrot.slane %v399, 1
      %v1203 = vrot.slane %v400, 1
      %v1204 = vsel %vm1201, %v1202, %v1203
      %v1205 = vrot.slane %v401, 1
      %v1206 = vsel %vm1201, %v1203, %v1205
      %v1207 = vrot.slane %v402, 1
      %v1208 = vsel %vm1201, %v1205, %v1207
      %v1209 = vrot.slane %v403, 1
      %v1210 = vsel %vm1201, %v1207, %v1209
      %v1211 = vrot.slane %v404, 1
      %v1212 = vsel %vm1201, %v1209, %v1211
      %v1213 = vrot.slane %v405, 1
      %v1214 = vsel %vm1201, %v1211, %v1213
      %v1215 = vrot.slane %v406, 1
      %v1216 = vsel %vm1201, %v1213, %v1215
      %v1217 = vrot.slane %v407, 1
      %v1218 = vsel %vm1201, %v1215, %v1217
      %v1219 = vrot.slane %v408, 1
      %v1220 = vsel %vm1201, %v1217, %v1219
      %v1221 = vrot.slane %v409, 1
      %v1222 = vsel %vm1201, %v1219, %v1221
      %v1223 = vrot.slane %v410, 1
      %v1224 = vsel %vm1201, %v1221, %v1223
      %v1225 = vrot.slane %v411, 1
      %v1226 = vsel %vm1201, %v1223, %v1225
      %v1227 = vrot.slane %v412, 1
      %v1228 = vsel %vm1201, %v1225, %v1227
      %v1229 = vrot.slane %v413, 1
      %v1230 = vsel %vm1201, %v1227, %v1229
      %v1231 = vrot.slane %v414, 1
      %v1232 = vsel %vm1201, %v1229, %v1231
      %v1233 = vrot.slane %v415, 1
      %v1234 = vsel %vm1201, %v1231, %v1233
      %v1235 = vrot.slane %v416, 1
      %v1236 = vsel %vm1201, %v1233, %v1235
      %v1237 = vrot.slane %v417, 1
      %v1238 = vsel %vm1201, %v1235, %v1237
      %v1239 = vrot.slane %v418, 1
      %v1240 = vsel %vm1201, %v1237, %v1239
      %v1241 = vrot.slane %v419, 1
      %v1242 = vsel %vm1201, %v1239, %v1241
      %v1243 = vrot.slane %v420, 1
      %v1244 = vsel %vm1201, %v1241, %v1243
      %v1245 = vrot.slane %v421, 1
      %v1246 = vsel %vm1201, %v1243, %v1245
      %v1247 = vrot.slane %v422, 1
      %v1248 = vsel %vm1201, %v1245, %v1247
      %v1249 = vrot.slane %v423, 1
      %v1250 = vsel %vm1201, %v1247, %v1249
      %v1252 = vsel %vm621, %v1204, 0
      %v1255 = vsel %vm621, %v1206, 0
      %v1258 = vsel %vm621, %v1208, 0
      %v1261 = vsel %vm621, %v1210, 0
      %v1264 = vsel %vm621, %v1212, 0
      %v1267 = vsel %vm621, %v1214, 0
      %v1270 = vsel %vm621, %v1216, 0
      %v1273 = vsel %vm621, %v1218, 0
      %v1276 = vsel %vm621, %v1220, 0
      %v1279 = vsel %vm621, %v1222, 0
      %v1282 = vsel %vm621, %v1224, 0
      %v1285 = vsel %vm621, %v1226, 0
      %v1288 = vsel %vm621, %v1228, 0
      %v1291 = vsel %vm621, %v1230, 0
      %v1294 = vsel %vm621, %v1232, 0
      %v1297 = vsel %vm621, %v1234, 0
      %v1300 = vsel %vm621, %v1236, 0
      %v1303 = vsel %vm621, %v1238, 0
      %v1306 = vsel %vm621, %v1240, 0
      %v1309 = vsel %vm621, %v1242, 0
      %v1312 = vsel %vm621, %v1244, 0
      %v1315 = vsel %vm621, %v1246, 0
      %v1318 = vsel %vm621, %v1248, 0
      %v1321 = vsel %vm621, %v1250, 0
      %v1324 = vsel %vm694, %v1200, 0
      %1326 = vmatprep.subr.bf16.mxu0 0
      %1327 = vmatpush1.bf16.msra.mxu0 %v1324
      %1328 = vmatprep.subr.bf16.mxu0 0
      %1329 = vmatpush1.bf16.msra.mxu0 0
      %1330 = vmatprep.subr.bf16.mxu0 0
      %1331 = vmatpush1.bf16.msra.mxu0 0
      %1332 = vmatprep.subr.bf16.mxu0 0
      %1333 = vmatpush1.bf16.msra.mxu0 0
      %1334 = vmatprep.subr.bf16.mxu0 0
      %1335 = vmatpush1.bf16.msra.mxu0 0
      %1336 = vmatprep.subr.bf16.mxu0 0
      %1337 = vmatpush1.bf16.msra.mxu0 0
      %1338 = vmatprep.subr.bf16.mxu0 0
      %1339 = vmatpush1.bf16.msra.mxu0 0
      %1340 = vmatprep.subr.bf16.mxu0 0
      %1341 = vmatpush1.bf16.msra.mxu0 0
      %1342 = vmatprep.subr.bf16.mxu0 0
      %1343 = vmatpush1.bf16.msra.mxu0 0
      %1344 = vmatprep.subr.bf16.mxu0 0
      %1345 = vmatpush1.bf16.msra.mxu0 0
      %1346 = vmatprep.subr.bf16.mxu0 0
      %1347 = vmatpush1.bf16.msra.mxu0 0
      %1348 = vmatprep.subr.bf16.mxu0 0
      %1349 = vmatpush1.bf16.msra.mxu0 0
      %1350 = vmatprep.subr.bf16.mxu0 0
      %1351 = vmatpush1.bf16.msra.mxu0 0
      %1352 = vmatprep.subr.bf16.mxu0 0
      %1353 = vmatpush1.bf16.msra.mxu0 0
      %1354 = vmatprep.subr.bf16.mxu0 0
      %1355 = vmatpush1.bf16.msra.mxu0 0
      %1356 = vmatprep.subr.bf16.mxu0 0
      %1357 = vmatpush1.bf16.msra.mxu0 0
      %1358 = vmatprep.mubr.bf16.mxu0 0
      %1359 = vmatmul.mubr.bf16.gmra.mrb[0].mxu0 %v1252
      %v1360 = vpop.f32.mrb[0].mxu0
      %v1361 = vadd.f32 0.0, %v1360
      %v1362 = vpop.f32.mrb[0].mxu0
      %v1363 = vpop.f32.mrb[0].mxu0
      %v1364 = vadd.f32 0.0, %v1363
      %v1365 = vpop.f32.mrb[0].mxu0
      %1366 = vmatprep.mubr.bf16.mxu0 0
      %1367 = vmatmul.mubr.bf16.gmra.mrb[0].mxu0 %v1255
      %v1368 = vpop.f32.mrb[0].mxu0
      %v1369 = vadd.f32 0.0, %v1368
      %v1370 = vpop.f32.mrb[0].mxu0
      %v1371 = vpop.f32.mrb[0].mxu0
      %v1372 = vadd.f32 0.0, %v1371
      %v1373 = vpop.f32.mrb[0].mxu0
      %1374 = vmatprep.mubr.bf16.mxu0 0
      %1375 = vmatmul.mubr.bf16.gmra.mrb[0].mxu0 %v1258
      %v1376 = vpop.f32.mrb[0].mxu0
      %v1377 = vadd.f32 0.0, %v1376
      %v1378 = vpop.f32.mrb[0].mxu0
      %v1379 = vpop.f32.mrb[0].mxu0
      %v1380 = vadd.f32 0.0, %v1379
      %v1381 = vpop.f32.mrb[0].mxu0
      %1382 = vmatprep.mubr.bf16.mxu0 0
      %1383 = vmatmul.mubr.bf16.gmra.mrb[0].mxu0 %v1261
      %v1384 = vpop.f32.mrb[0].mxu0
      %v1385 = vadd.f32 0.0, %v1384
      %v1386 = vpop.f32.mrb[0].mxu0
      %v1387 = vpop.f32.mrb[0].mxu0
      %v1388 = vadd.f32 0.0, %v1387
      %v1389 = vpop.f32.mrb[0].mxu0
      %1390 = vmatprep.mubr.bf16.mxu0 0
      %1391 = vmatmul.mubr.bf16.gmra.mrb[0].mxu0 %v1264
      %v1392 = vpop.f32.mrb[0].mxu0
      %v1393 = vadd.f32 0.0, %v1392
      %v1394 = vpop.f32.mrb[0].mxu0
      %v1395 = vpop.f32.mrb[0].mxu0
      %v1396 = vadd.f32 0.0, %v1395
      %v1397 = vpop.f32.mrb[0].mxu0
      %1398 = vmatprep.mubr.bf16.mxu0 0
      %1399 = vmatmul.mubr.bf16.gmra.mrb[0].mxu0 %v1267
      %v1400 = vpop.f32.mrb[0].mxu0
      %v1401 = vadd.f32 0.0, %v1400
      %v1402 = vpop.f32.mrb[0].mxu0
      %v1403 = vpop.f32.mrb[0].mxu0
      %v1404 = vadd.f32 0.0, %v1403
      %v1405 = vpop.f32.mrb[0].mxu0
      %1406 = vmatprep.mubr.bf16.mxu0 0
      %1407 = vmatmul.mubr.bf16.gmra.mrb[0].mxu0 %v1270
      %v1408 = vpop.f32.mrb[0].mxu0
      %v1409 = vadd.f32 0.0, %v1408
      %v1410 = vpop.f32.mrb[0].mxu0
      %v1411 = vpop.f32.mrb[0].mxu0
      %v1412 = vadd.f32 0.0, %v1411
      %v1413 = vpop.f32.mrb[0].mxu0
      %1414 = vmatprep.mubr.bf16.mxu0 0
      %1415 = vmatmul.mubr.bf16.gmra.mrb[0].mxu0 %v1273
      %v1416 = vpop.f32.mrb[0].mxu0
      %v1417 = vadd.f32 0.0, %v1416
      %v1418 = vpop.f32.mrb[0].mxu0
      %v1419 = vpop.f32.mrb[0].mxu0
      %v1420 = vadd.f32 0.0, %v1419
      %v1421 = vpop.f32.mrb[0].mxu0
      %1422 = vmatprep.mubr.bf16.mxu0 0
      %1423 = vmatmul.mubr.bf16.gmra.mrb[0].mxu0 %v1276
      %v1424 = vpop.f32.mrb[0].mxu0
      %v1425 = vadd.f32 0.0, %v1424
      %v1426 = vpop.f32.mrb[0].mxu0
      %v1427 = vpop.f32.mrb[0].mxu0
      %v1428 = vadd.f32 0.0, %v1427
      %v1429 = vpop.f32.mrb[0].mxu0
      %1430 = vmatprep.mubr.bf16.mxu0 0
      %1431 = vmatmul.mubr.bf16.gmra.mrb[0].mxu0 %v1279
      %v1432 = vpop.f32.mrb[0].mxu0
      %v1433 = vadd.f32 0.0, %v1432
      %v1434 = vpop.f32.mrb[0].mxu0
      %v1435 = vpop.f32.mrb[0].mxu0
      %v1436 = vadd.f32 0.0, %v1435
      %v1437 = vpop.f32.mrb[0].mxu0
      %1438 = vmatprep.mubr.bf16.mxu0 0
      %1439 = vmatmul.mubr.bf16.gmra.mrb[0].mxu0 %v1282
      %v1440 = vpop.f32.mrb[0].mxu0
      %v1441 = vadd.f32 0.0, %v1440
      %v1442 = vpop.f32.mrb[0].mxu0
      %v1443 = vpop.f32.mrb[0].mxu0
      %v1444 = vadd.f32 0.0, %v1443
      %v1445 = vpop.f32.mrb[0].mxu0
      %1446 = vmatprep.mubr.bf16.mxu0 0
      %1447 = vmatmul.mubr.bf16.gmra.mrb[0].mxu0 %v1285
      %v1448 = vpop.f32.mrb[0].mxu0
      %v1449 = vadd.f32 0.0, %v1448
      %v1450 = vpop.f32.mrb[0].mxu0
      %v1451 = vpop.f32.mrb[0].mxu0
      %v1452 = vadd.f32 0.0, %v1451
      %v1453 = vpop.f32.mrb[0].mxu0
      %1454 = vmatprep.mubr.bf16.mxu0 0
      %1455 = vmatmul.mubr.bf16.gmra.mrb[0].mxu0 %v1288
      %v1456 = vpop.f32.mrb[0].mxu0
      %v1457 = vadd.f32 0.0, %v1456
      %v1458 = vpop.f32.mrb[0].mxu0
      %v1459 = vpop.f32.mrb[0].mxu0
      %v1460 = vadd.f32 0.0, %v1459
      %v1461 = vpop.f32.mrb[0].mxu0
      %1462 = vmatprep.mubr.bf16.mxu0 0
      %1463 = vmatmul.mubr.bf16.gmra.mrb[0].mxu0 %v1291
      %v1464 = vpop.f32.mrb[0].mxu0
      %v1465 = vadd.f32 0.0, %v1464
      %v1466 = vpop.f32.mrb[0].mxu0
      %v1467 = vpop.f32.mrb[0].mxu0
      %v1468 = vadd.f32 0.0, %v1467
      %v1469 = vpop.f32.mrb[0].mxu0
      %1470 = vmatprep.mubr.bf16.mxu0 0
      %1471 = vmatmul.mubr.bf16.gmra.mrb[0].mxu0 %v1294
      %v1472 = vpop.f32.mrb[0].mxu0
      %v1473 = vadd.f32 0.0, %v1472
      %v1474 = vpop.f32.mrb[0].mxu0
      %v1475 = vpop.f32.mrb[0].mxu0
      %v1476 = vadd.f32 0.0, %v1475
      %v1477 = vpop.f32.mrb[0].mxu0
      %1478 = vmatprep.mubr.bf16.mxu0 0
      %1479 = vmatmul.mubr.bf16.gmra.mrb[0].mxu0 %v1297
      %v1480 = vpop.f32.mrb[0].mxu0
      %v1481 = vadd.f32 0.0, %v1480
      %v1482 = vpop.f32.mrb[0].mxu0
      %v1483 = vpop.f32.mrb[0].mxu0
      %v1484 = vadd.f32 0.0, %v1483
      %v1485 = vpop.f32.mrb[0].mxu0
      %1486 = vmatprep.mubr.bf16.mxu0 0
      %1487 = vmatmul.mubr.bf16.gmra.mrb[0].mxu0 %v1300
      %v1488 = vpop.f32.mrb[0].mxu0
      %v1489 = vadd.f32 0.0, %v1488
      %v1490 = vpop.f32.mrb[0].mxu0
      %v1491 = vpop.f32.mrb[0].mxu0
      %v1492 = vadd.f32 0.0, %v1491
      %v1493 = vpop.f32.mrb[0].mxu0
      %1494 = vmatprep.mubr.bf16.mxu0 0
      %1495 = vmatmul.mubr.bf16.gmra.mrb[0].mxu0 %v1303
      %v1496 = vpop.f32.mrb[0].mxu0
      %v1497 = vadd.f32 0.0, %v1496
      %v1498 = vpop.f32.mrb[0].mxu0
      %v1499 = vpop.f32.mrb[0].mxu0
      %v1500 = vadd.f32 0.0, %v1499
      %v1501 = vpop.f32.mrb[0].mxu0
      %1502 = vmatprep.mubr.bf16.mxu0 0
      %1503 = vmatmul.mubr.bf16.gmra.mrb[0].mxu0 %v1306
      %v1504 = vpop.f32.mrb[0].mxu0
      %v1505 = vadd.f32 0.0, %v1504
      %v1506 = vpop.f32.mrb[0].mxu0
      %v1507 = vpop.f32.mrb[0].mxu0
      %v1508 = vadd.f32 0.0, %v1507
      %v1509 = vpop.f32.mrb[0].mxu0
      %1510 = vmatprep.mubr.bf16.mxu0 0
      %1511 = vmatmul.mubr.bf16.gmra.mrb[0].mxu0 %v1309
      %v1512 = vpop.f32.mrb[0].mxu0
      %v1513 = vadd.f32 0.0, %v1512
      %v1514 = vpop.f32.mrb[0].mxu0
      %v1515 = vpop.f32.mrb[0].mxu0
      %v1516 = vadd.f32 0.0, %v1515
      %v1517 = vpop.f32.mrb[0].mxu0
      %1518 = vmatprep.mubr.bf16.mxu0 0
      %1519 = vmatmul.mubr.bf16.gmra.mrb[0].mxu0 %v1312
      %v1520 = vpop.f32.mrb[0].mxu0
      %v1521 = vadd.f32 0.0, %v1520
      %v1522 = vpop.f32.mrb[0].mxu0
      %v1523 = vpop.f32.mrb[0].mxu0
      %v1524 = vadd.f32 0.0, %v1523
      %v1525 = vpop.f32.mrb[0].mxu0
      %1526 = vmatprep.mubr.bf16.mxu0 0
      %1527 = vmatmul.mubr.bf16.gmra.mrb[0].mxu0 %v1315
      %v1528 = vpop.f32.mrb[0].mxu0
      %v1529 = vadd.f32 0.0, %v1528
      %v1530 = vpop.f32.mrb[0].mxu0
      %v1531 = vpop.f32.mrb[0].mxu0
      %v1532 = vadd.f32 0.0, %v1531
      %v1533 = vpop.f32.mrb[0].mxu0
      %1534 = vmatprep.mubr.bf16.mxu0 0
      %1535 = vmatmul.mubr.bf16.gmra.mrb[0].mxu0 %v1318
      %v1536 = vpop.f32.mrb[0].mxu0
      %v1537 = vadd.f32 0.0, %v1536
      %v1538 = vpop.f32.mrb[0].mxu0
      %v1539 = vpop.f32.mrb[0].mxu0
      %v1540 = vadd.f32 0.0, %v1539
      %v1541 = vpop.f32.mrb[0].mxu0
      %1542 = vmatprep.mubr.bf16.mxu0 0
      %1543 = vmatmul.mubr.bf16.gmra.mrb[0].mxu0 %v1321
      %v1544 = vpop.f32.mrb[0].mxu0
      %v1545 = vadd.f32 0.0, %v1544
      %v1546 = vpop.f32.mrb[0].mxu0
      %v1547 = vpop.f32.mrb[0].mxu0
      %v1548 = vadd.f32 0.0, %v1547
      %v1549 = vpop.f32.mrb[0].mxu0
      %1550 = vdwg.mxu0
      %v1551 = vadd.f32 %v1009, %v1361
      %v1552 = vadd.f32 %v1012, %v1364
      %v1553 = vadd.f32 %v1017, %v1369
      %v1554 = vadd.f32 %v1020, %v1372
      %v1555 = vadd.f32 %v1025, %v1377
      %v1556 = vadd.f32 %v1028, %v1380
      %v1557 = vadd.f32 %v1033, %v1385
      %v1558 = vadd.f32 %v1036, %v1388
      %v1559 = vadd.f32 %v1041, %v1393
      %v1560 = vadd.f32 %v1044, %v1396
      %v1561 = vadd.f32 %v1049, %v1401
      %v1562 = vadd.f32 %v1052, %v1404
      %v1563 = vadd.f32 %v1057, %v1409
      %v1564 = vadd.f32 %v1060, %v1412
      %v1565 = vadd.f32 %v1065, %v1417
      %v1566 = vadd.f32 %v1068, %v1420
      %v1567 = vadd.f32 %v1073, %v1425
      %v1568 = vadd.f32 %v1076, %v1428
      %v1569 = vadd.f32 %v1081, %v1433
      %v1570 = vadd.f32 %v1084, %v1436
      %v1571 = vadd.f32 %v1089, %v1441
      %v1572 = vadd.f32 %v1092, %v1444
      %v1573 = vadd.f32 %v1097, %v1449
      %v1574 = vadd.f32 %v1100, %v1452
      %v1575 = vadd.f32 %v1105, %v1457
      %v1576 = vadd.f32 %v1108, %v1460
      %v1577 = vadd.f32 %v1113, %v1465
      %v1578 = vadd.f32 %v1116, %v1468
      %v1579 = vadd.f32 %v1121, %v1473
      %v1580 = vadd.f32 %v1124, %v1476
      %v1581 = vadd.f32 %v1129, %v1481
      %v1582 = vadd.f32 %v1132, %v1484
      %v1583 = vadd.f32 %v1137, %v1489
      %v1584 = vadd.f32 %v1140, %v1492
      %v1585 = vadd.f32 %v1145, %v1497
      %v1586 = vadd.f32 %v1148, %v1500
      %v1587 = vadd.f32 %v1153, %v1505
      %v1588 = vadd.f32 %v1156, %v1508
      %v1589 = vadd.f32 %v1161, %v1513
      %v1590 = vadd.f32 %v1164, %v1516
      %v1591 = vadd.f32 %v1169, %v1521
      %v1592 = vadd.f32 %v1172, %v1524
      %v1593 = vadd.f32 %v1177, %v1529
      %v1594 = vadd.f32 %v1180, %v1532
      %v1595 = vadd.f32 %v1185, %v1537
      %v1596 = vadd.f32 %v1188, %v1540
      %v1597 = vadd.f32 %v1193, %v1545
      %v1598 = vadd.f32 %v1196, %v1548
      %s1599 = scalar_lea.vmem %s232, 12
      %v1600 = vld [vmem:[%s1599] sm:$0xf]
      %v1603 = vunpack.c.l.b16 %v292
      %v1604 = vunpack.c.l.b16 %v293
      %v1605 = vpack.c.b16 %v354, %v353
      %v1606 = vpack.c.b16 %v356, %v355
      %v1607 = vpack.c.b16 %v358, %v357
      %v1608 = vpack.c.b16 %v360, %v359
      %v1609 = vpack.c.b16 %v362, %v361
      %v1610 = vpack.c.b16 %v364, %v363
      %v1611 = vpack.c.b16 %v366, %v365
      %v1612 = vpack.c.b16 %v368, %v367
      %v1613 = vpack.c.b16 %v370, %v369
      %v1614 = vpack.c.b16 %v372, %v371
      %v1615 = vpack.c.b16 %v374, %v373
      %v1616 = vpack.c.b16 %v376, %v375
      %v1617 = vpack.c.b16 %v378, %v377
      %v1618 = vpack.c.b16 %v380, %v379
      %v1619 = vpack.c.b16 %v382, %v381
      %v1620 = vpack.c.b16 %v384, %v383
      %v1621 = vpack.c.b16 %v386, %v385
      %v1622 = vpack.c.b16 %v388, %v387
      %v1623 = vpack.c.b16 %v390, %v389
      %v1624 = vpack.c.b16 %v392, %v391
      %v1625 = vpack.c.b16 %v394, %v393
      %v1626 = vpack.c.b16 %v396, %v395
      %v1627 = vpack.c.b16 %v398, %v397
      %v1628 = vpack.c.b16 %v1604, %v1603
      %v1630 = vsel %vm621, %v1605, 0
      %v1633 = vsel %vm621, %v1606, 0
      %v1636 = vsel %vm621, %v1607, 0
      %v1639 = vsel %vm621, %v1608, 0
      %v1642 = vsel %vm621, %v1609, 0
      %v1645 = vsel %vm621, %v1610, 0
      %v1648 = vsel %vm621, %v1611, 0
      %v1651 = vsel %vm621, %v1612, 0
      %v1654 = vsel %vm621, %v1613, 0
      %v1657 = vsel %vm621, %v1614, 0
      %v1660 = vsel %vm621, %v1615, 0
      %v1663 = vsel %vm621, %v1616, 0
      %v1666 = vsel %vm621, %v1617, 0
      %v1669 = vsel %vm621, %v1618, 0
      %v1672 = vsel %vm621, %v1619, 0
      %v1675 = vsel %vm621, %v1620, 0
      %v1678 = vsel %vm621, %v1621, 0
      %v1681 = vsel %vm621, %v1622, 0
      %v1684 = vsel %vm621, %v1623, 0
      %v1687 = vsel %vm621, %v1624, 0
      %v1690 = vsel %vm621, %v1625, 0
      %v1693 = vsel %vm621, %v1626, 0
      %v1696 = vsel %vm621, %v1627, 0
      %v1699 = vsel %vm621, %v1628, 0
      %v1702 = vsel %vm694, %v1600, 0
      %1704 = vmatprep.subr.bf16.mxu0 0
      %1705 = vmatpush1.bf16.msra.mxu0 %v1702
      %1706 = vmatprep.subr.bf16.mxu0 0
      %1707 = vmatpush1.bf16.msra.mxu0 0
      %1708 = vmatprep.subr.bf16.mxu0 0
      %1709 = vmatpush1.bf16.msra.mxu0 0
      %1710 = vmatprep.subr.bf16.mxu0 0
      %1711 = vmatpush1.bf16.msra.mxu0 0
      %1712 = vmatprep.subr.bf16.mxu0 0
      %1713 = vmatpush1.bf16.msra.mxu0 0
      %1714 = vmatprep.subr.bf16.mxu0 0
      %1715 = vmatpush1.bf16.msra.mxu0 0
      %1716 = vmatprep.subr.bf16.mxu0 0
      %1717 = vmatpush1.bf16.msra.mxu0 0
      %1718 = vmatprep.subr.bf16.mxu0 0
      %1719 = vmatpush1.bf16.msra.mxu0 0
      %1720 = vmatprep.subr.bf16.mxu0 0
      %1721 = vmatpush1.bf16.msra.mxu0 0
      %1722 = vmatprep.subr.bf16.mxu0 0
      %1723 = vmatpush1.bf16.msra.mxu0 0
      %1724 = vmatprep.subr.bf16.mxu0 0
      %1725 = vmatpush1.bf16.msra.mxu0 0
      %1726 = vmatprep.subr.bf16.mxu0 0
      %1727 = vmatpush1.bf16.msra.mxu0 0
      %1728 = vmatprep.subr.bf16.mxu0 0
      %1729 = vmatpush1.bf16.msra.mxu0 0
      %1730 = vmatprep.subr.bf16.mxu0 0
      %1731 = vmatpush1.bf16.msra.mxu0 0
      %1732 = vmatprep.subr.bf16.mxu0 0
      %1733 = vmatpush1.bf16.msra.mxu0 0
      %1734 = vmatprep.subr.bf16.mxu0 0
      %1735 = vmatpush1.bf16.msra.mxu0 0
      %1736 = vmatprep.mubr.bf16.mxu0 0
      %1737 = vmatmul.mubr.bf16.gmra.mrb[0].mxu0 %v1630
      %v1738 = vpop.f32.mrb[0].mxu0
      %v1739 = vadd.f32 0.0, %v1738
      %v1740 = vpop.f32.mrb[0].mxu0
      %v1741 = vpop.f32.mrb[0].mxu0
      %v1742 = vadd.f32 0.0, %v1741
      %v1743 = vpop.f32.mrb[0].mxu0
      %1744 = vmatprep.mubr.bf16.mxu0 0
      %1745 = vmatmul.mubr.bf16.gmra.mrb[0].mxu0 %v1633
      %v1746 = vpop.f32.mrb[0].mxu0
      %v1747 = vadd.f32 0.0, %v1746
      %v1748 = vpop.f32.mrb[0].mxu0
      %v1749 = vpop.f32.mrb[0].mxu0
      %v1750 = vadd.f32 0.0, %v1749
      %v1751 = vpop.f32.mrb[0].mxu0
      %1752 = vmatprep.mubr.bf16.mxu0 0
      %1753 = vmatmul.mubr.bf16.gmra.mrb[0].mxu0 %v1636
      %v1754 = vpop.f32.mrb[0].mxu0
      %v1755 = vadd.f32 0.0, %v1754
      %v1756 = vpop.f32.mrb[0].mxu0
      %v1757 = vpop.f32.mrb[0].mxu0
      %v1758 = vadd.f32 0.0, %v1757
      %v1759 = vpop.f32.mrb[0].mxu0
      %1760 = vmatprep.mubr.bf16.mxu0 0
      %1761 = vmatmul.mubr.bf16.gmra.mrb[0].mxu0 %v1639
      %v1762 = vpop.f32.mrb[0].mxu0
      %v1763 = vadd.f32 0.0, %v1762
      %v1764 = vpop.f32.mrb[0].mxu0
      %v1765 = vpop.f32.mrb[0].mxu0
      %v1766 = vadd.f32 0.0, %v1765
      %v1767 = vpop.f32.mrb[0].mxu0
      %1768 = vmatprep.mubr.bf16.mxu0 0
      %1769 = vmatmul.mubr.bf16.gmra.mrb[0].mxu0 %v1642
      %v1770 = vpop.f32.mrb[0].mxu0
      %v1771 = vadd.f32 0.0, %v1770
      %v1772 = vpop.f32.mrb[0].mxu0
      %v1773 = vpop.f32.mrb[0].mxu0
      %v1774 = vadd.f32 0.0, %v1773
      %v1775 = vpop.f32.mrb[0].mxu0
      %1776 = vmatprep.mubr.bf16.mxu0 0
      %1777 = vmatmul.mubr.bf16.gmra.mrb[0].mxu0 %v1645
      %v1778 = vpop.f32.mrb[0].mxu0
      %v1779 = vadd.f32 0.0, %v1778
      %v1780 = vpop.f32.mrb[0].mxu0
      %v1781 = vpop.f32.mrb[0].mxu0
      %v1782 = vadd.f32 0.0, %v1781
      %v1783 = vpop.f32.mrb[0].mxu0
      %1784 = vmatprep.mubr.bf16.mxu0 0
      %1785 = vmatmul.mubr.bf16.gmra.mrb[0].mxu0 %v1648
      %v1786 = vpop.f32.mrb[0].mxu0
      %v1787 = vadd.f32 0.0, %v1786
      %v1788 = vpop.f32.mrb[0].mxu0
      %v1789 = vpop.f32.mrb[0].mxu0
      %v1790 = vadd.f32 0.0, %v1789
      %v1791 = vpop.f32.mrb[0].mxu0
      %1792 = vmatprep.mubr.bf16.mxu0 0
      %1793 = vmatmul.mubr.bf16.gmra.mrb[0].mxu0 %v1651
      %v1794 = vpop.f32.mrb[0].mxu0
      %v1795 = vadd.f32 0.0, %v1794
      %v1796 = vpop.f32.mrb[0].mxu0
      %v1797 = vpop.f32.mrb[0].mxu0
      %v1798 = vadd.f32 0.0, %v1797
      %v1799 = vpop.f32.mrb[0].mxu0
      %1800 = vmatprep.mubr.bf16.mxu0 0
      %1801 = vmatmul.mubr.bf16.gmra.mrb[0].mxu0 %v1654
      %v1802 = vpop.f32.mrb[0].mxu0
      %v1803 = vadd.f32 0.0, %v1802
      %v1804 = vpop.f32.mrb[0].mxu0
      %v1805 = vpop.f32.mrb[0].mxu0
      %v1806 = vadd.f32 0.0, %v1805
      %v1807 = vpop.f32.mrb[0].mxu0
      %1808 = vmatprep.mubr.bf16.mxu0 0
      %1809 = vmatmul.mubr.bf16.gmra.mrb[0].mxu0 %v1657
      %v1810 = vpop.f32.mrb[0].mxu0
      %v1811 = vadd.f32 0.0, %v1810
      %v1812 = vpop.f32.mrb[0].mxu0
      %v1813 = vpop.f32.mrb[0].mxu0
      %v1814 = vadd.f32 0.0, %v1813
      %v1815 = vpop.f32.mrb[0].mxu0
      %1816 = vmatprep.mubr.bf16.mxu0 0
      %1817 = vmatmul.mubr.bf16.gmra.mrb[0].mxu0 %v1660
      %v1818 = vpop.f32.mrb[0].mxu0
      %v1819 = vadd.f32 0.0, %v1818
      %v1820 = vpop.f32.mrb[0].mxu0
      %v1821 = vpop.f32.mrb[0].mxu0
      %v1822 = vadd.f32 0.0, %v1821
      %v1823 = vpop.f32.mrb[0].mxu0
      %1824 = vmatprep.mubr.bf16.mxu0 0
      %1825 = vmatmul.mubr.bf16.gmra.mrb[0].mxu0 %v1663
      %v1826 = vpop.f32.mrb[0].mxu0
      %v1827 = vadd.f32 0.0, %v1826
      %v1828 = vpop.f32.mrb[0].mxu0
      %v1829 = vpop.f32.mrb[0].mxu0
      %v1830 = vadd.f32 0.0, %v1829
      %v1831 = vpop.f32.mrb[0].mxu0
      %1832 = vmatprep.mubr.bf16.mxu0 0
      %1833 = vmatmul.mubr.bf16.gmra.mrb[0].mxu0 %v1666
      %v1834 = vpop.f32.mrb[0].mxu0
      %v1835 = vadd.f32 0.0, %v1834
      %v1836 = vpop.f32.mrb[0].mxu0
      %v1837 = vpop.f32.mrb[0].mxu0
      %v1838 = vadd.f32 0.0, %v1837
      %v1839 = vpop.f32.mrb[0].mxu0
      %1840 = vmatprep.mubr.bf16.mxu0 0
      %1841 = vmatmul.mubr.bf16.gmra.mrb[0].mxu0 %v1669
      %v1842 = vpop.f32.mrb[0].mxu0
      %v1843 = vadd.f32 0.0, %v1842
      %v1844 = vpop.f32.mrb[0].mxu0
      %v1845 = vpop.f32.mrb[0].mxu0
      %v1846 = vadd.f32 0.0, %v1845
      %v1847 = vpop.f32.mrb[0].mxu0
      %1848 = vmatprep.mubr.bf16.mxu0 0
      %1849 = vmatmul.mubr.bf16.gmra.mrb[0].mxu0 %v1672
      %v1850 = vpop.f32.mrb[0].mxu0
      %v1851 = vadd.f32 0.0, %v1850
      %v1852 = vpop.f32.mrb[0].mxu0
      %v1853 = vpop.f32.mrb[0].mxu0
      %v1854 = vadd.f32 0.0, %v1853
      %v1855 = vpop.f32.mrb[0].mxu0
      %1856 = vmatprep.mubr.bf16.mxu0 0
      %1857 = vmatmul.mubr.bf16.gmra.mrb[0].mxu0 %v1675
      %v1858 = vpop.f32.mrb[0].mxu0
      %v1859 = vadd.f32 0.0, %v1858
      %v1860 = vpop.f32.mrb[0].mxu0
      %v1861 = vpop.f32.mrb[0].mxu0
      %v1862 = vadd.f32 0.0, %v1861
      %v1863 = vpop.f32.mrb[0].mxu0
      %1864 = vmatprep.mubr.bf16.mxu0 0
      %1865 = vmatmul.mubr.bf16.gmra.mrb[0].mxu0 %v1678
      %v1866 = vpop.f32.mrb[0].mxu0
      %v1867 = vadd.f32 0.0, %v1866
      %v1868 = vpop.f32.mrb[0].mxu0
      %v1869 = vpop.f32.mrb[0].mxu0
      %v1870 = vadd.f32 0.0, %v1869
      %v1871 = vpop.f32.mrb[0].mxu0
      %1872 = vmatprep.mubr.bf16.mxu0 0
      %1873 = vmatmul.mubr.bf16.gmra.mrb[0].mxu0 %v1681
      %v1874 = vpop.f32.mrb[0].mxu0
      %v1875 = vadd.f32 0.0, %v1874
      %v1876 = vpop.f32.mrb[0].mxu0
      %v1877 = vpop.f32.mrb[0].mxu0
      %v1878 = vadd.f32 0.0, %v1877
      %v1879 = vpop.f32.mrb[0].mxu0
      %1880 = vmatprep.mubr.bf16.mxu0 0
      %1881 = vmatmul.mubr.bf16.gmra.mrb[0].mxu0 %v1684
      %v1882 = vpop.f32.mrb[0].mxu0
      %v1883 = vadd.f32 0.0, %v1882
      %v1884 = vpop.f32.mrb[0].mxu0
      %v1885 = vpop.f32.mrb[0].mxu0
      %v1886 = vadd.f32 0.0, %v1885
      %v1887 = vpop.f32.mrb[0].mxu0
      %1888 = vmatprep.mubr.bf16.mxu0 0
      %1889 = vmatmul.mubr.bf16.gmra.mrb[0].mxu0 %v1687
      %v1890 = vpop.f32.mrb[0].mxu0
      %v1891 = vadd.f32 0.0, %v1890
      %v1892 = vpop.f32.mrb[0].mxu0
      %v1893 = vpop.f32.mrb[0].mxu0
      %v1894 = vadd.f32 0.0, %v1893
      %v1895 = vpop.f32.mrb[0].mxu0
      %1896 = vmatprep.mubr.bf16.mxu0 0
      %1897 = vmatmul.mubr.bf16.gmra.mrb[0].mxu0 %v1690
      %v1898 = vpop.f32.mrb[0].mxu0
      %v1899 = vadd.f32 0.0, %v1898
      %v1900 = vpop.f32.mrb[0].mxu0
      %v1901 = vpop.f32.mrb[0].mxu0
      %v1902 = vadd.f32 0.0, %v1901
      %v1903 = vpop.f32.mrb[0].mxu0
      %1904 = vmatprep.mubr.bf16.mxu0 0
      %1905 = vmatmul.mubr.bf16.gmra.mrb[0].mxu0 %v1693
      %v1906 = vpop.f32.mrb[0].mxu0
      %v1907 = vadd.f32 0.0, %v1906
      %v1908 = vpop.f32.mrb[0].mxu0
      %v1909 = vpop.f32.mrb[0].mxu0
      %v1910 = vadd.f32 0.0, %v1909
      %v1911 = vpop.f32.mrb[0].mxu0
      %1912 = vmatprep.mubr.bf16.mxu0 0
      %1913 = vmatmul.mubr.bf16.gmra.mrb[0].mxu0 %v1696
      %v1914 = vpop.f32.mrb[0].mxu0
      %v1915 = vadd.f32 0.0, %v1914
      %v1916 = vpop.f32.mrb[0].mxu0
      %v1917 = vpop.f32.mrb[0].mxu0
      %v1918 = vadd.f32 0.0, %v1917
      %v1919 = vpop.f32.mrb[0].mxu0
      %1920 = vmatprep.mubr.bf16.mxu0 0
      %1921 = vmatmul.mubr.bf16.gmra.mrb[0].mxu0 %v1699
      %v1922 = vpop.f32.mrb[0].mxu0
      %v1923 = vadd.f32 0.0, %v1922
      %v1924 = vpop.f32.mrb[0].mxu0
      %v1925 = vpop.f32.mrb[0].mxu0
      %v1926 = vadd.f32 0.0, %v1925
      %v1927 = vpop.f32.mrb[0].mxu0
      %1928 = vdwg.mxu0
      %v1929 = vadd.f32 %v1551, %v1739
      %v1930 = vadd.f32 %v1552, %v1742
      %v1931 = vadd.f32 %v1553, %v1747
      %v1932 = vadd.f32 %v1554, %v1750
      %v1933 = vadd.f32 %v1555, %v1755
      %v1934 = vadd.f32 %v1556, %v1758
      %v1935 = vadd.f32 %v1557, %v1763
      %v1936 = vadd.f32 %v1558, %v1766
      %v1937 = vadd.f32 %v1559, %v1771
      %v1938 = vadd.f32 %v1560, %v1774
      %v1939 = vadd.f32 %v1561, %v1779
      %v1940 = vadd.f32 %v1562, %v1782
      %v1941 = vadd.f32 %v1563, %v1787
      %v1942 = vadd.f32 %v1564, %v1790
      %v1943 = vadd.f32 %v1565, %v1795
      %v1944 = vadd.f32 %v1566, %v1798
      %v1945 = vadd.f32 %v1567, %v1803
      %v1946 = vadd.f32 %v1568, %v1806
      %v1947 = vadd.f32 %v1569, %v1811
      %v1948 = vadd.f32 %v1570, %v1814
      %v1949 = vadd.f32 %v1571, %v1819
      %v1950 = vadd.f32 %v1572, %v1822
      %v1951 = vadd.f32 %v1573, %v1827
      %v1952 = vadd.f32 %v1574, %v1830
      %v1953 = vadd.f32 %v1575, %v1835
      %v1954 = vadd.f32 %v1576, %v1838
      %v1955 = vadd.f32 %v1577, %v1843
      %v1956 = vadd.f32 %v1578, %v1846
      %v1957 = vadd.f32 %v1579, %v1851
      %v1958 = vadd.f32 %v1580, %v1854
      %v1959 = vadd.f32 %v1581, %v1859
      %v1960 = vadd.f32 %v1582, %v1862
      %v1961 = vadd.f32 %v1583, %v1867
      %v1962 = vadd.f32 %v1584, %v1870
      %v1963 = vadd.f32 %v1585, %v1875
      %v1964 = vadd.f32 %v1586, %v1878
      %v1965 = vadd.f32 %v1587, %v1883
      %v1966 = vadd.f32 %v1588, %v1886
      %v1967 = vadd.f32 %v1589, %v1891
      %v1968 = vadd.f32 %v1590, %v1894
      %v1969 = vadd.f32 %v1591, %v1899
      %v1970 = vadd.f32 %v1592, %v1902
      %v1971 = vadd.f32 %v1593, %v1907
      %v1972 = vadd.f32 %v1594, %v1910
      %v1973 = vadd.f32 %v1595, %v1915
      %v1974 = vadd.f32 %v1596, %v1918
      %v1975 = vadd.f32 %v1597, %v1923
      %v1976 = vadd.f32 %v1598, %v1926
      %s1977 = scalar_lea.vmem %s232, 16
      %v1978 = vld [vmem:[%s1977] sm:$0xf]
      %v1980 = vunpack.c.l.b16 %v294
      %v1981 = vpack.c.b16 %v1980, %v1980
      %v1982 = vshrl.u32 %v1605, 16
      %v1984 = vshll.u32 %v1605, 16
      %v1986 = vrot.slane %v1984, 1
      %v1987 = vor.u32 %v1982, %v1986
      %v1988 = vshll.u32 %v1606, 16
      %v1990 = vrot.slane %v1988, 1
      %v1991 = vsel %vm424, %v1987, %v1990
      %v1992 = vshrl.u32 %v1606, 16
      %v1994 = vor.u32 %v1992, %v1990
      %v1995 = vshll.u32 %v1607, 16
      %v1997 = vrot.slane %v1995, 1
      %v1998 = vsel %vm424, %v1994, %v1997
      %v1999 = vshrl.u32 %v1607, 16
      %v2001 = vor.u32 %v1999, %v1997
      %v2002 = vshll.u32 %v1608, 16
      %v2004 = vrot.slane %v2002, 1
      %v2005 = vsel %vm424, %v2001, %v2004
      %v2006 = vshrl.u32 %v1608, 16
      %v2008 = vor.u32 %v2006, %v2004
      %v2009 = vshll.u32 %v1609, 16
      %v2011 = vrot.slane %v2009, 1
      %v2012 = vsel %vm424, %v2008, %v2011
      %v2013 = vshrl.u32 %v1609, 16
      %v2015 = vor.u32 %v2013, %v2011
      %v2016 = vshll.u32 %v1610, 16
      %v2018 = vrot.slane %v2016, 1
      %v2019 = vsel %vm424, %v2015, %v2018
      %v2020 = vshrl.u32 %v1610, 16
      %v2022 = vor.u32 %v2020, %v2018
      %v2023 = vshll.u32 %v1611, 16
      %v2025 = vrot.slane %v2023, 1
      %v2026 = vsel %vm424, %v2022, %v2025
      %v2027 = vshrl.u32 %v1611, 16
      %v2029 = vor.u32 %v2027, %v2025
      %v2030 = vshll.u32 %v1612, 16
      %v2032 = vrot.slane %v2030, 1
      %v2033 = vsel %vm424, %v2029, %v2032
      %v2034 = vshrl.u32 %v1612, 16
      %v2036 = vor.u32 %v2034, %v2032
      %v2037 = vshll.u32 %v1613, 16
      %v2039 = vrot.slane %v2037, 1
      %v2040 = vsel %vm424, %v2036, %v2039
      %v2041 = vshrl.u32 %v1613, 16
      %v2043 = vor.u32 %v2041, %v2039
      %v2044 = vshll.u32 %v1614, 16
      %v2046 = vrot.slane %v2044, 1
      %v2047 = vsel %vm424, %v2043, %v2046
      %v2048 = vshrl.u32 %v1614, 16
      %v2050 = vor.u32 %v2048, %v2046
      %v2051 = vshll.u32 %v1615, 16
      %v2053 = vrot.slane %v2051, 1
      %v2054 = vsel %vm424, %v2050, %v2053
      %v2055 = vshrl.u32 %v1615, 16
      %v2057 = vor.u32 %v2055, %v2053
      %v2058 = vshll.u32 %v1616, 16
      %v2060 = vrot.slane %v2058, 1
      %v2061 = vsel %vm424, %v2057, %v2060
      %v2062 = vshrl.u32 %v1616, 16
      %v2064 = vor.u32 %v2062, %v2060
      %v2065 = vshll.u32 %v1617, 16
      %v2067 = vrot.slane %v2065, 1
      %v2068 = vsel %vm424, %v2064, %v2067
      %v2069 = vshrl.u32 %v1617, 16
      %v2071 = vor.u32 %v2069, %v2067
      %v2072 = vshll.u32 %v1618, 16
      %v2074 = vrot.slane %v2072, 1
      %v2075 = vsel %vm424, %v2071, %v2074
      %v2076 = vshrl.u32 %v1618, 16
      %v2078 = vor.u32 %v2076, %v2074
      %v2079 = vshll.u32 %v1619, 16
      %v2081 = vrot.slane %v2079, 1
      %v2082 = vsel %vm424, %v2078, %v2081
      %v2083 = vshrl.u32 %v1619, 16
      %v2085 = vor.u32 %v2083, %v2081
      %v2086 = vshll.u32 %v1620, 16
      %v2088 = vrot.slane %v2086, 1
      %v2089 = vsel %vm424, %v2085, %v2088
      %v2090 = vshrl.u32 %v1620, 16
      %v2092 = vor.u32 %v2090, %v2088
      %v2093 = vshll.u32 %v1621, 16
      %v2095 = vrot.slane %v2093, 1
      %v2096 = vsel %vm424, %v2092, %v2095
      %v2097 = vshrl.u32 %v1621, 16
      %v2099 = vor.u32 %v2097, %v2095
      %v2100 = vshll.u32 %v1622, 16
      %v2102 = vrot.slane %v2100, 1
      %v2103 = vsel %vm424, %v2099, %v2102
      %v2104 = vshrl.u32 %v1622, 16
      %v2106 = vor.u32 %v2104, %v2102
      %v2107 = vshll.u32 %v1623, 16
      %v2109 = vrot.slane %v2107, 1
      %v2110 = vsel %vm424, %v2106, %v2109
      %v2111 = vshrl.u32 %v1623, 16
      %v2113 = vor.u32 %v2111, %v2109
      %v2114 = vshll.u32 %v1624, 16
      %v2116 = vrot.slane %v2114, 1
      %v2117 = vsel %vm424, %v2113, %v2116
      %v2118 = vshrl.u32 %v1624, 16
      %v2120 = vor.u32 %v2118, %v2116
      %v2121 = vshll.u32 %v1625, 16
      %v2123 = vrot.slane %v2121, 1
      %v2124 = vsel %vm424, %v2120, %v2123
      %v2125 = vshrl.u32 %v1625, 16
      %v2127 = vor.u32 %v2125, %v2123
      %v2128 = vshll.u32 %v1626, 16
      %v2130 = vrot.slane %v2128, 1
      %v2131 = vsel %vm424, %v2127, %v2130
      %v2132 = vshrl.u32 %v1626, 16
      %v2134 = vor.u32 %v2132, %v2130
      %v2135 = vshll.u32 %v1627, 16
      %v2137 = vrot.slane %v2135, 1
      %v2138 = vsel %vm424, %v2134, %v2137
      %v2139 = vshrl.u32 %v1627, 16
      %v2141 = vor.u32 %v2139, %v2137
      %v2142 = vshll.u32 %v1628, 16
      %v2144 = vrot.slane %v2142, 1
      %v2145 = vsel %vm424, %v2141, %v2144
      %v2146 = vshrl.u32 %v1628, 16
      %v2148 = vor.u32 %v2146, %v2144
      %v2150 = vshll.u32 %v1981, 16
      %v2152 = vrot.slane %v2150, 1
      %v2153 = vsel %vm424, %v2148, %v2152
      %v2155 = vsel %vm621, %v1991, 0
      %v2158 = vsel %vm621, %v1998, 0
      %v2161 = vsel %vm621, %v2005, 0
      %v2164 = vsel %vm621, %v2012, 0
      %v2167 = vsel %vm621, %v2019, 0
      %v2170 = vsel %vm621, %v2026, 0
      %v2173 = vsel %vm621, %v2033, 0
      %v2176 = vsel %vm621, %v2040, 0
      %v2179 = vsel %vm621, %v2047, 0
      %v2182 = vsel %vm621, %v2054, 0
      %v2185 = vsel %vm621, %v2061, 0
      %v2188 = vsel %vm621, %v2068, 0
      %v2191 = vsel %vm621, %v2075, 0
      %v2194 = vsel %vm621, %v2082, 0
      %v2197 = vsel %vm621, %v2089, 0
      %v2200 = vsel %vm621, %v2096, 0
      %v2203 = vsel %vm621, %v2103, 0
      %v2206 = vsel %vm621, %v2110, 0
      %v2209 = vsel %vm621, %v2117, 0
      %v2212 = vsel %vm621, %v2124, 0
      %v2215 = vsel %vm621, %v2131, 0
      %v2218 = vsel %vm621, %v2138, 0
      %v2221 = vsel %vm621, %v2145, 0
      %v2224 = vsel %vm621, %v2153, 0
      %v2227 = vsel %vm694, %v1978, 0
      %2229 = vmatprep.subr.bf16.mxu0 0
      %2230 = vmatpush1.bf16.msra.mxu0 %v2227
      %2231 = vmatprep.subr.bf16.mxu0 0
      %2232 = vmatpush1.bf16.msra.mxu0 0
      %2233 = vmatprep.subr.bf16.mxu0 0
      %2234 = vmatpush1.bf16.msra.mxu0 0
      %2235 = vmatprep.subr.bf16.mxu0 0
      %2236 = vmatpush1.bf16.msra.mxu0 0
      %2237 = vmatprep.subr.bf16.mxu0 0
      %2238 = vmatpush1.bf16.msra.mxu0 0
      %2239 = vmatprep.subr.bf16.mxu0 0
      %2240 = vmatpush1.bf16.msra.mxu0 0
      %2241 = vmatprep.subr.bf16.mxu0 0
      %2242 = vmatpush1.bf16.msra.mxu0 0
      %2243 = vmatprep.subr.bf16.mxu0 0
      %2244 = vmatpush1.bf16.msra.mxu0 0
      %2245 = vmatprep.subr.bf16.mxu0 0
      %2246 = vmatpush1.bf16.msra.mxu0 0
      %2247 = vmatprep.subr.bf16.mxu0 0
      %2248 = vmatpush1.bf16.msra.mxu0 0
      %2249 = vmatprep.subr.bf16.mxu0 0
      %2250 = vmatpush1.bf16.msra.mxu0 0
      %2251 = vmatprep.subr.bf16.mxu0 0
      %2252 = vmatpush1.bf16.msra.mxu0 0
      %2253 = vmatprep.subr.bf16.mxu0 0
      %2254 = vmatpush1.bf16.msra.mxu0 0
      %2255 = vmatprep.subr.bf16.mxu0 0
      %2256 = vmatpush1.bf16.msra.mxu0 0
      %2257 = vmatprep.subr.bf16.mxu0 0
      %2258 = vmatpush1.bf16.msra.mxu0 0
      %2259 = vmatprep.subr.bf16.mxu0 0
      %2260 = vmatpush1.bf16.msra.mxu0 0
      %2261 = vmatprep.mubr.bf16.mxu0 0
      %2262 = vmatmul.mubr.bf16.gmra.mrb[0].mxu0 %v2155
      %v2263 = vpop.f32.mrb[0].mxu0
      %v2264 = vadd.f32 0.0, %v2263
      %v2265 = vpop.f32.mrb[0].mxu0
      %v2266 = vpop.f32.mrb[0].mxu0
      %v2267 = vadd.f32 0.0, %v2266
      %v2268 = vpop.f32.mrb[0].mxu0
      %2269 = vmatprep.mubr.bf16.mxu0 0
      %2270 = vmatmul.mubr.bf16.gmra.mrb[0].mxu0 %v2158
      %v2271 = vpop.f32.mrb[0].mxu0
      %v2272 = vadd.f32 0.0, %v2271
      %v2273 = vpop.f32.mrb[0].mxu0
      %v2274 = vpop.f32.mrb[0].mxu0
      %v2275 = vadd.f32 0.0, %v2274
      %v2276 = vpop.f32.mrb[0].mxu0
      %2277 = vmatprep.mubr.bf16.mxu0 0
      %2278 = vmatmul.mubr.bf16.gmra.mrb[0].mxu0 %v2161
      %v2279 = vpop.f32.mrb[0].mxu0
      %v2280 = vadd.f32 0.0, %v2279
      %v2281 = vpop.f32.mrb[0].mxu0
      %v2282 = vpop.f32.mrb[0].mxu0
      %v2283 = vadd.f32 0.0, %v2282
      %v2284 = vpop.f32.mrb[0].mxu0
      %2285 = vmatprep.mubr.bf16.mxu0 0
      %2286 = vmatmul.mubr.bf16.gmra.mrb[0].mxu0 %v2164
      %v2287 = vpop.f32.mrb[0].mxu0
      %v2288 = vadd.f32 0.0, %v2287
      %v2289 = vpop.f32.mrb[0].mxu0
      %v2290 = vpop.f32.mrb[0].mxu0
      %v2291 = vadd.f32 0.0, %v2290
      %v2292 = vpop.f32.mrb[0].mxu0
      %2293 = vmatprep.mubr.bf16.mxu0 0
      %2294 = vmatmul.mubr.bf16.gmra.mrb[0].mxu0 %v2167
      %v2295 = vpop.f32.mrb[0].mxu0
      %v2296 = vadd.f32 0.0, %v2295
      %v2297 = vpop.f32.mrb[0].mxu0
      %v2298 = vpop.f32.mrb[0].mxu0
      %v2299 = vadd.f32 0.0, %v2298
      %v2300 = vpop.f32.mrb[0].mxu0
      %2301 = vmatprep.mubr.bf16.mxu0 0
      %2302 = vmatmul.mubr.bf16.gmra.mrb[0].mxu0 %v2170
      %v2303 = vpop.f32.mrb[0].mxu0
      %v2304 = vadd.f32 0.0, %v2303
      %v2305 = vpop.f32.mrb[0].mxu0
      %v2306 = vpop.f32.mrb[0].mxu0
      %v2307 = vadd.f32 0.0, %v2306
      %v2308 = vpop.f32.mrb[0].mxu0
      %2309 = vmatprep.mubr.bf16.mxu0 0
      %2310 = vmatmul.mubr.bf16.gmra.mrb[0].mxu0 %v2173
      %v2311 = vpop.f32.mrb[0].mxu0
      %v2312 = vadd.f32 0.0, %v2311
      %v2313 = vpop.f32.mrb[0].mxu0
      %v2314 = vpop.f32.mrb[0].mxu0
      %v2315 = vadd.f32 0.0, %v2314
      %v2316 = vpop.f32.mrb[0].mxu0
      %2317 = vmatprep.mubr.bf16.mxu0 0
      %2318 = vmatmul.mubr.bf16.gmra.mrb[0].mxu0 %v2176
      %v2319 = vpop.f32.mrb[0].mxu0
      %v2320 = vadd.f32 0.0, %v2319
      %v2321 = vpop.f32.mrb[0].mxu0
      %v2322 = vpop.f32.mrb[0].mxu0
      %v2323 = vadd.f32 0.0, %v2322
      %v2324 = vpop.f32.mrb[0].mxu0
      %2325 = vmatprep.mubr.bf16.mxu0 0
      %2326 = vmatmul.mubr.bf16.gmra.mrb[0].mxu0 %v2179
      %v2327 = vpop.f32.mrb[0].mxu0
      %v2328 = vadd.f32 0.0, %v2327
      %v2329 = vpop.f32.mrb[0].mxu0
      %v2330 = vpop.f32.mrb[0].mxu0
      %v2331 = vadd.f32 0.0, %v2330
      %v2332 = vpop.f32.mrb[0].mxu0
      %2333 = vmatprep.mubr.bf16.mxu0 0
      %2334 = vmatmul.mubr.bf16.gmra.mrb[0].mxu0 %v2182
      %v2335 = vpop.f32.mrb[0].mxu0
      %v2336 = vadd.f32 0.0, %v2335
      %v2337 = vpop.f32.mrb[0].mxu0
      %v2338 = vpop.f32.mrb[0].mxu0
      %v2339 = vadd.f32 0.0, %v2338
      %v2340 = vpop.f32.mrb[0].mxu0
      %2341 = vmatprep.mubr.bf16.mxu0 0
      %2342 = vmatmul.mubr.bf16.gmra.mrb[0].mxu0 %v2185
      %v2343 = vpop.f32.mrb[0].mxu0
      %v2344 = vadd.f32 0.0, %v2343
      %v2345 = vpop.f32.mrb[0].mxu0
      %v2346 = vpop.f32.mrb[0].mxu0
      %v2347 = vadd.f32 0.0, %v2346
      %v2348 = vpop.f32.mrb[0].mxu0
      %2349 = vmatprep.mubr.bf16.mxu0 0
      %2350 = vmatmul.mubr.bf16.gmra.mrb[0].mxu0 %v2188
      %v2351 = vpop.f32.mrb[0].mxu0
      %v2352 = vadd.f32 0.0, %v2351
      %v2353 = vpop.f32.mrb[0].mxu0
      %v2354 = vpop.f32.mrb[0].mxu0
      %v2355 = vadd.f32 0.0, %v2354
      %v2356 = vpop.f32.mrb[0].mxu0
      %2357 = vmatprep.mubr.bf16.mxu0 0
      %2358 = vmatmul.mubr.bf16.gmra.mrb[0].mxu0 %v2191
      %v2359 = vpop.f32.mrb[0].mxu0
      %v2360 = vadd.f32 0.0, %v2359
      %v2361 = vpop.f32.mrb[0].mxu0
      %v2362 = vpop.f32.mrb[0].mxu0
      %v2363 = vadd.f32 0.0, %v2362
      %v2364 = vpop.f32.mrb[0].mxu0
      %2365 = vmatprep.mubr.bf16.mxu0 0
      %2366 = vmatmul.mubr.bf16.gmra.mrb[0].mxu0 %v2194
      %v2367 = vpop.f32.mrb[0].mxu0
      %v2368 = vadd.f32 0.0, %v2367
      %v2369 = vpop.f32.mrb[0].mxu0
      %v2370 = vpop.f32.mrb[0].mxu0
      %v2371 = vadd.f32 0.0, %v2370
      %v2372 = vpop.f32.mrb[0].mxu0
      %2373 = vmatprep.mubr.bf16.mxu0 0
      %2374 = vmatmul.mubr.bf16.gmra.mrb[0].mxu0 %v2197
      %v2375 = vpop.f32.mrb[0].mxu0
      %v2376 = vadd.f32 0.0, %v2375
      %v2377 = vpop.f32.mrb[0].mxu0
      %v2378 = vpop.f32.mrb[0].mxu0
      %v2379 = vadd.f32 0.0, %v2378
      %v2380 = vpop.f32.mrb[0].mxu0
      %2381 = vmatprep.mubr.bf16.mxu0 0
      %2382 = vmatmul.mubr.bf16.gmra.mrb[0].mxu0 %v2200
      %v2383 = vpop.f32.mrb[0].mxu0
      %v2384 = vadd.f32 0.0, %v2383
      %v2385 = vpop.f32.mrb[0].mxu0
      %v2386 = vpop.f32.mrb[0].mxu0
      %v2387 = vadd.f32 0.0, %v2386
      %v2388 = vpop.f32.mrb[0].mxu0
      %2389 = vmatprep.mubr.bf16.mxu0 0
      %2390 = vmatmul.mubr.bf16.gmra.mrb[0].mxu0 %v2203
      %v2391 = vpop.f32.mrb[0].mxu0
      %v2392 = vadd.f32 0.0, %v2391
      %v2393 = vpop.f32.mrb[0].mxu0
      %v2394 = vpop.f32.mrb[0].mxu0
      %v2395 = vadd.f32 0.0, %v2394
      %v2396 = vpop.f32.mrb[0].mxu0
      %2397 = vmatprep.mubr.bf16.mxu0 0
      %2398 = vmatmul.mubr.bf16.gmra.mrb[0].mxu0 %v2206
      %v2399 = vpop.f32.mrb[0].mxu0
      %v2400 = vadd.f32 0.0, %v2399
      %v2401 = vpop.f32.mrb[0].mxu0
      %v2402 = vpop.f32.mrb[0].mxu0
      %v2403 = vadd.f32 0.0, %v2402
      %v2404 = vpop.f32.mrb[0].mxu0
      %2405 = vmatprep.mubr.bf16.mxu0 0
      %2406 = vmatmul.mubr.bf16.gmra.mrb[0].mxu0 %v2209
      %v2407 = vpop.f32.mrb[0].mxu0
      %v2408 = vadd.f32 0.0, %v2407
      %v2409 = vpop.f32.mrb[0].mxu0
      %v2410 = vpop.f32.mrb[0].mxu0
      %v2411 = vadd.f32 0.0, %v2410
      %v2412 = vpop.f32.mrb[0].mxu0
      %2413 = vmatprep.mubr.bf16.mxu0 0
      %2414 = vmatmul.mubr.bf16.gmra.mrb[0].mxu0 %v2212
      %v2415 = vpop.f32.mrb[0].mxu0
      %v2416 = vadd.f32 0.0, %v2415
      %v2417 = vpop.f32.mrb[0].mxu0
      %v2418 = vpop.f32.mrb[0].mxu0
      %v2419 = vadd.f32 0.0, %v2418
      %v2420 = vpop.f32.mrb[0].mxu0
      %2421 = vmatprep.mubr.bf16.mxu0 0
      %2422 = vmatmul.mubr.bf16.gmra.mrb[0].mxu0 %v2215
      %v2423 = vpop.f32.mrb[0].mxu0
      %v2424 = vadd.f32 0.0, %v2423
      %v2425 = vpop.f32.mrb[0].mxu0
      %v2426 = vpop.f32.mrb[0].mxu0
      %v2427 = vadd.f32 0.0, %v2426
      %v2428 = vpop.f32.mrb[0].mxu0
      %2429 = vmatprep.mubr.bf16.mxu0 0
      %2430 = vmatmul.mubr.bf16.gmra.mrb[0].mxu0 %v2218
      %v2431 = vpop.f32.mrb[0].mxu0
      %v2432 = vadd.f32 0.0, %v2431
      %v2433 = vpop.f32.mrb[0].mxu0
      %v2434 = vpop.f32.mrb[0].mxu0
      %v2435 = vadd.f32 0.0, %v2434
      %v2436 = vpop.f32.mrb[0].mxu0
      %2437 = vmatprep.mubr.bf16.mxu0 0
      %2438 = vmatmul.mubr.bf16.gmra.mrb[0].mxu0 %v2221
      %v2439 = vpop.f32.mrb[0].mxu0
      %v2440 = vadd.f32 0.0, %v2439
      %v2441 = vpop.f32.mrb[0].mxu0
      %v2442 = vpop.f32.mrb[0].mxu0
      %v2443 = vadd.f32 0.0, %v2442
      %v2444 = vpop.f32.mrb[0].mxu0
      %2445 = vmatprep.mubr.bf16.mxu0 0
      %2446 = vmatmul.mubr.bf16.gmra.mrb[0].mxu0 %v2224
      %v2447 = vpop.f32.mrb[0].mxu0
      %v2448 = vadd.f32 0.0, %v2447
      %v2449 = vpop.f32.mrb[0].mxu0
      %v2450 = vpop.f32.mrb[0].mxu0
      %v2451 = vadd.f32 0.0, %v2450
      %v2452 = vpop.f32.mrb[0].mxu0
      %2453 = vdwg.mxu0
      %v2454 = vadd.f32 %v1929, %v2264
      %v2455 = vadd.f32 %v1930, %v2267
      %v2456 = vadd.f32 %v1931, %v2272
      %v2457 = vadd.f32 %v1932, %v2275
      %v2458 = vadd.f32 %v1933, %v2280
      %v2459 = vadd.f32 %v1934, %v2283
      %v2460 = vadd.f32 %v1935, %v2288
      %v2461 = vadd.f32 %v1936, %v2291
      %v2462 = vadd.f32 %v1937, %v2296
      %v2463 = vadd.f32 %v1938, %v2299
      %v2464 = vadd.f32 %v1939, %v2304
      %v2465 = vadd.f32 %v1940, %v2307
      %v2466 = vadd.f32 %v1941, %v2312
      %v2467 = vadd.f32 %v1942, %v2315
      %v2468 = vadd.f32 %v1943, %v2320
      %v2469 = vadd.f32 %v1944, %v2323
      %v2470 = vadd.f32 %v1945, %v2328
      %v2471 = vadd.f32 %v1946, %v2331
      %v2472 = vadd.f32 %v1947, %v2336
      %v2473 = vadd.f32 %v1948, %v2339
      %v2474 = vadd.f32 %v1949, %v2344
      %v2475 = vadd.f32 %v1950, %v2347
      %v2476 = vadd.f32 %v1951, %v2352
      %v2477 = vadd.f32 %v1952, %v2355
      %v2478 = vadd.f32 %v1953, %v2360
      %v2479 = vadd.f32 %v1954, %v2363
      %v2480 = vadd.f32 %v1955, %v2368
      %v2481 = vadd.f32 %v1956, %v2371
      %v2482 = vadd.f32 %v1957, %v2376
      %v2483 = vadd.f32 %v1958, %v2379
      %v2484 = vadd.f32 %v1959, %v2384
      %v2485 = vadd.f32 %v1960, %v2387
      %v2486 = vadd.f32 %v1961, %v2392
      %v2487 = vadd.f32 %v1962, %v2395
      %v2488 = vadd.f32 %v1963, %v2400
      %v2489 = vadd.f32 %v1964, %v2403
      %v2490 = vadd.f32 %v1965, %v2408
      %v2491 = vadd.f32 %v1966, %v2411
      %v2492 = vadd.f32 %v1967, %v2416
      %v2493 = vadd.f32 %v1968, %v2419
      %v2494 = vadd.f32 %v1969, %v2424
      %v2495 = vadd.f32 %v1970, %v2427
      %v2496 = vadd.f32 %v1971, %v2432
      %v2497 = vadd.f32 %v1972, %v2435
      %v2498 = vadd.f32 %v1973, %v2440
      %v2499 = vadd.f32 %v1974, %v2443
      %v2500 = vadd.f32 %v1975, %v2448
      %v2501 = vadd.f32 %v1976, %v2451
      %s2502 = scalar_lea.vmem %s232, 20
      %v2503 = vld [vmem:[%s2502] sm:$0xf]
      %v2504 = vrot.slane %v1605, 1
      %v2505 = vrot.slane %v1606, 1
      %v2506 = vsel %vm1201, %v2504, %v2505
      %v2507 = vrot.slane %v1607, 1
      %v2508 = vsel %vm1201, %v2505, %v2507
      %v2509 = vrot.slane %v1608, 1
      %v2510 = vsel %vm1201, %v2507, %v2509
      %v2511 = vrot.slane %v1609, 1
      %v2512 = vsel %vm1201, %v2509, %v2511
      %v2513 = vrot.slane %v1610, 1
      %v2514 = vsel %vm1201, %v2511, %v2513
      %v2515 = vrot.slane %v1611, 1
      %v2516 = vsel %vm1201, %v2513, %v2515
      %v2517 = vrot.slane %v1612, 1
      %v2518 = vsel %vm1201, %v2515, %v2517
      %v2519 = vrot.slane %v1613, 1
      %v2520 = vsel %vm1201, %v2517, %v2519
      %v2521 = vrot.slane %v1614, 1
      %v2522 = vsel %vm1201, %v2519, %v2521
      %v2523 = vrot.slane %v1615, 1
      %v2524 = vsel %vm1201, %v2521, %v2523
      %v2525 = vrot.slane %v1616, 1
      %v2526 = vsel %vm1201, %v2523, %v2525
      %v2527 = vrot.slane %v1617, 1
      %v2528 = vsel %vm1201, %v2525, %v2527
      %v2529 = vrot.slane %v1618, 1
      %v2530 = vsel %vm1201, %v2527, %v2529
      %v2531 = vrot.slane %v1619, 1
      %v2532 = vsel %vm1201, %v2529, %v2531
      %v2533 = vrot.slane %v1620, 1
      %v2534 = vsel %vm1201, %v2531, %v2533
      %v2535 = vrot.slane %v1621, 1
      %v2536 = vsel %vm1201, %v2533, %v2535
      %v2537 = vrot.slane %v1622, 1
      %v2538 = vsel %vm1201, %v2535, %v2537
      %v2539 = vrot.slane %v1623, 1
      %v2540 = vsel %vm1201, %v2537, %v2539
      %v2541 = vrot.slane %v1624, 1
      %v2542 = vsel %vm1201, %v2539, %v2541
      %v2543 = vrot.slane %v1625, 1
      %v2544 = vsel %vm1201, %v2541, %v2543
      %v2545 = vrot.slane %v1626, 1
      %v2546 = vsel %vm1201, %v2543, %v2545
      %v2547 = vrot.slane %v1627, 1
      %v2548 = vsel %vm1201, %v2545, %v2547
      %v2549 = vrot.slane %v1628, 1
      %v2550 = vsel %vm1201, %v2547, %v2549
      %v2551 = vrot.slane %v1981, 1
      %v2552 = vsel %vm1201, %v2549, %v2551
      %v2554 = vsel %vm621, %v2506, 0
      %v2557 = vsel %vm621, %v2508, 0
      %v2560 = vsel %vm621, %v2510, 0
      %v2563 = vsel %vm621, %v2512, 0
      %v2566 = vsel %vm621, %v2514, 0
      %v2569 = vsel %vm621, %v2516, 0
      %v2572 = vsel %vm621, %v2518, 0
      %v2575 = vsel %vm621, %v2520, 0
      %v2578 = vsel %vm621, %v2522, 0
      %v2581 = vsel %vm621, %v2524, 0
      %v2584 = vsel %vm621, %v2526, 0
      %v2587 = vsel %vm621, %v2528, 0
      %v2590 = vsel %vm621, %v2530, 0
      %v2593 = vsel %vm621, %v2532, 0
      %v2596 = vsel %vm621, %v2534, 0
      %v2599 = vsel %vm621, %v2536, 0
      %v2602 = vsel %vm621, %v2538, 0
      %v2605 = vsel %vm621, %v2540, 0
      %v2608 = vsel %vm621, %v2542, 0
      %v2611 = vsel %vm621, %v2544, 0
      %v2614 = vsel %vm621, %v2546, 0
      %v2617 = vsel %vm621, %v2548, 0
      %v2620 = vsel %vm621, %v2550, 0
      %v2623 = vsel %vm621, %v2552, 0
      %v2626 = vsel %vm694, %v2503, 0
      %2628 = vmatprep.subr.bf16.mxu0 0
      %2629 = vmatpush1.bf16.msra.mxu0 %v2626
      %2630 = vmatprep.subr.bf16.mxu0 0
      %2631 = vmatpush1.bf16.msra.mxu0 0
      %2632 = vmatprep.subr.bf16.mxu0 0
      %2633 = vmatpush1.bf16.msra.mxu0 0
      %2634 = vmatprep.subr.bf16.mxu0 0
      %2635 = vmatpush1.bf16.msra.mxu0 0
      %2636 = vmatprep.subr.bf16.mxu0 0
      %2637 = vmatpush1.bf16.msra.mxu0 0
      %2638 = vmatprep.subr.bf16.mxu0 0
      %2639 = vmatpush1.bf16.msra.mxu0 0
      %2640 = vmatprep.subr.bf16.mxu0 0
      %2641 = vmatpush1.bf16.msra.mxu0 0
      %2642 = vmatprep.subr.bf16.mxu0 0
      %2643 = vmatpush1.bf16.msra.mxu0 0
      %2644 = vmatprep.subr.bf16.mxu0 0
      %2645 = vmatpush1.bf16.msra.mxu0 0
      %2646 = vmatprep.subr.bf16.mxu0 0
      %2647 = vmatpush1.bf16.msra.mxu0 0
      %2648 = vmatprep.subr.bf16.mxu0 0
      %2649 = vmatpush1.bf16.msra.mxu0 0
      %2650 = vmatprep.subr.bf16.mxu0 0
      %2651 = vmatpush1.bf16.msra.mxu0 0
      %2652 = vmatprep.subr.bf16.mxu0 0
      %2653 = vmatpush1.bf16.msra.mxu0 0
      %2654 = vmatprep.subr.bf16.mxu0 0
      %2655 = vmatpush1.bf16.msra.mxu0 0
      %2656 = vmatprep.subr.bf16.mxu0 0
      %2657 = vmatpush1.bf16.msra.mxu0 0
      %2658 = vmatprep.subr.bf16.mxu0 0
      %2659 = vmatpush1.bf16.msra.mxu0 0
      %2660 = vmatprep.mubr.bf16.mxu0 0
      %2661 = vmatmul.mubr.bf16.gmra.mrb[0].mxu0 %v2554
      %v2662 = vpop.f32.mrb[0].mxu0
      %v2663 = vadd.f32 0.0, %v2662
      %v2664 = vpop.f32.mrb[0].mxu0
      %v2665 = vpop.f32.mrb[0].mxu0
      %v2666 = vadd.f32 0.0, %v2665
      %v2667 = vpop.f32.mrb[0].mxu0
      %2668 = vmatprep.mubr.bf16.mxu0 0
      %2669 = vmatmul.mubr.bf16.gmra.mrb[0].mxu0 %v2557
      %v2670 = vpop.f32.mrb[0].mxu0
      %v2671 = vadd.f32 0.0, %v2670
      %v2672 = vpop.f32.mrb[0].mxu0
      %v2673 = vpop.f32.mrb[0].mxu0
      %v2674 = vadd.f32 0.0, %v2673
      %v2675 = vpop.f32.mrb[0].mxu0
      %2676 = vmatprep.mubr.bf16.mxu0 0
      %2677 = vmatmul.mubr.bf16.gmra.mrb[0].mxu0 %v2560
      %v2678 = vpop.f32.mrb[0].mxu0
      %v2679 = vadd.f32 0.0, %v2678
      %v2680 = vpop.f32.mrb[0].mxu0
      %v2681 = vpop.f32.mrb[0].mxu0
      %v2682 = vadd.f32 0.0, %v2681
      %v2683 = vpop.f32.mrb[0].mxu0
      %2684 = vmatprep.mubr.bf16.mxu0 0
      %2685 = vmatmul.mubr.bf16.gmra.mrb[0].mxu0 %v2563
      %v2686 = vpop.f32.mrb[0].mxu0
      %v2687 = vadd.f32 0.0, %v2686
      %v2688 = vpop.f32.mrb[0].mxu0
      %v2689 = vpop.f32.mrb[0].mxu0
      %v2690 = vadd.f32 0.0, %v2689
      %v2691 = vpop.f32.mrb[0].mxu0
      %2692 = vmatprep.mubr.bf16.mxu0 0
      %2693 = vmatmul.mubr.bf16.gmra.mrb[0].mxu0 %v2566
      %v2694 = vpop.f32.mrb[0].mxu0
      %v2695 = vadd.f32 0.0, %v2694
      %v2696 = vpop.f32.mrb[0].mxu0
      %v2697 = vpop.f32.mrb[0].mxu0
      %v2698 = vadd.f32 0.0, %v2697
      %v2699 = vpop.f32.mrb[0].mxu0
      %2700 = vmatprep.mubr.bf16.mxu0 0
      %2701 = vmatmul.mubr.bf16.gmra.mrb[0].mxu0 %v2569
      %v2702 = vpop.f32.mrb[0].mxu0
      %v2703 = vadd.f32 0.0, %v2702
      %v2704 = vpop.f32.mrb[0].mxu0
      %v2705 = vpop.f32.mrb[0].mxu0
      %v2706 = vadd.f32 0.0, %v2705
      %v2707 = vpop.f32.mrb[0].mxu0
      %2708 = vmatprep.mubr.bf16.mxu0 0
      %2709 = vmatmul.mubr.bf16.gmra.mrb[0].mxu0 %v2572
      %v2710 = vpop.f32.mrb[0].mxu0
      %v2711 = vadd.f32 0.0, %v2710
      %v2712 = vpop.f32.mrb[0].mxu0
      %v2713 = vpop.f32.mrb[0].mxu0
      %v2714 = vadd.f32 0.0, %v2713
      %v2715 = vpop.f32.mrb[0].mxu0
      %2716 = vmatprep.mubr.bf16.mxu0 0
      %2717 = vmatmul.mubr.bf16.gmra.mrb[0].mxu0 %v2575
      %v2718 = vpop.f32.mrb[0].mxu0
      %v2719 = vadd.f32 0.0, %v2718
      %v2720 = vpop.f32.mrb[0].mxu0
      %v2721 = vpop.f32.mrb[0].mxu0
      %v2722 = vadd.f32 0.0, %v2721
      %v2723 = vpop.f32.mrb[0].mxu0
      %2724 = vmatprep.mubr.bf16.mxu0 0
      %2725 = vmatmul.mubr.bf16.gmra.mrb[0].mxu0 %v2578
      %v2726 = vpop.f32.mrb[0].mxu0
      %v2727 = vadd.f32 0.0, %v2726
      %v2728 = vpop.f32.mrb[0].mxu0
      %v2729 = vpop.f32.mrb[0].mxu0
      %v2730 = vadd.f32 0.0, %v2729
      %v2731 = vpop.f32.mrb[0].mxu0
      %2732 = vmatprep.mubr.bf16.mxu0 0
      %2733 = vmatmul.mubr.bf16.gmra.mrb[0].mxu0 %v2581
      %v2734 = vpop.f32.mrb[0].mxu0
      %v2735 = vadd.f32 0.0, %v2734
      %v2736 = vpop.f32.mrb[0].mxu0
      %v2737 = vpop.f32.mrb[0].mxu0
      %v2738 = vadd.f32 0.0, %v2737
      %v2739 = vpop.f32.mrb[0].mxu0
      %2740 = vmatprep.mubr.bf16.mxu0 0
      %2741 = vmatmul.mubr.bf16.gmra.mrb[0].mxu0 %v2584
      %v2742 = vpop.f32.mrb[0].mxu0
      %v2743 = vadd.f32 0.0, %v2742
      %v2744 = vpop.f32.mrb[0].mxu0
      %v2745 = vpop.f32.mrb[0].mxu0
      %v2746 = vadd.f32 0.0, %v2745
      %v2747 = vpop.f32.mrb[0].mxu0
      %2748 = vmatprep.mubr.bf16.mxu0 0
      %2749 = vmatmul.mubr.bf16.gmra.mrb[0].mxu0 %v2587
      %v2750 = vpop.f32.mrb[0].mxu0
      %v2751 = vadd.f32 0.0, %v2750
      %v2752 = vpop.f32.mrb[0].mxu0
      %v2753 = vpop.f32.mrb[0].mxu0
      %v2754 = vadd.f32 0.0, %v2753
      %v2755 = vpop.f32.mrb[0].mxu0
      %2756 = vmatprep.mubr.bf16.mxu0 0
      %2757 = vmatmul.mubr.bf16.gmra.mrb[0].mxu0 %v2590
      %v2758 = vpop.f32.mrb[0].mxu0
      %v2759 = vadd.f32 0.0, %v2758
      %v2760 = vpop.f32.mrb[0].mxu0
      %v2761 = vpop.f32.mrb[0].mxu0
      %v2762 = vadd.f32 0.0, %v2761
      %v2763 = vpop.f32.mrb[0].mxu0
      %2764 = vmatprep.mubr.bf16.mxu0 0
      %2765 = vmatmul.mubr.bf16.gmra.mrb[0].mxu0 %v2593
      %v2766 = vpop.f32.mrb[0].mxu0
      %v2767 = vadd.f32 0.0, %v2766
      %v2768 = vpop.f32.mrb[0].mxu0
      %v2769 = vpop.f32.mrb[0].mxu0
      %v2770 = vadd.f32 0.0, %v2769
      %v2771 = vpop.f32.mrb[0].mxu0
      %2772 = vmatprep.mubr.bf16.mxu0 0
      %2773 = vmatmul.mubr.bf16.gmra.mrb[0].mxu0 %v2596
      %v2774 = vpop.f32.mrb[0].mxu0
      %v2775 = vadd.f32 0.0, %v2774
      %v2776 = vpop.f32.mrb[0].mxu0
      %v2777 = vpop.f32.mrb[0].mxu0
      %v2778 = vadd.f32 0.0, %v2777
      %v2779 = vpop.f32.mrb[0].mxu0
      %2780 = vmatprep.mubr.bf16.mxu0 0
      %2781 = vmatmul.mubr.bf16.gmra.mrb[0].mxu0 %v2599
      %v2782 = vpop.f32.mrb[0].mxu0
      %v2783 = vadd.f32 0.0, %v2782
      %v2784 = vpop.f32.mrb[0].mxu0
      %v2785 = vpop.f32.mrb[0].mxu0
      %v2786 = vadd.f32 0.0, %v2785
      %v2787 = vpop.f32.mrb[0].mxu0
      %2788 = vmatprep.mubr.bf16.mxu0 0
      %2789 = vmatmul.mubr.bf16.gmra.mrb[0].mxu0 %v2602
      %v2790 = vpop.f32.mrb[0].mxu0
      %v2791 = vadd.f32 0.0, %v2790
      %v2792 = vpop.f32.mrb[0].mxu0
      %v2793 = vpop.f32.mrb[0].mxu0
      %v2794 = vadd.f32 0.0, %v2793
      %v2795 = vpop.f32.mrb[0].mxu0
      %2796 = vmatprep.mubr.bf16.mxu0 0
      %2797 = vmatmul.mubr.bf16.gmra.mrb[0].mxu0 %v2605
      %v2798 = vpop.f32.mrb[0].mxu0
      %v2799 = vadd.f32 0.0, %v2798
      %v2800 = vpop.f32.mrb[0].mxu0
      %v2801 = vpop.f32.mrb[0].mxu0
      %v2802 = vadd.f32 0.0, %v2801
      %v2803 = vpop.f32.mrb[0].mxu0
      %2804 = vmatprep.mubr.bf16.mxu0 0
      %2805 = vmatmul.mubr.bf16.gmra.mrb[0].mxu0 %v2608
      %v2806 = vpop.f32.mrb[0].mxu0
      %v2807 = vadd.f32 0.0, %v2806
      %v2808 = vpop.f32.mrb[0].mxu0
      %v2809 = vpop.f32.mrb[0].mxu0
      %v2810 = vadd.f32 0.0, %v2809
      %v2811 = vpop.f32.mrb[0].mxu0
      %2812 = vmatprep.mubr.bf16.mxu0 0
      %2813 = vmatmul.mubr.bf16.gmra.mrb[0].mxu0 %v2611
      %v2814 = vpop.f32.mrb[0].mxu0
      %v2815 = vadd.f32 0.0, %v2814
      %v2816 = vpop.f32.mrb[0].mxu0
      %v2817 = vpop.f32.mrb[0].mxu0
      %v2818 = vadd.f32 0.0, %v2817
      %v2819 = vpop.f32.mrb[0].mxu0
      %2820 = vmatprep.mubr.bf16.mxu0 0
      %2821 = vmatmul.mubr.bf16.gmra.mrb[0].mxu0 %v2614
      %v2822 = vpop.f32.mrb[0].mxu0
      %v2823 = vadd.f32 0.0, %v2822
      %v2824 = vpop.f32.mrb[0].mxu0
      %v2825 = vpop.f32.mrb[0].mxu0
      %v2826 = vadd.f32 0.0, %v2825
      %v2827 = vpop.f32.mrb[0].mxu0
      %2828 = vmatprep.mubr.bf16.mxu0 0
      %2829 = vmatmul.mubr.bf16.gmra.mrb[0].mxu0 %v2617
      %v2830 = vpop.f32.mrb[0].mxu0
      %v2831 = vadd.f32 0.0, %v2830
      %v2832 = vpop.f32.mrb[0].mxu0
      %v2833 = vpop.f32.mrb[0].mxu0
      %v2834 = vadd.f32 0.0, %v2833
      %v2835 = vpop.f32.mrb[0].mxu0
      %2836 = vmatprep.mubr.bf16.mxu0 0
      %2837 = vmatmul.mubr.bf16.gmra.mrb[0].mxu0 %v2620
      %v2838 = vpop.f32.mrb[0].mxu0
      %v2839 = vadd.f32 0.0, %v2838
      %v2840 = vpop.f32.mrb[0].mxu0
      %v2841 = vpop.f32.mrb[0].mxu0
      %v2842 = vadd.f32 0.0, %v2841
      %v2843 = vpop.f32.mrb[0].mxu0
      %2844 = vmatprep.mubr.bf16.mxu0 0
      %2845 = vmatmul.mubr.bf16.gmra.mrb[0].mxu0 %v2623
      %v2846 = vpop.f32.mrb[0].mxu0
      %v2847 = vadd.f32 0.0, %v2846
      %v2848 = vpop.f32.mrb[0].mxu0
      %v2849 = vpop.f32.mrb[0].mxu0
      %v2850 = vadd.f32 0.0, %v2849
      %v2851 = vpop.f32.mrb[0].mxu0
      %2852 = vdwg.mxu0
      %v2853 = vadd.f32 %v2454, %v2663
      %v2854 = vadd.f32 %v2455, %v2666
      %v2855 = vadd.f32 %v2456, %v2671
      %v2856 = vadd.f32 %v2457, %v2674
      %v2857 = vadd.f32 %v2458, %v2679
      %v2858 = vadd.f32 %v2459, %v2682
      %v2859 = vadd.f32 %v2460, %v2687
      %v2860 = vadd.f32 %v2461, %v2690
      %v2861 = vadd.f32 %v2462, %v2695
      %v2862 = vadd.f32 %v2463, %v2698
      %v2863 = vadd.f32 %v2464, %v2703
      %v2864 = vadd.f32 %v2465, %v2706
      %v2865 = vadd.f32 %v2466, %v2711
      %v2866 = vadd.f32 %v2467, %v2714
      %v2867 = vadd.f32 %v2468, %v2719
      %v2868 = vadd.f32 %v2469, %v2722
      %v2869 = vadd.f32 %v2470, %v2727
      %v2870 = vadd.f32 %v2471, %v2730
      %v2871 = vadd.f32 %v2472, %v2735
      %v2872 = vadd.f32 %v2473, %v2738
      %v2873 = vadd.f32 %v2474, %v2743
      %v2874 = vadd.f32 %v2475, %v2746
      %v2875 = vadd.f32 %v2476, %v2751
      %v2876 = vadd.f32 %v2477, %v2754
      %v2877 = vadd.f32 %v2478, %v2759
      %v2878 = vadd.f32 %v2479, %v2762
      %v2879 = vadd.f32 %v2480, %v2767
      %v2880 = vadd.f32 %v2481, %v2770
      %v2881 = vadd.f32 %v2482, %v2775
      %v2882 = vadd.f32 %v2483, %v2778
      %v2883 = vadd.f32 %v2484, %v2783
      %v2884 = vadd.f32 %v2485, %v2786
      %v2885 = vadd.f32 %v2486, %v2791
      %v2886 = vadd.f32 %v2487, %v2794
      %v2887 = vadd.f32 %v2488, %v2799
      %v2888 = vadd.f32 %v2489, %v2802
      %v2889 = vadd.f32 %v2490, %v2807
      %v2890 = vadd.f32 %v2491, %v2810
      %v2891 = vadd.f32 %v2492, %v2815
      %v2892 = vadd.f32 %v2493, %v2818
      %v2893 = vadd.f32 %v2494, %v2823
      %v2894 = vadd.f32 %v2495, %v2826
      %v2895 = vadd.f32 %v2496, %v2831
      %v2896 = vadd.f32 %v2497, %v2834
      %v2897 = vadd.f32 %v2498, %v2839
      %v2898 = vadd.f32 %v2499, %v2842
      %v2899 = vadd.f32 %v2500, %v2847
      %v2900 = vadd.f32 %v2501, %v2850
      %s2901 = scalar_lea.vmem %s232, 24
      %v2902 = vld [vmem:[%s2901] sm:$0xf]
      %v2905 = vunpack.c.l.b16 %v295
      %v2906 = vunpack.c.l.b16 %v296
      %v2907 = vpack.c.b16 %v1603, %v398
      %v2908 = vpack.c.b16 %v1980, %v1604
      %v2909 = vpack.c.b16 %v2906, %v2905
      %v2911 = vsel %vm621, %v2907, 0
      %v2914 = vsel %vm621, %v2908, 0
      %v2917 = vsel %vm621, %v2909, 0
      %v2920 = vsel %vm694, %v2902, 0
      %2922 = vmatprep.subr.bf16.mxu0 0
      %2923 = vmatpush1.bf16.msra.mxu0 %v2920
      %2924 = vmatprep.subr.bf16.mxu0 0
      %2925 = vmatpush1.bf16.msra.mxu0 0
      %2926 = vmatprep.subr.bf16.mxu0 0
      %2927 = vmatpush1.bf16.msra.mxu0 0
      %2928 = vmatprep.subr.bf16.mxu0 0
      %2929 = vmatpush1.bf16.msra.mxu0 0
      %2930 = vmatprep.subr.bf16.mxu0 0
      %2931 = vmatpush1.bf16.msra.mxu0 0
      %2932 = vmatprep.subr.bf16.mxu0 0
      %2933 = vmatpush1.bf16.msra.mxu0 0
      %2934 = vmatprep.subr.bf16.mxu0 0
      %2935 = vmatpush1.bf16.msra.mxu0 0
      %2936 = vmatprep.subr.bf16.mxu0 0
      %2937 = vmatpush1.bf16.msra.mxu0 0
      %2938 = vmatprep.subr.bf16.mxu0 0
      %2939 = vmatpush1.bf16.msra.mxu0 0
      %2940 = vmatprep.subr.bf16.mxu0 0
      %2941 = vmatpush1.bf16.msra.mxu0 0
      %2942 = vmatprep.subr.bf16.mxu0 0
      %2943 = vmatpush1.bf16.msra.mxu0 0
      %2944 = vmatprep.subr.bf16.mxu0 0
      %2945 = vmatpush1.bf16.msra.mxu0 0
      %2946 = vmatprep.subr.bf16.mxu0 0
      %2947 = vmatpush1.bf16.msra.mxu0 0
      %2948 = vmatprep.subr.bf16.mxu0 0
      %2949 = vmatpush1.bf16.msra.mxu0 0
      %2950 = vmatprep.subr.bf16.mxu0 0
      %2951 = vmatpush1.bf16.msra.mxu0 0
      %2952 = vmatprep.subr.bf16.mxu0 0
      %2953 = vmatpush1.bf16.msra.mxu0 0
      %2954 = vmatprep.mubr.bf16.mxu0 0
      %2955 = vmatmul.mubr.bf16.gmra.mrb[0].mxu0 %v929
      %v2956 = vpop.f32.mrb[0].mxu0
      %v2957 = vadd.f32 0.0, %v2956
      %v2958 = vpop.f32.mrb[0].mxu0
      %v2959 = vpop.f32.mrb[0].mxu0
      %v2960 = vadd.f32 0.0, %v2959
      %v2961 = vpop.f32.mrb[0].mxu0
      %2962 = vmatprep.mubr.bf16.mxu0 0
      %2963 = vmatmul.mubr.bf16.gmra.mrb[0].mxu0 %v931
      %v2964 = vpop.f32.mrb[0].mxu0
      %v2965 = vadd.f32 0.0, %v2964
      %v2966 = vpop.f32.mrb[0].mxu0
      %v2967 = vpop.f32.mrb[0].mxu0
      %v2968 = vadd.f32 0.0, %v2967
      %v2969 = vpop.f32.mrb[0].mxu0
      %2970 = vmatprep.mubr.bf16.mxu0 0
      %2971 = vmatmul.mubr.bf16.gmra.mrb[0].mxu0 %v933
      %v2972 = vpop.f32.mrb[0].mxu0
      %v2973 = vadd.f32 0.0, %v2972
      %v2974 = vpop.f32.mrb[0].mxu0
      %v2975 = vpop.f32.mrb[0].mxu0
      %v2976 = vadd.f32 0.0, %v2975
      %v2977 = vpop.f32.mrb[0].mxu0
      %2978 = vmatprep.mubr.bf16.mxu0 0
      %2979 = vmatmul.mubr.bf16.gmra.mrb[0].mxu0 %v935
      %v2980 = vpop.f32.mrb[0].mxu0
      %v2981 = vadd.f32 0.0, %v2980
      %v2982 = vpop.f32.mrb[0].mxu0
      %v2983 = vpop.f32.mrb[0].mxu0
      %v2984 = vadd.f32 0.0, %v2983
      %v2985 = vpop.f32.mrb[0].mxu0
      %2986 = vmatprep.mubr.bf16.mxu0 0
      %2987 = vmatmul.mubr.bf16.gmra.mrb[0].mxu0 %v937
      %v2988 = vpop.f32.mrb[0].mxu0
      %v2989 = vadd.f32 0.0, %v2988
      %v2990 = vpop.f32.mrb[0].mxu0
      %v2991 = vpop.f32.mrb[0].mxu0
      %v2992 = vadd.f32 0.0, %v2991
      %v2993 = vpop.f32.mrb[0].mxu0
      %2994 = vmatprep.mubr.bf16.mxu0 0
      %2995 = vmatmul.mubr.bf16.gmra.mrb[0].mxu0 %v939
      %v2996 = vpop.f32.mrb[0].mxu0
      %v2997 = vadd.f32 0.0, %v2996
      %v2998 = vpop.f32.mrb[0].mxu0
      %v2999 = vpop.f32.mrb[0].mxu0
      %v3000 = vadd.f32 0.0, %v2999
      %v3001 = vpop.f32.mrb[0].mxu0
      %3002 = vmatprep.mubr.bf16.mxu0 0
      %3003 = vmatmul.mubr.bf16.gmra.mrb[0].mxu0 %v941
      %v3004 = vpop.f32.mrb[0].mxu0
      %v3005 = vadd.f32 0.0, %v3004
      %v3006 = vpop.f32.mrb[0].mxu0
      %v3007 = vpop.f32.mrb[0].mxu0
      %v3008 = vadd.f32 0.0, %v3007
      %v3009 = vpop.f32.mrb[0].mxu0
      %3010 = vmatprep.mubr.bf16.mxu0 0
      %3011 = vmatmul.mubr.bf16.gmra.mrb[0].mxu0 %v943
      %v3012 = vpop.f32.mrb[0].mxu0
      %v3013 = vadd.f32 0.0, %v3012
      %v3014 = vpop.f32.mrb[0].mxu0
      %v3015 = vpop.f32.mrb[0].mxu0
      %v3016 = vadd.f32 0.0, %v3015
      %v3017 = vpop.f32.mrb[0].mxu0
      %3018 = vmatprep.mubr.bf16.mxu0 0
      %3019 = vmatmul.mubr.bf16.gmra.mrb[0].mxu0 %v945
      %v3020 = vpop.f32.mrb[0].mxu0
      %v3021 = vadd.f32 0.0, %v3020
      %v3022 = vpop.f32.mrb[0].mxu0
      %v3023 = vpop.f32.mrb[0].mxu0
      %v3024 = vadd.f32 0.0, %v3023
      %v3025 = vpop.f32.mrb[0].mxu0
      %3026 = vmatprep.mubr.bf16.mxu0 0
      %3027 = vmatmul.mubr.bf16.gmra.mrb[0].mxu0 %v947
      %v3028 = vpop.f32.mrb[0].mxu0
      %v3029 = vadd.f32 0.0, %v3028
      %v3030 = vpop.f32.mrb[0].mxu0
      %v3031 = vpop.f32.mrb[0].mxu0
      %v3032 = vadd.f32 0.0, %v3031
      %v3033 = vpop.f32.mrb[0].mxu0
      %3034 = vmatprep.mubr.bf16.mxu0 0
      %3035 = vmatmul.mubr.bf16.gmra.mrb[0].mxu0 %v949
      %v3036 = vpop.f32.mrb[0].mxu0
      %v3037 = vadd.f32 0.0, %v3036
      %v3038 = vpop.f32.mrb[0].mxu0
      %v3039 = vpop.f32.mrb[0].mxu0
      %v3040 = vadd.f32 0.0, %v3039
      %v3041 = vpop.f32.mrb[0].mxu0
      %3042 = vmatprep.mubr.bf16.mxu0 0
      %3043 = vmatmul.mubr.bf16.gmra.mrb[0].mxu0 %v951
      %v3044 = vpop.f32.mrb[0].mxu0
      %v3045 = vadd.f32 0.0, %v3044
      %v3046 = vpop.f32.mrb[0].mxu0
      %v3047 = vpop.f32.mrb[0].mxu0
      %v3048 = vadd.f32 0.0, %v3047
      %v3049 = vpop.f32.mrb[0].mxu0
      %3050 = vmatprep.mubr.bf16.mxu0 0
      %3051 = vmatmul.mubr.bf16.gmra.mrb[0].mxu0 %v953
      %v3052 = vpop.f32.mrb[0].mxu0
      %v3053 = vadd.f32 0.0, %v3052
      %v3054 = vpop.f32.mrb[0].mxu0
      %v3055 = vpop.f32.mrb[0].mxu0
      %v3056 = vadd.f32 0.0, %v3055
      %v3057 = vpop.f32.mrb[0].mxu0
      %3058 = vmatprep.mubr.bf16.mxu0 0
      %3059 = vmatmul.mubr.bf16.gmra.mrb[0].mxu0 %v955
      %v3060 = vpop.f32.mrb[0].mxu0
      %v3061 = vadd.f32 0.0, %v3060
      %v3062 = vpop.f32.mrb[0].mxu0
      %v3063 = vpop.f32.mrb[0].mxu0
      %v3064 = vadd.f32 0.0, %v3063
      %v3065 = vpop.f32.mrb[0].mxu0
      %3066 = vmatprep.mubr.bf16.mxu0 0
      %3067 = vmatmul.mubr.bf16.gmra.mrb[0].mxu0 %v957
      %v3068 = vpop.f32.mrb[0].mxu0
      %v3069 = vadd.f32 0.0, %v3068
      %v3070 = vpop.f32.mrb[0].mxu0
      %v3071 = vpop.f32.mrb[0].mxu0
      %v3072 = vadd.f32 0.0, %v3071
      %v3073 = vpop.f32.mrb[0].mxu0
      %3074 = vmatprep.mubr.bf16.mxu0 0
      %3075 = vmatmul.mubr.bf16.gmra.mrb[0].mxu0 %v959
      %v3076 = vpop.f32.mrb[0].mxu0
      %v3077 = vadd.f32 0.0, %v3076
      %v3078 = vpop.f32.mrb[0].mxu0
      %v3079 = vpop.f32.mrb[0].mxu0
      %v3080 = vadd.f32 0.0, %v3079
      %v3081 = vpop.f32.mrb[0].mxu0
      %3082 = vmatprep.mubr.bf16.mxu0 0
      %3083 = vmatmul.mubr.bf16.gmra.mrb[0].mxu0 %v961
      %v3084 = vpop.f32.mrb[0].mxu0
      %v3085 = vadd.f32 0.0, %v3084
      %v3086 = vpop.f32.mrb[0].mxu0
      %v3087 = vpop.f32.mrb[0].mxu0
      %v3088 = vadd.f32 0.0, %v3087
      %v3089 = vpop.f32.mrb[0].mxu0
      %3090 = vmatprep.mubr.bf16.mxu0 0
      %3091 = vmatmul.mubr.bf16.gmra.mrb[0].mxu0 %v963
      %v3092 = vpop.f32.mrb[0].mxu0
      %v3093 = vadd.f32 0.0, %v3092
      %v3094 = vpop.f32.mrb[0].mxu0
      %v3095 = vpop.f32.mrb[0].mxu0
      %v3096 = vadd.f32 0.0, %v3095
      %v3097 = vpop.f32.mrb[0].mxu0
      %3098 = vmatprep.mubr.bf16.mxu0 0
      %3099 = vmatmul.mubr.bf16.gmra.mrb[0].mxu0 %v965
      %v3100 = vpop.f32.mrb[0].mxu0
      %v3101 = vadd.f32 0.0, %v3100
      %v3102 = vpop.f32.mrb[0].mxu0
      %v3103 = vpop.f32.mrb[0].mxu0
      %v3104 = vadd.f32 0.0, %v3103
      %v3105 = vpop.f32.mrb[0].mxu0
      %3106 = vmatprep.mubr.bf16.mxu0 0
      %3107 = vmatmul.mubr.bf16.gmra.mrb[0].mxu0 %v967
      %v3108 = vpop.f32.mrb[0].mxu0
      %v3109 = vadd.f32 0.0, %v3108
      %v3110 = vpop.f32.mrb[0].mxu0
      %v3111 = vpop.f32.mrb[0].mxu0
      %v3112 = vadd.f32 0.0, %v3111
      %v3113 = vpop.f32.mrb[0].mxu0
      %3114 = vmatprep.mubr.bf16.mxu0 0
      %3115 = vmatmul.mubr.bf16.gmra.mrb[0].mxu0 %v969
      %v3116 = vpop.f32.mrb[0].mxu0
      %v3117 = vadd.f32 0.0, %v3116
      %v3118 = vpop.f32.mrb[0].mxu0
      %v3119 = vpop.f32.mrb[0].mxu0
      %v3120 = vadd.f32 0.0, %v3119
      %v3121 = vpop.f32.mrb[0].mxu0
      %3122 = vmatprep.mubr.bf16.mxu0 0
      %3123 = vmatmul.mubr.bf16.gmra.mrb[0].mxu0 %v2911
      %v3124 = vpop.f32.mrb[0].mxu0
      %v3125 = vadd.f32 0.0, %v3124
      %v3126 = vpop.f32.mrb[0].mxu0
      %v3127 = vpop.f32.mrb[0].mxu0
      %v3128 = vadd.f32 0.0, %v3127
      %v3129 = vpop.f32.mrb[0].mxu0
      %3130 = vmatprep.mubr.bf16.mxu0 0
      %3131 = vmatmul.mubr.bf16.gmra.mrb[0].mxu0 %v2914
      %v3132 = vpop.f32.mrb[0].mxu0
      %v3133 = vadd.f32 0.0, %v3132
      %v3134 = vpop.f32.mrb[0].mxu0
      %v3135 = vpop.f32.mrb[0].mxu0
      %v3136 = vadd.f32 0.0, %v3135
      %v3137 = vpop.f32.mrb[0].mxu0
      %3138 = vmatprep.mubr.bf16.mxu0 0
      %3139 = vmatmul.mubr.bf16.gmra.mrb[0].mxu0 %v2917
      %v3140 = vpop.f32.mrb[0].mxu0
      %v3141 = vadd.f32 0.0, %v3140
      %v3142 = vpop.f32.mrb[0].mxu0
      %v3143 = vpop.f32.mrb[0].mxu0
      %v3144 = vadd.f32 0.0, %v3143
      %v3145 = vpop.f32.mrb[0].mxu0
      %3146 = vdwg.mxu0
      %v3147 = vadd.f32 %v2853, %v2957
      %v3148 = vadd.f32 %v2854, %v2960
      %v3149 = vadd.f32 %v2855, %v2965
      %v3150 = vadd.f32 %v2856, %v2968
      %v3151 = vadd.f32 %v2857, %v2973
      %v3152 = vadd.f32 %v2858, %v2976
      %v3153 = vadd.f32 %v2859, %v2981
      %v3154 = vadd.f32 %v2860, %v2984
      %v3155 = vadd.f32 %v2861, %v2989
      %v3156 = vadd.f32 %v2862, %v2992
      %v3157 = vadd.f32 %v2863, %v2997
      %v3158 = vadd.f32 %v2864, %v3000
      %v3159 = vadd.f32 %v2865, %v3005
      %v3160 = vadd.f32 %v2866, %v3008
      %v3161 = vadd.f32 %v2867, %v3013
      %v3162 = vadd.f32 %v2868, %v3016
      %v3163 = vadd.f32 %v2869, %v3021
      %v3164 = vadd.f32 %v2870, %v3024
      %v3165 = vadd.f32 %v2871, %v3029
      %v3166 = vadd.f32 %v2872, %v3032
      %v3167 = vadd.f32 %v2873, %v3037
      %v3168 = vadd.f32 %v2874, %v3040
      %v3169 = vadd.f32 %v2875, %v3045
      %v3170 = vadd.f32 %v2876, %v3048
      %v3171 = vadd.f32 %v2877, %v3053
      %v3172 = vadd.f32 %v2878, %v3056
      %v3173 = vadd.f32 %v2879, %v3061
      %v3174 = vadd.f32 %v2880, %v3064
      %v3175 = vadd.f32 %v2881, %v3069
      %v3176 = vadd.f32 %v2882, %v3072
      %v3177 = vadd.f32 %v2883, %v3077
      %v3178 = vadd.f32 %v2884, %v3080
      %v3179 = vadd.f32 %v2885, %v3085
      %v3180 = vadd.f32 %v2886, %v3088
      %v3181 = vadd.f32 %v2887, %v3093
      %v3182 = vadd.f32 %v2888, %v3096
      %v3183 = vadd.f32 %v2889, %v3101
      %v3184 = vadd.f32 %v2890, %v3104
      %v3185 = vadd.f32 %v2891, %v3109
      %v3186 = vadd.f32 %v2892, %v3112
      %v3187 = vadd.f32 %v2893, %v3117
      %v3188 = vadd.f32 %v2894, %v3120
      %v3189 = vadd.f32 %v2895, %v3125
      %v3190 = vadd.f32 %v2896, %v3128
      %v3191 = vadd.f32 %v2897, %v3133
      %v3192 = vadd.f32 %v2898, %v3136
      %v3193 = vadd.f32 %v2899, %v3141
      %v3194 = vadd.f32 %v2900, %v3144
      %s3195 = scalar_lea.vmem %s232, 28
      %v3196 = vld [vmem:[%s3195] sm:$0xf]
      %v3198 = vunpack.c.l.b16 %v297
      %v3199 = vpack.c.b16 %v3198, %v3198
      %v3200 = vshll.u32 %v2907, 16
      %v3202 = vrot.slane %v3200, 1
      %v3203 = vsel %vm424, %v615, %v3202
      %v3204 = vshrl.u32 %v2907, 16
      %v3206 = vor.u32 %v3204, %v3202
      %v3207 = vshll.u32 %v2908, 16
      %v3209 = vrot.slane %v3207, 1
      %v3210 = vsel %vm424, %v3206, %v3209
      %v3211 = vshrl.u32 %v2908, 16
      %v3213 = vor.u32 %v3211, %v3209
      %v3214 = vshll.u32 %v2909, 16
      %v3216 = vrot.slane %v3214, 1
      %v3217 = vsel %vm424, %v3213, %v3216
      %v3218 = vshrl.u32 %v2909, 16
      %v3220 = vor.u32 %v3218, %v3216
      %v3222 = vshll.u32 %v3199, 16
      %v3224 = vrot.slane %v3222, 1
      %v3225 = vsel %vm424, %v3220, %v3224
      %v3227 = vsel %vm621, %v3203, 0
      %v3230 = vsel %vm621, %v3210, 0
      %v3233 = vsel %vm621, %v3217, 0
      %v3236 = vsel %vm621, %v3225, 0
      %v3239 = vsel %vm694, %v3196, 0
      %3241 = vmatprep.subr.bf16.mxu0 0
      %3242 = vmatpush1.bf16.msra.mxu0 %v3239
      %3243 = vmatprep.subr.bf16.mxu0 0
      %3244 = vmatpush1.bf16.msra.mxu0 0
      %3245 = vmatprep.subr.bf16.mxu0 0
      %3246 = vmatpush1.bf16.msra.mxu0 0
      %3247 = vmatprep.subr.bf16.mxu0 0
      %3248 = vmatpush1.bf16.msra.mxu0 0
      %3249 = vmatprep.subr.bf16.mxu0 0
      %3250 = vmatpush1.bf16.msra.mxu0 0
      %3251 = vmatprep.subr.bf16.mxu0 0
      %3252 = vmatpush1.bf16.msra.mxu0 0
      %3253 = vmatprep.subr.bf16.mxu0 0
      %3254 = vmatpush1.bf16.msra.mxu0 0
      %3255 = vmatprep.subr.bf16.mxu0 0
      %3256 = vmatpush1.bf16.msra.mxu0 0
      %3257 = vmatprep.subr.bf16.mxu0 0
      %3258 = vmatpush1.bf16.msra.mxu0 0
      %3259 = vmatprep.subr.bf16.mxu0 0
      %3260 = vmatpush1.bf16.msra.mxu0 0
      %3261 = vmatprep.subr.bf16.mxu0 0
      %3262 = vmatpush1.bf16.msra.mxu0 0
      %3263 = vmatprep.subr.bf16.mxu0 0
      %3264 = vmatpush1.bf16.msra.mxu0 0
      %3265 = vmatprep.subr.bf16.mxu0 0
      %3266 = vmatpush1.bf16.msra.mxu0 0
      %3267 = vmatprep.subr.bf16.mxu0 0
      %3268 = vmatpush1.bf16.msra.mxu0 0
      %3269 = vmatprep.subr.bf16.mxu0 0
      %3270 = vmatpush1.bf16.msra.mxu0 0
      %3271 = vmatprep.subr.bf16.mxu0 0
      %3272 = vmatpush1.bf16.msra.mxu0 0
      %3273 = vmatprep.mubr.bf16.mxu0 0
      %3274 = vmatmul.mubr.bf16.gmra.mrb[0].mxu0 %v632
      %v3275 = vpop.f32.mrb[0].mxu0
      %v3276 = vadd.f32 0.0, %v3275
      %v3277 = vpop.f32.mrb[0].mxu0
      %v3278 = vpop.f32.mrb[0].mxu0
      %v3279 = vadd.f32 0.0, %v3278
      %v3280 = vpop.f32.mrb[0].mxu0
      %3281 = vmatprep.mubr.bf16.mxu0 0
      %3282 = vmatmul.mubr.bf16.gmra.mrb[0].mxu0 %v635
      %v3283 = vpop.f32.mrb[0].mxu0
      %v3284 = vadd.f32 0.0, %v3283
      %v3285 = vpop.f32.mrb[0].mxu0
      %v3286 = vpop.f32.mrb[0].mxu0
      %v3287 = vadd.f32 0.0, %v3286
      %v3288 = vpop.f32.mrb[0].mxu0
      %3289 = vmatprep.mubr.bf16.mxu0 0
      %3290 = vmatmul.mubr.bf16.gmra.mrb[0].mxu0 %v638
      %v3291 = vpop.f32.mrb[0].mxu0
      %v3292 = vadd.f32 0.0, %v3291
      %v3293 = vpop.f32.mrb[0].mxu0
      %v3294 = vpop.f32.mrb[0].mxu0
      %v3295 = vadd.f32 0.0, %v3294
      %v3296 = vpop.f32.mrb[0].mxu0
      %3297 = vmatprep.mubr.bf16.mxu0 0
      %3298 = vmatmul.mubr.bf16.gmra.mrb[0].mxu0 %v641
      %v3299 = vpop.f32.mrb[0].mxu0
      %v3300 = vadd.f32 0.0, %v3299
      %v3301 = vpop.f32.mrb[0].mxu0
      %v3302 = vpop.f32.mrb[0].mxu0
      %v3303 = vadd.f32 0.0, %v3302
      %v3304 = vpop.f32.mrb[0].mxu0
      %3305 = vmatprep.mubr.bf16.mxu0 0
      %3306 = vmatmul.mubr.bf16.gmra.mrb[0].mxu0 %v644
      %v3307 = vpop.f32.mrb[0].mxu0
      %v3308 = vadd.f32 0.0, %v3307
      %v3309 = vpop.f32.mrb[0].mxu0
      %v3310 = vpop.f32.mrb[0].mxu0
      %v3311 = vadd.f32 0.0, %v3310
      %v3312 = vpop.f32.mrb[0].mxu0
      %3313 = vmatprep.mubr.bf16.mxu0 0
      %3314 = vmatmul.mubr.bf16.gmra.mrb[0].mxu0 %v647
      %v3315 = vpop.f32.mrb[0].mxu0
      %v3316 = vadd.f32 0.0, %v3315
      %v3317 = vpop.f32.mrb[0].mxu0
      %v3318 = vpop.f32.mrb[0].mxu0
      %v3319 = vadd.f32 0.0, %v3318
      %v3320 = vpop.f32.mrb[0].mxu0
      %3321 = vmatprep.mubr.bf16.mxu0 0
      %3322 = vmatmul.mubr.bf16.gmra.mrb[0].mxu0 %v650
      %v3323 = vpop.f32.mrb[0].mxu0
      %v3324 = vadd.f32 0.0, %v3323
      %v3325 = vpop.f32.mrb[0].mxu0
      %v3326 = vpop.f32.mrb[0].mxu0
      %v3327 = vadd.f32 0.0, %v3326
      %v3328 = vpop.f32.mrb[0].mxu0
      %3329 = vmatprep.mubr.bf16.mxu0 0
      %3330 = vmatmul.mubr.bf16.gmra.mrb[0].mxu0 %v653
      %v3331 = vpop.f32.mrb[0].mxu0
      %v3332 = vadd.f32 0.0, %v3331
      %v3333 = vpop.f32.mrb[0].mxu0
      %v3334 = vpop.f32.mrb[0].mxu0
      %v3335 = vadd.f32 0.0, %v3334
      %v3336 = vpop.f32.mrb[0].mxu0
      %3337 = vmatprep.mubr.bf16.mxu0 0
      %3338 = vmatmul.mubr.bf16.gmra.mrb[0].mxu0 %v656
      %v3339 = vpop.f32.mrb[0].mxu0
      %v3340 = vadd.f32 0.0, %v3339
      %v3341 = vpop.f32.mrb[0].mxu0
      %v3342 = vpop.f32.mrb[0].mxu0
      %v3343 = vadd.f32 0.0, %v3342
      %v3344 = vpop.f32.mrb[0].mxu0
      %3345 = vmatprep.mubr.bf16.mxu0 0
      %3346 = vmatmul.mubr.bf16.gmra.mrb[0].mxu0 %v659
      %v3347 = vpop.f32.mrb[0].mxu0
      %v3348 = vadd.f32 0.0, %v3347
      %v3349 = vpop.f32.mrb[0].mxu0
      %v3350 = vpop.f32.mrb[0].mxu0
      %v3351 = vadd.f32 0.0, %v3350
      %v3352 = vpop.f32.mrb[0].mxu0
      %3353 = vmatprep.mubr.bf16.mxu0 0
      %3354 = vmatmul.mubr.bf16.gmra.mrb[0].mxu0 %v662
      %v3355 = vpop.f32.mrb[0].mxu0
      %v3356 = vadd.f32 0.0, %v3355
      %v3357 = vpop.f32.mrb[0].mxu0
      %v3358 = vpop.f32.mrb[0].mxu0
      %v3359 = vadd.f32 0.0, %v3358
      %v3360 = vpop.f32.mrb[0].mxu0
      %3361 = vmatprep.mubr.bf16.mxu0 0
      %3362 = vmatmul.mubr.bf16.gmra.mrb[0].mxu0 %v665
      %v3363 = vpop.f32.mrb[0].mxu0
      %v3364 = vadd.f32 0.0, %v3363
      %v3365 = vpop.f32.mrb[0].mxu0
      %v3366 = vpop.f32.mrb[0].mxu0
      %v3367 = vadd.f32 0.0, %v3366
      %v3368 = vpop.f32.mrb[0].mxu0
      %3369 = vmatprep.mubr.bf16.mxu0 0
      %3370 = vmatmul.mubr.bf16.gmra.mrb[0].mxu0 %v668
      %v3371 = vpop.f32.mrb[0].mxu0
      %v3372 = vadd.f32 0.0, %v3371
      %v3373 = vpop.f32.mrb[0].mxu0
      %v3374 = vpop.f32.mrb[0].mxu0
      %v3375 = vadd.f32 0.0, %v3374
      %v3376 = vpop.f32.mrb[0].mxu0
      %3377 = vmatprep.mubr.bf16.mxu0 0
      %3378 = vmatmul.mubr.bf16.gmra.mrb[0].mxu0 %v671
      %v3379 = vpop.f32.mrb[0].mxu0
      %v3380 = vadd.f32 0.0, %v3379
      %v3381 = vpop.f32.mrb[0].mxu0
      %v3382 = vpop.f32.mrb[0].mxu0
      %v3383 = vadd.f32 0.0, %v3382
      %v3384 = vpop.f32.mrb[0].mxu0
      %3385 = vmatprep.mubr.bf16.mxu0 0
      %3386 = vmatmul.mubr.bf16.gmra.mrb[0].mxu0 %v674
      %v3387 = vpop.f32.mrb[0].mxu0
      %v3388 = vadd.f32 0.0, %v3387
      %v3389 = vpop.f32.mrb[0].mxu0
      %v3390 = vpop.f32.mrb[0].mxu0
      %v3391 = vadd.f32 0.0, %v3390
      %v3392 = vpop.f32.mrb[0].mxu0
      %3393 = vmatprep.mubr.bf16.mxu0 0
      %3394 = vmatmul.mubr.bf16.gmra.mrb[0].mxu0 %v677
      %v3395 = vpop.f32.mrb[0].mxu0
      %v3396 = vadd.f32 0.0, %v3395
      %v3397 = vpop.f32.mrb[0].mxu0
      %v3398 = vpop.f32.mrb[0].mxu0
      %v3399 = vadd.f32 0.0, %v3398
      %v3400 = vpop.f32.mrb[0].mxu0
      %3401 = vmatprep.mubr.bf16.mxu0 0
      %3402 = vmatmul.mubr.bf16.gmra.mrb[0].mxu0 %v680
      %v3403 = vpop.f32.mrb[0].mxu0
      %v3404 = vadd.f32 0.0, %v3403
      %v3405 = vpop.f32.mrb[0].mxu0
      %v3406 = vpop.f32.mrb[0].mxu0
      %v3407 = vadd.f32 0.0, %v3406
      %v3408 = vpop.f32.mrb[0].mxu0
      %3409 = vmatprep.mubr.bf16.mxu0 0
      %3410 = vmatmul.mubr.bf16.gmra.mrb[0].mxu0 %v683
      %v3411 = vpop.f32.mrb[0].mxu0
      %v3412 = vadd.f32 0.0, %v3411
      %v3413 = vpop.f32.mrb[0].mxu0
      %v3414 = vpop.f32.mrb[0].mxu0
      %v3415 = vadd.f32 0.0, %v3414
      %v3416 = vpop.f32.mrb[0].mxu0
      %3417 = vmatprep.mubr.bf16.mxu0 0
      %3418 = vmatmul.mubr.bf16.gmra.mrb[0].mxu0 %v686
      %v3419 = vpop.f32.mrb[0].mxu0
      %v3420 = vadd.f32 0.0, %v3419
      %v3421 = vpop.f32.mrb[0].mxu0
      %v3422 = vpop.f32.mrb[0].mxu0
      %v3423 = vadd.f32 0.0, %v3422
      %v3424 = vpop.f32.mrb[0].mxu0
      %3425 = vmatprep.mubr.bf16.mxu0 0
      %3426 = vmatmul.mubr.bf16.gmra.mrb[0].mxu0 %v689
      %v3427 = vpop.f32.mrb[0].mxu0
      %v3428 = vadd.f32 0.0, %v3427
      %v3429 = vpop.f32.mrb[0].mxu0
      %v3430 = vpop.f32.mrb[0].mxu0
      %v3431 = vadd.f32 0.0, %v3430
      %v3432 = vpop.f32.mrb[0].mxu0
      %3433 = vmatprep.mubr.bf16.mxu0 0
      %3434 = vmatmul.mubr.bf16.gmra.mrb[0].mxu0 %v3227
      %v3435 = vpop.f32.mrb[0].mxu0
      %v3436 = vadd.f32 0.0, %v3435
      %v3437 = vpop.f32.mrb[0].mxu0
      %v3438 = vpop.f32.mrb[0].mxu0
      %v3439 = vadd.f32 0.0, %v3438
      %v3440 = vpop.f32.mrb[0].mxu0
      %3441 = vmatprep.mubr.bf16.mxu0 0
      %3442 = vmatmul.mubr.bf16.gmra.mrb[0].mxu0 %v3230
      %v3443 = vpop.f32.mrb[0].mxu0
      %v3444 = vadd.f32 0.0, %v3443
      %v3445 = vpop.f32.mrb[0].mxu0
      %v3446 = vpop.f32.mrb[0].mxu0
      %v3447 = vadd.f32 0.0, %v3446
      %v3448 = vpop.f32.mrb[0].mxu0
      %3449 = vmatprep.mubr.bf16.mxu0 0
      %3450 = vmatmul.mubr.bf16.gmra.mrb[0].mxu0 %v3233
      %v3451 = vpop.f32.mrb[0].mxu0
      %v3452 = vadd.f32 0.0, %v3451
      %v3453 = vpop.f32.mrb[0].mxu0
      %v3454 = vpop.f32.mrb[0].mxu0
      %v3455 = vadd.f32 0.0, %v3454
      %v3456 = vpop.f32.mrb[0].mxu0
      %3457 = vmatprep.mubr.bf16.mxu0 0
      %3458 = vmatmul.mubr.bf16.gmra.mrb[0].mxu0 %v3236
      %v3459 = vpop.f32.mrb[0].mxu0
      %v3460 = vadd.f32 0.0, %v3459
      %v3461 = vpop.f32.mrb[0].mxu0
      %v3462 = vpop.f32.mrb[0].mxu0
      %v3463 = vadd.f32 0.0, %v3462
      %v3464 = vpop.f32.mrb[0].mxu0
      %3465 = vdwg.mxu0
      %v3466 = vadd.f32 %v3147, %v3276
      %v3467 = vadd.f32 %v3148, %v3279
      %v3468 = vadd.f32 %v3149, %v3284
      %v3469 = vadd.f32 %v3150, %v3287
      %v3470 = vadd.f32 %v3151, %v3292
      %v3471 = vadd.f32 %v3152, %v3295
      %v3472 = vadd.f32 %v3153, %v3300
      %v3473 = vadd.f32 %v3154, %v3303
      %v3474 = vadd.f32 %v3155, %v3308
      %v3475 = vadd.f32 %v3156, %v3311
      %v3476 = vadd.f32 %v3157, %v3316
      %v3477 = vadd.f32 %v3158, %v3319
      %v3478 = vadd.f32 %v3159, %v3324
      %v3479 = vadd.f32 %v3160, %v3327
      %v3480 = vadd.f32 %v3161, %v3332
      %v3481 = vadd.f32 %v3162, %v3335
      %v3482 = vadd.f32 %v3163, %v3340
      %v3483 = vadd.f32 %v3164, %v3343
      %v3484 = vadd.f32 %v3165, %v3348
      %v3485 = vadd.f32 %v3166, %v3351
      %v3486 = vadd.f32 %v3167, %v3356
      %v3487 = vadd.f32 %v3168, %v3359
      %v3488 = vadd.f32 %v3169, %v3364
      %v3489 = vadd.f32 %v3170, %v3367
      %v3490 = vadd.f32 %v3171, %v3372
      %v3491 = vadd.f32 %v3172, %v3375
      %v3492 = vadd.f32 %v3173, %v3380
      %v3493 = vadd.f32 %v3174, %v3383
      %v3494 = vadd.f32 %v3175, %v3388
      %v3495 = vadd.f32 %v3176, %v3391
      %v3496 = vadd.f32 %v3177, %v3396
      %v3497 = vadd.f32 %v3178, %v3399
      %v3498 = vadd.f32 %v3179, %v3404
      %v3499 = vadd.f32 %v3180, %v3407
      %v3500 = vadd.f32 %v3181, %v3412
      %v3501 = vadd.f32 %v3182, %v3415
      %v3502 = vadd.f32 %v3183, %v3420
      %v3503 = vadd.f32 %v3184, %v3423
      %v3504 = vadd.f32 %v3185, %v3428
      %v3505 = vadd.f32 %v3186, %v3431
      %v3506 = vadd.f32 %v3187, %v3436
      %v3507 = vadd.f32 %v3188, %v3439
      %v3508 = vadd.f32 %v3189, %v3444
      %v3509 = vadd.f32 %v3190, %v3447
      %v3510 = vadd.f32 %v3191, %v3452
      %v3511 = vadd.f32 %v3192, %v3455
      %v3512 = vadd.f32 %v3193, %v3460
      %v3513 = vadd.f32 %v3194, %v3463
      %s3514 = scalar_lea.vmem %s232, 32
      %v3515 = vld [vmem:[%s3514] sm:$0xf]
      %v3516 = vrot.slane %v2907, 1
      %v3517 = vsel %vm1201, %v1247, %v3516
      %v3518 = vrot.slane %v2908, 1
      %v3519 = vsel %vm1201, %v3516, %v3518
      %v3520 = vrot.slane %v2909, 1
      %v3521 = vsel %vm1201, %v3518, %v3520
      %v3522 = vrot.slane %v3199, 1
      %v3523 = vsel %vm1201, %v3520, %v3522
      %v3525 = vsel %vm621, %v3517, 0
      %v3528 = vsel %vm621, %v3519, 0
      %v3531 = vsel %vm621, %v3521, 0
      %v3534 = vsel %vm621, %v3523, 0
      %v3537 = vsel %vm694, %v3515, 0
      %3539 = vmatprep.subr.bf16.mxu0 0
      %3540 = vmatpush1.bf16.msra.mxu0 %v3537
      %3541 = vmatprep.subr.bf16.mxu0 0
      %3542 = vmatpush1.bf16.msra.mxu0 0
      %3543 = vmatprep.subr.bf16.mxu0 0
      %3544 = vmatpush1.bf16.msra.mxu0 0
      %3545 = vmatprep.subr.bf16.mxu0 0
      %3546 = vmatpush1.bf16.msra.mxu0 0
      %3547 = vmatprep.subr.bf16.mxu0 0
      %3548 = vmatpush1.bf16.msra.mxu0 0
      %3549 = vmatprep.subr.bf16.mxu0 0
      %3550 = vmatpush1.bf16.msra.mxu0 0
      %3551 = vmatprep.subr.bf16.mxu0 0
      %3552 = vmatpush1.bf16.msra.mxu0 0
      %3553 = vmatprep.subr.bf16.mxu0 0
      %3554 = vmatpush1.bf16.msra.mxu0 0
      %3555 = vmatprep.subr.bf16.mxu0 0
      %3556 = vmatpush1.bf16.msra.mxu0 0
      %3557 = vmatprep.subr.bf16.mxu0 0
      %3558 = vmatpush1.bf16.msra.mxu0 0
      %3559 = vmatprep.subr.bf16.mxu0 0
      %3560 = vmatpush1.bf16.msra.mxu0 0
      %3561 = vmatprep.subr.bf16.mxu0 0
      %3562 = vmatpush1.bf16.msra.mxu0 0
      %3563 = vmatprep.subr.bf16.mxu0 0
      %3564 = vmatpush1.bf16.msra.mxu0 0
      %3565 = vmatprep.subr.bf16.mxu0 0
      %3566 = vmatpush1.bf16.msra.mxu0 0
      %3567 = vmatprep.subr.bf16.mxu0 0
      %3568 = vmatpush1.bf16.msra.mxu0 0
      %3569 = vmatprep.subr.bf16.mxu0 0
      %3570 = vmatpush1.bf16.msra.mxu0 0
      %3571 = vmatprep.mubr.bf16.mxu0 0
      %3572 = vmatmul.mubr.bf16.gmra.mrb[0].mxu0 %v1261
      %v3573 = vpop.f32.mrb[0].mxu0
      %v3574 = vadd.f32 0.0, %v3573
      %v3575 = vpop.f32.mrb[0].mxu0
      %v3576 = vpop.f32.mrb[0].mxu0
      %v3577 = vadd.f32 0.0, %v3576
      %v3578 = vpop.f32.mrb[0].mxu0
      %3579 = vmatprep.mubr.bf16.mxu0 0
      %3580 = vmatmul.mubr.bf16.gmra.mrb[0].mxu0 %v1264
      %v3581 = vpop.f32.mrb[0].mxu0
      %v3582 = vadd.f32 0.0, %v3581
      %v3583 = vpop.f32.mrb[0].mxu0
      %v3584 = vpop.f32.mrb[0].mxu0
      %v3585 = vadd.f32 0.0, %v3584
      %v3586 = vpop.f32.mrb[0].mxu0
      %3587 = vmatprep.mubr.bf16.mxu0 0
      %3588 = vmatmul.mubr.bf16.gmra.mrb[0].mxu0 %v1267
      %v3589 = vpop.f32.mrb[0].mxu0
      %v3590 = vadd.f32 0.0, %v3589
      %v3591 = vpop.f32.mrb[0].mxu0
      %v3592 = vpop.f32.mrb[0].mxu0
      %v3593 = vadd.f32 0.0, %v3592
      %v3594 = vpop.f32.mrb[0].mxu0
      %3595 = vmatprep.mubr.bf16.mxu0 0
      %3596 = vmatmul.mubr.bf16.gmra.mrb[0].mxu0 %v1270
      %v3597 = vpop.f32.mrb[0].mxu0
      %v3598 = vadd.f32 0.0, %v3597
      %v3599 = vpop.f32.mrb[0].mxu0
      %v3600 = vpop.f32.mrb[0].mxu0
      %v3601 = vadd.f32 0.0, %v3600
      %v3602 = vpop.f32.mrb[0].mxu0
      %3603 = vmatprep.mubr.bf16.mxu0 0
      %3604 = vmatmul.mubr.bf16.gmra.mrb[0].mxu0 %v1273
      %v3605 = vpop.f32.mrb[0].mxu0
      %v3606 = vadd.f32 0.0, %v3605
      %v3607 = vpop.f32.mrb[0].mxu0
      %v3608 = vpop.f32.mrb[0].mxu0
      %v3609 = vadd.f32 0.0, %v3608
      %v3610 = vpop.f32.mrb[0].mxu0
      %3611 = vmatprep.mubr.bf16.mxu0 0
      %3612 = vmatmul.mubr.bf16.gmra.mrb[0].mxu0 %v1276
      %v3613 = vpop.f32.mrb[0].mxu0
      %v3614 = vadd.f32 0.0, %v3613
      %v3615 = vpop.f32.mrb[0].mxu0
      %v3616 = vpop.f32.mrb[0].mxu0
      %v3617 = vadd.f32 0.0, %v3616
      %v3618 = vpop.f32.mrb[0].mxu0
      %3619 = vmatprep.mubr.bf16.mxu0 0
      %3620 = vmatmul.mubr.bf16.gmra.mrb[0].mxu0 %v1279
      %v3621 = vpop.f32.mrb[0].mxu0
      %v3622 = vadd.f32 0.0, %v3621
      %v3623 = vpop.f32.mrb[0].mxu0
      %v3624 = vpop.f32.mrb[0].mxu0
      %v3625 = vadd.f32 0.0, %v3624
      %v3626 = vpop.f32.mrb[0].mxu0
      %3627 = vmatprep.mubr.bf16.mxu0 0
      %3628 = vmatmul.mubr.bf16.gmra.mrb[0].mxu0 %v1282
      %v3629 = vpop.f32.mrb[0].mxu0
      %v3630 = vadd.f32 0.0, %v3629
      %v3631 = vpop.f32.mrb[0].mxu0
      %v3632 = vpop.f32.mrb[0].mxu0
      %v3633 = vadd.f32 0.0, %v3632
      %v3634 = vpop.f32.mrb[0].mxu0
      %3635 = vmatprep.mubr.bf16.mxu0 0
      %3636 = vmatmul.mubr.bf16.gmra.mrb[0].mxu0 %v1285
      %v3637 = vpop.f32.mrb[0].mxu0
      %v3638 = vadd.f32 0.0, %v3637
      %v3639 = vpop.f32.mrb[0].mxu0
      %v3640 = vpop.f32.mrb[0].mxu0
      %v3641 = vadd.f32 0.0, %v3640
      %v3642 = vpop.f32.mrb[0].mxu0
      %3643 = vmatprep.mubr.bf16.mxu0 0
      %3644 = vmatmul.mubr.bf16.gmra.mrb[0].mxu0 %v1288
      %v3645 = vpop.f32.mrb[0].mxu0
      %v3646 = vadd.f32 0.0, %v3645
      %v3647 = vpop.f32.mrb[0].mxu0
      %v3648 = vpop.f32.mrb[0].mxu0
      %v3649 = vadd.f32 0.0, %v3648
      %v3650 = vpop.f32.mrb[0].mxu0
      %3651 = vmatprep.mubr.bf16.mxu0 0
      %3652 = vmatmul.mubr.bf16.gmra.mrb[0].mxu0 %v1291
      %v3653 = vpop.f32.mrb[0].mxu0
      %v3654 = vadd.f32 0.0, %v3653
      %v3655 = vpop.f32.mrb[0].mxu0
      %v3656 = vpop.f32.mrb[0].mxu0
      %v3657 = vadd.f32 0.0, %v3656
      %v3658 = vpop.f32.mrb[0].mxu0
      %3659 = vmatprep.mubr.bf16.mxu0 0
      %3660 = vmatmul.mubr.bf16.gmra.mrb[0].mxu0 %v1294
      %v3661 = vpop.f32.mrb[0].mxu0
      %v3662 = vadd.f32 0.0, %v3661
      %v3663 = vpop.f32.mrb[0].mxu0
      %v3664 = vpop.f32.mrb[0].mxu0
      %v3665 = vadd.f32 0.0, %v3664
      %v3666 = vpop.f32.mrb[0].mxu0
      %3667 = vmatprep.mubr.bf16.mxu0 0
      %3668 = vmatmul.mubr.bf16.gmra.mrb[0].mxu0 %v1297
      %v3669 = vpop.f32.mrb[0].mxu0
      %v3670 = vadd.f32 0.0, %v3669
      %v3671 = vpop.f32.mrb[0].mxu0
      %v3672 = vpop.f32.mrb[0].mxu0
      %v3673 = vadd.f32 0.0, %v3672
      %v3674 = vpop.f32.mrb[0].mxu0
      %3675 = vmatprep.mubr.bf16.mxu0 0
      %3676 = vmatmul.mubr.bf16.gmra.mrb[0].mxu0 %v1300
      %v3677 = vpop.f32.mrb[0].mxu0
      %v3678 = vadd.f32 0.0, %v3677
      %v3679 = vpop.f32.mrb[0].mxu0
      %v3680 = vpop.f32.mrb[0].mxu0
      %v3681 = vadd.f32 0.0, %v3680
      %v3682 = vpop.f32.mrb[0].mxu0
      %3683 = vmatprep.mubr.bf16.mxu0 0
      %3684 = vmatmul.mubr.bf16.gmra.mrb[0].mxu0 %v1303
      %v3685 = vpop.f32.mrb[0].mxu0
      %v3686 = vadd.f32 0.0, %v3685
      %v3687 = vpop.f32.mrb[0].mxu0
      %v3688 = vpop.f32.mrb[0].mxu0
      %v3689 = vadd.f32 0.0, %v3688
      %v3690 = vpop.f32.mrb[0].mxu0
      %3691 = vmatprep.mubr.bf16.mxu0 0
      %3692 = vmatmul.mubr.bf16.gmra.mrb[0].mxu0 %v1306
      %v3693 = vpop.f32.mrb[0].mxu0
      %v3694 = vadd.f32 0.0, %v3693
      %v3695 = vpop.f32.mrb[0].mxu0
      %v3696 = vpop.f32.mrb[0].mxu0
      %v3697 = vadd.f32 0.0, %v3696
      %v3698 = vpop.f32.mrb[0].mxu0
      %3699 = vmatprep.mubr.bf16.mxu0 0
      %3700 = vmatmul.mubr.bf16.gmra.mrb[0].mxu0 %v1309
      %v3701 = vpop.f32.mrb[0].mxu0
      %v3702 = vadd.f32 0.0, %v3701
      %v3703 = vpop.f32.mrb[0].mxu0
      %v3704 = vpop.f32.mrb[0].mxu0
      %v3705 = vadd.f32 0.0, %v3704
      %v3706 = vpop.f32.mrb[0].mxu0
      %3707 = vmatprep.mubr.bf16.mxu0 0
      %3708 = vmatmul.mubr.bf16.gmra.mrb[0].mxu0 %v1312
      %v3709 = vpop.f32.mrb[0].mxu0
      %v3710 = vadd.f32 0.0, %v3709
      %v3711 = vpop.f32.mrb[0].mxu0
      %v3712 = vpop.f32.mrb[0].mxu0
      %v3713 = vadd.f32 0.0, %v3712
      %v3714 = vpop.f32.mrb[0].mxu0
      %3715 = vmatprep.mubr.bf16.mxu0 0
      %3716 = vmatmul.mubr.bf16.gmra.mrb[0].mxu0 %v1315
      %v3717 = vpop.f32.mrb[0].mxu0
      %v3718 = vadd.f32 0.0, %v3717
      %v3719 = vpop.f32.mrb[0].mxu0
      %v3720 = vpop.f32.mrb[0].mxu0
      %v3721 = vadd.f32 0.0, %v3720
      %v3722 = vpop.f32.mrb[0].mxu0
      %3723 = vmatprep.mubr.bf16.mxu0 0
      %3724 = vmatmul.mubr.bf16.gmra.mrb[0].mxu0 %v1318
      %v3725 = vpop.f32.mrb[0].mxu0
      %v3726 = vadd.f32 0.0, %v3725
      %v3727 = vpop.f32.mrb[0].mxu0
      %v3728 = vpop.f32.mrb[0].mxu0
      %v3729 = vadd.f32 0.0, %v3728
      %v3730 = vpop.f32.mrb[0].mxu0
      %3731 = vmatprep.mubr.bf16.mxu0 0
      %3732 = vmatmul.mubr.bf16.gmra.mrb[0].mxu0 %v3525
      %v3733 = vpop.f32.mrb[0].mxu0
      %v3734 = vadd.f32 0.0, %v3733
      %v3735 = vpop.f32.mrb[0].mxu0
      %v3736 = vpop.f32.mrb[0].mxu0
      %v3737 = vadd.f32 0.0, %v3736
      %v3738 = vpop.f32.mrb[0].mxu0
      %3739 = vmatprep.mubr.bf16.mxu0 0
      %3740 = vmatmul.mubr.bf16.gmra.mrb[0].mxu0 %v3528
      %v3741 = vpop.f32.mrb[0].mxu0
      %v3742 = vadd.f32 0.0, %v3741
      %v3743 = vpop.f32.mrb[0].mxu0
      %v3744 = vpop.f32.mrb[0].mxu0
      %v3745 = vadd.f32 0.0, %v3744
      %v3746 = vpop.f32.mrb[0].mxu0
      %3747 = vmatprep.mubr.bf16.mxu0 0
      %3748 = vmatmul.mubr.bf16.gmra.mrb[0].mxu0 %v3531
      %v3749 = vpop.f32.mrb[0].mxu0
      %v3750 = vadd.f32 0.0, %v3749
      %v3751 = vpop.f32.mrb[0].mxu0
      %v3752 = vpop.f32.mrb[0].mxu0
      %v3753 = vadd.f32 0.0, %v3752
      %v3754 = vpop.f32.mrb[0].mxu0
      %3755 = vmatprep.mubr.bf16.mxu0 0
      %3756 = vmatmul.mubr.bf16.gmra.mrb[0].mxu0 %v3534
      %v3757 = vpop.f32.mrb[0].mxu0
      %v3758 = vadd.f32 0.0, %v3757
      %v3759 = vpop.f32.mrb[0].mxu0
      %v3760 = vpop.f32.mrb[0].mxu0
      %v3761 = vadd.f32 0.0, %v3760
      %v3762 = vpop.f32.mrb[0].mxu0
      %3763 = vdwg.mxu0
      %v3764 = vadd.f32 %v3466, %v3574
      %v3765 = vadd.f32 %v3467, %v3577
      %v3766 = vadd.f32 %v3468, %v3582
      %v3767 = vadd.f32 %v3469, %v3585
      %v3768 = vadd.f32 %v3470, %v3590
      %v3769 = vadd.f32 %v3471, %v3593
      %v3770 = vadd.f32 %v3472, %v3598
      %v3771 = vadd.f32 %v3473, %v3601
      %v3772 = vadd.f32 %v3474, %v3606
      %v3773 = vadd.f32 %v3475, %v3609
      %v3774 = vadd.f32 %v3476, %v3614
      %v3775 = vadd.f32 %v3477, %v3617
      %v3776 = vadd.f32 %v3478, %v3622
      %v3777 = vadd.f32 %v3479, %v3625
      %v3778 = vadd.f32 %v3480, %v3630
      %v3779 = vadd.f32 %v3481, %v3633
      %v3780 = vadd.f32 %v3482, %v3638
      %v3781 = vadd.f32 %v3483, %v3641
      %v3782 = vadd.f32 %v3484, %v3646
      %v3783 = vadd.f32 %v3485, %v3649
      %v3784 = vadd.f32 %v3486, %v3654
      %v3785 = vadd.f32 %v3487, %v3657
      %v3786 = vadd.f32 %v3488, %v3662
      %v3787 = vadd.f32 %v3489, %v3665
      %v3788 = vadd.f32 %v3490, %v3670
      %v3789 = vadd.f32 %v3491, %v3673
      %v3790 = vadd.f32 %v3492, %v3678
      %v3791 = vadd.f32 %v3493, %v3681
      %v3792 = vadd.f32 %v3494, %v3686
      %v3793 = vadd.f32 %v3495, %v3689
      %v3794 = vadd.f32 %v3496, %v3694
      %v3795 = vadd.f32 %v3497, %v3697
      %v3796 = vadd.f32 %v3498, %v3702
      %v3797 = vadd.f32 %v3499, %v3705
      %v3798 = vadd.f32 %v3500, %v3710
      %v3799 = vadd.f32 %v3501, %v3713
      %v3800 = vadd.f32 %v3502, %v3718
      %v3801 = vadd.f32 %v3503, %v3721
      %v3802 = vadd.f32 %v3504, %v3726
      %v3803 = vadd.f32 %v3505, %v3729
      %v3804 = vadd.f32 %v3506, %v3734
      %v3805 = vadd.f32 %v3507, %v3737
      %v3806 = vadd.f32 %v3508, %v3742
      %v3807 = vadd.f32 %v3509, %v3745
      %v3808 = vadd.f32 %v3510, %v3750
      %v3809 = vadd.f32 %v3511, %v3753
      %v3810 = vadd.f32 %v3512, %v3758
      %v3811 = vadd.f32 %v3513, %v3761
      %v3812 = vld [vmem:[%s2] sm:$0x1]
      %v3814 = vlaneseq
      %v3815 = vshrl.u32 %v3814, 7
      %v3816 = vsub.s32 0, %v3815
      %v3817 = vrot.slane %v3812, %v3816
      %v3819 = vadd.f32 %v3764, %v3817
      %v3820 = vadd.f32 %v3765, %v3817
      %v3821 = vadd.f32 %v3766, %v3817
      %v3822 = vadd.f32 %v3767, %v3817
      %v3823 = vadd.f32 %v3768, %v3817
      %v3824 = vadd.f32 %v3769, %v3817
      %v3825 = vadd.f32 %v3770, %v3817
      %v3826 = vadd.f32 %v3771, %v3817
      %v3827 = vadd.f32 %v3772, %v3817
      %v3828 = vadd.f32 %v3773, %v3817
      %v3829 = vadd.f32 %v3774, %v3817
      %v3830 = vadd.f32 %v3775, %v3817
      %v3831 = vadd.f32 %v3776, %v3817
      %v3832 = vadd.f32 %v3777, %v3817
      %v3833 = vadd.f32 %v3778, %v3817
      %v3834 = vadd.f32 %v3779, %v3817
      %v3835 = vadd.f32 %v3780, %v3817
      %v3836 = vadd.f32 %v3781, %v3817
      %v3837 = vadd.f32 %v3782, %v3817
      %v3838 = vadd.f32 %v3783, %v3817
      %v3839 = vadd.f32 %v3784, %v3817
      %v3840 = vadd.f32 %v3785, %v3817
      %v3841 = vadd.f32 %v3786, %v3817
      %v3842 = vadd.f32 %v3787, %v3817
      %v3843 = vadd.f32 %v3788, %v3817
      %v3844 = vadd.f32 %v3789, %v3817
      %v3845 = vadd.f32 %v3790, %v3817
      %v3846 = vadd.f32 %v3791, %v3817
      %v3847 = vadd.f32 %v3792, %v3817
      %v3848 = vadd.f32 %v3793, %v3817
      %v3849 = vadd.f32 %v3794, %v3817
      %v3850 = vadd.f32 %v3795, %v3817
      %v3851 = vadd.f32 %v3796, %v3817
      %v3852 = vadd.f32 %v3797, %v3817
      %v3853 = vadd.f32 %v3798, %v3817
      %v3854 = vadd.f32 %v3799, %v3817
      %v3855 = vadd.f32 %v3800, %v3817
      %v3856 = vadd.f32 %v3801, %v3817
      %v3857 = vadd.f32 %v3802, %v3817
      %v3858 = vadd.f32 %v3803, %v3817
      %v3859 = vadd.f32 %v3804, %v3817
      %v3860 = vadd.f32 %v3805, %v3817
      %v3861 = vadd.f32 %v3806, %v3817
      %v3862 = vadd.f32 %v3807, %v3817
      %v3863 = vadd.f32 %v3808, %v3817
      %v3864 = vadd.f32 %v3809, %v3817
      %v3865 = vadd.f32 %v3810, %v3817
      %v3866 = vadd.f32 %v3811, %v3817
      %v3867 = vmax.f32 %v3819, 0.0
      %v3868 = vmax.f32 %v3820, 0.0
      %v3869 = vmax.f32 %v3821, 0.0
      %v3870 = vmax.f32 %v3822, 0.0
      %v3871 = vmax.f32 %v3823, 0.0
      %v3872 = vmax.f32 %v3824, 0.0
      %v3873 = vmax.f32 %v3825, 0.0
      %v3874 = vmax.f32 %v3826, 0.0
      %v3875 = vmax.f32 %v3827, 0.0
      %v3876 = vmax.f32 %v3828, 0.0
      %v3877 = vmax.f32 %v3829, 0.0
      %v3878 = vmax.f32 %v3830, 0.0
      %v3879 = vmax.f32 %v3831, 0.0
      %v3880 = vmax.f32 %v3832, 0.0
      %v3881 = vmax.f32 %v3833, 0.0
      %v3882 = vmax.f32 %v3834, 0.0
      %v3883 = vmax.f32 %v3835, 0.0
      %v3884 = vmax.f32 %v3836, 0.0
      %v3885 = vmax.f32 %v3837, 0.0
      %v3886 = vmax.f32 %v3838, 0.0
      %v3887 = vmax.f32 %v3839, 0.0
      %v3888 = vmax.f32 %v3840, 0.0
      %v3889 = vmax.f32 %v3841, 0.0
      %v3890 = vmax.f32 %v3842, 0.0
      %v3891 = vmax.f32 %v3843, 0.0
      %v3892 = vmax.f32 %v3844, 0.0
      %v3893 = vmax.f32 %v3845, 0.0
      %v3894 = vmax.f32 %v3846, 0.0
      %v3895 = vmax.f32 %v3847, 0.0
      %v3896 = vmax.f32 %v3848, 0.0
      %v3897 = vmax.f32 %v3849, 0.0
      %v3898 = vmax.f32 %v3850, 0.0
      %v3899 = vmax.f32 %v3851, 0.0
      %v3900 = vmax.f32 %v3852, 0.0
      %v3901 = vmax.f32 %v3853, 0.0
      %v3902 = vmax.f32 %v3854, 0.0
      %v3903 = vmax.f32 %v3855, 0.0
      %v3904 = vmax.f32 %v3856, 0.0
      %v3905 = vmax.f32 %v3857, 0.0
      %v3906 = vmax.f32 %v3858, 0.0
      %v3907 = vmax.f32 %v3859, 0.0
      %v3908 = vmax.f32 %v3860, 0.0
      %v3909 = vmax.f32 %v3861, 0.0
      %v3910 = vmax.f32 %v3862, 0.0
      %v3911 = vmax.f32 %v3863, 0.0
      %v3912 = vmax.f32 %v3864, 0.0
      %v3913 = vmax.f32 %v3865, 0.0
      %v3914 = vmax.f32 %v3866, 0.0
      %3915 = vst.msk [vmem:[%s241] sm:$0xff] %vm621, %v3867
      %3916 = vst.msk [vmem:[%s241 + $0x8] sm:$0xff] %vm621, %v3868
      %3917 = vst.msk [vmem:[%s241 + $0x10] sm:$0xff] %vm621, %v3869
      %3918 = vst.msk [vmem:[%s241 + $0x18] sm:$0xff] %vm621, %v3870
      %3919 = vst.msk [vmem:[%s241 + $0x20] sm:$0xff] %vm621, %v3871
      %3920 = vst.msk [vmem:[%s241 + $0x28] sm:$0xff] %vm621, %v3872
      %3921 = vst.msk [vmem:[%s241 + $0x30] sm:$0xff] %vm621, %v3873
      %3922 = vst.msk [vmem:[%s241 + $0x38] sm:$0xff] %vm621, %v3874
      %3923 = vst.msk [vmem:[%s241 + $0x40] sm:$0xff] %vm621, %v3875
      %3924 = vst.msk [vmem:[%s241 + $0x48] sm:$0xff] %vm621, %v3876
      %3925 = vst.msk [vmem:[%s241 + $0x50] sm:$0xff] %vm621, %v3877
      %3926 = vst.msk [vmem:[%s241 + $0x58] sm:$0xff] %vm621, %v3878
      %3927 = vst.msk [vmem:[%s241 + $0x60] sm:$0xff] %vm621, %v3879
      %3928 = vst.msk [vmem:[%s241 + $0x68] sm:$0xff] %vm621, %v3880
      %3929 = vst.msk [vmem:[%s241 + $0x70] sm:$0xff] %vm621, %v3881
      %3930 = vst.msk [vmem:[%s241 + $0x78] sm:$0xff] %vm621, %v3882
      %3931 = vst.msk [vmem:[%s241 + $0x80] sm:$0xff] %vm621, %v3883
      %3932 = vst.msk [vmem:[%s241 + $0x88] sm:$0xff] %vm621, %v3884
      %3933 = vst.msk [vmem:[%s241 + $0x90] sm:$0xff] %vm621, %v3885
      %3934 = vst.msk [vmem:[%s241 + $0x98] sm:$0xff] %vm621, %v3886
      %3935 = vst.msk [vmem:[%s241 + $0xa0] sm:$0xff] %vm621, %v3887
      %3936 = vst.msk [vmem:[%s241 + $0xa8] sm:$0xff] %vm621, %v3888
      %3937 = vst.msk [vmem:[%s241 + $0xb0] sm:$0xff] %vm621, %v3889
      %3938 = vst.msk [vmem:[%s241 + $0xb8] sm:$0xff] %vm621, %v3890
      %3939 = vst.msk [vmem:[%s241 + $0xc0] sm:$0xff] %vm621, %v3891
      %3940 = vst.msk [vmem:[%s241 + $0xc8] sm:$0xff] %vm621, %v3892
      %3941 = vst.msk [vmem:[%s241 + $0xd0] sm:$0xff] %vm621, %v3893
      %3942 = vst.msk [vmem:[%s241 + $0xd8] sm:$0xff] %vm621, %v3894
      %3943 = vst.msk [vmem:[%s241 + $0xe0] sm:$0xff] %vm621, %v3895
      %3944 = vst.msk [vmem:[%s241 + $0xe8] sm:$0xff] %vm621, %v3896
      %3945 = vst.msk [vmem:[%s241 + $0xf0] sm:$0xff] %vm621, %v3897
      %3946 = vst.msk [vmem:[%s241 + $0xf8] sm:$0xff] %vm621, %v3898
      %3947 = vst.msk [vmem:[%s241 + $0x100] sm:$0xff] %vm621, %v3899
      %3948 = vst.msk [vmem:[%s241 + $0x108] sm:$0xff] %vm621, %v3900
      %3949 = vst.msk [vmem:[%s241 + $0x110] sm:$0xff] %vm621, %v3901
      %3950 = vst.msk [vmem:[%s241 + $0x118] sm:$0xff] %vm621, %v3902
      %3951 = vst.msk [vmem:[%s241 + $0x120] sm:$0xff] %vm621, %v3903
      %3952 = vst.msk [vmem:[%s241 + $0x128] sm:$0xff] %vm621, %v3904
      %3953 = vst.msk [vmem:[%s241 + $0x130] sm:$0xff] %vm621, %v3905
      %3954 = vst.msk [vmem:[%s241 + $0x138] sm:$0xff] %vm621, %v3906
      %3955 = vst.msk [vmem:[%s241 + $0x140] sm:$0xff] %vm621, %v3907
      %3956 = vst.msk [vmem:[%s241 + $0x148] sm:$0xff] %vm621, %v3908
      %3957 = vst.msk [vmem:[%s241 + $0x150] sm:$0xff] %vm621, %v3909
      %3958 = vst.msk [vmem:[%s241 + $0x158] sm:$0xff] %vm621, %v3910
      %3959 = vst.msk [vmem:[%s241 + $0x160] sm:$0xff] %vm621, %v3911
      %3960 = vst.msk [vmem:[%s241 + $0x168] sm:$0xff] %vm621, %v3912
      %3961 = vst.msk [vmem:[%s241 + $0x170] sm:$0xff] %vm621, %v3913
      %3962 = vst.msk [vmem:[%s241 + $0x178] sm:$0xff] %vm621, %v3914
      %p3963 = scmp.lt.s32.totalorder %s19, 1
      %s3964 = scalar_select %p3963, %s19, 1
      %p3965 = scmp.lt.s32.totalorder %s20, 0
      %s3966 = scalar_select %p3965, %s20, 0
      %s3967 = smul.addr %s3966, 48
      %s3968 = smul.addr %s3964, 48
      %s3969 = sadd.s32 %s3967, %s3968
      %s3970 = smul.addr %s3969, 8
      %s3971 = scalar_lea.vmem %s3, %s3970
      // Predicated region
      $region33: #{up_cat_forward.3} parent=31 // pred_check
        %p3972 = pneg %p130
      $region34: #{up_cat_forward.3} parent=31 // pred_check_branch
        %3974 = sbr.rel (%p3972) target = $region36
      $region35: #{up_cat_forward.3} parent=31 // pred_region
        _
      $region36: #{up_cat_forward.3} parent=31 // pred_fallthru
        _
    $region32: #{up_cat_forward.3} parent=5 // pred_fallthru
      _
    %p3975 = scmp.le.s32.totalorder 2, %s9
    // Predicated region
    $region37: #{up_cat_forward.3} parent=5 // pred_check
      %p3976 = pneg %p3975
    $region38: #{up_cat_forward.3} parent=5 // pred_check_branch
      %3978 = sbr.rel (%p3976) target = $region40
    $region39: #{up_cat_forward.3} parent=5 // pred_region
      %s3979 = ssub.s32 %s9, 2
      // Predicated region
      $region41: #{up_cat_forward.3} parent=39 // pred_check
        %p3980 = pneg %p136
      $region42: #{up_cat_forward.3} parent=39 // pred_check_branch
        %3982 = sbr.rel (%p3980) target = $region44
      $region43: #{up_cat_forward.3} parent=39 // pred_region
        %p3983 = scmp.lt.s32.totalorder %s22, 1
        %s3984 = scalar_select %p3983, %s22, 1
        %p3985 = scmp.lt.s32.totalorder %s23, 0
        %s3986 = scalar_select %p3985, %s23, 0
        %s3987 = smul.addr %s3986, 48
        %s3988 = smul.addr %s3984, 48
        %s3989 = sadd.s32 %s3987, %s3988
        %s3990 = smul.addr %s3989, 8
        %s3991 = scalar_lea.vmem %s3, %s3990
      $region44: #{up_cat_forward.3} parent=39 // pred_fallthru
        _
    $region40: #{up_cat_forward.3} parent=5 // pred_fallthru
      _
  $region6: #{up_cat_forward.3} parent=0 // loop_footer
    %s13 = sadd.s32 1, %s9
  $region7: #{up_cat_forward.3} parent=0 // loop_footer_branch
    %8 = sbr.rel target = $region3
  $region8: #{up_cat_forward.3} parent=0 // loop_exit
    _

// kernel: up_cat_forward.2
$region0: #{up_cat_forward.2}
  #allocation0 [shape = 'u32[]', space=smem, size = 0x4, offset = 0x4, fixed_abs, tag = 'smem constant byte address 0x4 - core index']
  #allocation1 [shape = 'u32[144,128]{1,0:T(1,128)}', space=vmem, size = 0x12000, scoped, tag = 'internal scratch']
  %s0 = inlined_call_operand.vmem [shape: bf16[2,1,456,8], index: 0, kind: input, shape index: {}]
  %s1 = inlined_call_operand.vmem [shape: bf16[9,8,8], index: 1, kind: input, shape index: {}]
  %s2 = inlined_call_operand.vmem [shape: f32[1,8], index: 2, kind: input, shape index: {}]
  %s3 = inlined_call_operand.vmem [shape: bf16[2,1,384,8], index: 3, kind: output, shape index: {}]
  %s4 = sld [smem:[#allocation0]]
  $region45: #{up_cat_forward.2} parent=0
    _
  %s6 = ssub.s32 1, %s4
  %s7 = scalar_select 0, %s6, %s4
  loop: start=0, step=1, limit=4
  $region2: #{up_cat_forward.2} parent=0 // loop_pre_header
    _
  $region3: #{up_cat_forward.2} parent=0 // loop_header
    %s9 = sphi 0, %s13
    %p10 = scmp.ge.s32.totalorder %s9, 4
    %s16 = sphi 0, %s35
    %s17 = sphi 0, %s31
    %s18 = sphi 0, %s27
    %s19 = sphi 0, %s16
    %s20 = sphi 0, %s17
    %s21 = sphi 0, %s18
    %s22 = sphi 0, %s19
    %s23 = sphi 0, %s20
    %s24 = sphi 0, %s21
    %s42 = sphi 0, %s44
    %s45 = sphi 0, %s42
    %s46 = sphi 0, %s45
    %s62 = sphi 0, %s46
    %s68 = sphi 0, %s70
    %s71 = sphi 0, %s68
    %s72 = sphi 0, %s71
    %s88 = sphi 0, %s72
    %s92 = sphi 0, %s92
    %s94 = sphi 0, %s92
    %s95 = sphi 0, %s94
    %s109 = sphi 0, %s95
    %s117 = sphi 0, %s119
    %s120 = sphi 0, %s117
    %s121 = sphi 0, %s120
    %s137 = sphi 0, %s121
  $region4: #{up_cat_forward.2} parent=0 // loop_header_branch
    %12 = sbr.rel (%p10) target = $region8
  $region5: #{up_cat_forward.2} parent=0 // loop_body
    %s14 = ssub.s32 %s9, 1
    %s15 = ssub.s32 %s9, 2
    %s25 = sadd.s32 1, %s18
    %p26 = scmp.ge.s32.totalorder %s25, 1
    %s27 = scalar_select %p26, 0, %s25
    %s28 = sadd.s32 1, %s17
    %s29 = scalar_select %p26, %s28, %s17
    %p30 = scmp.ge.s32.totalorder %s29, 1
    %s31 = scalar_select %p30, 0, %s29
    %s32 = sadd.s32 1, %s16
    %s33 = scalar_select %p30, %s32, %s16
    %p34 = scmp.ge.s32.totalorder %s33, 2
    %s35 = scalar_select %p34, 0, %s33
    %s36 = ssub.s32 %s16, %s35
    %s37 = ssub.s32 %s17, %s31
    %s38 = sor.u32 %s36, %s37
    %s39 = ssub.s32 %s18, %s27
    %s40 = sor.u32 %s38, %s39
    %p41 = scmp.eq.s32.totalorder %s40, 0
    %s43 = sadd.s32 %s42, 1
    %s44 = scalar_select %p41, %s42, %s43
    %p47 = pneg %p41
    %p48 = scmp.eq.s32.totalorder %s9, 1
    %p49 = por %p47, %p48
    %p50 = scmp.ne.s32.totalorder %s42, %s45
    %p51 = scmp.eq.s32.totalorder %s9, 0
    %p52 = por %p50, %p51
    %p53 = scmp.ne.s32.totalorder %s42, %s45
    %p54 = scmp.eq.s32.totalorder %s14, 1
    %p55 = por %p53, %p54
    %p56 = scmp.ne.s32.totalorder %s45, %s46
    %p57 = scmp.eq.s32.totalorder %s14, 0
    %p58 = por %p56, %p57
    %p59 = scmp.ne.s32.totalorder %s45, %s46
    %p60 = scmp.eq.s32.totalorder %s15, 1
    %p61 = por %p59, %p60
    %p63 = scmp.ne.s32.totalorder %s46, %s62
    %p64 = scmp.eq.s32.totalorder %s15, 0
    %p65 = por %p63, %p64
    %s66 = ssub.s32 %s18, %s27
    %p67 = scmp.eq.s32.totalorder %s66, 0
    %s69 = sadd.s32 %s68, 1
    %s70 = scalar_select %p67, %s68, %s69
    %p73 = pneg %p67
    %p74 = scmp.eq.s32.totalorder %s9, 1
    %p75 = por %p73, %p74
    %p76 = scmp.ne.s32.totalorder %s68, %s71
    %p77 = scmp.eq.s32.totalorder %s9, 0
    %p78 = por %p76, %p77
    %p79 = scmp.ne.s32.totalorder %s68, %s71
    %p80 = scmp.eq.s32.totalorder %s14, 1
    %p81 = por %p79, %p80
    %p82 = scmp.ne.s32.totalorder %s71, %s72
    %p83 = scmp.eq.s32.totalorder %s14, 0
    %p84 = por %p82, %p83
    %p85 = scmp.ne.s32.totalorder %s71, %s72
    %p86 = scmp.eq.s32.totalorder %s15, 1
    %p87 = por %p85, %p86
    %p89 = scmp.ne.s32.totalorder %s72, %s88
    %p90 = scmp.eq.s32.totalorder %s15, 0
    %p91 = por %p89, %p90
    %s93 = sadd.s32 %s92, 1
    %p96 = scmp.eq.s32.totalorder %s9, 1
    %p97 = scmp.ne.s32.totalorder %s92, %s94
    %p98 = scmp.eq.s32.totalorder %s9, 0
    %p99 = por %p97, %p98
    %p100 = scmp.ne.s32.totalorder %s92, %s94
    %p101 = scmp.eq.s32.totalorder %s14, 1
    %p102 = por %p100, %p101
    %p103 = scmp.ne.s32.totalorder %s94, %s95
    %p104 = scmp.eq.s32.totalorder %s14, 0
    %p105 = por %p103, %p104
    %p106 = scmp.ne.s32.totalorder %s94, %s95
    %p107 = scmp.eq.s32.totalorder %s15, 1
    %p108 = por %p106, %p107
    %p110 = scmp.ne.s32.totalorder %s95, %s109
    %p111 = scmp.eq.s32.totalorder %s15, 0
    %p112 = por %p110, %p111
    %s113 = ssub.s32 %s16, %s35
    %s114 = ssub.s32 %s17, %s31
    %s115 = sor.u32 %s113, %s114
    %p116 = scmp.eq.s32.totalorder %s115, 0
    %s118 = sadd.s32 %s117, 1
    %s119 = scalar_select %p116, %s117, %s118
    %p122 = pneg %p116
    %p123 = scmp.eq.s32.totalorder %s9, 1
    %p124 = por %p122, %p123
    %p125 = scmp.ne.s32.totalorder %s117, %s120
    %p126 = scmp.eq.s32.totalorder %s9, 0
    %p127 = por %p125, %p126
    %p128 = scmp.ne.s32.totalorder %s117, %s120
    %p129 = scmp.eq.s32.totalorder %s14, 1
    %p130 = por %p128, %p129
    %p131 = scmp.ne.s32.totalorder %s120, %s121
    %p132 = scmp.eq.s32.totalorder %s14, 0
    %p133 = por %p131, %p132
    %p134 = scmp.ne.s32.totalorder %s120, %s121
    %p135 = scmp.eq.s32.totalorder %s15, 1
    %p136 = por %p134, %p135
    %p138 = scmp.ne.s32.totalorder %s121, %s137
    %p139 = scmp.eq.s32.totalorder %s15, 0
    %p140 = por %p138, %p139
    %p141 = scmp.le.s32.totalorder 1, %s9
    %p142 = scmp.lt.s32.totalorder %s9, 3
    %p143 = pnand %p141, %p142
    %p144 = pneg %p143
    // Predicated region
    $region9: #{up_cat_forward.2} parent=5 // pred_check
      _
    $region10: #{up_cat_forward.2} parent=5 // pred_check_branch
      %146 = sbr.rel (%p143) target = $region12
    $region11: #{up_cat_forward.2} parent=5 // pred_region
      %s147 = ssub.s32 %s9, 1
      // Predicated region
      $region13: #{up_cat_forward.2} parent=11 // pred_check
        %p148 = pneg %p84
      $region14: #{up_cat_forward.2} parent=11 // pred_check_branch
        %150 = sbr.rel (%p148) target = $region16
      $region15: #{up_cat_forward.2} parent=11 // pred_region
        %p151 = scmp.lt.s32.totalorder %s21, 0
        %s152 = scalar_select %p151, %s21, 0
        %s153 = smul.addr %s152, 4
        %s154 = scalar_lea.vmem %s1, %s153
      $region16: #{up_cat_forward.2} parent=11 // pred_fallthru
        _
      // Predicated region
      $region17: #{up_cat_forward.2} parent=11 // pred_check
        %p155 = pneg %p105
      $region18: #{up_cat_forward.2} parent=11 // pred_check_branch
        %157 = sbr.rel (%p155) target = $region20
      $region19: #{up_cat_forward.2} parent=11 // pred_region
        _
      $region20: #{up_cat_forward.2} parent=11 // pred_fallthru
        _
    $region12: #{up_cat_forward.2} parent=5 // pred_fallthru
      _
    %p158 = scmp.lt.s32.totalorder %s9, 2
    // Predicated region
    $region21: #{up_cat_forward.2} parent=5 // pred_check
      %p159 = pneg %p158
    $region22: #{up_cat_forward.2} parent=5 // pred_check_branch
      %161 = sbr.rel (%p159) target = $region24
    $region23: #{up_cat_forward.2} parent=5 // pred_region
      // Predicated region
      $region25: #{up_cat_forward.2} parent=23 // pred_check
        %p162 = pneg %p52
      $region26: #{up_cat_forward.2} parent=23 // pred_check_branch
        %164 = sbr.rel (%p162) target = $region28
      $region27: #{up_cat_forward.2} parent=23 // pred_region
        %p165 = scmp.lt.s32.totalorder %s16, 1
        %s166 = scalar_select %p165, %s16, 1
        %p167 = scmp.lt.s32.totalorder %s17, 0
        %s168 = scalar_select %p167, %s17, 0
        %p169 = scmp.lt.s32.totalorder %s18, 0
        %s170 = scalar_select %p169, %s18, 0
        %s171 = smul.addr %s168, 57
        %s172 = sadd.s32 %s170, %s171
        %s173 = smul.addr %s166, 57
        %s174 = sadd.s32 %s172, %s173
        %s175 = smul.addr %s174, 4
        %s176 = scalar_lea.vmem %s0, %s175
      $region28: #{up_cat_forward.2} parent=23 // pred_fallthru
        _
    $region24: #{up_cat_forward.2} parent=5 // pred_fallthru
      _
    %p177 = scmp.le.s32.totalorder 1, %s9
    %p178 = scmp.lt.s32.totalorder %s9, 3
    %p179 = pnand %p177, %p178
    %p180 = pneg %p179
    // Predicated region
    $region29: #{up_cat_forward.2} parent=5 // pred_check
      _
    $region30: #{up_cat_forward.2} parent=5 // pred_check_branch
      %182 = sbr.rel (%p179) target = $region32
    $region31: #{up_cat_forward.2} parent=5 // pred_region
      %s183 = ssub.s32 %s9, 1
      %p184 = scmp.lt.s32.totalorder %s19, 1
      %s185 = scalar_select %p184, %s19, 1
      %p186 = scmp.lt.s32.totalorder %s20, 0
      %s187 = scalar_select %p186, %s20, 0
      %p188 = scmp.lt.s32.totalorder %s21, 0
      %s189 = scalar_select %p188, %s21, 0
      %s190 = smul.addr %s187, 57
      %s191 = sadd.s32 %s189, %s190
      %s192 = smul.addr %s185, 57
      %s193 = sadd.s32 %s191, %s192
      %s194 = smul.addr %s193, 4
      %s195 = scalar_lea.vmem %s0, %s194
      %p196 = pneg %p58
      %p197 = pneg %p55
      %p198 = scmp.lt.s32.totalorder %s21, 0
      %s199 = scalar_select %p198, %s21, 0
      %s200 = smul.addr %s199, 4
      %s201 = scalar_lea.vmem %s1, %s200
      %p202 = pneg %p84
      %p203 = pneg %p81
      %p204 = pneg %p105
      %p205 = pneg %p102
      %p206 = pneg %p133
      %p207 = pneg %p130
      %p208 = scmp.lt.s32.totalorder %s19, 1
      %s209 = scalar_select %p208, %s19, 1
      %p210 = scmp.lt.s32.totalorder %s20, 0
      %s211 = scalar_select %p210, %s20, 0
      %s212 = smul.addr %s211, 48
      %s213 = smul.addr %s209, 48
      %s214 = sadd.s32 %s212, %s213
      %s215 = smul.addr %s214, 4
      %s216 = scalar_lea.vmem %s3, %s215
      %p217 = scmp.lt.s32.totalorder %s19, 1
      %s218 = scalar_select %p217, %s19, 1
      %p219 = scmp.lt.s32.totalorder %s20, 0
      %s220 = scalar_select %p219, %s20, 0
      %p221 = scmp.lt.s32.totalorder %s21, 0
      %s222 = scalar_select %p221, %s21, 0
      %s223 = smul.addr %s220, 57
      %s224 = sadd.s32 %s222, %s223
      %s225 = smul.addr %s218, 57
      %s226 = sadd.s32 %s224, %s225
      %s227 = smul.addr %s226, 4
      %s228 = scalar_lea.vmem %s0, %s227
      %p229 = scmp.lt.s32.totalorder %s21, 0
      %s230 = scalar_select %p229, %s21, 0
      %s231 = smul.addr %s230, 4
      %s232 = scalar_lea.vmem %s1, %s231
      %p233 = scmp.lt.s32.totalorder %s19, 1
      %s234 = scalar_select %p233, %s19, 1
      %p235 = scmp.lt.s32.totalorder %s20, 0
      %s236 = scalar_select %p235, %s20, 0
      %s237 = smul.addr %s236, 48
      %s238 = smul.addr %s234, 48
      %s239 = sadd.s32 %s237, %s238
      %s240 = smul.addr %s239, 4
      %s241 = scalar_lea.vmem %s3, %s240
      %v243 = vld [vmem:[%s228] sm:$0xf]
      %v244 = vld [vmem:[%s228 + $0x4] sm:$0xf]
      %v245 = vld [vmem:[%s228 + $0x8] sm:$0xf]
      %v246 = vld [vmem:[%s228 + $0xc] sm:$0xf]
      %v247 = vld [vmem:[%s228 + $0x10] sm:$0xf]
      %v248 = vld [vmem:[%s228 + $0x14] sm:$0xf]
      %v249 = vld [vmem:[%s228 + $0x18] sm:$0xf]
      %v250 = vld [vmem:[%s228 + $0x1c] sm:$0xf]
      %v251 = vld [vmem:[%s228 + $0x20] sm:$0xf]
      %v252 = vld [vmem:[%s228 + $0x24] sm:$0xf]
      %v253 = vld [vmem:[%s228 + $0x28] sm:$0xf]
      %v254 = vld [vmem:[%s228 + $0x2c] sm:$0xf]
      %v255 = vld [vmem:[%s228 + $0x30] sm:$0xf]
      %v256 = vld [vmem:[%s228 + $0x34] sm:$0xf]
      %v257 = vld [vmem:[%s228 + $0x38] sm:$0xf]
      %v258 = vld [vmem:[%s228 + $0x3c] sm:$0xf]
      %v259 = vld [vmem:[%s228 + $0x40] sm:$0xf]
      %v260 = vld [vmem:[%s228 + $0x44] sm:$0xf]
      %v261 = vld [vmem:[%s228 + $0x48] sm:$0xf]
      %v262 = vld [vmem:[%s228 + $0x4c] sm:$0xf]
      %v263 = vld [vmem:[%s228 + $0x50] sm:$0xf]
      %v264 = vld [vmem:[%s228 + $0x54] sm:$0xf]
      %v265 = vld [vmem:[%s228 + $0x58] sm:$0xf]
      %v266 = vld [vmem:[%s228 + $0x5c] sm:$0xf]
      %v267 = vld [vmem:[%s228 + $0x60] sm:$0xf]
      %v268 = vld [vmem:[%s228 + $0x64] sm:$0xf]
      %v269 = vld [vmem:[%s228 + $0x68] sm:$0xf]
      %v270 = vld [vmem:[%s228 + $0x6c] sm:$0xf]
      %v271 = vld [vmem:[%s228 + $0x70] sm:$0xf]
      %v272 = vld [vmem:[%s228 + $0x74] sm:$0xf]
      %v273 = vld [vmem:[%s228 + $0x78] sm:$0xf]
      %v274 = vld [vmem:[%s228 + $0x7c] sm:$0xf]
      %v275 = vld [vmem:[%s228 + $0x80] sm:$0xf]
      %v276 = vld [vmem:[%s228 + $0x84] sm:$0xf]
      %v277 = vld [vmem:[%s228 + $0x88] sm:$0xf]
      %v278 = vld [vmem:[%s228 + $0x8c] sm:$0xf]
      %v279 = vld [vmem:[%s228 + $0x90] sm:$0xf]
      %v280 = vld [vmem:[%s228 + $0x94] sm:$0xf]
      %v281 = vld [vmem:[%s228 + $0x98] sm:$0xf]
      %v282 = vld [vmem:[%s228 + $0x9c] sm:$0xf]
      %v283 = vld [vmem:[%s228 + $0xa0] sm:$0xf]
      %v284 = vld [vmem:[%s228 + $0xa4] sm:$0xf]
      %v285 = vld [vmem:[%s228 + $0xa8] sm:$0xf]
      %v286 = vld [vmem:[%s228 + $0xac] sm:$0xf]
      %v287 = vld [vmem:[%s228 + $0xb0] sm:$0xf]
      %v288 = vld [vmem:[%s228 + $0xb4] sm:$0xf]
      %v289 = vld [vmem:[%s228 + $0xb8] sm:$0xf]
      %v290 = vld [vmem:[%s228 + $0xbc] sm:$0xf]
      %v291 = vld [vmem:[%s228 + $0xc0] sm:$0xf]
      %v292 = vld [vmem:[%s228 + $0xc4] sm:$0xf]
      %v293 = vld [vmem:[%s228 + $0xc8] sm:$0xf]
      %v294 = vld [vmem:[%s228 + $0xcc] sm:$0xf]
      %v295 = vld [vmem:[%s228 + $0xd0] sm:$0xf]
      %v296 = vld [vmem:[%s228 + $0xd4] sm:$0xf]
      %v297 = vld [vmem:[%s228 + $0xd8] sm:$0xf]
      %v298 = vld [vmem:[%s232] sm:$0xf]
      %s299 = scalar_lea.vmem %s232, 4
      %v300 = vld [vmem:[%s299] sm:$0xf]
      %v350 = vunpack.c.l.b16 %v243
      %v351 = vunpack.c.l.b16 %v244
      %v352 = vunpack.c.l.b16 %v245
      %v353 = vunpack.c.l.b16 %v246
      %v354 = vunpack.c.l.b16 %v247
      %v355 = vunpack.c.l.b16 %v248
      %v356 = vunpack.c.l.b16 %v249
      %v357 = vunpack.c.l.b16 %v250
      %v358 = vunpack.c.l.b16 %v251
      %v359 = vunpack.c.l.b16 %v252
      %v360 = vunpack.c.l.b16 %v253
      %v361 = vunpack.c.l.b16 %v254
      %v362 = vunpack.c.l.b16 %v255
      %v363 = vunpack.c.l.b16 %v256
      %v364 = vunpack.c.l.b16 %v257
      %v365 = vunpack.c.l.b16 %v258
      %v366 = vunpack.c.l.b16 %v259
      %v367 = vunpack.c.l.b16 %v260
      %v368 = vunpack.c.l.b16 %v261
      %v369 = vunpack.c.l.b16 %v262
      %v370 = vunpack.c.l.b16 %v263
      %v371 = vunpack.c.l.b16 %v264
      %v372 = vunpack.c.l.b16 %v265
      %v373 = vunpack.c.l.b16 %v266
      %v374 = vunpack.c.l.b16 %v267
      %v375 = vunpack.c.l.b16 %v268
      %v376 = vunpack.c.l.b16 %v269
      %v377 = vunpack.c.l.b16 %v270
      %v378 = vunpack.c.l.b16 %v271
      %v379 = vunpack.c.l.b16 %v272
      %v380 = vunpack.c.l.b16 %v273
      %v381 = vunpack.c.l.b16 %v274
      %v382 = vunpack.c.l.b16 %v275
      %v383 = vunpack.c.l.b16 %v276
      %v384 = vunpack.c.l.b16 %v277
      %v385 = vunpack.c.l.b16 %v278
      %v386 = vunpack.c.l.b16 %v279
      %v387 = vunpack.c.l.b16 %v280
      %v388 = vunpack.c.l.b16 %v281
      %v389 = vunpack.c.l.b16 %v282
      %v390 = vunpack.c.l.b16 %v283
      %v391 = vunpack.c.l.b16 %v284
      %v392 = vunpack.c.l.b16 %v285
      %v393 = vunpack.c.l.b16 %v286
      %v394 = vunpack.c.l.b16 %v287
      %v395 = vunpack.c.l.b16 %v288
      %v396 = vunpack.c.l.b16 %v289
      %v397 = vunpack.c.l.b16 %v290
      %v398 = vunpack.c.l.b16 %v291
      %v399 = vpack.c.b16 %v351, %v350
      %v400 = vpack.c.b16 %v353, %v352
      %v401 = vpack.c.b16 %v355, %v354
      %v402 = vpack.c.b16 %v357, %v356
      %v403 = vpack.c.b16 %v359, %v358
      %v404 = vpack.c.b16 %v361, %v360
      %v405 = vpack.c.b16 %v363, %v362
      %v406 = vpack.c.b16 %v365, %v364
      %v407 = vpack.c.b16 %v367, %v366
      %v408 = vpack.c.b16 %v369, %v368
      %v409 = vpack.c.b16 %v371, %v370
      %v410 = vpack.c.b16 %v373, %v372
      %v411 = vpack.c.b16 %v375, %v374
      %v412 = vpack.c.b16 %v377, %v376
      %v413 = vpack.c.b16 %v379, %v378
      %v414 = vpack.c.b16 %v381, %v380
      %v415 = vpack.c.b16 %v383, %v382
      %v416 = vpack.c.b16 %v385, %v384
      %v417 = vpack.c.b16 %v387, %v386
      %v418 = vpack.c.b16 %v389, %v388
      %v419 = vpack.c.b16 %v391, %v390
      %v420 = vpack.c.b16 %v393, %v392
      %v421 = vpack.c.b16 %v395, %v394
      %v422 = vpack.c.b16 %v397, %v396
      %v423 = vpack.c.b16 %v398, %v398
      %vm424 = vsmask.f32 7424
      %v426 = vshrl.u32 %v399, 16
      %v428 = vshll.u32 %v399, 16
      %v430 = vrot.slane %v428, 1
      %v431 = vor.u32 %v426, %v430
      %v433 = vshll.u32 %v400, 16
      %v435 = vrot.slane %v433, 1
      %v436 = vsel %vm424, %v431, %v435
      %v437 = vshrl.u32 %v400, 16
      %v439 = vor.u32 %v437, %v435
      %v441 = vshll.u32 %v401, 16
      %v443 = vrot.slane %v441, 1
      %v444 = vsel %vm424, %v439, %v443
      %v445 = vshrl.u32 %v401, 16
      %v447 = vor.u32 %v445, %v443
      %v449 = vshll.u32 %v402, 16
      %v451 = vrot.slane %v449, 1
      %v452 = vsel %vm424, %v447, %v451
      %v453 = vshrl.u32 %v402, 16
      %v455 = vor.u32 %v453, %v451
      %v457 = vshll.u32 %v403, 16
      %v459 = vrot.slane %v457, 1
      %v460 = vsel %vm424, %v455, %v459
      %v461 = vshrl.u32 %v403, 16
      %v463 = vor.u32 %v461, %v459
      %v465 = vshll.u32 %v404, 16
      %v467 = vrot.slane %v465, 1
      %v468 = vsel %vm424, %v463, %v467
      %v469 = vshrl.u32 %v404, 16
      %v471 = vor.u32 %v469, %v467
      %v473 = vshll.u32 %v405, 16
      %v475 = vrot.slane %v473, 1
      %v476 = vsel %vm424, %v471, %v475
      %v477 = vshrl.u32 %v405, 16
      %v479 = vor.u32 %v477, %v475
      %v481 = vshll.u32 %v406, 16
      %v483 = vrot.slane %v481, 1
      %v484 = vsel %vm424, %v479, %v483
      %v485 = vshrl.u32 %v406, 16
      %v487 = vor.u32 %v485, %v483
      %v489 = vshll.u32 %v407, 16
      %v491 = vrot.slane %v489, 1
      %v492 = vsel %vm424, %v487, %v491
      %v493 = vshrl.u32 %v407, 16
      %v495 = vor.u32 %v493, %v491
      %v497 = vshll.u32 %v408, 16
      %v499 = vrot.slane %v497, 1
      %v500 = vsel %vm424, %v495, %v499
      %v501 = vshrl.u32 %v408, 16
      %v503 = vor.u32 %v501, %v499
      %v505 = vshll.u32 %v409, 16
      %v507 = vrot.slane %v505, 1
      %v508 = vsel %vm424, %v503, %v507
      %v509 = vshrl.u32 %v409, 16
      %v511 = vor.u32 %v509, %v507
      %v513 = vshll.u32 %v410, 16
      %v515 = vrot.slane %v513, 1
      %v516 = vsel %vm424, %v511, %v515
      %v517 = vshrl.u32 %v410, 16
      %v519 = vor.u32 %v517, %v515
      %v521 = vshll.u32 %v411, 16
      %v523 = vrot.slane %v521, 1
      %v524 = vsel %vm424, %v519, %v523
      %v525 = vshrl.u32 %v411, 16
      %v527 = vor.u32 %v525, %v523
      %v529 = vshll.u32 %v412, 16
      %v531 = vrot.slane %v529, 1
      %v532 = vsel %vm424, %v527, %v531
      %v533 = vshrl.u32 %v412, 16
      %v535 = vor.u32 %v533, %v531
      %v537 = vshll.u32 %v413, 16
      %v539 = vrot.slane %v537, 1
      %v540 = vsel %vm424, %v535, %v539
      %v541 = vshrl.u32 %v413, 16
      %v543 = vor.u32 %v541, %v539
      %v545 = vshll.u32 %v414, 16
      %v547 = vrot.slane %v545, 1
      %v548 = vsel %vm424, %v543, %v547
      %v549 = vshrl.u32 %v414, 16
      %v551 = vor.u32 %v549, %v547
      %v553 = vshll.u32 %v415, 16
      %v555 = vrot.slane %v553, 1
      %v556 = vsel %vm424, %v551, %v555
      %v557 = vshrl.u32 %v415, 16
      %v559 = vor.u32 %v557, %v555
      %v561 = vshll.u32 %v416, 16
      %v563 = vrot.slane %v561, 1
      %v564 = vsel %vm424, %v559, %v563
      %v565 = vshrl.u32 %v416, 16
      %v567 = vor.u32 %v565, %v563
      %v569 = vshll.u32 %v417, 16
      %v571 = vrot.slane %v569, 1
      %v572 = vsel %vm424, %v567, %v571
      %v573 = vshrl.u32 %v417, 16
      %v575 = vor.u32 %v573, %v571
      %v577 = vshll.u32 %v418, 16
      %v579 = vrot.slane %v577, 1
      %v580 = vsel %vm424, %v575, %v579
      %v581 = vshrl.u32 %v418, 16
      %v583 = vor.u32 %v581, %v579
      %v585 = vshll.u32 %v419, 16
      %v587 = vrot.slane %v585, 1
      %v588 = vsel %vm424, %v583, %v587
      %v589 = vshrl.u32 %v419, 16
      %v591 = vor.u32 %v589, %v587
      %v593 = vshll.u32 %v420, 16
      %v595 = vrot.slane %v593, 1
      %v596 = vsel %vm424, %v591, %v595
      %v597 = vshrl.u32 %v420, 16
      %v599 = vor.u32 %v597, %v595
      %v601 = vshll.u32 %v421, 16
      %v603 = vrot.slane %v601, 1
      %v604 = vsel %vm424, %v599, %v603
      %v605 = vshrl.u32 %v421, 16
      %v607 = vor.u32 %v605, %v603
      %v609 = vshll.u32 %v422, 16
      %v611 = vrot.slane %v609, 1
      %v612 = vsel %vm424, %v607, %v611
      %v613 = vshrl.u32 %v422, 16
      %v615 = vor.u32 %v613, %v611
      %v617 = vshll.u32 %v423, 16
      %v619 = vrot.slane %v617, 1
      %v620 = vsel %vm424, %v615, %v619
      %vm621 = vcmask 64512
      %v623 = vsel %vm621, %v436, 0
      %v626 = vsel %vm621, %v444, 0
      %v629 = vsel %vm621, %v452, 0
      %v632 = vsel %vm621, %v460, 0
      %v635 = vsel %vm621, %v468, 0
      %v638 = vsel %vm621, %v476, 0
      %v641 = vsel %vm621, %v484, 0
      %v644 = vsel %vm621, %v492, 0
      %v647 = vsel %vm621, %v500, 0
      %v650 = vsel %vm621, %v508, 0
      %v653 = vsel %vm621, %v516, 0
      %v656 = vsel %vm621, %v524, 0
      %v659 = vsel %vm621, %v532, 0
      %v662 = vsel %vm621, %v540, 0
      %v665 = vsel %vm621, %v548, 0
      %v668 = vsel %vm621, %v556, 0
      %v671 = vsel %vm621, %v564, 0
      %v674 = vsel %vm621, %v572, 0
      %v677 = vsel %vm621, %v580, 0
      %v680 = vsel %vm621, %v588, 0
      %v683 = vsel %vm621, %v596, 0
      %v686 = vsel %vm621, %v604, 0
      %v689 = vsel %vm621, %v612, 0
      %v692 = vsel %vm621, %v620, 0
      %vm694 = vcmask 1043456
      %v696 = vsel %vm694, %v300, 0
      %698 = vmatprep.subr.bf16.mxu0 0
      %699 = vmatpush1.bf16.msra.mxu0 %v696
      %700 = vmatprep.subr.bf16.mxu0 0
      %701 = vmatpush1.bf16.msra.mxu0 0
      %702 = vmatprep.subr.bf16.mxu0 0
      %703 = vmatpush1.bf16.msra.mxu0 0
      %704 = vmatprep.subr.bf16.mxu0 0
      %705 = vmatpush1.bf16.msra.mxu0 0
      %706 = vmatprep.subr.bf16.mxu0 0
      %707 = vmatpush1.bf16.msra.mxu0 0
      %708 = vmatprep.subr.bf16.mxu0 0
      %709 = vmatpush1.bf16.msra.mxu0 0
      %710 = vmatprep.subr.bf16.mxu0 0
      %711 = vmatpush1.bf16.msra.mxu0 0
      %712 = vmatprep.subr.bf16.mxu0 0
      %713 = vmatpush1.bf16.msra.mxu0 0
      %714 = vmatprep.subr.bf16.mxu0 0
      %715 = vmatpush1.bf16.msra.mxu0 0
      %716 = vmatprep.subr.bf16.mxu0 0
      %717 = vmatpush1.bf16.msra.mxu0 0
      %718 = vmatprep.subr.bf16.mxu0 0
      %719 = vmatpush1.bf16.msra.mxu0 0
      %720 = vmatprep.subr.bf16.mxu0 0
      %721 = vmatpush1.bf16.msra.mxu0 0
      %722 = vmatprep.subr.bf16.mxu0 0
      %723 = vmatpush1.bf16.msra.mxu0 0
      %724 = vmatprep.subr.bf16.mxu0 0
      %725 = vmatpush1.bf16.msra.mxu0 0
      %726 = vmatprep.subr.bf16.mxu0 0
      %727 = vmatpush1.bf16.msra.mxu0 0
      %728 = vmatprep.subr.bf16.mxu0 0
      %729 = vmatpush1.bf16.msra.mxu0 0
      %730 = vmatprep.mubr.bf16.mxu0 0
      %731 = vmatmul.mubr.bf16.gmra.mrb[0].mxu0 %v623
      %v732 = vpop.f32.mrb[0].mxu0
      %v733 = vadd.f32 0.0, %v732
      %v734 = vpop.f32.mrb[0].mxu0
      %v735 = vpop.f32.mrb[0].mxu0
      %v736 = vadd.f32 0.0, %v735
      %v737 = vpop.f32.mrb[0].mxu0
      %738 = vmatprep.mubr.bf16.mxu0 0
      %739 = vmatmul.mubr.bf16.gmra.mrb[0].mxu0 %v626
      %v740 = vpop.f32.mrb[0].mxu0
      %v741 = vadd.f32 0.0, %v740
      %v742 = vpop.f32.mrb[0].mxu0
      %v743 = vpop.f32.mrb[0].mxu0
      %v744 = vadd.f32 0.0, %v743
      %v745 = vpop.f32.mrb[0].mxu0
      %746 = vmatprep.mubr.bf16.mxu0 0
      %747 = vmatmul.mubr.bf16.gmra.mrb[0].mxu0 %v629
      %v748 = vpop.f32.mrb[0].mxu0
      %v749 = vadd.f32 0.0, %v748
      %v750 = vpop.f32.mrb[0].mxu0
      %v751 = vpop.f32.mrb[0].mxu0
      %v752 = vadd.f32 0.0, %v751
      %v753 = vpop.f32.mrb[0].mxu0
      %754 = vmatprep.mubr.bf16.mxu0 0
      %755 = vmatmul.mubr.bf16.gmra.mrb[0].mxu0 %v632
      %v756 = vpop.f32.mrb[0].mxu0
      %v757 = vadd.f32 0.0, %v756
      %v758 = vpop.f32.mrb[0].mxu0
      %v759 = vpop.f32.mrb[0].mxu0
      %v760 = vadd.f32 0.0, %v759
      %v761 = vpop.f32.mrb[0].mxu0
      %762 = vmatprep.mubr.bf16.mxu0 0
      %763 = vmatmul.mubr.bf16.gmra.mrb[0].mxu0 %v635
      %v764 = vpop.f32.mrb[0].mxu0
      %v765 = vadd.f32 0.0, %v764
      %v766 = vpop.f32.mrb[0].mxu0
      %v767 = vpop.f32.mrb[0].mxu0
      %v768 = vadd.f32 0.0, %v767
      %v769 = vpop.f32.mrb[0].mxu0
      %770 = vmatprep.mubr.bf16.mxu0 0
      %771 = vmatmul.mubr.bf16.gmra.mrb[0].mxu0 %v638
      %v772 = vpop.f32.mrb[0].mxu0
      %v773 = vadd.f32 0.0, %v772
      %v774 = vpop.f32.mrb[0].mxu0
      %v775 = vpop.f32.mrb[0].mxu0
      %v776 = vadd.f32 0.0, %v775
      %v777 = vpop.f32.mrb[0].mxu0
      %778 = vmatprep.mubr.bf16.mxu0 0
      %779 = vmatmul.mubr.bf16.gmra.mrb[0].mxu0 %v641
      %v780 = vpop.f32.mrb[0].mxu0
      %v781 = vadd.f32 0.0, %v780
      %v782 = vpop.f32.mrb[0].mxu0
      %v783 = vpop.f32.mrb[0].mxu0
      %v784 = vadd.f32 0.0, %v783
      %v785 = vpop.f32.mrb[0].mxu0
      %786 = vmatprep.mubr.bf16.mxu0 0
      %787 = vmatmul.mubr.bf16.gmra.mrb[0].mxu0 %v644
      %v788 = vpop.f32.mrb[0].mxu0
      %v789 = vadd.f32 0.0, %v788
      %v790 = vpop.f32.mrb[0].mxu0
      %v791 = vpop.f32.mrb[0].mxu0
      %v792 = vadd.f32 0.0, %v791
      %v793 = vpop.f32.mrb[0].mxu0
      %794 = vmatprep.mubr.bf16.mxu0 0
      %795 = vmatmul.mubr.bf16.gmra.mrb[0].mxu0 %v647
      %v796 = vpop.f32.mrb[0].mxu0
      %v797 = vadd.f32 0.0, %v796
      %v798 = vpop.f32.mrb[0].mxu0
      %v799 = vpop.f32.mrb[0].mxu0
      %v800 = vadd.f32 0.0, %v799
      %v801 = vpop.f32.mrb[0].mxu0
      %802 = vmatprep.mubr.bf16.mxu0 0
      %803 = vmatmul.mubr.bf16.gmra.mrb[0].mxu0 %v650
      %v804 = vpop.f32.mrb[0].mxu0
      %v805 = vadd.f32 0.0, %v804
      %v806 = vpop.f32.mrb[0].mxu0
      %v807 = vpop.f32.mrb[0].mxu0
      %v808 = vadd.f32 0.0, %v807
      %v809 = vpop.f32.mrb[0].mxu0
      %810 = vmatprep.mubr.bf16.mxu0 0
      %811 = vmatmul.mubr.bf16.gmra.mrb[0].mxu0 %v653
      %v812 = vpop.f32.mrb[0].mxu0
      %v813 = vadd.f32 0.0, %v812
      %v814 = vpop.f32.mrb[0].mxu0
      %v815 = vpop.f32.mrb[0].mxu0
      %v816 = vadd.f32 0.0, %v815
      %v817 = vpop.f32.mrb[0].mxu0
      %818 = vmatprep.mubr.bf16.mxu0 0
      %819 = vmatmul.mubr.bf16.gmra.mrb[0].mxu0 %v656
      %v820 = vpop.f32.mrb[0].mxu0
      %v821 = vadd.f32 0.0, %v820
      %v822 = vpop.f32.mrb[0].mxu0
      %v823 = vpop.f32.mrb[0].mxu0
      %v824 = vadd.f32 0.0, %v823
      %v825 = vpop.f32.mrb[0].mxu0
      %826 = vmatprep.mubr.bf16.mxu0 0
      %827 = vmatmul.mubr.bf16.gmra.mrb[0].mxu0 %v659
      %v828 = vpop.f32.mrb[0].mxu0
      %v829 = vadd.f32 0.0, %v828
      %v830 = vpop.f32.mrb[0].mxu0
      %v831 = vpop.f32.mrb[0].mxu0
      %v832 = vadd.f32 0.0, %v831
      %v833 = vpop.f32.mrb[0].mxu0
      %834 = vmatprep.mubr.bf16.mxu0 0
      %835 = vmatmul.mubr.bf16.gmra.mrb[0].mxu0 %v662
      %v836 = vpop.f32.mrb[0].mxu0
      %v837 = vadd.f32 0.0, %v836
      %v838 = vpop.f32.mrb[0].mxu0
      %v839 = vpop.f32.mrb[0].mxu0
      %v840 = vadd.f32 0.0, %v839
      %v841 = vpop.f32.mrb[0].mxu0
      %842 = vmatprep.mubr.bf16.mxu0 0
      %843 = vmatmul.mubr.bf16.gmra.mrb[0].mxu0 %v665
      %v844 = vpop.f32.mrb[0].mxu0
      %v845 = vadd.f32 0.0, %v844
      %v846 = vpop.f32.mrb[0].mxu0
      %v847 = vpop.f32.mrb[0].mxu0
      %v848 = vadd.f32 0.0, %v847
      %v849 = vpop.f32.mrb[0].mxu0
      %850 = vmatprep.mubr.bf16.mxu0 0
      %851 = vmatmul.mubr.bf16.gmra.mrb[0].mxu0 %v668
      %v852 = vpop.f32.mrb[0].mxu0
      %v853 = vadd.f32 0.0, %v852
      %v854 = vpop.f32.mrb[0].mxu0
      %v855 = vpop.f32.mrb[0].mxu0
      %v856 = vadd.f32 0.0, %v855
      %v857 = vpop.f32.mrb[0].mxu0
      %858 = vmatprep.mubr.bf16.mxu0 0
      %859 = vmatmul.mubr.bf16.gmra.mrb[0].mxu0 %v671
      %v860 = vpop.f32.mrb[0].mxu0
      %v861 = vadd.f32 0.0, %v860
      %v862 = vpop.f32.mrb[0].mxu0
      %v863 = vpop.f32.mrb[0].mxu0
      %v864 = vadd.f32 0.0, %v863
      %v865 = vpop.f32.mrb[0].mxu0
      %866 = vmatprep.mubr.bf16.mxu0 0
      %867 = vmatmul.mubr.bf16.gmra.mrb[0].mxu0 %v674
      %v868 = vpop.f32.mrb[0].mxu0
      %v869 = vadd.f32 0.0, %v868
      %v870 = vpop.f32.mrb[0].mxu0
      %v871 = vpop.f32.mrb[0].mxu0
      %v872 = vadd.f32 0.0, %v871
      %v873 = vpop.f32.mrb[0].mxu0
      %874 = vmatprep.mubr.bf16.mxu0 0
      %875 = vmatmul.mubr.bf16.gmra.mrb[0].mxu0 %v677
      %v876 = vpop.f32.mrb[0].mxu0
      %v877 = vadd.f32 0.0, %v876
      %v878 = vpop.f32.mrb[0].mxu0
      %v879 = vpop.f32.mrb[0].mxu0
      %v880 = vadd.f32 0.0, %v879
      %v881 = vpop.f32.mrb[0].mxu0
      %882 = vmatprep.mubr.bf16.mxu0 0
      %883 = vmatmul.mubr.bf16.gmra.mrb[0].mxu0 %v680
      %v884 = vpop.f32.mrb[0].mxu0
      %v885 = vadd.f32 0.0, %v884
      %v886 = vpop.f32.mrb[0].mxu0
      %v887 = vpop.f32.mrb[0].mxu0
      %v888 = vadd.f32 0.0, %v887
      %v889 = vpop.f32.mrb[0].mxu0
      %890 = vmatprep.mubr.bf16.mxu0 0
      %891 = vmatmul.mubr.bf16.gmra.mrb[0].mxu0 %v683
      %v892 = vpop.f32.mrb[0].mxu0
      %v893 = vadd.f32 0.0, %v892
      %v894 = vpop.f32.mrb[0].mxu0
      %v895 = vpop.f32.mrb[0].mxu0
      %v896 = vadd.f32 0.0, %v895
      %v897 = vpop.f32.mrb[0].mxu0
      %898 = vmatprep.mubr.bf16.mxu0 0
      %899 = vmatmul.mubr.bf16.gmra.mrb[0].mxu0 %v686
      %v900 = vpop.f32.mrb[0].mxu0
      %v901 = vadd.f32 0.0, %v900
      %v902 = vpop.f32.mrb[0].mxu0
      %v903 = vpop.f32.mrb[0].mxu0
      %v904 = vadd.f32 0.0, %v903
      %v905 = vpop.f32.mrb[0].mxu0
      %906 = vmatprep.mubr.bf16.mxu0 0
      %907 = vmatmul.mubr.bf16.gmra.mrb[0].mxu0 %v689
      %v908 = vpop.f32.mrb[0].mxu0
      %v909 = vadd.f32 0.0, %v908
      %v910 = vpop.f32.mrb[0].mxu0
      %v911 = vpop.f32.mrb[0].mxu0
      %v912 = vadd.f32 0.0, %v911
      %v913 = vpop.f32.mrb[0].mxu0
      %914 = vmatprep.mubr.bf16.mxu0 0
      %915 = vmatmul.mubr.bf16.gmra.mrb[0].mxu0 %v692
      %v916 = vpop.f32.mrb[0].mxu0
      %v917 = vadd.f32 0.0, %v916
      %v918 = vpop.f32.mrb[0].mxu0
      %v919 = vpop.f32.mrb[0].mxu0
      %v920 = vadd.f32 0.0, %v919
      %v921 = vpop.f32.mrb[0].mxu0
      %922 = vdwg.mxu0
      %v923 = vsel %vm621, %v399, 0
      %v925 = vsel %vm621, %v400, 0
      %v927 = vsel %vm621, %v401, 0
      %v929 = vsel %vm621, %v402, 0
      %v931 = vsel %vm621, %v403, 0
      %v933 = vsel %vm621, %v404, 0
      %v935 = vsel %vm621, %v405, 0
      %v937 = vsel %vm621, %v406, 0
      %v939 = vsel %vm621, %v407, 0
      %v941 = vsel %vm621, %v408, 0
      %v943 = vsel %vm621, %v409, 0
      %v945 = vsel %vm621, %v410, 0
      %v947 = vsel %vm621, %v411, 0
      %v949 = vsel %vm621, %v412, 0
      %v951 = vsel %vm621, %v413, 0
      %v953 = vsel %vm621, %v414, 0
      %v955 = vsel %vm621, %v415, 0
      %v957 = vsel %vm621, %v416, 0
      %v959 = vsel %vm621, %v417, 0
      %v961 = vsel %vm621, %v418, 0
      %v963 = vsel %vm621, %v419, 0
      %v965 = vsel %vm621, %v420, 0
      %v967 = vsel %vm621, %v421, 0
      %v969 = vsel %vm621, %v422, 0
      %v972 = vsel %vm694, %v298, 0
      %974 = vmatprep.subr.bf16.mxu0 0
      %975 = vmatpush1.bf16.msra.mxu0 %v972
      %976 = vmatprep.subr.bf16.mxu0 0
      %977 = vmatpush1.bf16.msra.mxu0 0
      %978 = vmatprep.subr.bf16.mxu0 0
      %979 = vmatpush1.bf16.msra.mxu0 0
      %980 = vmatprep.subr.bf16.mxu0 0
      %981 = vmatpush1.bf16.msra.mxu0 0
      %982 = vmatprep.subr.bf16.mxu0 0
      %983 = vmatpush1.bf16.msra.mxu0 0
      %984 = vmatprep.subr.bf16.mxu0 0
      %985 = vmatpush1.bf16.msra.mxu0 0
      %986 = vmatprep.subr.bf16.mxu0 0
      %987 = vmatpush1.bf16.msra.mxu0 0
      %988 = vmatprep.subr.bf16.mxu0 0
      %989 = vmatpush1.bf16.msra.mxu0 0
      %990 = vmatprep.subr.bf16.mxu0 0
      %991 = vmatpush1.bf16.msra.mxu0 0
      %992 = vmatprep.subr.bf16.mxu0 0
      %993 = vmatpush1.bf16.msra.mxu0 0
      %994 = vmatprep.subr.bf16.mxu0 0
      %995 = vmatpush1.bf16.msra.mxu0 0
      %996 = vmatprep.subr.bf16.mxu0 0
      %997 = vmatpush1.bf16.msra.mxu0 0
      %998 = vmatprep.subr.bf16.mxu0 0
      %999 = vmatpush1.bf16.msra.mxu0 0
      %1000 = vmatprep.subr.bf16.mxu0 0
      %1001 = vmatpush1.bf16.msra.mxu0 0
      %1002 = vmatprep.subr.bf16.mxu0 0
      %1003 = vmatpush1.bf16.msra.mxu0 0
      %1004 = vmatprep.subr.bf16.mxu0 0
      %1005 = vmatpush1.bf16.msra.mxu0 0
      %1006 = vmatprep.mubr.bf16.mxu0 0
      %1007 = vmatmul.mubr.bf16.gmra.mrb[0].mxu0 %v923
      %v1008 = vpop.f32.mrb[0].mxu0
      %v1009 = vadd.f32 %v733, %v1008
      %v1010 = vpop.f32.mrb[0].mxu0
      %v1011 = vpop.f32.mrb[0].mxu0
      %v1012 = vadd.f32 %v736, %v1011
      %v1013 = vpop.f32.mrb[0].mxu0
      %1014 = vmatprep.mubr.bf16.mxu0 0
      %1015 = vmatmul.mubr.bf16.gmra.mrb[0].mxu0 %v925
      %v1016 = vpop.f32.mrb[0].mxu0
      %v1017 = vadd.f32 %v741, %v1016
      %v1018 = vpop.f32.mrb[0].mxu0
      %v1019 = vpop.f32.mrb[0].mxu0
      %v1020 = vadd.f32 %v744, %v1019
      %v1021 = vpop.f32.mrb[0].mxu0
      %1022 = vmatprep.mubr.bf16.mxu0 0
      %1023 = vmatmul.mubr.bf16.gmra.mrb[0].mxu0 %v927
      %v1024 = vpop.f32.mrb[0].mxu0
      %v1025 = vadd.f32 %v749, %v1024
      %v1026 = vpop.f32.mrb[0].mxu0
      %v1027 = vpop.f32.mrb[0].mxu0
      %v1028 = vadd.f32 %v752, %v1027
      %v1029 = vpop.f32.mrb[0].mxu0
      %1030 = vmatprep.mubr.bf16.mxu0 0
      %1031 = vmatmul.mubr.bf16.gmra.mrb[0].mxu0 %v929
      %v1032 = vpop.f32.mrb[0].mxu0
      %v1033 = vadd.f32 %v757, %v1032
      %v1034 = vpop.f32.mrb[0].mxu0
      %v1035 = vpop.f32.mrb[0].mxu0
      %v1036 = vadd.f32 %v760, %v1035
      %v1037 = vpop.f32.mrb[0].mxu0
      %1038 = vmatprep.mubr.bf16.mxu0 0
      %1039 = vmatmul.mubr.bf16.gmra.mrb[0].mxu0 %v931
      %v1040 = vpop.f32.mrb[0].mxu0
      %v1041 = vadd.f32 %v765, %v1040
      %v1042 = vpop.f32.mrb[0].mxu0
      %v1043 = vpop.f32.mrb[0].mxu0
      %v1044 = vadd.f32 %v768, %v1043
      %v1045 = vpop.f32.mrb[0].mxu0
      %1046 = vmatprep.mubr.bf16.mxu0 0
      %1047 = vmatmul.mubr.bf16.gmra.mrb[0].mxu0 %v933
      %v1048 = vpop.f32.mrb[0].mxu0
      %v1049 = vadd.f32 %v773, %v1048
      %v1050 = vpop.f32.mrb[0].mxu0
      %v1051 = vpop.f32.mrb[0].mxu0
      %v1052 = vadd.f32 %v776, %v1051
      %v1053 = vpop.f32.mrb[0].mxu0
      %1054 = vmatprep.mubr.bf16.mxu0 0
      %1055 = vmatmul.mubr.bf16.gmra.mrb[0].mxu0 %v935
      %v1056 = vpop.f32.mrb[0].mxu0
      %v1057 = vadd.f32 %v781, %v1056
      %v1058 = vpop.f32.mrb[0].mxu0
      %v1059 = vpop.f32.mrb[0].mxu0
      %v1060 = vadd.f32 %v784, %v1059
      %v1061 = vpop.f32.mrb[0].mxu0
      %1062 = vmatprep.mubr.bf16.mxu0 0
      %1063 = vmatmul.mubr.bf16.gmra.mrb[0].mxu0 %v937
      %v1064 = vpop.f32.mrb[0].mxu0
      %v1065 = vadd.f32 %v789, %v1064
      %v1066 = vpop.f32.mrb[0].mxu0
      %v1067 = vpop.f32.mrb[0].mxu0
      %v1068 = vadd.f32 %v792, %v1067
      %v1069 = vpop.f32.mrb[0].mxu0
      %1070 = vmatprep.mubr.bf16.mxu0 0
      %1071 = vmatmul.mubr.bf16.gmra.mrb[0].mxu0 %v939
      %v1072 = vpop.f32.mrb[0].mxu0
      %v1073 = vadd.f32 %v797, %v1072
      %v1074 = vpop.f32.mrb[0].mxu0
      %v1075 = vpop.f32.mrb[0].mxu0
      %v1076 = vadd.f32 %v800, %v1075
      %v1077 = vpop.f32.mrb[0].mxu0
      %1078 = vmatprep.mubr.bf16.mxu0 0
      %1079 = vmatmul.mubr.bf16.gmra.mrb[0].mxu0 %v941
      %v1080 = vpop.f32.mrb[0].mxu0
      %v1081 = vadd.f32 %v805, %v1080
      %v1082 = vpop.f32.mrb[0].mxu0
      %v1083 = vpop.f32.mrb[0].mxu0
      %v1084 = vadd.f32 %v808, %v1083
      %v1085 = vpop.f32.mrb[0].mxu0
      %1086 = vmatprep.mubr.bf16.mxu0 0
      %1087 = vmatmul.mubr.bf16.gmra.mrb[0].mxu0 %v943
      %v1088 = vpop.f32.mrb[0].mxu0
      %v1089 = vadd.f32 %v813, %v1088
      %v1090 = vpop.f32.mrb[0].mxu0
      %v1091 = vpop.f32.mrb[0].mxu0
      %v1092 = vadd.f32 %v816, %v1091
      %v1093 = vpop.f32.mrb[0].mxu0
      %1094 = vmatprep.mubr.bf16.mxu0 0
      %1095 = vmatmul.mubr.bf16.gmra.mrb[0].mxu0 %v945
      %v1096 = vpop.f32.mrb[0].mxu0
      %v1097 = vadd.f32 %v821, %v1096
      %v1098 = vpop.f32.mrb[0].mxu0
      %v1099 = vpop.f32.mrb[0].mxu0
      %v1100 = vadd.f32 %v824, %v1099
      %v1101 = vpop.f32.mrb[0].mxu0
      %1102 = vmatprep.mubr.bf16.mxu0 0
      %1103 = vmatmul.mubr.bf16.gmra.mrb[0].mxu0 %v947
      %v1104 = vpop.f32.mrb[0].mxu0
      %v1105 = vadd.f32 %v829, %v1104
      %v1106 = vpop.f32.mrb[0].mxu0
      %v1107 = vpop.f32.mrb[0].mxu0
      %v1108 = vadd.f32 %v832, %v1107
      %v1109 = vpop.f32.mrb[0].mxu0
      %1110 = vmatprep.mubr.bf16.mxu0 0
      %1111 = vmatmul.mubr.bf16.gmra.mrb[0].mxu0 %v949
      %v1112 = vpop.f32.mrb[0].mxu0
      %v1113 = vadd.f32 %v837, %v1112
      %v1114 = vpop.f32.mrb[0].mxu0
      %v1115 = vpop.f32.mrb[0].mxu0
      %v1116 = vadd.f32 %v840, %v1115
      %v1117 = vpop.f32.mrb[0].mxu0
      %1118 = vmatprep.mubr.bf16.mxu0 0
      %1119 = vmatmul.mubr.bf16.gmra.mrb[0].mxu0 %v951
      %v1120 = vpop.f32.mrb[0].mxu0
      %v1121 = vadd.f32 %v845, %v1120
      %v1122 = vpop.f32.mrb[0].mxu0
      %v1123 = vpop.f32.mrb[0].mxu0
      %v1124 = vadd.f32 %v848, %v1123
      %v1125 = vpop.f32.mrb[0].mxu0
      %1126 = vmatprep.mubr.bf16.mxu0 0
      %1127 = vmatmul.mubr.bf16.gmra.mrb[0].mxu0 %v953
      %v1128 = vpop.f32.mrb[0].mxu0
      %v1129 = vadd.f32 %v853, %v1128
      %v1130 = vpop.f32.mrb[0].mxu0
      %v1131 = vpop.f32.mrb[0].mxu0
      %v1132 = vadd.f32 %v856, %v1131
      %v1133 = vpop.f32.mrb[0].mxu0
      %1134 = vmatprep.mubr.bf16.mxu0 0
      %1135 = vmatmul.mubr.bf16.gmra.mrb[0].mxu0 %v955
      %v1136 = vpop.f32.mrb[0].mxu0
      %v1137 = vadd.f32 %v861, %v1136
      %v1138 = vpop.f32.mrb[0].mxu0
      %v1139 = vpop.f32.mrb[0].mxu0
      %v1140 = vadd.f32 %v864, %v1139
      %v1141 = vpop.f32.mrb[0].mxu0
      %1142 = vmatprep.mubr.bf16.mxu0 0
      %1143 = vmatmul.mubr.bf16.gmra.mrb[0].mxu0 %v957
      %v1144 = vpop.f32.mrb[0].mxu0
      %v1145 = vadd.f32 %v869, %v1144
      %v1146 = vpop.f32.mrb[0].mxu0
      %v1147 = vpop.f32.mrb[0].mxu0
      %v1148 = vadd.f32 %v872, %v1147
      %v1149 = vpop.f32.mrb[0].mxu0
      %1150 = vmatprep.mubr.bf16.mxu0 0
      %1151 = vmatmul.mubr.bf16.gmra.mrb[0].mxu0 %v959
      %v1152 = vpop.f32.mrb[0].mxu0
      %v1153 = vadd.f32 %v877, %v1152
      %v1154 = vpop.f32.mrb[0].mxu0
      %v1155 = vpop.f32.mrb[0].mxu0
      %v1156 = vadd.f32 %v880, %v1155
      %v1157 = vpop.f32.mrb[0].mxu0
      %1158 = vmatprep.mubr.bf16.mxu0 0
      %1159 = vmatmul.mubr.bf16.gmra.mrb[0].mxu0 %v961
      %v1160 = vpop.f32.mrb[0].mxu0
      %v1161 = vadd.f32 %v885, %v1160
      %v1162 = vpop.f32.mrb[0].mxu0
      %v1163 = vpop.f32.mrb[0].mxu0
      %v1164 = vadd.f32 %v888, %v1163
      %v1165 = vpop.f32.mrb[0].mxu0
      %1166 = vmatprep.mubr.bf16.mxu0 0
      %1167 = vmatmul.mubr.bf16.gmra.mrb[0].mxu0 %v963
      %v1168 = vpop.f32.mrb[0].mxu0
      %v1169 = vadd.f32 %v893, %v1168
      %v1170 = vpop.f32.mrb[0].mxu0
      %v1171 = vpop.f32.mrb[0].mxu0
      %v1172 = vadd.f32 %v896, %v1171
      %v1173 = vpop.f32.mrb[0].mxu0
      %1174 = vmatprep.mubr.bf16.mxu0 0
      %1175 = vmatmul.mubr.bf16.gmra.mrb[0].mxu0 %v965
      %v1176 = vpop.f32.mrb[0].mxu0
      %v1177 = vadd.f32 %v901, %v1176
      %v1178 = vpop.f32.mrb[0].mxu0
      %v1179 = vpop.f32.mrb[0].mxu0
      %v1180 = vadd.f32 %v904, %v1179
      %v1181 = vpop.f32.mrb[0].mxu0
      %1182 = vmatprep.mubr.bf16.mxu0 0
      %1183 = vmatmul.mubr.bf16.gmra.mrb[0].mxu0 %v967
      %v1184 = vpop.f32.mrb[0].mxu0
      %v1185 = vadd.f32 %v909, %v1184
      %v1186 = vpop.f32.mrb[0].mxu0
      %v1187 = vpop.f32.mrb[0].mxu0
      %v1188 = vadd.f32 %v912, %v1187
      %v1189 = vpop.f32.mrb[0].mxu0
      %1190 = vmatprep.mubr.bf16.mxu0 0
      %1191 = vmatmul.mubr.bf16.gmra.mrb[0].mxu0 %v969
      %v1192 = vpop.f32.mrb[0].mxu0
      %v1193 = vadd.f32 %v917, %v1192
      %v1194 = vpop.f32.mrb[0].mxu0
      %v1195 = vpop.f32.mrb[0].mxu0
      %v1196 = vadd.f32 %v920, %v1195
      %v1197 = vpop.f32.mrb[0].mxu0
      %1198 = vdwg.mxu0
      %s1199 = scalar_lea.vmem %s232, 8
      %v1200 = vld [vmem:[%s1199] sm:$0xf]
      %vm1201 = vcmask 1046528
      %v1202 = vrot.slane %v399, 1
      %v1203 = vrot.slane %v400, 1
      %v1204 = vsel %vm1201, %v1202, %v1203
      %v1205 = vrot.slane %v401, 1
      %v1206 = vsel %vm1201, %v1203, %v1205
      %v1207 = vrot.slane %v402, 1
      %v1208 = vsel %vm1201, %v1205, %v1207
      %v1209 = vrot.slane %v403, 1
      %v1210 = vsel %vm1201, %v1207, %v1209
      %v1211 = vrot.slane %v404, 1
      %v1212 = vsel %vm1201, %v1209, %v1211
      %v1213 = vrot.slane %v405, 1
      %v1214 = vsel %vm1201, %v1211, %v1213
      %v1215 = vrot.slane %v406, 1
      %v1216 = vsel %vm1201, %v1213, %v1215
      %v1217 = vrot.slane %v407, 1
      %v1218 = vsel %vm1201, %v1215, %v1217
      %v1219 = vrot.slane %v408, 1
      %v1220 = vsel %vm1201, %v1217, %v1219
      %v1221 = vrot.slane %v409, 1
      %v1222 = vsel %vm1201, %v1219, %v1221
      %v1223 = vrot.slane %v410, 1
      %v1224 = vsel %vm1201, %v1221, %v1223
      %v1225 = vrot.slane %v411, 1
      %v1226 = vsel %vm1201, %v1223, %v1225
      %v1227 = vrot.slane %v412, 1
      %v1228 = vsel %vm1201, %v1225, %v1227
      %v1229 = vrot.slane %v413, 1
      %v1230 = vsel %vm1201, %v1227, %v1229
      %v1231 = vrot.slane %v414, 1
      %v1232 = vsel %vm1201, %v1229, %v1231
      %v1233 = vrot.slane %v415, 1
      %v1234 = vsel %vm1201, %v1231, %v1233
      %v1235 = vrot.slane %v416, 1
      %v1236 = vsel %vm1201, %v1233, %v1235
      %v1237 = vrot.slane %v417, 1
      %v1238 = vsel %vm1201, %v1235, %v1237
      %v1239 = vrot.slane %v418, 1
      %v1240 = vsel %vm1201, %v1237, %v1239
      %v1241 = vrot.slane %v419, 1
      %v1242 = vsel %vm1201, %v1239, %v1241
      %v1243 = vrot.slane %v420, 1
      %v1244 = vsel %vm1201, %v1241, %v1243
      %v1245 = vrot.slane %v421, 1
      %v1246 = vsel %vm1201, %v1243, %v1245
      %v1247 = vrot.slane %v422, 1
      %v1248 = vsel %vm1201, %v1245, %v1247
      %v1249 = vrot.slane %v423, 1
      %v1250 = vsel %vm1201, %v1247, %v1249
      %v1252 = vsel %vm621, %v1204, 0
      %v1255 = vsel %vm621, %v1206, 0
      %v1258 = vsel %vm621, %v1208, 0
      %v1261 = vsel %vm621, %v1210, 0
      %v1264 = vsel %vm621, %v1212, 0
      %v1267 = vsel %vm621, %v1214, 0
      %v1270 = vsel %vm621, %v1216, 0
      %v1273 = vsel %vm621, %v1218, 0
      %v1276 = vsel %vm621, %v1220, 0
      %v1279 = vsel %vm621, %v1222, 0
      %v1282 = vsel %vm621, %v1224, 0
      %v1285 = vsel %vm621, %v1226, 0
      %v1288 = vsel %vm621, %v1228, 0
      %v1291 = vsel %vm621, %v1230, 0
      %v1294 = vsel %vm621, %v1232, 0
      %v1297 = vsel %vm621, %v1234, 0
      %v1300 = vsel %vm621, %v1236, 0
      %v1303 = vsel %vm621, %v1238, 0
      %v1306 = vsel %vm621, %v1240, 0
      %v1309 = vsel %vm621, %v1242, 0
      %v1312 = vsel %vm621, %v1244, 0
      %v1315 = vsel %vm621, %v1246, 0
      %v1318 = vsel %vm621, %v1248, 0
      %v1321 = vsel %vm621, %v1250, 0
      %v1324 = vsel %vm694, %v1200, 0
      %1326 = vmatprep.subr.bf16.mxu0 0
      %1327 = vmatpush1.bf16.msra.mxu0 %v1324
      %1328 = vmatprep.subr.bf16.mxu0 0
      %1329 = vmatpush1.bf16.msra.mxu0 0
      %1330 = vmatprep.subr.bf16.mxu0 0
      %1331 = vmatpush1.bf16.msra.mxu0 0
      %1332 = vmatprep.subr.bf16.mxu0 0
      %1333 = vmatpush1.bf16.msra.mxu0 0
      %1334 = vmatprep.subr.bf16.mxu0 0
      %1335 = vmatpush1.bf16.msra.mxu0 0
      %1336 = vmatprep.subr.bf16.mxu0 0
      %1337 = vmatpush1.bf16.msra.mxu0 0
      %1338 = vmatprep.subr.bf16.mxu0 0
      %1339 = vmatpush1.bf16.msra.mxu0 0
      %1340 = vmatprep.subr.bf16.mxu0 0
      %1341 = vmatpush1.bf16.msra.mxu0 0
      %1342 = vmatprep.subr.bf16.mxu0 0
      %1343 = vmatpush1.bf16.msra.mxu0 0
      %1344 = vmatprep.subr.bf16.mxu0 0
      %1345 = vmatpush1.bf16.msra.mxu0 0
      %1346 = vmatprep.subr.bf16.mxu0 0
      %1347 = vmatpush1.bf16.msra.mxu0 0
      %1348 = vmatprep.subr.bf16.mxu0 0
      %1349 = vmatpush1.bf16.msra.mxu0 0
      %1350 = vmatprep.subr.bf16.mxu0 0
      %1351 = vmatpush1.bf16.msra.mxu0 0
      %1352 = vmatprep.subr.bf16.mxu0 0
      %1353 = vmatpush1.bf16.msra.mxu0 0
      %1354 = vmatprep.subr.bf16.mxu0 0
      %1355 = vmatpush1.bf16.msra.mxu0 0
      %1356 = vmatprep.subr.bf16.mxu0 0
      %1357 = vmatpush1.bf16.msra.mxu0 0
      %1358 = vmatprep.mubr.bf16.mxu0 0
      %1359 = vmatmul.mubr.bf16.gmra.mrb[0].mxu0 %v1252
      %v1360 = vpop.f32.mrb[0].mxu0
      %v1361 = vadd.f32 0.0, %v1360
      %v1362 = vpop.f32.mrb[0].mxu0
      %v1363 = vpop.f32.mrb[0].mxu0
      %v1364 = vadd.f32 0.0, %v1363
      %v1365 = vpop.f32.mrb[0].mxu0
      %1366 = vmatprep.mubr.bf16.mxu0 0
      %1367 = vmatmul.mubr.bf16.gmra.mrb[0].mxu0 %v1255
      %v1368 = vpop.f32.mrb[0].mxu0
      %v1369 = vadd.f32 0.0, %v1368
      %v1370 = vpop.f32.mrb[0].mxu0
      %v1371 = vpop.f32.mrb[0].mxu0
      %v1372 = vadd.f32 0.0, %v1371
      %v1373 = vpop.f32.mrb[0].mxu0
      %1374 = vmatprep.mubr.bf16.mxu0 0
      %1375 = vmatmul.mubr.bf16.gmra.mrb[0].mxu0 %v1258
      %v1376 = vpop.f32.mrb[0].mxu0
      %v1377 = vadd.f32 0.0, %v1376
      %v1378 = vpop.f32.mrb[0].mxu0
      %v1379 = vpop.f32.mrb[0].mxu0
      %v1380 = vadd.f32 0.0, %v1379
      %v1381 = vpop.f32.mrb[0].mxu0
      %1382 = vmatprep.mubr.bf16.mxu0 0
      %1383 = vmatmul.mubr.bf16.gmra.mrb[0].mxu0 %v1261
      %v1384 = vpop.f32.mrb[0].mxu0
      %v1385 = vadd.f32 0.0, %v1384
      %v1386 = vpop.f32.mrb[0].mxu0
      %v1387 = vpop.f32.mrb[0].mxu0
      %v1388 = vadd.f32 0.0, %v1387
      %v1389 = vpop.f32.mrb[0].mxu0
      %1390 = vmatprep.mubr.bf16.mxu0 0
      %1391 = vmatmul.mubr.bf16.gmra.mrb[0].mxu0 %v1264
      %v1392 = vpop.f32.mrb[0].mxu0
      %v1393 = vadd.f32 0.0, %v1392
      %v1394 = vpop.f32.mrb[0].mxu0
      %v1395 = vpop.f32.mrb[0].mxu0
      %v1396 = vadd.f32 0.0, %v1395
      %v1397 = vpop.f32.mrb[0].mxu0
      %1398 = vmatprep.mubr.bf16.mxu0 0
      %1399 = vmatmul.mubr.bf16.gmra.mrb[0].mxu0 %v1267
      %v1400 = vpop.f32.mrb[0].mxu0
      %v1401 = vadd.f32 0.0, %v1400
      %v1402 = vpop.f32.mrb[0].mxu0
      %v1403 = vpop.f32.mrb[0].mxu0
      %v1404 = vadd.f32 0.0, %v1403
      %v1405 = vpop.f32.mrb[0].mxu0
      %1406 = vmatprep.mubr.bf16.mxu0 0
      %1407 = vmatmul.mubr.bf16.gmra.mrb[0].mxu0 %v1270
      %v1408 = vpop.f32.mrb[0].mxu0
      %v1409 = vadd.f32 0.0, %v1408
      %v1410 = vpop.f32.mrb[0].mxu0
      %v1411 = vpop.f32.mrb[0].mxu0
      %v1412 = vadd.f32 0.0, %v1411
      %v1413 = vpop.f32.mrb[0].mxu0
      %1414 = vmatprep.mubr.bf16.mxu0 0
      %1415 = vmatmul.mubr.bf16.gmra.mrb[0].mxu0 %v1273
      %v1416 = vpop.f32.mrb[0].mxu0
      %v1417 = vadd.f32 0.0, %v1416
      %v1418 = vpop.f32.mrb[0].mxu0
      %v1419 = vpop.f32.mrb[0].mxu0
      %v1420 = vadd.f32 0.0, %v1419
      %v1421 = vpop.f32.mrb[0].mxu0
      %1422 = vmatprep.mubr.bf16.mxu0 0
      %1423 = vmatmul.mubr.bf16.gmra.mrb[0].mxu0 %v1276
      %v1424 = vpop.f32.mrb[0].mxu0
      %v1425 = vadd.f32 0.0, %v1424
      %v1426 = vpop.f32.mrb[0].mxu0
      %v1427 = vpop.f32.mrb[0].mxu0
      %v1428 = vadd.f32 0.0, %v1427
      %v1429 = vpop.f32.mrb[0].mxu0
      %1430 = vmatprep.mubr.bf16.mxu0 0
      %1431 = vmatmul.mubr.bf16.gmra.mrb[0].mxu0 %v1279
      %v1432 = vpop.f32.mrb[0].mxu0
      %v1433 = vadd.f32 0.0, %v1432
      %v1434 = vpop.f32.mrb[0].mxu0
      %v1435 = vpop.f32.mrb[0].mxu0
      %v1436 = vadd.f32 0.0, %v1435
      %v1437 = vpop.f32.mrb[0].mxu0
      %1438 = vmatprep.mubr.bf16.mxu0 0
      %1439 = vmatmul.mubr.bf16.gmra.mrb[0].mxu0 %v1282
      %v1440 = vpop.f32.mrb[0].mxu0
      %v1441 = vadd.f32 0.0, %v1440
      %v1442 = vpop.f32.mrb[0].mxu0
      %v1443 = vpop.f32.mrb[0].mxu0
      %v1444 = vadd.f32 0.0, %v1443
      %v1445 = vpop.f32.mrb[0].mxu0
      %1446 = vmatprep.mubr.bf16.mxu0 0
      %1447 = vmatmul.mubr.bf16.gmra.mrb[0].mxu0 %v1285
      %v1448 = vpop.f32.mrb[0].mxu0
      %v1449 = vadd.f32 0.0, %v1448
      %v1450 = vpop.f32.mrb[0].mxu0
      %v1451 = vpop.f32.mrb[0].mxu0
      %v1452 = vadd.f32 0.0, %v1451
      %v1453 = vpop.f32.mrb[0].mxu0
      %1454 = vmatprep.mubr.bf16.mxu0 0
      %1455 = vmatmul.mubr.bf16.gmra.mrb[0].mxu0 %v1288
      %v1456 = vpop.f32.mrb[0].mxu0
      %v1457 = vadd.f32 0.0, %v1456
      %v1458 = vpop.f32.mrb[0].mxu0
      %v1459 = vpop.f32.mrb[0].mxu0
      %v1460 = vadd.f32 0.0, %v1459
      %v1461 = vpop.f32.mrb[0].mxu0
      %1462 = vmatprep.mubr.bf16.mxu0 0
      %1463 = vmatmul.mubr.bf16.gmra.mrb[0].mxu0 %v1291
      %v1464 = vpop.f32.mrb[0].mxu0
      %v1465 = vadd.f32 0.0, %v1464
      %v1466 = vpop.f32.mrb[0].mxu0
      %v1467 = vpop.f32.mrb[0].mxu0
      %v1468 = vadd.f32 0.0, %v1467
      %v1469 = vpop.f32.mrb[0].mxu0
      %1470 = vmatprep.mubr.bf16.mxu0 0
      %1471 = vmatmul.mubr.bf16.gmra.mrb[0].mxu0 %v1294
      %v1472 = vpop.f32.mrb[0].mxu0
      %v1473 = vadd.f32 0.0, %v1472
      %v1474 = vpop.f32.mrb[0].mxu0
      %v1475 = vpop.f32.mrb[0].mxu0
      %v1476 = vadd.f32 0.0, %v1475
      %v1477 = vpop.f32.mrb[0].mxu0
      %1478 = vmatprep.mubr.bf16.mxu0 0
      %1479 = vmatmul.mubr.bf16.gmra.mrb[0].mxu0 %v1297
      %v1480 = vpop.f32.mrb[0].mxu0
      %v1481 = vadd.f32 0.0, %v1480
      %v1482 = vpop.f32.mrb[0].mxu0
      %v1483 = vpop.f32.mrb[0].mxu0
      %v1484 = vadd.f32 0.0, %v1483
      %v1485 = vpop.f32.mrb[0].mxu0
      %1486 = vmatprep.mubr.bf16.mxu0 0
      %1487 = vmatmul.mubr.bf16.gmra.mrb[0].mxu0 %v1300
      %v1488 = vpop.f32.mrb[0].mxu0
      %v1489 = vadd.f32 0.0, %v1488
      %v1490 = vpop.f32.mrb[0].mxu0
      %v1491 = vpop.f32.mrb[0].mxu0
      %v1492 = vadd.f32 0.0, %v1491
      %v1493 = vpop.f32.mrb[0].mxu0
      %1494 = vmatprep.mubr.bf16.mxu0 0
      %1495 = vmatmul.mubr.bf16.gmra.mrb[0].mxu0 %v1303
      %v1496 = vpop.f32.mrb[0].mxu0
      %v1497 = vadd.f32 0.0, %v1496
      %v1498 = vpop.f32.mrb[0].mxu0
      %v1499 = vpop.f32.mrb[0].mxu0
      %v1500 = vadd.f32 0.0, %v1499
      %v1501 = vpop.f32.mrb[0].mxu0
      %1502 = vmatprep.mubr.bf16.mxu0 0
      %1503 = vmatmul.mubr.bf16.gmra.mrb[0].mxu0 %v1306
      %v1504 = vpop.f32.mrb[0].mxu0
      %v1505 = vadd.f32 0.0, %v1504
      %v1506 = vpop.f32.mrb[0].mxu0
      %v1507 = vpop.f32.mrb[0].mxu0
      %v1508 = vadd.f32 0.0, %v1507
      %v1509 = vpop.f32.mrb[0].mxu0
      %1510 = vmatprep.mubr.bf16.mxu0 0
      %1511 = vmatmul.mubr.bf16.gmra.mrb[0].mxu0 %v1309
      %v1512 = vpop.f32.mrb[0].mxu0
      %v1513 = vadd.f32 0.0, %v1512
      %v1514 = vpop.f32.mrb[0].mxu0
      %v1515 = vpop.f32.mrb[0].mxu0
      %v1516 = vadd.f32 0.0, %v1515
      %v1517 = vpop.f32.mrb[0].mxu0
      %1518 = vmatprep.mubr.bf16.mxu0 0
      %1519 = vmatmul.mubr.bf16.gmra.mrb[0].mxu0 %v1312
      %v1520 = vpop.f32.mrb[0].mxu0
      %v1521 = vadd.f32 0.0, %v1520
      %v1522 = vpop.f32.mrb[0].mxu0
      %v1523 = vpop.f32.mrb[0].mxu0
      %v1524 = vadd.f32 0.0, %v1523
      %v1525 = vpop.f32.mrb[0].mxu0
      %1526 = vmatprep.mubr.bf16.mxu0 0
      %1527 = vmatmul.mubr.bf16.gmra.mrb[0].mxu0 %v1315
      %v1528 = vpop.f32.mrb[0].mxu0
      %v1529 = vadd.f32 0.0, %v1528
      %v1530 = vpop.f32.mrb[0].mxu0
      %v1531 = vpop.f32.mrb[0].mxu0
      %v1532 = vadd.f32 0.0, %v1531
      %v1533 = vpop.f32.mrb[0].mxu0
      %1534 = vmatprep.mubr.bf16.mxu0 0
      %1535 = vmatmul.mubr.bf16.gmra.mrb[0].mxu0 %v1318
      %v1536 = vpop.f32.mrb[0].mxu0
      %v1537 = vadd.f32 0.0, %v1536
      %v1538 = vpop.f32.mrb[0].mxu0
      %v1539 = vpop.f32.mrb[0].mxu0
      %v1540 = vadd.f32 0.0, %v1539
      %v1541 = vpop.f32.mrb[0].mxu0
      %1542 = vmatprep.mubr.bf16.mxu0 0
      %1543 = vmatmul.mubr.bf16.gmra.mrb[0].mxu0 %v1321
      %v1544 = vpop.f32.mrb[0].mxu0
      %v1545 = vadd.f32 0.0, %v1544
      %v1546 = vpop.f32.mrb[0].mxu0
      %v1547 = vpop.f32.mrb[0].mxu0
      %v1548 = vadd.f32 0.0, %v1547
      %v1549 = vpop.f32.mrb[0].mxu0
      %1550 = vdwg.mxu0
      %v1551 = vadd.f32 %v1009, %v1361
      %v1552 = vadd.f32 %v1012, %v1364
      %v1553 = vadd.f32 %v1017, %v1369
      %v1554 = vadd.f32 %v1020, %v1372
      %v1555 = vadd.f32 %v1025, %v1377
      %v1556 = vadd.f32 %v1028, %v1380
      %v1557 = vadd.f32 %v1033, %v1385
      %v1558 = vadd.f32 %v1036, %v1388
      %v1559 = vadd.f32 %v1041, %v1393
      %v1560 = vadd.f32 %v1044, %v1396
      %v1561 = vadd.f32 %v1049, %v1401
      %v1562 = vadd.f32 %v1052, %v1404
      %v1563 = vadd.f32 %v1057, %v1409
      %v1564 = vadd.f32 %v1060, %v1412
      %v1565 = vadd.f32 %v1065, %v1417
      %v1566 = vadd.f32 %v1068, %v1420
      %v1567 = vadd.f32 %v1073, %v1425
      %v1568 = vadd.f32 %v1076, %v1428
      %v1569 = vadd.f32 %v1081, %v1433
      %v1570 = vadd.f32 %v1084, %v1436
      %v1571 = vadd.f32 %v1089, %v1441
      %v1572 = vadd.f32 %v1092, %v1444
      %v1573 = vadd.f32 %v1097, %v1449
      %v1574 = vadd.f32 %v1100, %v1452
      %v1575 = vadd.f32 %v1105, %v1457
      %v1576 = vadd.f32 %v1108, %v1460
      %v1577 = vadd.f32 %v1113, %v1465
      %v1578 = vadd.f32 %v1116, %v1468
      %v1579 = vadd.f32 %v1121, %v1473
      %v1580 = vadd.f32 %v1124, %v1476
      %v1581 = vadd.f32 %v1129, %v1481
      %v1582 = vadd.f32 %v1132, %v1484
      %v1583 = vadd.f32 %v1137, %v1489
      %v1584 = vadd.f32 %v1140, %v1492
      %v1585 = vadd.f32 %v1145, %v1497
      %v1586 = vadd.f32 %v1148, %v1500
      %v1587 = vadd.f32 %v1153, %v1505
      %v1588 = vadd.f32 %v1156, %v1508
      %v1589 = vadd.f32 %v1161, %v1513
      %v1590 = vadd.f32 %v1164, %v1516
      %v1591 = vadd.f32 %v1169, %v1521
      %v1592 = vadd.f32 %v1172, %v1524
      %v1593 = vadd.f32 %v1177, %v1529
      %v1594 = vadd.f32 %v1180, %v1532
      %v1595 = vadd.f32 %v1185, %v1537
      %v1596 = vadd.f32 %v1188, %v1540
      %v1597 = vadd.f32 %v1193, %v1545
      %v1598 = vadd.f32 %v1196, %v1548
      %s1599 = scalar_lea.vmem %s232, 12
      %v1600 = vld [vmem:[%s1599] sm:$0xf]
      %v1603 = vunpack.c.l.b16 %v292
      %v1604 = vunpack.c.l.b16 %v293
      %v1605 = vpack.c.b16 %v354, %v353
      %v1606 = vpack.c.b16 %v356, %v355
      %v1607 = vpack.c.b16 %v358, %v357
      %v1608 = vpack.c.b16 %v360, %v359
      %v1609 = vpack.c.b16 %v362, %v361
      %v1610 = vpack.c.b16 %v364, %v363
      %v1611 = vpack.c.b16 %v366, %v365
      %v1612 = vpack.c.b16 %v368, %v367
      %v1613 = vpack.c.b16 %v370, %v369
      %v1614 = vpack.c.b16 %v372, %v371
      %v1615 = vpack.c.b16 %v374, %v373
      %v1616 = vpack.c.b16 %v376, %v375
      %v1617 = vpack.c.b16 %v378, %v377
      %v1618 = vpack.c.b16 %v380, %v379
      %v1619 = vpack.c.b16 %v382, %v381
      %v1620 = vpack.c.b16 %v384, %v383
      %v1621 = vpack.c.b16 %v386, %v385
      %v1622 = vpack.c.b16 %v388, %v387
      %v1623 = vpack.c.b16 %v390, %v389
      %v1624 = vpack.c.b16 %v392, %v391
      %v1625 = vpack.c.b16 %v394, %v393
      %v1626 = vpack.c.b16 %v396, %v395
      %v1627 = vpack.c.b16 %v398, %v397
      %v1628 = vpack.c.b16 %v1604, %v1603
      %v1630 = vsel %vm621, %v1605, 0
      %v1633 = vsel %vm621, %v1606, 0
      %v1636 = vsel %vm621, %v1607, 0
      %v1639 = vsel %vm621, %v1608, 0
      %v1642 = vsel %vm621, %v1609, 0
      %v1645 = vsel %vm621, %v1610, 0
      %v1648 = vsel %vm621, %v1611, 0
      %v1651 = vsel %vm621, %v1612, 0
      %v1654 = vsel %vm621, %v1613, 0
      %v1657 = vsel %vm621, %v1614, 0
      %v1660 = vsel %vm621, %v1615, 0
      %v1663 = vsel %vm621, %v1616, 0
      %v1666 = vsel %vm621, %v1617, 0
      %v1669 = vsel %vm621, %v1618, 0
      %v1672 = vsel %vm621, %v1619, 0
      %v1675 = vsel %vm621, %v1620, 0
      %v1678 = vsel %vm621, %v1621, 0
      %v1681 = vsel %vm621, %v1622, 0
      %v1684 = vsel %vm621, %v1623, 0
      %v1687 = vsel %vm621, %v1624, 0
      %v1690 = vsel %vm621, %v1625, 0
      %v1693 = vsel %vm621, %v1626, 0
      %v1696 = vsel %vm621, %v1627, 0
      %v1699 = vsel %vm621, %v1628, 0
      %v1702 = vsel %vm694, %v1600, 0
      %1704 = vmatprep.subr.bf16.mxu0 0
      %1705 = vmatpush1.bf16.msra.mxu0 %v1702
      %1706 = vmatprep.subr.bf16.mxu0 0
      %1707 = vmatpush1.bf16.msra.mxu0 0
      %1708 = vmatprep.subr.bf16.mxu0 0
      %1709 = vmatpush1.bf16.msra.mxu0 0
      %1710 = vmatprep.subr.bf16.mxu0 0
      %1711 = vmatpush1.bf16.msra.mxu0 0
      %1712 = vmatprep.subr.bf16.mxu0 0
      %1713 = vmatpush1.bf16.msra.mxu0 0
      %1714 = vmatprep.subr.bf16.mxu0 0
      %1715 = vmatpush1.bf16.msra.mxu0 0
      %1716 = vmatprep.subr.bf16.mxu0 0
      %1717 = vmatpush1.bf16.msra.mxu0 0
      %1718 = vmatprep.subr.bf16.mxu0 0
      %1719 = vmatpush1.bf16.msra.mxu0 0
      %1720 = vmatprep.subr.bf16.mxu0 0
      %1721 = vmatpush1.bf16.msra.mxu0 0
      %1722 = vmatprep.subr.bf16.mxu0 0
      %1723 = vmatpush1.bf16.msra.mxu0 0
      %1724 = vmatprep.subr.bf16.mxu0 0
      %1725 = vmatpush1.bf16.msra.mxu0 0
      %1726 = vmatprep.subr.bf16.mxu0 0
      %1727 = vmatpush1.bf16.msra.mxu0 0
      %1728 = vmatprep.subr.bf16.mxu0 0
      %1729 = vmatpush1.bf16.msra.mxu0 0
      %1730 = vmatprep.subr.bf16.mxu0 0
      %1731 = vmatpush1.bf16.msra.mxu0 0
      %1732 = vmatprep.subr.bf16.mxu0 0
      %1733 = vmatpush1.bf16.msra.mxu0 0
      %1734 = vmatprep.subr.bf16.mxu0 0
      %1735 = vmatpush1.bf16.msra.mxu0 0
      %1736 = vmatprep.mubr.bf16.mxu0 0
      %1737 = vmatmul.mubr.bf16.gmra.mrb[0].mxu0 %v1630
      %v1738 = vpop.f32.mrb[0].mxu0
      %v1739 = vadd.f32 0.0, %v1738
      %v1740 = vpop.f32.mrb[0].mxu0
      %v1741 = vpop.f32.mrb[0].mxu0
      %v1742 = vadd.f32 0.0, %v1741
      %v1743 = vpop.f32.mrb[0].mxu0
      %1744 = vmatprep.mubr.bf16.mxu0 0
      %1745 = vmatmul.mubr.bf16.gmra.mrb[0].mxu0 %v1633
      %v1746 = vpop.f32.mrb[0].mxu0
      %v1747 = vadd.f32 0.0, %v1746
      %v1748 = vpop.f32.mrb[0].mxu0
      %v1749 = vpop.f32.mrb[0].mxu0
      %v1750 = vadd.f32 0.0, %v1749
      %v1751 = vpop.f32.mrb[0].mxu0
      %1752 = vmatprep.mubr.bf16.mxu0 0
      %1753 = vmatmul.mubr.bf16.gmra.mrb[0].mxu0 %v1636
      %v1754 = vpop.f32.mrb[0].mxu0
      %v1755 = vadd.f32 0.0, %v1754
      %v1756 = vpop.f32.mrb[0].mxu0
      %v1757 = vpop.f32.mrb[0].mxu0
      %v1758 = vadd.f32 0.0, %v1757
      %v1759 = vpop.f32.mrb[0].mxu0
      %1760 = vmatprep.mubr.bf16.mxu0 0
      %1761 = vmatmul.mubr.bf16.gmra.mrb[0].mxu0 %v1639
      %v1762 = vpop.f32.mrb[0].mxu0
      %v1763 = vadd.f32 0.0, %v1762
      %v1764 = vpop.f32.mrb[0].mxu0
      %v1765 = vpop.f32.mrb[0].mxu0
      %v1766 = vadd.f32 0.0, %v1765
      %v1767 = vpop.f32.mrb[0].mxu0
      %1768 = vmatprep.mubr.bf16.mxu0 0
      %1769 = vmatmul.mubr.bf16.gmra.mrb[0].mxu0 %v1642
      %v1770 = vpop.f32.mrb[0].mxu0
      %v1771 = vadd.f32 0.0, %v1770
      %v1772 = vpop.f32.mrb[0].mxu0
      %v1773 = vpop.f32.mrb[0].mxu0
      %v1774 = vadd.f32 0.0, %v1773
      %v1775 = vpop.f32.mrb[0].mxu0
      %1776 = vmatprep.mubr.bf16.mxu0 0
      %1777 = vmatmul.mubr.bf16.gmra.mrb[0].mxu0 %v1645
      %v1778 = vpop.f32.mrb[0].mxu0
      %v1779 = vadd.f32 0.0, %v1778
      %v1780 = vpop.f32.mrb[0].mxu0
      %v1781 = vpop.f32.mrb[0].mxu0
      %v1782 = vadd.f32 0.0, %v1781
      %v1783 = vpop.f32.mrb[0].mxu0
      %1784 = vmatprep.mubr.bf16.mxu0 0
      %1785 = vmatmul.mubr.bf16.gmra.mrb[0].mxu0 %v1648
      %v1786 = vpop.f32.mrb[0].mxu0
      %v1787 = vadd.f32 0.0, %v1786
      %v1788 = vpop.f32.mrb[0].mxu0
      %v1789 = vpop.f32.mrb[0].mxu0
      %v1790 = vadd.f32 0.0, %v1789
      %v1791 = vpop.f32.mrb[0].mxu0
      %1792 = vmatprep.mubr.bf16.mxu0 0
      %1793 = vmatmul.mubr.bf16.gmra.mrb[0].mxu0 %v1651
      %v1794 = vpop.f32.mrb[0].mxu0
      %v1795 = vadd.f32 0.0, %v1794
      %v1796 = vpop.f32.mrb[0].mxu0
      %v1797 = vpop.f32.mrb[0].mxu0
      %v1798 = vadd.f32 0.0, %v1797
      %v1799 = vpop.f32.mrb[0].mxu0
      %1800 = vmatprep.mubr.bf16.mxu0 0
      %1801 = vmatmul.mubr.bf16.gmra.mrb[0].mxu0 %v1654
      %v1802 = vpop.f32.mrb[0].mxu0
      %v1803 = vadd.f32 0.0, %v1802
      %v1804 = vpop.f32.mrb[0].mxu0
      %v1805 = vpop.f32.mrb[0].mxu0
      %v1806 = vadd.f32 0.0, %v1805
      %v1807 = vpop.f32.mrb[0].mxu0
      %1808 = vmatprep.mubr.bf16.mxu0 0
      %1809 = vmatmul.mubr.bf16.gmra.mrb[0].mxu0 %v1657
      %v1810 = vpop.f32.mrb[0].mxu0
      %v1811 = vadd.f32 0.0, %v1810
      %v1812 = vpop.f32.mrb[0].mxu0
      %v1813 = vpop.f32.mrb[0].mxu0
      %v1814 = vadd.f32 0.0, %v1813
      %v1815 = vpop.f32.mrb[0].mxu0
      %1816 = vmatprep.mubr.bf16.mxu0 0
      %1817 = vmatmul.mubr.bf16.gmra.mrb[0].mxu0 %v1660
      %v1818 = vpop.f32.mrb[0].mxu0
      %v1819 = vadd.f32 0.0, %v1818
      %v1820 = vpop.f32.mrb[0].mxu0
      %v1821 = vpop.f32.mrb[0].mxu0
      %v1822 = vadd.f32 0.0, %v1821
      %v1823 = vpop.f32.mrb[0].mxu0
      %1824 = vmatprep.mubr.bf16.mxu0 0
      %1825 = vmatmul.mubr.bf16.gmra.mrb[0].mxu0 %v1663
      %v1826 = vpop.f32.mrb[0].mxu0
      %v1827 = vadd.f32 0.0, %v1826
      %v1828 = vpop.f32.mrb[0].mxu0
      %v1829 = vpop.f32.mrb[0].mxu0
      %v1830 = vadd.f32 0.0, %v1829
      %v1831 = vpop.f32.mrb[0].mxu0
      %1832 = vmatprep.mubr.bf16.mxu0 0
      %1833 = vmatmul.mubr.bf16.gmra.mrb[0].mxu0 %v1666
      %v1834 = vpop.f32.mrb[0].mxu0
      %v1835 = vadd.f32 0.0, %v1834
      %v1836 = vpop.f32.mrb[0].mxu0
      %v1837 = vpop.f32.mrb[0].mxu0
      %v1838 = vadd.f32 0.0, %v1837
      %v1839 = vpop.f32.mrb[0].mxu0
      %1840 = vmatprep.mubr.bf16.mxu0 0
      %1841 = vmatmul.mubr.bf16.gmra.mrb[0].mxu0 %v1669
      %v1842 = vpop.f32.mrb[0].mxu0
      %v1843 = vadd.f32 0.0, %v1842
      %v1844 = vpop.f32.mrb[0].mxu0
      %v1845 = vpop.f32.mrb[0].mxu0
      %v1846 = vadd.f32 0.0, %v1845
      %v1847 = vpop.f32.mrb[0].mxu0
      %1848 = vmatprep.mubr.bf16.mxu0 0
      %1849 = vmatmul.mubr.bf16.gmra.mrb[0].mxu0 %v1672
      %v1850 = vpop.f32.mrb[0].mxu0
      %v1851 = vadd.f32 0.0, %v1850
      %v1852 = vpop.f32.mrb[0].mxu0
      %v1853 = vpop.f32.mrb[0].mxu0
      %v1854 = vadd.f32 0.0, %v1853
      %v1855 = vpop.f32.mrb[0].mxu0
      %1856 = vmatprep.mubr.bf16.mxu0 0
      %1857 = vmatmul.mubr.bf16.gmra.mrb[0].mxu0 %v1675
      %v1858 = vpop.f32.mrb[0].mxu0
      %v1859 = vadd.f32 0.0, %v1858
      %v1860 = vpop.f32.mrb[0].mxu0
      %v1861 = vpop.f32.mrb[0].mxu0
      %v1862 = vadd.f32 0.0, %v1861
      %v1863 = vpop.f32.mrb[0].mxu0
      %1864 = vmatprep.mubr.bf16.mxu0 0
      %1865 = vmatmul.mubr.bf16.gmra.mrb[0].mxu0 %v1678
      %v1866 = vpop.f32.mrb[0].mxu0
      %v1867 = vadd.f32 0.0, %v1866
      %v1868 = vpop.f32.mrb[0].mxu0
      %v1869 = vpop.f32.mrb[0].mxu0
      %v1870 = vadd.f32 0.0, %v1869
      %v1871 = vpop.f32.mrb[0].mxu0
      %1872 = vmatprep.mubr.bf16.mxu0 0
      %1873 = vmatmul.mubr.bf16.gmra.mrb[0].mxu0 %v1681
      %v1874 = vpop.f32.mrb[0].mxu0
      %v1875 = vadd.f32 0.0, %v1874
      %v1876 = vpop.f32.mrb[0].mxu0
      %v1877 = vpop.f32.mrb[0].mxu0
      %v1878 = vadd.f32 0.0, %v1877
      %v1879 = vpop.f32.mrb[0].mxu0
      %1880 = vmatprep.mubr.bf16.mxu0 0
      %1881 = vmatmul.mubr.bf16.gmra.mrb[0].mxu0 %v1684
      %v1882 = vpop.f32.mrb[0].mxu0
      %v1883 = vadd.f32 0.0, %v1882
      %v1884 = vpop.f32.mrb[0].mxu0
      %v1885 = vpop.f32.mrb[0].mxu0
      %v1886 = vadd.f32 0.0, %v1885
      %v1887 = vpop.f32.mrb[0].mxu0
      %1888 = vmatprep.mubr.bf16.mxu0 0
      %1889 = vmatmul.mubr.bf16.gmra.mrb[0].mxu0 %v1687
      %v1890 = vpop.f32.mrb[0].mxu0
      %v1891 = vadd.f32 0.0, %v1890
      %v1892 = vpop.f32.mrb[0].mxu0
      %v1893 = vpop.f32.mrb[0].mxu0
      %v1894 = vadd.f32 0.0, %v1893
      %v1895 = vpop.f32.mrb[0].mxu0
      %1896 = vmatprep.mubr.bf16.mxu0 0
      %1897 = vmatmul.mubr.bf16.gmra.mrb[0].mxu0 %v1690
      %v1898 = vpop.f32.mrb[0].mxu0
      %v1899 = vadd.f32 0.0, %v1898
      %v1900 = vpop.f32.mrb[0].mxu0
      %v1901 = vpop.f32.mrb[0].mxu0
      %v1902 = vadd.f32 0.0, %v1901
      %v1903 = vpop.f32.mrb[0].mxu0
      %1904 = vmatprep.mubr.bf16.mxu0 0
      %1905 = vmatmul.mubr.bf16.gmra.mrb[0].mxu0 %v1693
      %v1906 = vpop.f32.mrb[0].mxu0
      %v1907 = vadd.f32 0.0, %v1906
      %v1908 = vpop.f32.mrb[0].mxu0
      %v1909 = vpop.f32.mrb[0].mxu0
      %v1910 = vadd.f32 0.0, %v1909
      %v1911 = vpop.f32.mrb[0].mxu0
      %1912 = vmatprep.mubr.bf16.mxu0 0
      %1913 = vmatmul.mubr.bf16.gmra.mrb[0].mxu0 %v1696
      %v1914 = vpop.f32.mrb[0].mxu0
      %v1915 = vadd.f32 0.0, %v1914
      %v1916 = vpop.f32.mrb[0].mxu0
      %v1917 = vpop.f32.mrb[0].mxu0
      %v1918 = vadd.f32 0.0, %v1917
      %v1919 = vpop.f32.mrb[0].mxu0
      %1920 = vmatprep.mubr.bf16.mxu0 0
      %1921 = vmatmul.mubr.bf16.gmra.mrb[0].mxu0 %v1699
      %v1922 = vpop.f32.mrb[0].mxu0
      %v1923 = vadd.f32 0.0, %v1922
      %v1924 = vpop.f32.mrb[0].mxu0
      %v1925 = vpop.f32.mrb[0].mxu0
      %v1926 = vadd.f32 0.0, %v1925
      %v1927 = vpop.f32.mrb[0].mxu0
      %1928 = vdwg.mxu0
      %v1929 = vadd.f32 %v1551, %v1739
      %v1930 = vadd.f32 %v1552, %v1742
      %v1931 = vadd.f32 %v1553, %v1747
      %v1932 = vadd.f32 %v1554, %v1750
      %v1933 = vadd.f32 %v1555, %v1755
      %v1934 = vadd.f32 %v1556, %v1758
      %v1935 = vadd.f32 %v1557, %v1763
      %v1936 = vadd.f32 %v1558, %v1766
      %v1937 = vadd.f32 %v1559, %v1771
      %v1938 = vadd.f32 %v1560, %v1774
      %v1939 = vadd.f32 %v1561, %v1779
      %v1940 = vadd.f32 %v1562, %v1782
      %v1941 = vadd.f32 %v1563, %v1787
      %v1942 = vadd.f32 %v1564, %v1790
      %v1943 = vadd.f32 %v1565, %v1795
      %v1944 = vadd.f32 %v1566, %v1798
      %v1945 = vadd.f32 %v1567, %v1803
      %v1946 = vadd.f32 %v1568, %v1806
      %v1947 = vadd.f32 %v1569, %v1811
      %v1948 = vadd.f32 %v1570, %v1814
      %v1949 = vadd.f32 %v1571, %v1819
      %v1950 = vadd.f32 %v1572, %v1822
      %v1951 = vadd.f32 %v1573, %v1827
      %v1952 = vadd.f32 %v1574, %v1830
      %v1953 = vadd.f32 %v1575, %v1835
      %v1954 = vadd.f32 %v1576, %v1838
      %v1955 = vadd.f32 %v1577, %v1843
      %v1956 = vadd.f32 %v1578, %v1846
      %v1957 = vadd.f32 %v1579, %v1851
      %v1958 = vadd.f32 %v1580, %v1854
      %v1959 = vadd.f32 %v1581, %v1859
      %v1960 = vadd.f32 %v1582, %v1862
      %v1961 = vadd.f32 %v1583, %v1867
      %v1962 = vadd.f32 %v1584, %v1870
      %v1963 = vadd.f32 %v1585, %v1875
      %v1964 = vadd.f32 %v1586, %v1878
      %v1965 = vadd.f32 %v1587, %v1883
      %v1966 = vadd.f32 %v1588, %v1886
      %v1967 = vadd.f32 %v1589, %v1891
      %v1968 = vadd.f32 %v1590, %v1894
      %v1969 = vadd.f32 %v1591, %v1899
      %v1970 = vadd.f32 %v1592, %v1902
      %v1971 = vadd.f32 %v1593, %v1907
      %v1972 = vadd.f32 %v1594, %v1910
      %v1973 = vadd.f32 %v1595, %v1915
      %v1974 = vadd.f32 %v1596, %v1918
      %v1975 = vadd.f32 %v1597, %v1923
      %v1976 = vadd.f32 %v1598, %v1926
      %s1977 = scalar_lea.vmem %s232, 16
      %v1978 = vld [vmem:[%s1977] sm:$0xf]
      %v1980 = vunpack.c.l.b16 %v294
      %v1981 = vpack.c.b16 %v1980, %v1980
      %v1982 = vshrl.u32 %v1605, 16
      %v1984 = vshll.u32 %v1605, 16
      %v1986 = vrot.slane %v1984, 1
      %v1987 = vor.u32 %v1982, %v1986
      %v1988 = vshll.u32 %v1606, 16
      %v1990 = vrot.slane %v1988, 1
      %v1991 = vsel %vm424, %v1987, %v1990
      %v1992 = vshrl.u32 %v1606, 16
      %v1994 = vor.u32 %v1992, %v1990
      %v1995 = vshll.u32 %v1607, 16
      %v1997 = vrot.slane %v1995, 1
      %v1998 = vsel %vm424, %v1994, %v1997
      %v1999 = vshrl.u32 %v1607, 16
      %v2001 = vor.u32 %v1999, %v1997
      %v2002 = vshll.u32 %v1608, 16
      %v2004 = vrot.slane %v2002, 1
      %v2005 = vsel %vm424, %v2001, %v2004
      %v2006 = vshrl.u32 %v1608, 16
      %v2008 = vor.u32 %v2006, %v2004
      %v2009 = vshll.u32 %v1609, 16
      %v2011 = vrot.slane %v2009, 1
      %v2012 = vsel %vm424, %v2008, %v2011
      %v2013 = vshrl.u32 %v1609, 16
      %v2015 = vor.u32 %v2013, %v2011
      %v2016 = vshll.u32 %v1610, 16
      %v2018 = vrot.slane %v2016, 1
      %v2019 = vsel %vm424, %v2015, %v2018
      %v2020 = vshrl.u32 %v1610, 16
      %v2022 = vor.u32 %v2020, %v2018
      %v2023 = vshll.u32 %v1611, 16
      %v2025 = vrot.slane %v2023, 1
      %v2026 = vsel %vm424, %v2022, %v2025
      %v2027 = vshrl.u32 %v1611, 16
      %v2029 = vor.u32 %v2027, %v2025
      %v2030 = vshll.u32 %v1612, 16
      %v2032 = vrot.slane %v2030, 1
      %v2033 = vsel %vm424, %v2029, %v2032
      %v2034 = vshrl.u32 %v1612, 16
      %v2036 = vor.u32 %v2034, %v2032
      %v2037 = vshll.u32 %v1613, 16
      %v2039 = vrot.slane %v2037, 1
      %v2040 = vsel %vm424, %v2036, %v2039
      %v2041 = vshrl.u32 %v1613, 16
      %v2043 = vor.u32 %v2041, %v2039
      %v2044 = vshll.u32 %v1614, 16
      %v2046 = vrot.slane %v2044, 1
      %v2047 = vsel %vm424, %v2043, %v2046
      %v2048 = vshrl.u32 %v1614, 16
      %v2050 = vor.u32 %v2048, %v2046
      %v2051 = vshll.u32 %v1615, 16
      %v2053 = vrot.slane %v2051, 1
      %v2054 = vsel %vm424, %v2050, %v2053
      %v2055 = vshrl.u32 %v1615, 16
      %v2057 = vor.u32 %v2055, %v2053
      %v2058 = vshll.u32 %v1616, 16
      %v2060 = vrot.slane %v2058, 1
      %v2061 = vsel %vm424, %v2057, %v2060
      %v2062 = vshrl.u32 %v1616, 16
      %v2064 = vor.u32 %v2062, %v2060
      %v2065 = vshll.u32 %v1617, 16
      %v2067 = vrot.slane %v2065, 1
      %v2068 = vsel %vm424, %v2064, %v2067
      %v2069 = vshrl.u32 %v1617, 16
      %v2071 = vor.u32 %v2069, %v2067
      %v2072 = vshll.u32 %v1618, 16
      %v2074 = vrot.slane %v2072, 1
      %v2075 = vsel %vm424, %v2071, %v2074
      %v2076 = vshrl.u32 %v1618, 16
      %v2078 = vor.u32 %v2076, %v2074
      %v2079 = vshll.u32 %v1619, 16
      %v2081 = vrot.slane %v2079, 1
      %v2082 = vsel %vm424, %v2078, %v2081
      %v2083 = vshrl.u32 %v1619, 16
      %v2085 = vor.u32 %v2083, %v2081
      %v2086 = vshll.u32 %v1620, 16
      %v2088 = vrot.slane %v2086, 1
      %v2089 = vsel %vm424, %v2085, %v2088
      %v2090 = vshrl.u32 %v1620, 16
      %v2092 = vor.u32 %v2090, %v2088
      %v2093 = vshll.u32 %v1621, 16
      %v2095 = vrot.slane %v2093, 1
      %v2096 = vsel %vm424, %v2092, %v2095
      %v2097 = vshrl.u32 %v1621, 16
      %v2099 = vor.u32 %v2097, %v2095
      %v2100 = vshll.u32 %v1622, 16
      %v2102 = vrot.slane %v2100, 1
      %v2103 = vsel %vm424, %v2099, %v2102
      %v2104 = vshrl.u32 %v1622, 16
      %v2106 = vor.u32 %v2104, %v2102
      %v2107 = vshll.u32 %v1623, 16
      %v2109 = vrot.slane %v2107, 1
      %v2110 = vsel %vm424, %v2106, %v2109
      %v2111 = vshrl.u32 %v1623, 16
      %v2113 = vor.u32 %v2111, %v2109
      %v2114 = vshll.u32 %v1624, 16
      %v2116 = vrot.slane %v2114, 1
      %v2117 = vsel %vm424, %v2113, %v2116
      %v2118 = vshrl.u32 %v1624, 16
      %v2120 = vor.u32 %v2118, %v2116
      %v2121 = vshll.u32 %v1625, 16
      %v2123 = vrot.slane %v2121, 1
      %v2124 = vsel %vm424, %v2120, %v2123
      %v2125 = vshrl.u32 %v1625, 16
      %v2127 = vor.u32 %v2125, %v2123
      %v2128 = vshll.u32 %v1626, 16
      %v2130 = vrot.slane %v2128, 1
      %v2131 = vsel %vm424, %v2127, %v2130
      %v2132 = vshrl.u32 %v1626, 16
      %v2134 = vor.u32 %v2132, %v2130
      %v2135 = vshll.u32 %v1627, 16
      %v2137 = vrot.slane %v2135, 1
      %v2138 = vsel %vm424, %v2134, %v2137
      %v2139 = vshrl.u32 %v1627, 16
      %v2141 = vor.u32 %v2139, %v2137
      %v2142 = vshll.u32 %v1628, 16
      %v2144 = vrot.slane %v2142, 1
      %v2145 = vsel %vm424, %v2141, %v2144
      %v2146 = vshrl.u32 %v1628, 16
      %v2148 = vor.u32 %v2146, %v2144
      %v2150 = vshll.u32 %v1981, 16
      %v2152 = vrot.slane %v2150, 1
      %v2153 = vsel %vm424, %v2148, %v2152
      %v2155 = vsel %vm621, %v1991, 0
      %v2158 = vsel %vm621, %v1998, 0
      %v2161 = vsel %vm621, %v2005, 0
      %v2164 = vsel %vm621, %v2012, 0
      %v2167 = vsel %vm621, %v2019, 0
      %v2170 = vsel %vm621, %v2026, 0
      %v2173 = vsel %vm621, %v2033, 0
      %v2176 = vsel %vm621, %v2040, 0
      %v2179 = vsel %vm621, %v2047, 0
      %v2182 = vsel %vm621, %v2054, 0
      %v2185 = vsel %vm621, %v2061, 0
      %v2188 = vsel %vm621, %v2068, 0
      %v2191 = vsel %vm621, %v2075, 0
      %v2194 = vsel %vm621, %v2082, 0
      %v2197 = vsel %vm621, %v2089, 0
      %v2200 = vsel %vm621, %v2096, 0
      %v2203 = vsel %vm621, %v2103, 0
      %v2206 = vsel %vm621, %v2110, 0
      %v2209 = vsel %vm621, %v2117, 0
      %v2212 = vsel %vm621, %v2124, 0
      %v2215 = vsel %vm621, %v2131, 0
      %v2218 = vsel %vm621, %v2138, 0
      %v2221 = vsel %vm621, %v2145, 0
      %v2224 = vsel %vm621, %v2153, 0
      %v2227 = vsel %vm694, %v1978, 0
      %2229 = vmatprep.subr.bf16.mxu0 0
      %2230 = vmatpush1.bf16.msra.mxu0 %v2227
      %2231 = vmatprep.subr.bf16.mxu0 0
      %2232 = vmatpush1.bf16.msra.mxu0 0
      %2233 = vmatprep.subr.bf16.mxu0 0
      %2234 = vmatpush1.bf16.msra.mxu0 0
      %2235 = vmatprep.subr.bf16.mxu0 0
      %2236 = vmatpush1.bf16.msra.mxu0 0
      %2237 = vmatprep.subr.bf16.mxu0 0
      %2238 = vmatpush1.bf16.msra.mxu0 0
      %2239 = vmatprep.subr.bf16.mxu0 0
      %2240 = vmatpush1.bf16.msra.mxu0 0
      %2241 = vmatprep.subr.bf16.mxu0 0
      %2242 = vmatpush1.bf16.msra.mxu0 0
      %2243 = vmatprep.subr.bf16.mxu0 0
      %2244 = vmatpush1.bf16.msra.mxu0 0
      %2245 = vmatprep.subr.bf16.mxu0 0
      %2246 = vmatpush1.bf16.msra.mxu0 0
      %2247 = vmatprep.subr.bf16.mxu0 0
      %2248 = vmatpush1.bf16.msra.mxu0 0
      %2249 = vmatprep.subr.bf16.mxu0 0
      %2250 = vmatpush1.bf16.msra.mxu0 0
      %2251 = vmatprep.subr.bf16.mxu0 0
      %2252 = vmatpush1.bf16.msra.mxu0 0
      %2253 = vmatprep.subr.bf16.mxu0 0
      %2254 = vmatpush1.bf16.msra.mxu0 0
      %2255 = vmatprep.subr.bf16.mxu0 0
      %2256 = vmatpush1.bf16.msra.mxu0 0
      %2257 = vmatprep.subr.bf16.mxu0 0
      %2258 = vmatpush1.bf16.msra.mxu0 0
      %2259 = vmatprep.subr.bf16.mxu0 0
      %2260 = vmatpush1.bf16.msra.mxu0 0
      %2261 = vmatprep.mubr.bf16.mxu0 0
      %2262 = vmatmul.mubr.bf16.gmra.mrb[0].mxu0 %v2155
      %v2263 = vpop.f32.mrb[0].mxu0
      %v2264 = vadd.f32 0.0, %v2263
      %v2265 = vpop.f32.mrb[0].mxu0
      %v2266 = vpop.f32.mrb[0].mxu0
      %v2267 = vadd.f32 0.0, %v2266
      %v2268 = vpop.f32.mrb[0].mxu0
      %2269 = vmatprep.mubr.bf16.mxu0 0
      %2270 = vmatmul.mubr.bf16.gmra.mrb[0].mxu0 %v2158
      %v2271 = vpop.f32.mrb[0].mxu0
      %v2272 = vadd.f32 0.0, %v2271
      %v2273 = vpop.f32.mrb[0].mxu0
      %v2274 = vpop.f32.mrb[0].mxu0
      %v2275 = vadd.f32 0.0, %v2274
      %v2276 = vpop.f32.mrb[0].mxu0
      %2277 = vmatprep.mubr.bf16.mxu0 0
      %2278 = vmatmul.mubr.bf16.gmra.mrb[0].mxu0 %v2161
      %v2279 = vpop.f32.mrb[0].mxu0
      %v2280 = vadd.f32 0.0, %v2279
      %v2281 = vpop.f32.mrb[0].mxu0
      %v2282 = vpop.f32.mrb[0].mxu0
      %v2283 = vadd.f32 0.0, %v2282
      %v2284 = vpop.f32.mrb[0].mxu0
      %2285 = vmatprep.mubr.bf16.mxu0 0
      %2286 = vmatmul.mubr.bf16.gmra.mrb[0].mxu0 %v2164
      %v2287 = vpop.f32.mrb[0].mxu0
      %v2288 = vadd.f32 0.0, %v2287
      %v2289 = vpop.f32.mrb[0].mxu0
      %v2290 = vpop.f32.mrb[0].mxu0
      %v2291 = vadd.f32 0.0, %v2290
      %v2292 = vpop.f32.mrb[0].mxu0
      %2293 = vmatprep.mubr.bf16.mxu0 0
      %2294 = vmatmul.mubr.bf16.gmra.mrb[0].mxu0 %v2167
      %v2295 = vpop.f32.mrb[0].mxu0
      %v2296 = vadd.f32 0.0, %v2295
      %v2297 = vpop.f32.mrb[0].mxu0
      %v2298 = vpop.f32.mrb[0].mxu0
      %v2299 = vadd.f32 0.0, %v2298
      %v2300 = vpop.f32.mrb[0].mxu0
      %2301 = vmatprep.mubr.bf16.mxu0 0
      %2302 = vmatmul.mubr.bf16.gmra.mrb[0].mxu0 %v2170
      %v2303 = vpop.f32.mrb[0].mxu0
      %v2304 = vadd.f32 0.0, %v2303
      %v2305 = vpop.f32.mrb[0].mxu0
      %v2306 = vpop.f32.mrb[0].mxu0
      %v2307 = vadd.f32 0.0, %v2306
      %v2308 = vpop.f32.mrb[0].mxu0
      %2309 = vmatprep.mubr.bf16.mxu0 0
      %2310 = vmatmul.mubr.bf16.gmra.mrb[0].mxu0 %v2173
      %v2311 = vpop.f32.mrb[0].mxu0
      %v2312 = vadd.f32 0.0, %v2311
      %v2313 = vpop.f32.mrb[0].mxu0
      %v2314 = vpop.f32.mrb[0].mxu0
      %v2315 = vadd.f32 0.0, %v2314
      %v2316 = vpop.f32.mrb[0].mxu0
      %2317 = vmatprep.mubr.bf16.mxu0 0
      %2318 = vmatmul.mubr.bf16.gmra.mrb[0].mxu0 %v2176
      %v2319 = vpop.f32.mrb[0].mxu0
      %v2320 = vadd.f32 0.0, %v2319
      %v2321 = vpop.f32.mrb[0].mxu0
      %v2322 = vpop.f32.mrb[0].mxu0
      %v2323 = vadd.f32 0.0, %v2322
      %v2324 = vpop.f32.mrb[0].mxu0
      %2325 = vmatprep.mubr.bf16.mxu0 0
      %2326 = vmatmul.mubr.bf16.gmra.mrb[0].mxu0 %v2179
      %v2327 = vpop.f32.mrb[0].mxu0
      %v2328 = vadd.f32 0.0, %v2327
      %v2329 = vpop.f32.mrb[0].mxu0
      %v2330 = vpop.f32.mrb[0].mxu0
      %v2331 = vadd.f32 0.0, %v2330
      %v2332 = vpop.f32.mrb[0].mxu0
      %2333 = vmatprep.mubr.bf16.mxu0 0
      %2334 = vmatmul.mubr.bf16.gmra.mrb[0].mxu0 %v2182
      %v2335 = vpop.f32.mrb[0].mxu0
      %v2336 = vadd.f32 0.0, %v2335
      %v2337 = vpop.f32.mrb[0].mxu0
      %v2338 = vpop.f32.mrb[0].mxu0
      %v2339 = vadd.f32 0.0, %v2338
      %v2340 = vpop.f32.mrb[0].mxu0
      %2341 = vmatprep.mubr.bf16.mxu0 0
      %2342 = vmatmul.mubr.bf16.gmra.mrb[0].mxu0 %v2185
      %v2343 = vpop.f32.mrb[0].mxu0
      %v2344 = vadd.f32 0.0, %v2343
      %v2345 = vpop.f32.mrb[0].mxu0
      %v2346 = vpop.f32.mrb[0].mxu0
      %v2347 = vadd.f32 0.0, %v2346
      %v2348 = vpop.f32.mrb[0].mxu0
      %2349 = vmatprep.mubr.bf16.mxu0 0
      %2350 = vmatmul.mubr.bf16.gmra.mrb[0].mxu0 %v2188
      %v2351 = vpop.f32.mrb[0].mxu0
      %v2352 = vadd.f32 0.0, %v2351
      %v2353 = vpop.f32.mrb[0].mxu0
      %v2354 = vpop.f32.mrb[0].mxu0
      %v2355 = vadd.f32 0.0, %v2354
      %v2356 = vpop.f32.mrb[0].mxu0
      %2357 = vmatprep.mubr.bf16.mxu0 0
      %2358 = vmatmul.mubr.bf16.gmra.mrb[0].mxu0 %v2191
      %v2359 = vpop.f32.mrb[0].mxu0
      %v2360 = vadd.f32 0.0, %v2359
      %v2361 = vpop.f32.mrb[0].mxu0
      %v2362 = vpop.f32.mrb[0].mxu0
      %v2363 = vadd.f32 0.0, %v2362
      %v2364 = vpop.f32.mrb[0].mxu0
      %2365 = vmatprep.mubr.bf16.mxu0 0
      %2366 = vmatmul.mubr.bf16.gmra.mrb[0].mxu0 %v2194
      %v2367 = vpop.f32.mrb[0].mxu0
      %v2368 = vadd.f32 0.0, %v2367
      %v2369 = vpop.f32.mrb[0].mxu0
      %v2370 = vpop.f32.mrb[0].mxu0
      %v2371 = vadd.f32 0.0, %v2370
      %v2372 = vpop.f32.mrb[0].mxu0
      %2373 = vmatprep.mubr.bf16.mxu0 0
      %2374 = vmatmul.mubr.bf16.gmra.mrb[0].mxu0 %v2197
      %v2375 = vpop.f32.mrb[0].mxu0
      %v2376 = vadd.f32 0.0, %v2375
      %v2377 = vpop.f32.mrb[0].mxu0
      %v2378 = vpop.f32.mrb[0].mxu0
      %v2379 = vadd.f32 0.0, %v2378
      %v2380 = vpop.f32.mrb[0].mxu0
      %2381 = vmatprep.mubr.bf16.mxu0 0
      %2382 = vmatmul.mubr.bf16.gmra.mrb[0].mxu0 %v2200
      %v2383 = vpop.f32.mrb[0].mxu0
      %v2384 = vadd.f32 0.0, %v2383
      %v2385 = vpop.f32.mrb[0].mxu0
      %v2386 = vpop.f32.mrb[0].mxu0
      %v2387 = vadd.f32 0.0, %v2386
      %v2388 = vpop.f32.mrb[0].mxu0
      %2389 = vmatprep.mubr.bf16.mxu0 0
      %2390 = vmatmul.mubr.bf16.gmra.mrb[0].mxu0 %v2203
      %v2391 = vpop.f32.mrb[0].mxu0
      %v2392 = vadd.f32 0.0, %v2391
      %v2393 = vpop.f32.mrb[0].mxu0
      %v2394 = vpop.f32.mrb[0].mxu0
      %v2395 = vadd.f32 0.0, %v2394
      %v2396 = vpop.f32.mrb[0].mxu0
      %2397 = vmatprep.mubr.bf16.mxu0 0
      %2398 = vmatmul.mubr.bf16.gmra.mrb[0].mxu0 %v2206
      %v2399 = vpop.f32.mrb[0].mxu0
      %v2400 = vadd.f32 0.0, %v2399
      %v2401 = vpop.f32.mrb[0].mxu0
      %v2402 = vpop.f32.mrb[0].mxu0
      %v2403 = vadd.f32 0.0, %v2402
      %v2404 = vpop.f32.mrb[0].mxu0
      %2405 = vmatprep.mubr.bf16.mxu0 0
      %2406 = vmatmul.mubr.bf16.gmra.mrb[0].mxu0 %v2209
      %v2407 = vpop.f32.mrb[0].mxu0
      %v2408 = vadd.f32 0.0, %v2407
      %v2409 = vpop.f32.mrb[0].mxu0
      %v2410 = vpop.f32.mrb[0].mxu0
      %v2411 = vadd.f32 0.0, %v2410
      %v2412 = vpop.f32.mrb[0].mxu0
      %2413 = vmatprep.mubr.bf16.mxu0 0
      %2414 = vmatmul.mubr.bf16.gmra.mrb[0].mxu0 %v2212
      %v2415 = vpop.f32.mrb[0].mxu0
      %v2416 = vadd.f32 0.0, %v2415
      %v2417 = vpop.f32.mrb[0].mxu0
      %v2418 = vpop.f32.mrb[0].mxu0
      %v2419 = vadd.f32 0.0, %v2418
      %v2420 = vpop.f32.mrb[0].mxu0
      %2421 = vmatprep.mubr.bf16.mxu0 0
      %2422 = vmatmul.mubr.bf16.gmra.mrb[0].mxu0 %v2215
      %v2423 = vpop.f32.mrb[0].mxu0
      %v2424 = vadd.f32 0.0, %v2423
      %v2425 = vpop.f32.mrb[0].mxu0
      %v2426 = vpop.f32.mrb[0].mxu0
      %v2427 = vadd.f32 0.0, %v2426
      %v2428 = vpop.f32.mrb[0].mxu0
      %2429 = vmatprep.mubr.bf16.mxu0 0
      %2430 = vmatmul.mubr.bf16.gmra.mrb[0].mxu0 %v2218
      %v2431 = vpop.f32.mrb[0].mxu0
      %v2432 = vadd.f32 0.0, %v2431
      %v2433 = vpop.f32.mrb[0].mxu0
      %v2434 = vpop.f32.mrb[0].mxu0
      %v2435 = vadd.f32 0.0, %v2434
      %v2436 = vpop.f32.mrb[0].mxu0
      %2437 = vmatprep.mubr.bf16.mxu0 0
      %2438 = vmatmul.mubr.bf16.gmra.mrb[0].mxu0 %v2221
      %v2439 = vpop.f32.mrb[0].mxu0
      %v2440 = vadd.f32 0.0, %v2439
      %v2441 = vpop.f32.mrb[0].mxu0
      %v2442 = vpop.f32.mrb[0].mxu0
      %v2443 = vadd.f32 0.0, %v2442
      %v2444 = vpop.f32.mrb[0].mxu0
      %2445 = vmatprep.mubr.bf16.mxu0 0
      %2446 = vmatmul.mubr.bf16.gmra.mrb[0].mxu0 %v2224
      %v2447 = vpop.f32.mrb[0].mxu0
      %v2448 = vadd.f32 0.0, %v2447
      %v2449 = vpop.f32.mrb[0].mxu0
      %v2450 = vpop.f32.mrb[0].mxu0
      %v2451 = vadd.f32 0.0, %v2450
      %v2452 = vpop.f32.mrb[0].mxu0
      %2453 = vdwg.mxu0
      %v2454 = vadd.f32 %v1929, %v2264
      %v2455 = vadd.f32 %v1930, %v2267
      %v2456 = vadd.f32 %v1931, %v2272
      %v2457 = vadd.f32 %v1932, %v2275
      %v2458 = vadd.f32 %v1933, %v2280
      %v2459 = vadd.f32 %v1934, %v2283
      %v2460 = vadd.f32 %v1935, %v2288
      %v2461 = vadd.f32 %v1936, %v2291
      %v2462 = vadd.f32 %v1937, %v2296
      %v2463 = vadd.f32 %v1938, %v2299
      %v2464 = vadd.f32 %v1939, %v2304
      %v2465 = vadd.f32 %v1940, %v2307
      %v2466 = vadd.f32 %v1941, %v2312
      %v2467 = vadd.f32 %v1942, %v2315
      %v2468 = vadd.f32 %v1943, %v2320
      %v2469 = vadd.f32 %v1944, %v2323
      %v2470 = vadd.f32 %v1945, %v2328
      %v2471 = vadd.f32 %v1946, %v2331
      %v2472 = vadd.f32 %v1947, %v2336
      %v2473 = vadd.f32 %v1948, %v2339
      %v2474 = vadd.f32 %v1949, %v2344
      %v2475 = vadd.f32 %v1950, %v2347
      %v2476 = vadd.f32 %v1951, %v2352
      %v2477 = vadd.f32 %v1952, %v2355
      %v2478 = vadd.f32 %v1953, %v2360
      %v2479 = vadd.f32 %v1954, %v2363
      %v2480 = vadd.f32 %v1955, %v2368
      %v2481 = vadd.f32 %v1956, %v2371
      %v2482 = vadd.f32 %v1957, %v2376
      %v2483 = vadd.f32 %v1958, %v2379
      %v2484 = vadd.f32 %v1959, %v2384
      %v2485 = vadd.f32 %v1960, %v2387
      %v2486 = vadd.f32 %v1961, %v2392
      %v2487 = vadd.f32 %v1962, %v2395
      %v2488 = vadd.f32 %v1963, %v2400
      %v2489 = vadd.f32 %v1964, %v2403
      %v2490 = vadd.f32 %v1965, %v2408
      %v2491 = vadd.f32 %v1966, %v2411
      %v2492 = vadd.f32 %v1967, %v2416
      %v2493 = vadd.f32 %v1968, %v2419
      %v2494 = vadd.f32 %v1969, %v2424
      %v2495 = vadd.f32 %v1970, %v2427
      %v2496 = vadd.f32 %v1971, %v2432
      %v2497 = vadd.f32 %v1972, %v2435
      %v2498 = vadd.f32 %v1973, %v2440
      %v2499 = vadd.f32 %v1974, %v2443
      %v2500 = vadd.f32 %v1975, %v2448
      %v2501 = vadd.f32 %v1976, %v2451
      %s2502 = scalar_lea.vmem %s232, 20
      %v2503 = vld [vmem:[%s2502] sm:$0xf]
      %v2504 = vrot.slane %v1605, 1
      %v2505 = vrot.slane %v1606, 1
      %v2506 = vsel %vm1201, %v2504, %v2505
      %v2507 = vrot.slane %v1607, 1
      %v2508 = vsel %vm1201, %v2505, %v2507
      %v2509 = vrot.slane %v1608, 1
      %v2510 = vsel %vm1201, %v2507, %v2509
      %v2511 = vrot.slane %v1609, 1
      %v2512 = vsel %vm1201, %v2509, %v2511
      %v2513 = vrot.slane %v1610, 1
      %v2514 = vsel %vm1201, %v2511, %v2513
      %v2515 = vrot.slane %v1611, 1
      %v2516 = vsel %vm1201, %v2513, %v2515
      %v2517 = vrot.slane %v1612, 1
      %v2518 = vsel %vm1201, %v2515, %v2517
      %v2519 = vrot.slane %v1613, 1
      %v2520 = vsel %vm1201, %v2517, %v2519
      %v2521 = vrot.slane %v1614, 1
      %v2522 = vsel %vm1201, %v2519, %v2521
      %v2523 = vrot.slane %v1615, 1
      %v2524 = vsel %vm1201, %v2521, %v2523
      %v2525 = vrot.slane %v1616, 1
      %v2526 = vsel %vm1201, %v2523, %v2525
      %v2527 = vrot.slane %v1617, 1
      %v2528 = vsel %vm1201, %v2525, %v2527
      %v2529 = vrot.slane %v1618, 1
      %v2530 = vsel %vm1201, %v2527, %v2529
      %v2531 = vrot.slane %v1619, 1
      %v2532 = vsel %vm1201, %v2529, %v2531
      %v2533 = vrot.slane %v1620, 1
      %v2534 = vsel %vm1201, %v2531, %v2533
      %v2535 = vrot.slane %v1621, 1
      %v2536 = vsel %vm1201, %v2533, %v2535
      %v2537 = vrot.slane %v1622, 1
      %v2538 = vsel %vm1201, %v2535, %v2537
      %v2539 = vrot.slane %v1623, 1
      %v2540 = vsel %vm1201, %v2537, %v2539
      %v2541 = vrot.slane %v1624, 1
      %v2542 = vsel %vm1201, %v2539, %v2541
      %v2543 = vrot.slane %v1625, 1
      %v2544 = vsel %vm1201, %v2541, %v2543
      %v2545 = vrot.slane %v1626, 1
      %v2546 = vsel %vm1201, %v2543, %v2545
      %v2547 = vrot.slane %v1627, 1
      %v2548 = vsel %vm1201, %v2545, %v2547
      %v2549 = vrot.slane %v1628, 1
      %v2550 = vsel %vm1201, %v2547, %v2549
      %v2551 = vrot.slane %v1981, 1
      %v2552 = vsel %vm1201, %v2549, %v2551
      %v2554 = vsel %vm621, %v2506, 0
      %v2557 = vsel %vm621, %v2508, 0
      %v2560 = vsel %vm621, %v2510, 0
      %v2563 = vsel %vm621, %v2512, 0
      %v2566 = vsel %vm621, %v2514, 0
      %v2569 = vsel %vm621, %v2516, 0
      %v2572 = vsel %vm621, %v2518, 0
      %v2575 = vsel %vm621, %v2520, 0
      %v2578 = vsel %vm621, %v2522, 0
      %v2581 = vsel %vm621, %v2524, 0
      %v2584 = vsel %vm621, %v2526, 0
      %v2587 = vsel %vm621, %v2528, 0
      %v2590 = vsel %vm621, %v2530, 0
      %v2593 = vsel %vm621, %v2532, 0
      %v2596 = vsel %vm621, %v2534, 0
      %v2599 = vsel %vm621, %v2536, 0
      %v2602 = vsel %vm621, %v2538, 0
      %v2605 = vsel %vm621, %v2540, 0
      %v2608 = vsel %vm621, %v2542, 0
      %v2611 = vsel %vm621, %v2544, 0
      %v2614 = vsel %vm621, %v2546, 0
      %v2617 = vsel %vm621, %v2548, 0
      %v2620 = vsel %vm621, %v2550, 0
      %v2623 = vsel %vm621, %v2552, 0
      %v2626 = vsel %vm694, %v2503, 0
      %2628 = vmatprep.subr.bf16.mxu0 0
      %2629 = vmatpush1.bf16.msra.mxu0 %v2626
      %2630 = vmatprep.subr.bf16.mxu0 0
      %2631 = vmatpush1.bf16.msra.mxu0 0
      %2632 = vmatprep.subr.bf16.mxu0 0
      %2633 = vmatpush1.bf16.msra.mxu0 0
      %2634 = vmatprep.subr.bf16.mxu0 0
      %2635 = vmatpush1.bf16.msra.mxu0 0
      %2636 = vmatprep.subr.bf16.mxu0 0
      %2637 = vmatpush1.bf16.msra.mxu0 0
      %2638 = vmatprep.subr.bf16.mxu0 0
      %2639 = vmatpush1.bf16.msra.mxu0 0
      %2640 = vmatprep.subr.bf16.mxu0 0
      %2641 = vmatpush1.bf16.msra.mxu0 0
      %2642 = vmatprep.subr.bf16.mxu0 0
      %2643 = vmatpush1.bf16.msra.mxu0 0
      %2644 = vmatprep.subr.bf16.mxu0 0
      %2645 = vmatpush1.bf16.msra.mxu0 0
      %2646 = vmatprep.subr.bf16.mxu0 0
      %2647 = vmatpush1.bf16.msra.mxu0 0
      %2648 = vmatprep.subr.bf16.mxu0 0
      %2649 = vmatpush1.bf16.msra.mxu0 0
      %2650 = vmatprep.subr.bf16.mxu0 0
      %2651 = vmatpush1.bf16.msra.mxu0 0
      %2652 = vmatprep.subr.bf16.mxu0 0
      %2653 = vmatpush1.bf16.msra.mxu0 0
      %2654 = vmatprep.subr.bf16.mxu0 0
      %2655 = vmatpush1.bf16.msra.mxu0 0
      %2656 = vmatprep.subr.bf16.mxu0 0
      %2657 = vmatpush1.bf16.msra.mxu0 0
      %2658 = vmatprep.subr.bf16.mxu0 0
      %2659 = vmatpush1.bf16.msra.mxu0 0
      %2660 = vmatprep.mubr.bf16.mxu0 0
      %2661 = vmatmul.mubr.bf16.gmra.mrb[0].mxu0 %v2554
      %v2662 = vpop.f32.mrb[0].mxu0
      %v2663 = vadd.f32 0.0, %v2662
      %v2664 = vpop.f32.mrb[0].mxu0
      %v2665 = vpop.f32.mrb[0].mxu0
      %v2666 = vadd.f32 0.0, %v2665
      %v2667 = vpop.f32.mrb[0].mxu0
      %2668 = vmatprep.mubr.bf16.mxu0 0
      %2669 = vmatmul.mubr.bf16.gmra.mrb[0].mxu0 %v2557
      %v2670 = vpop.f32.mrb[0].mxu0
      %v2671 = vadd.f32 0.0, %v2670
      %v2672 = vpop.f32.mrb[0].mxu0
      %v2673 = vpop.f32.mrb[0].mxu0
      %v2674 = vadd.f32 0.0, %v2673
      %v2675 = vpop.f32.mrb[0].mxu0
      %2676 = vmatprep.mubr.bf16.mxu0 0
      %2677 = vmatmul.mubr.bf16.gmra.mrb[0].mxu0 %v2560
      %v2678 = vpop.f32.mrb[0].mxu0
      %v2679 = vadd.f32 0.0, %v2678
      %v2680 = vpop.f32.mrb[0].mxu0
      %v2681 = vpop.f32.mrb[0].mxu0
      %v2682 = vadd.f32 0.0, %v2681
      %v2683 = vpop.f32.mrb[0].mxu0
      %2684 = vmatprep.mubr.bf16.mxu0 0
      %2685 = vmatmul.mubr.bf16.gmra.mrb[0].mxu0 %v2563
      %v2686 = vpop.f32.mrb[0].mxu0
      %v2687 = vadd.f32 0.0, %v2686
      %v2688 = vpop.f32.mrb[0].mxu0
      %v2689 = vpop.f32.mrb[0].mxu0
      %v2690 = vadd.f32 0.0, %v2689
      %v2691 = vpop.f32.mrb[0].mxu0
      %2692 = vmatprep.mubr.bf16.mxu0 0
      %2693 = vmatmul.mubr.bf16.gmra.mrb[0].mxu0 %v2566
      %v2694 = vpop.f32.mrb[0].mxu0
      %v2695 = vadd.f32 0.0, %v2694
      %v2696 = vpop.f32.mrb[0].mxu0
      %v2697 = vpop.f32.mrb[0].mxu0
      %v2698 = vadd.f32 0.0, %v2697
      %v2699 = vpop.f32.mrb[0].mxu0
      %2700 = vmatprep.mubr.bf16.mxu0 0
      %2701 = vmatmul.mubr.bf16.gmra.mrb[0].mxu0 %v2569
      %v2702 = vpop.f32.mrb[0].mxu0
      %v2703 = vadd.f32 0.0, %v2702
      %v2704 = vpop.f32.mrb[0].mxu0
      %v2705 = vpop.f32.mrb[0].mxu0
      %v2706 = vadd.f32 0.0, %v2705
      %v2707 = vpop.f32.mrb[0].mxu0
      %2708 = vmatprep.mubr.bf16.mxu0 0
      %2709 = vmatmul.mubr.bf16.gmra.mrb[0].mxu0 %v2572
      %v2710 = vpop.f32.mrb[0].mxu0
      %v2711 = vadd.f32 0.0, %v2710
      %v2712 = vpop.f32.mrb[0].mxu0
      %v2713 = vpop.f32.mrb[0].mxu0
      %v2714 = vadd.f32 0.0, %v2713
      %v2715 = vpop.f32.mrb[0].mxu0
      %2716 = vmatprep.mubr.bf16.mxu0 0
      %2717 = vmatmul.mubr.bf16.gmra.mrb[0].mxu0 %v2575
      %v2718 = vpop.f32.mrb[0].mxu0
      %v2719 = vadd.f32 0.0, %v2718
      %v2720 = vpop.f32.mrb[0].mxu0
      %v2721 = vpop.f32.mrb[0].mxu0
      %v2722 = vadd.f32 0.0, %v2721
      %v2723 = vpop.f32.mrb[0].mxu0
      %2724 = vmatprep.mubr.bf16.mxu0 0
      %2725 = vmatmul.mubr.bf16.gmra.mrb[0].mxu0 %v2578
      %v2726 = vpop.f32.mrb[0].mxu0
      %v2727 = vadd.f32 0.0, %v2726
      %v2728 = vpop.f32.mrb[0].mxu0
      %v2729 = vpop.f32.mrb[0].mxu0
      %v2730 = vadd.f32 0.0, %v2729
      %v2731 = vpop.f32.mrb[0].mxu0
      %2732 = vmatprep.mubr.bf16.mxu0 0
      %2733 = vmatmul.mubr.bf16.gmra.mrb[0].mxu0 %v2581
      %v2734 = vpop.f32.mrb[0].mxu0
      %v2735 = vadd.f32 0.0, %v2734
      %v2736 = vpop.f32.mrb[0].mxu0
      %v2737 = vpop.f32.mrb[0].mxu0
      %v2738 = vadd.f32 0.0, %v2737
      %v2739 = vpop.f32.mrb[0].mxu0
      %2740 = vmatprep.mubr.bf16.mxu0 0
      %2741 = vmatmul.mubr.bf16.gmra.mrb[0].mxu0 %v2584
      %v2742 = vpop.f32.mrb[0].mxu0
      %v2743 = vadd.f32 0.0, %v2742
      %v2744 = vpop.f32.mrb[0].mxu0
      %v2745 = vpop.f32.mrb[0].mxu0
      %v2746 = vadd.f32 0.0, %v2745
      %v2747 = vpop.f32.mrb[0].mxu0
      %2748 = vmatprep.mubr.bf16.mxu0 0
      %2749 = vmatmul.mubr.bf16.gmra.mrb[0].mxu0 %v2587
      %v2750 = vpop.f32.mrb[0].mxu0
      %v2751 = vadd.f32 0.0, %v2750
      %v2752 = vpop.f32.mrb[0].mxu0
      %v2753 = vpop.f32.mrb[0].mxu0
      %v2754 = vadd.f32 0.0, %v2753
      %v2755 = vpop.f32.mrb[0].mxu0
      %2756 = vmatprep.mubr.bf16.mxu0 0
      %2757 = vmatmul.mubr.bf16.gmra.mrb[0].mxu0 %v2590
      %v2758 = vpop.f32.mrb[0].mxu0
      %v2759 = vadd.f32 0.0, %v2758
      %v2760 = vpop.f32.mrb[0].mxu0
      %v2761 = vpop.f32.mrb[0].mxu0
      %v2762 = vadd.f32 0.0, %v2761
      %v2763 = vpop.f32.mrb[0].mxu0
      %2764 = vmatprep.mubr.bf16.mxu0 0
      %2765 = vmatmul.mubr.bf16.gmra.mrb[0].mxu0 %v2593
      %v2766 = vpop.f32.mrb[0].mxu0
      %v2767 = vadd.f32 0.0, %v2766
      %v2768 = vpop.f32.mrb[0].mxu0
      %v2769 = vpop.f32.mrb[0].mxu0
      %v2770 = vadd.f32 0.0, %v2769
      %v2771 = vpop.f32.mrb[0].mxu0
      %2772 = vmatprep.mubr.bf16.mxu0 0
      %2773 = vmatmul.mubr.bf16.gmra.mrb[0].mxu0 %v2596
      %v2774 = vpop.f32.mrb[0].mxu0
      %v2775 = vadd.f32 0.0, %v2774
      %v2776 = vpop.f32.mrb[0].mxu0
      %v2777 = vpop.f32.mrb[0].mxu0
      %v2778 = vadd.f32 0.0, %v2777
      %v2779 = vpop.f32.mrb[0].mxu0
      %2780 = vmatprep.mubr.bf16.mxu0 0
      %2781 = vmatmul.mubr.bf16.gmra.mrb[0].mxu0 %v2599
      %v2782 = vpop.f32.mrb[0].mxu0
      %v2783 = vadd.f32 0.0, %v2782
      %v2784 = vpop.f32.mrb[0].mxu0
      %v2785 = vpop.f32.mrb[0].mxu0
      %v2786 = vadd.f32 0.0, %v2785
      %v2787 = vpop.f32.mrb[0].mxu0
      %2788 = vmatprep.mubr.bf16.mxu0 0
      %2789 = vmatmul.mubr.bf16.gmra.mrb[0].mxu0 %v2602
      %v2790 = vpop.f32.mrb[0].mxu0
      %v2791 = vadd.f32 0.0, %v2790
      %v2792 = vpop.f32.mrb[0].mxu0
      %v2793 = vpop.f32.mrb[0].mxu0
      %v2794 = vadd.f32 0.0, %v2793
      %v2795 = vpop.f32.mrb[0].mxu0
      %2796 = vmatprep.mubr.bf16.mxu0 0
      %2797 = vmatmul.mubr.bf16.gmra.mrb[0].mxu0 %v2605
      %v2798 = vpop.f32.mrb[0].mxu0
      %v2799 = vadd.f32 0.0, %v2798
      %v2800 = vpop.f32.mrb[0].mxu0
      %v2801 = vpop.f32.mrb[0].mxu0
      %v2802 = vadd.f32 0.0, %v2801
      %v2803 = vpop.f32.mrb[0].mxu0
      %2804 = vmatprep.mubr.bf16.mxu0 0
      %2805 = vmatmul.mubr.bf16.gmra.mrb[0].mxu0 %v2608
      %v2806 = vpop.f32.mrb[0].mxu0
      %v2807 = vadd.f32 0.0, %v2806
      %v2808 = vpop.f32.mrb[0].mxu0
      %v2809 = vpop.f32.mrb[0].mxu0
      %v2810 = vadd.f32 0.0, %v2809
      %v2811 = vpop.f32.mrb[0].mxu0
      %2812 = vmatprep.mubr.bf16.mxu0 0
      %2813 = vmatmul.mubr.bf16.gmra.mrb[0].mxu0 %v2611
      %v2814 = vpop.f32.mrb[0].mxu0
      %v2815 = vadd.f32 0.0, %v2814
      %v2816 = vpop.f32.mrb[0].mxu0
      %v2817 = vpop.f32.mrb[0].mxu0
      %v2818 = vadd.f32 0.0, %v2817
      %v2819 = vpop.f32.mrb[0].mxu0
      %2820 = vmatprep.mubr.bf16.mxu0 0
      %2821 = vmatmul.mubr.bf16.gmra.mrb[0].mxu0 %v2614
      %v2822 = vpop.f32.mrb[0].mxu0
      %v2823 = vadd.f32 0.0, %v2822
      %v2824 = vpop.f32.mrb[0].mxu0
      %v2825 = vpop.f32.mrb[0].mxu0
      %v2826 = vadd.f32 0.0, %v2825
      %v2827 = vpop.f32.mrb[0].mxu0
      %2828 = vmatprep.mubr.bf16.mxu0 0
      %2829 = vmatmul.mubr.bf16.gmra.mrb[0].mxu0 %v2617
      %v2830 = vpop.f32.mrb[0].mxu0
      %v2831 = vadd.f32 0.0, %v2830
      %v2832 = vpop.f32.mrb[0].mxu0
      %v2833 = vpop.f32.mrb[0].mxu0
      %v2834 = vadd.f32 0.0, %v2833
      %v2835 = vpop.f32.mrb[0].mxu0
      %2836 = vmatprep.mubr.bf16.mxu0 0
      %2837 = vmatmul.mubr.bf16.gmra.mrb[0].mxu0 %v2620
      %v2838 = vpop.f32.mrb[0].mxu0
      %v2839 = vadd.f32 0.0, %v2838
      %v2840 = vpop.f32.mrb[0].mxu0
      %v2841 = vpop.f32.mrb[0].mxu0
      %v2842 = vadd.f32 0.0, %v2841
      %v2843 = vpop.f32.mrb[0].mxu0
      %2844 = vmatprep.mubr.bf16.mxu0 0
      %2845 = vmatmul.mubr.bf16.gmra.mrb[0].mxu0 %v2623
      %v2846 = vpop.f32.mrb[0].mxu0
      %v2847 = vadd.f32 0.0, %v2846
      %v2848 = vpop.f32.mrb[0].mxu0
      %v2849 = vpop.f32.mrb[0].mxu0
      %v2850 = vadd.f32 0.0, %v2849
      %v2851 = vpop.f32.mrb[0].mxu0
      %2852 = vdwg.mxu0
      %v2853 = vadd.f32 %v2454, %v2663
      %v2854 = vadd.f32 %v2455, %v2666
      %v2855 = vadd.f32 %v2456, %v2671
      %v2856 = vadd.f32 %v2457, %v2674
      %v2857 = vadd.f32 %v2458, %v2679
      %v2858 = vadd.f32 %v2459, %v2682
      %v2859 = vadd.f32 %v2460, %v2687
      %v2860 = vadd.f32 %v2461, %v2690
      %v2861 = vadd.f32 %v2462, %v2695
      %v2862 = vadd.f32 %v2463, %v2698
      %v2863 = vadd.f32 %v2464, %v2703
      %v2864 = vadd.f32 %v2465, %v2706
      %v2865 = vadd.f32 %v2466, %v2711
      %v2866 = vadd.f32 %v2467, %v2714
      %v2867 = vadd.f32 %v2468, %v2719
      %v2868 = vadd.f32 %v2469, %v2722
      %v2869 = vadd.f32 %v2470, %v2727
      %v2870 = vadd.f32 %v2471, %v2730
      %v2871 = vadd.f32 %v2472, %v2735
      %v2872 = vadd.f32 %v2473, %v2738
      %v2873 = vadd.f32 %v2474, %v2743
      %v2874 = vadd.f32 %v2475, %v2746
      %v2875 = vadd.f32 %v2476, %v2751
      %v2876 = vadd.f32 %v2477, %v2754
      %v2877 = vadd.f32 %v2478, %v2759
      %v2878 = vadd.f32 %v2479, %v2762
      %v2879 = vadd.f32 %v2480, %v2767
      %v2880 = vadd.f32 %v2481, %v2770
      %v2881 = vadd.f32 %v2482, %v2775
      %v2882 = vadd.f32 %v2483, %v2778
      %v2883 = vadd.f32 %v2484, %v2783
      %v2884 = vadd.f32 %v2485, %v2786
      %v2885 = vadd.f32 %v2486, %v2791
      %v2886 = vadd.f32 %v2487, %v2794
      %v2887 = vadd.f32 %v2488, %v2799
      %v2888 = vadd.f32 %v2489, %v2802
      %v2889 = vadd.f32 %v2490, %v2807
      %v2890 = vadd.f32 %v2491, %v2810
      %v2891 = vadd.f32 %v2492, %v2815
      %v2892 = vadd.f32 %v2493, %v2818
      %v2893 = vadd.f32 %v2494, %v2823
      %v2894 = vadd.f32 %v2495, %v2826
      %v2895 = vadd.f32 %v2496, %v2831
      %v2896 = vadd.f32 %v2497, %v2834
      %v2897 = vadd.f32 %v2498, %v2839
      %v2898 = vadd.f32 %v2499, %v2842
      %v2899 = vadd.f32 %v2500, %v2847
      %v2900 = vadd.f32 %v2501, %v2850
      %s2901 = scalar_lea.vmem %s232, 24
      %v2902 = vld [vmem:[%s2901] sm:$0xf]
      %v2905 = vunpack.c.l.b16 %v295
      %v2906 = vunpack.c.l.b16 %v296
      %v2907 = vpack.c.b16 %v1603, %v398
      %v2908 = vpack.c.b16 %v1980, %v1604
      %v2909 = vpack.c.b16 %v2906, %v2905
      %v2911 = vsel %vm621, %v2907, 0
      %v2914 = vsel %vm621, %v2908, 0
      %v2917 = vsel %vm621, %v2909, 0
      %v2920 = vsel %vm694, %v2902, 0
      %2922 = vmatprep.subr.bf16.mxu0 0
      %2923 = vmatpush1.bf16.msra.mxu0 %v2920
      %2924 = vmatprep.subr.bf16.mxu0 0
      %2925 = vmatpush1.bf16.msra.mxu0 0
      %2926 = vmatprep.subr.bf16.mxu0 0
      %2927 = vmatpush1.bf16.msra.mxu0 0
      %2928 = vmatprep.subr.bf16.mxu0 0
      %2929 = vmatpush1.bf16.msra.mxu0 0
      %2930 = vmatprep.subr.bf16.mxu0 0
      %2931 = vmatpush1.bf16.msra.mxu0 0
      %2932 = vmatprep.subr.bf16.mxu0 0
      %2933 = vmatpush1.bf16.msra.mxu0 0
      %2934 = vmatprep.subr.bf16.mxu0 0
      %2935 = vmatpush1.bf16.msra.mxu0 0
      %2936 = vmatprep.subr.bf16.mxu0 0
      %2937 = vmatpush1.bf16.msra.mxu0 0
      %2938 = vmatprep.subr.bf16.mxu0 0
      %2939 = vmatpush1.bf16.msra.mxu0 0
      %2940 = vmatprep.subr.bf16.mxu0 0
      %2941 = vmatpush1.bf16.msra.mxu0 0
      %2942 = vmatprep.subr.bf16.mxu0 0
      %2943 = vmatpush1.bf16.msra.mxu0 0
      %2944 = vmatprep.subr.bf16.mxu0 0
      %2945 = vmatpush1.bf16.msra.mxu0 0
      %2946 = vmatprep.subr.bf16.mxu0 0
      %2947 = vmatpush1.bf16.msra.mxu0 0
      %2948 = vmatprep.subr.bf16.mxu0 0
      %2949 = vmatpush1.bf16.msra.mxu0 0
      %2950 = vmatprep.subr.bf16.mxu0 0
      %2951 = vmatpush1.bf16.msra.mxu0 0
      %2952 = vmatprep.subr.bf16.mxu0 0
      %2953 = vmatpush1.bf16.msra.mxu0 0
      %2954 = vmatprep.mubr.bf16.mxu0 0
      %2955 = vmatmul.mubr.bf16.gmra.mrb[0].mxu0 %v929
      %v2956 = vpop.f32.mrb[0].mxu0
      %v2957 = vadd.f32 0.0, %v2956
      %v2958 = vpop.f32.mrb[0].mxu0
      %v2959 = vpop.f32.mrb[0].mxu0
      %v2960 = vadd.f32 0.0, %v2959
      %v2961 = vpop.f32.mrb[0].mxu0
      %2962 = vmatprep.mubr.bf16.mxu0 0
      %2963 = vmatmul.mubr.bf16.gmra.mrb[0].mxu0 %v931
      %v2964 = vpop.f32.mrb[0].mxu0
      %v2965 = vadd.f32 0.0, %v2964
      %v2966 = vpop.f32.mrb[0].mxu0
      %v2967 = vpop.f32.mrb[0].mxu0
      %v2968 = vadd.f32 0.0, %v2967
      %v2969 = vpop.f32.mrb[0].mxu0
      %2970 = vmatprep.mubr.bf16.mxu0 0
      %2971 = vmatmul.mubr.bf16.gmra.mrb[0].mxu0 %v933
      %v2972 = vpop.f32.mrb[0].mxu0
      %v2973 = vadd.f32 0.0, %v2972
      %v2974 = vpop.f32.mrb[0].mxu0
      %v2975 = vpop.f32.mrb[0].mxu0
      %v2976 = vadd.f32 0.0, %v2975
      %v2977 = vpop.f32.mrb[0].mxu0
      %2978 = vmatprep.mubr.bf16.mxu0 0
      %2979 = vmatmul.mubr.bf16.gmra.mrb[0].mxu0 %v935
      %v2980 = vpop.f32.mrb[0].mxu0
      %v2981 = vadd.f32 0.0, %v2980
      %v2982 = vpop.f32.mrb[0].mxu0
      %v2983 = vpop.f32.mrb[0].mxu0
      %v2984 = vadd.f32 0.0, %v2983
      %v2985 = vpop.f32.mrb[0].mxu0
      %2986 = vmatprep.mubr.bf16.mxu0 0
      %2987 = vmatmul.mubr.bf16.gmra.mrb[0].mxu0 %v937
      %v2988 = vpop.f32.mrb[0].mxu0
      %v2989 = vadd.f32 0.0, %v2988
      %v2990 = vpop.f32.mrb[0].mxu0
      %v2991 = vpop.f32.mrb[0].mxu0
      %v2992 = vadd.f32 0.0, %v2991
      %v2993 = vpop.f32.mrb[0].mxu0
      %2994 = vmatprep.mubr.bf16.mxu0 0
      %2995 = vmatmul.mubr.bf16.gmra.mrb[0].mxu0 %v939
      %v2996 = vpop.f32.mrb[0].mxu0
      %v2997 = vadd.f32 0.0, %v2996
      %v2998 = vpop.f32.mrb[0].mxu0
      %v2999 = vpop.f32.mrb[0].mxu0
      %v3000 = vadd.f32 0.0, %v2999
      %v3001 = vpop.f32.mrb[0].mxu0
      %3002 = vmatprep.mubr.bf16.mxu0 0
      %3003 = vmatmul.mubr.bf16.gmra.mrb[0].mxu0 %v941
      %v3004 = vpop.f32.mrb[0].mxu0
      %v3005 = vadd.f32 0.0, %v3004
      %v3006 = vpop.f32.mrb[0].mxu0
      %v3007 = vpop.f32.mrb[0].mxu0
      %v3008 = vadd.f32 0.0, %v3007
      %v3009 = vpop.f32.mrb[0].mxu0
      %3010 = vmatprep.mubr.bf16.mxu0 0
      %3011 = vmatmul.mubr.bf16.gmra.mrb[0].mxu0 %v943
      %v3012 = vpop.f32.mrb[0].mxu0
      %v3013 = vadd.f32 0.0, %v3012
      %v3014 = vpop.f32.mrb[0].mxu0
      %v3015 = vpop.f32.mrb[0].mxu0
      %v3016 = vadd.f32 0.0, %v3015
      %v3017 = vpop.f32.mrb[0].mxu0
      %3018 = vmatprep.mubr.bf16.mxu0 0
      %3019 = vmatmul.mubr.bf16.gmra.mrb[0].mxu0 %v945
      %v3020 = vpop.f32.mrb[0].mxu0
      %v3021 = vadd.f32 0.0, %v3020
      %v3022 = vpop.f32.mrb[0].mxu0
      %v3023 = vpop.f32.mrb[0].mxu0
      %v3024 = vadd.f32 0.0, %v3023
      %v3025 = vpop.f32.mrb[0].mxu0
      %3026 = vmatprep.mubr.bf16.mxu0 0
      %3027 = vmatmul.mubr.bf16.gmra.mrb[0].mxu0 %v947
      %v3028 = vpop.f32.mrb[0].mxu0
      %v3029 = vadd.f32 0.0, %v3028
      %v3030 = vpop.f32.mrb[0].mxu0
      %v3031 = vpop.f32.mrb[0].mxu0
      %v3032 = vadd.f32 0.0, %v3031
      %v3033 = vpop.f32.mrb[0].mxu0
      %3034 = vmatprep.mubr.bf16.mxu0 0
      %3035 = vmatmul.mubr.bf16.gmra.mrb[0].mxu0 %v949
      %v3036 = vpop.f32.mrb[0].mxu0
      %v3037 = vadd.f32 0.0, %v3036
      %v3038 = vpop.f32.mrb[0].mxu0
      %v3039 = vpop.f32.mrb[0].mxu0
      %v3040 = vadd.f32 0.0, %v3039
      %v3041 = vpop.f32.mrb[0].mxu0
      %3042 = vmatprep.mubr.bf16.mxu0 0
      %3043 = vmatmul.mubr.bf16.gmra.mrb[0].mxu0 %v951
      %v3044 = vpop.f32.mrb[0].mxu0
      %v3045 = vadd.f32 0.0, %v3044
      %v3046 = vpop.f32.mrb[0].mxu0
      %v3047 = vpop.f32.mrb[0].mxu0
      %v3048 = vadd.f32 0.0, %v3047
      %v3049 = vpop.f32.mrb[0].mxu0
      %3050 = vmatprep.mubr.bf16.mxu0 0
      %3051 = vmatmul.mubr.bf16.gmra.mrb[0].mxu0 %v953
      %v3052 = vpop.f32.mrb[0].mxu0
      %v3053 = vadd.f32 0.0, %v3052
      %v3054 = vpop.f32.mrb[0].mxu0
      %v3055 = vpop.f32.mrb[0].mxu0
      %v3056 = vadd.f32 0.0, %v3055
      %v3057 = vpop.f32.mrb[0].mxu0
      %3058 = vmatprep.mubr.bf16.mxu0 0
      %3059 = vmatmul.mubr.bf16.gmra.mrb[0].mxu0 %v955
      %v3060 = vpop.f32.mrb[0].mxu0
      %v3061 = vadd.f32 0.0, %v3060
      %v3062 = vpop.f32.mrb[0].mxu0
      %v3063 = vpop.f32.mrb[0].mxu0
      %v3064 = vadd.f32 0.0, %v3063
      %v3065 = vpop.f32.mrb[0].mxu0
      %3066 = vmatprep.mubr.bf16.mxu0 0
      %3067 = vmatmul.mubr.bf16.gmra.mrb[0].mxu0 %v957
      %v3068 = vpop.f32.mrb[0].mxu0
      %v3069 = vadd.f32 0.0, %v3068
      %v3070 = vpop.f32.mrb[0].mxu0
      %v3071 = vpop.f32.mrb[0].mxu0
      %v3072 = vadd.f32 0.0, %v3071
      %v3073 = vpop.f32.mrb[0].mxu0
      %3074 = vmatprep.mubr.bf16.mxu0 0
      %3075 = vmatmul.mubr.bf16.gmra.mrb[0].mxu0 %v959
      %v3076 = vpop.f32.mrb[0].mxu0
      %v3077 = vadd.f32 0.0, %v3076
      %v3078 = vpop.f32.mrb[0].mxu0
      %v3079 = vpop.f32.mrb[0].mxu0
      %v3080 = vadd.f32 0.0, %v3079
      %v3081 = vpop.f32.mrb[0].mxu0
      %3082 = vmatprep.mubr.bf16.mxu0 0
      %3083 = vmatmul.mubr.bf16.gmra.mrb[0].mxu0 %v961
      %v3084 = vpop.f32.mrb[0].mxu0
      %v3085 = vadd.f32 0.0, %v3084
      %v3086 = vpop.f32.mrb[0].mxu0
      %v3087 = vpop.f32.mrb[0].mxu0
      %v3088 = vadd.f32 0.0, %v3087
      %v3089 = vpop.f32.mrb[0].mxu0
      %3090 = vmatprep.mubr.bf16.mxu0 0
      %3091 = vmatmul.mubr.bf16.gmra.mrb[0].mxu0 %v963
      %v3092 = vpop.f32.mrb[0].mxu0
      %v3093 = vadd.f32 0.0, %v3092
      %v3094 = vpop.f32.mrb[0].mxu0
      %v3095 = vpop.f32.mrb[0].mxu0
      %v3096 = vadd.f32 0.0, %v3095
      %v3097 = vpop.f32.mrb[0].mxu0
      %3098 = vmatprep.mubr.bf16.mxu0 0
      %3099 = vmatmul.mubr.bf16.gmra.mrb[0].mxu0 %v965
      %v3100 = vpop.f32.mrb[0].mxu0
      %v3101 = vadd.f32 0.0, %v3100
      %v3102 = vpop.f32.mrb[0].mxu0
      %v3103 = vpop.f32.mrb[0].mxu0
      %v3104 = vadd.f32 0.0, %v3103
      %v3105 = vpop.f32.mrb[0].mxu0
      %3106 = vmatprep.mubr.bf16.mxu0 0
      %3107 = vmatmul.mubr.bf16.gmra.mrb[0].mxu0 %v967
      %v3108 = vpop.f32.mrb[0].mxu0
      %v3109 = vadd.f32 0.0, %v3108
      %v3110 = vpop.f32.mrb[0].mxu0
      %v3111 = vpop.f32.mrb[0].mxu0
      %v3112 = vadd.f32 0.0, %v3111
      %v3113 = vpop.f32.mrb[0].mxu0
      %3114 = vmatprep.mubr.bf16.mxu0 0
      %3115 = vmatmul.mubr.bf16.gmra.mrb[0].mxu0 %v969
      %v3116 = vpop.f32.mrb[0].mxu0
      %v3117 = vadd.f32 0.0, %v3116
      %v3118 = vpop.f32.mrb[0].mxu0
      %v3119 = vpop.f32.mrb[0].mxu0
      %v3120 = vadd.f32 0.0, %v3119
      %v3121 = vpop.f32.mrb[0].mxu0
      %3122 = vmatprep.mubr.bf16.mxu0 0
      %3123 = vmatmul.mubr.bf16.gmra.mrb[0].mxu0 %v2911
      %v3124 = vpop.f32.mrb[0].mxu0
      %v3125 = vadd.f32 0.0, %v3124
      %v3126 = vpop.f32.mrb[0].mxu0
      %v3127 = vpop.f32.mrb[0].mxu0
      %v3128 = vadd.f32 0.0, %v3127
      %v3129 = vpop.f32.mrb[0].mxu0
      %3130 = vmatprep.mubr.bf16.mxu0 0
      %3131 = vmatmul.mubr.bf16.gmra.mrb[0].mxu0 %v2914
      %v3132 = vpop.f32.mrb[0].mxu0
      %v3133 = vadd.f32 0.0, %v3132
      %v3134 = vpop.f32.mrb[0].mxu0
      %v3135 = vpop.f32.mrb[0].mxu0
      %v3136 = vadd.f32 0.0, %v3135
      %v3137 = vpop.f32.mrb[0].mxu0
      %3138 = vmatprep.mubr.bf16.mxu0 0
      %3139 = vmatmul.mubr.bf16.gmra.mrb[0].mxu0 %v2917
      %v3140 = vpop.f32.mrb[0].mxu0
      %v3141 = vadd.f32 0.0, %v3140
      %v3142 = vpop.f32.mrb[0].mxu0
      %v3143 = vpop.f32.mrb[0].mxu0
      %v3144 = vadd.f32 0.0, %v3143
      %v3145 = vpop.f32.mrb[0].mxu0
      %3146 = vdwg.mxu0
      %v3147 = vadd.f32 %v2853, %v2957
      %v3148 = vadd.f32 %v2854, %v2960
      %v3149 = vadd.f32 %v2855, %v2965
      %v3150 = vadd.f32 %v2856, %v2968
      %v3151 = vadd.f32 %v2857, %v2973
      %v3152 = vadd.f32 %v2858, %v2976
      %v3153 = vadd.f32 %v2859, %v2981
      %v3154 = vadd.f32 %v2860, %v2984
      %v3155 = vadd.f32 %v2861, %v2989
      %v3156 = vadd.f32 %v2862, %v2992
      %v3157 = vadd.f32 %v2863, %v2997
      %v3158 = vadd.f32 %v2864, %v3000
      %v3159 = vadd.f32 %v2865, %v3005
      %v3160 = vadd.f32 %v2866, %v3008
      %v3161 = vadd.f32 %v2867, %v3013
      %v3162 = vadd.f32 %v2868, %v3016
      %v3163 = vadd.f32 %v2869, %v3021
      %v3164 = vadd.f32 %v2870, %v3024
      %v3165 = vadd.f32 %v2871, %v3029
      %v3166 = vadd.f32 %v2872, %v3032
      %v3167 = vadd.f32 %v2873, %v3037
      %v3168 = vadd.f32 %v2874, %v3040
      %v3169 = vadd.f32 %v2875, %v3045
      %v3170 = vadd.f32 %v2876, %v3048
      %v3171 = vadd.f32 %v2877, %v3053
      %v3172 = vadd.f32 %v2878, %v3056
      %v3173 = vadd.f32 %v2879, %v3061
      %v3174 = vadd.f32 %v2880, %v3064
      %v3175 = vadd.f32 %v2881, %v3069
      %v3176 = vadd.f32 %v2882, %v3072
      %v3177 = vadd.f32 %v2883, %v3077
      %v3178 = vadd.f32 %v2884, %v3080
      %v3179 = vadd.f32 %v2885, %v3085
      %v3180 = vadd.f32 %v2886, %v3088
      %v3181 = vadd.f32 %v2887, %v3093
      %v3182 = vadd.f32 %v2888, %v3096
      %v3183 = vadd.f32 %v2889, %v3101
      %v3184 = vadd.f32 %v2890, %v3104
      %v3185 = vadd.f32 %v2891, %v3109
      %v3186 = vadd.f32 %v2892, %v3112
      %v3187 = vadd.f32 %v2893, %v3117
      %v3188 = vadd.f32 %v2894, %v3120
      %v3189 = vadd.f32 %v2895, %v3125
      %v3190 = vadd.f32 %v2896, %v3128
      %v3191 = vadd.f32 %v2897, %v3133
      %v3192 = vadd.f32 %v2898, %v3136
      %v3193 = vadd.f32 %v2899, %v3141
      %v3194 = vadd.f32 %v2900, %v3144
      %s3195 = scalar_lea.vmem %s232, 28
      %v3196 = vld [vmem:[%s3195] sm:$0xf]
      %v3198 = vunpack.c.l.b16 %v297
      %v3199 = vpack.c.b16 %v3198, %v3198
      %v3200 = vshll.u32 %v2907, 16
      %v3202 = vrot.slane %v3200, 1
      %v3203 = vsel %vm424, %v615, %v3202
      %v3204 = vshrl.u32 %v2907, 16
      %v3206 = vor.u32 %v3204, %v3202
      %v3207 = vshll.u32 %v2908, 16
      %v3209 = vrot.slane %v3207, 1
      %v3210 = vsel %vm424, %v3206, %v3209
      %v3211 = vshrl.u32 %v2908, 16
      %v3213 = vor.u32 %v3211, %v3209
      %v3214 = vshll.u32 %v2909, 16
      %v3216 = vrot.slane %v3214, 1
      %v3217 = vsel %vm424, %v3213, %v3216
      %v3218 = vshrl.u32 %v2909, 16
      %v3220 = vor.u32 %v3218, %v3216
      %v3222 = vshll.u32 %v3199, 16
      %v3224 = vrot.slane %v3222, 1
      %v3225 = vsel %vm424, %v3220, %v3224
      %v3227 = vsel %vm621, %v3203, 0
      %v3230 = vsel %vm621, %v3210, 0
      %v3233 = vsel %vm621, %v3217, 0
      %v3236 = vsel %vm621, %v3225, 0
      %v3239 = vsel %vm694, %v3196, 0
      %3241 = vmatprep.subr.bf16.mxu0 0
      %3242 = vmatpush1.bf16.msra.mxu0 %v3239
      %3243 = vmatprep.subr.bf16.mxu0 0
      %3244 = vmatpush1.bf16.msra.mxu0 0
      %3245 = vmatprep.subr.bf16.mxu0 0
      %3246 = vmatpush1.bf16.msra.mxu0 0
      %3247 = vmatprep.subr.bf16.mxu0 0
      %3248 = vmatpush1.bf16.msra.mxu0 0
      %3249 = vmatprep.subr.bf16.mxu0 0
      %3250 = vmatpush1.bf16.msra.mxu0 0
      %3251 = vmatprep.subr.bf16.mxu0 0
      %3252 = vmatpush1.bf16.msra.mxu0 0
      %3253 = vmatprep.subr.bf16.mxu0 0
      %3254 = vmatpush1.bf16.msra.mxu0 0
      %3255 = vmatprep.subr.bf16.mxu0 0
      %3256 = vmatpush1.bf16.msra.mxu0 0
      %3257 = vmatprep.subr.bf16.mxu0 0
      %3258 = vmatpush1.bf16.msra.mxu0 0
      %3259 = vmatprep.subr.bf16.mxu0 0
      %3260 = vmatpush1.bf16.msra.mxu0 0
      %3261 = vmatprep.subr.bf16.mxu0 0
      %3262 = vmatpush1.bf16.msra.mxu0 0
      %3263 = vmatprep.subr.bf16.mxu0 0
      %3264 = vmatpush1.bf16.msra.mxu0 0
      %3265 = vmatprep.subr.bf16.mxu0 0
      %3266 = vmatpush1.bf16.msra.mxu0 0
      %3267 = vmatprep.subr.bf16.mxu0 0
      %3268 = vmatpush1.bf16.msra.mxu0 0
      %3269 = vmatprep.subr.bf16.mxu0 0
      %3270 = vmatpush1.bf16.msra.mxu0 0
      %3271 = vmatprep.subr.bf16.mxu0 0
      %3272 = vmatpush1.bf16.msra.mxu0 0
      %3273 = vmatprep.mubr.bf16.mxu0 0
      %3274 = vmatmul.mubr.bf16.gmra.mrb[0].mxu0 %v632
      %v3275 = vpop.f32.mrb[0].mxu0
      %v3276 = vadd.f32 0.0, %v3275
      %v3277 = vpop.f32.mrb[0].mxu0
      %v3278 = vpop.f32.mrb[0].mxu0
      %v3279 = vadd.f32 0.0, %v3278
      %v3280 = vpop.f32.mrb[0].mxu0
      %3281 = vmatprep.mubr.bf16.mxu0 0
      %3282 = vmatmul.mubr.bf16.gmra.mrb[0].mxu0 %v635
      %v3283 = vpop.f32.mrb[0].mxu0
      %v3284 = vadd.f32 0.0, %v3283
      %v3285 = vpop.f32.mrb[0].mxu0
      %v3286 = vpop.f32.mrb[0].mxu0
      %v3287 = vadd.f32 0.0, %v3286
      %v3288 = vpop.f32.mrb[0].mxu0
      %3289 = vmatprep.mubr.bf16.mxu0 0
      %3290 = vmatmul.mubr.bf16.gmra.mrb[0].mxu0 %v638
      %v3291 = vpop.f32.mrb[0].mxu0
      %v3292 = vadd.f32 0.0, %v3291
      %v3293 = vpop.f32.mrb[0].mxu0
      %v3294 = vpop.f32.mrb[0].mxu0
      %v3295 = vadd.f32 0.0, %v3294
      %v3296 = vpop.f32.mrb[0].mxu0
      %3297 = vmatprep.mubr.bf16.mxu0 0
      %3298 = vmatmul.mubr.bf16.gmra.mrb[0].mxu0 %v641
      %v3299 = vpop.f32.mrb[0].mxu0
      %v3300 = vadd.f32 0.0, %v3299
      %v3301 = vpop.f32.mrb[0].mxu0
      %v3302 = vpop.f32.mrb[0].mxu0
      %v3303 = vadd.f32 0.0, %v3302
      %v3304 = vpop.f32.mrb[0].mxu0
      %3305 = vmatprep.mubr.bf16.mxu0 0
      %3306 = vmatmul.mubr.bf16.gmra.mrb[0].mxu0 %v644
      %v3307 = vpop.f32.mrb[0].mxu0
      %v3308 = vadd.f32 0.0, %v3307
      %v3309 = vpop.f32.mrb[0].mxu0
      %v3310 = vpop.f32.mrb[0].mxu0
      %v3311 = vadd.f32 0.0, %v3310
      %v3312 = vpop.f32.mrb[0].mxu0
      %3313 = vmatprep.mubr.bf16.mxu0 0
      %3314 = vmatmul.mubr.bf16.gmra.mrb[0].mxu0 %v647
      %v3315 = vpop.f32.mrb[0].mxu0
      %v3316 = vadd.f32 0.0, %v3315
      %v3317 = vpop.f32.mrb[0].mxu0
      %v3318 = vpop.f32.mrb[0].mxu0
      %v3319 = vadd.f32 0.0, %v3318
      %v3320 = vpop.f32.mrb[0].mxu0
      %3321 = vmatprep.mubr.bf16.mxu0 0
      %3322 = vmatmul.mubr.bf16.gmra.mrb[0].mxu0 %v650
      %v3323 = vpop.f32.mrb[0].mxu0
      %v3324 = vadd.f32 0.0, %v3323
      %v3325 = vpop.f32.mrb[0].mxu0
      %v3326 = vpop.f32.mrb[0].mxu0
      %v3327 = vadd.f32 0.0, %v3326
      %v3328 = vpop.f32.mrb[0].mxu0
      %3329 = vmatprep.mubr.bf16.mxu0 0
      %3330 = vmatmul.mubr.bf16.gmra.mrb[0].mxu0 %v653
      %v3331 = vpop.f32.mrb[0].mxu0
      %v3332 = vadd.f32 0.0, %v3331
      %v3333 = vpop.f32.mrb[0].mxu0
      %v3334 = vpop.f32.mrb[0].mxu0
      %v3335 = vadd.f32 0.0, %v3334
      %v3336 = vpop.f32.mrb[0].mxu0
      %3337 = vmatprep.mubr.bf16.mxu0 0
      %3338 = vmatmul.mubr.bf16.gmra.mrb[0].mxu0 %v656
      %v3339 = vpop.f32.mrb[0].mxu0
      %v3340 = vadd.f32 0.0, %v3339
      %v3341 = vpop.f32.mrb[0].mxu0
      %v3342 = vpop.f32.mrb[0].mxu0
      %v3343 = vadd.f32 0.0, %v3342
      %v3344 = vpop.f32.mrb[0].mxu0
      %3345 = vmatprep.mubr.bf16.mxu0 0
      %3346 = vmatmul.mubr.bf16.gmra.mrb[0].mxu0 %v659
      %v3347 = vpop.f32.mrb[0].mxu0
      %v3348 = vadd.f32 0.0, %v3347
      %v3349 = vpop.f32.mrb[0].mxu0
      %v3350 = vpop.f32.mrb[0].mxu0
      %v3351 = vadd.f32 0.0, %v3350
      %v3352 = vpop.f32.mrb[0].mxu0
      %3353 = vmatprep.mubr.bf16.mxu0 0
      %3354 = vmatmul.mubr.bf16.gmra.mrb[0].mxu0 %v662
      %v3355 = vpop.f32.mrb[0].mxu0
      %v3356 = vadd.f32 0.0, %v3355
      %v3357 = vpop.f32.mrb[0].mxu0
      %v3358 = vpop.f32.mrb[0].mxu0
      %v3359 = vadd.f32 0.0, %v3358
      %v3360 = vpop.f32.mrb[0].mxu0
      %3361 = vmatprep.mubr.bf16.mxu0 0
      %3362 = vmatmul.mubr.bf16.gmra.mrb[0].mxu0 %v665
      %v3363 = vpop.f32.mrb[0].mxu0
      %v3364 = vadd.f32 0.0, %v3363
      %v3365 = vpop.f32.mrb[0].mxu0
      %v3366 = vpop.f32.mrb[0].mxu0
      %v3367 = vadd.f32 0.0, %v3366
      %v3368 = vpop.f32.mrb[0].mxu0
      %3369 = vmatprep.mubr.bf16.mxu0 0
      %3370 = vmatmul.mubr.bf16.gmra.mrb[0].mxu0 %v668
      %v3371 = vpop.f32.mrb[0].mxu0
      %v3372 = vadd.f32 0.0, %v3371
      %v3373 = vpop.f32.mrb[0].mxu0
      %v3374 = vpop.f32.mrb[0].mxu0
      %v3375 = vadd.f32 0.0, %v3374
      %v3376 = vpop.f32.mrb[0].mxu0
      %3377 = vmatprep.mubr.bf16.mxu0 0
      %3378 = vmatmul.mubr.bf16.gmra.mrb[0].mxu0 %v671
      %v3379 = vpop.f32.mrb[0].mxu0
      %v3380 = vadd.f32 0.0, %v3379
      %v3381 = vpop.f32.mrb[0].mxu0
      %v3382 = vpop.f32.mrb[0].mxu0
      %v3383 = vadd.f32 0.0, %v3382
      %v3384 = vpop.f32.mrb[0].mxu0
      %3385 = vmatprep.mubr.bf16.mxu0 0
      %3386 = vmatmul.mubr.bf16.gmra.mrb[0].mxu0 %v674
      %v3387 = vpop.f32.mrb[0].mxu0
      %v3388 = vadd.f32 0.0, %v3387
      %v3389 = vpop.f32.mrb[0].mxu0
      %v3390 = vpop.f32.mrb[0].mxu0
      %v3391 = vadd.f32 0.0, %v3390
      %v3392 = vpop.f32.mrb[0].mxu0
      %3393 = vmatprep.mubr.bf16.mxu0 0
      %3394 = vmatmul.mubr.bf16.gmra.mrb[0].mxu0 %v677
      %v3395 = vpop.f32.mrb[0].mxu0
      %v3396 = vadd.f32 0.0, %v3395
      %v3397 = vpop.f32.mrb[0].mxu0
      %v3398 = vpop.f32.mrb[0].mxu0
      %v3399 = vadd.f32 0.0, %v3398
      %v3400 = vpop.f32.mrb[0].mxu0
      %3401 = vmatprep.mubr.bf16.mxu0 0
      %3402 = vmatmul.mubr.bf16.gmra.mrb[0].mxu0 %v680
      %v3403 = vpop.f32.mrb[0].mxu0
      %v3404 = vadd.f32 0.0, %v3403
      %v3405 = vpop.f32.mrb[0].mxu0
      %v3406 = vpop.f32.mrb[0].mxu0
      %v3407 = vadd.f32 0.0, %v3406
      %v3408 = vpop.f32.mrb[0].mxu0
      %3409 = vmatprep.mubr.bf16.mxu0 0
      %3410 = vmatmul.mubr.bf16.gmra.mrb[0].mxu0 %v683
      %v3411 = vpop.f32.mrb[0].mxu0
      %v3412 = vadd.f32 0.0, %v3411
      %v3413 = vpop.f32.mrb[0].mxu0
      %v3414 = vpop.f32.mrb[0].mxu0
      %v3415 = vadd.f32 0.0, %v3414
      %v3416 = vpop.f32.mrb[0].mxu0
      %3417 = vmatprep.mubr.bf16.mxu0 0
      %3418 = vmatmul.mubr.bf16.gmra.mrb[0].mxu0 %v686
      %v3419 = vpop.f32.mrb[0].mxu0
      %v3420 = vadd.f32 0.0, %v3419
      %v3421 = vpop.f32.mrb[0].mxu0
      %v3422 = vpop.f32.mrb[0].mxu0
      %v3423 = vadd.f32 0.0, %v3422
      %v3424 = vpop.f32.mrb[0].mxu0
      %3425 = vmatprep.mubr.bf16.mxu0 0
      %3426 = vmatmul.mubr.bf16.gmra.mrb[0].mxu0 %v689
      %v3427 = vpop.f32.mrb[0].mxu0
      %v3428 = vadd.f32 0.0, %v3427
      %v3429 = vpop.f32.mrb[0].mxu0
      %v3430 = vpop.f32.mrb[0].mxu0
      %v3431 = vadd.f32 0.0, %v3430
      %v3432 = vpop.f32.mrb[0].mxu0
      %3433 = vmatprep.mubr.bf16.mxu0 0
      %3434 = vmatmul.mubr.bf16.gmra.mrb[0].mxu0 %v3227
      %v3435 = vpop.f32.mrb[0].mxu0
      %v3436 = vadd.f32 0.0, %v3435
      %v3437 = vpop.f32.mrb[0].mxu0
      %v3438 = vpop.f32.mrb[0].mxu0
      %v3439 = vadd.f32 0.0, %v3438
      %v3440 = vpop.f32.mrb[0].mxu0
      %3441 = vmatprep.mubr.bf16.mxu0 0
      %3442 = vmatmul.mubr.bf16.gmra.mrb[0].mxu0 %v3230
      %v3443 = vpop.f32.mrb[0].mxu0
      %v3444 = vadd.f32 0.0, %v3443
      %v3445 = vpop.f32.mrb[0].mxu0
      %v3446 = vpop.f32.mrb[0].mxu0
      %v3447 = vadd.f32 0.0, %v3446
      %v3448 = vpop.f32.mrb[0].mxu0
      %3449 = vmatprep.mubr.bf16.mxu0 0
      %3450 = vmatmul.mubr.bf16.gmra.mrb[0].mxu0 %v3233
      %v3451 = vpop.f32.mrb[0].mxu0
      %v3452 = vadd.f32 0.0, %v3451
      %v3453 = vpop.f32.mrb[0].mxu0
      %v3454 = vpop.f32.mrb[0].mxu0
      %v3455 = vadd.f32 0.0, %v3454
      %v3456 = vpop.f32.mrb[0].mxu0
      %3457 = vmatprep.mubr.bf16.mxu0 0
      %3458 = vmatmul.mubr.bf16.gmra.mrb[0].mxu0 %v3236
      %v3459 = vpop.f32.mrb[0].mxu0
      %v3460 = vadd.f32 0.0, %v3459
      %v3461 = vpop.f32.mrb[0].mxu0
      %v3462 = vpop.f32.mrb[0].mxu0
      %v3463 = vadd.f32 0.0, %v3462
      %v3464 = vpop.f32.mrb[0].mxu0
      %3465 = vdwg.mxu0
      %v3466 = vadd.f32 %v3147, %v3276
      %v3467 = vadd.f32 %v3148, %v3279
      %v3468 = vadd.f32 %v3149, %v3284
      %v3469 = vadd.f32 %v3150, %v3287
      %v3470 = vadd.f32 %v3151, %v3292
      %v3471 = vadd.f32 %v3152, %v3295
      %v3472 = vadd.f32 %v3153, %v3300
      %v3473 = vadd.f32 %v3154, %v3303
      %v3474 = vadd.f32 %v3155, %v3308
      %v3475 = vadd.f32 %v3156, %v3311
      %v3476 = vadd.f32 %v3157, %v3316
      %v3477 = vadd.f32 %v3158, %v3319
      %v3478 = vadd.f32 %v3159, %v3324
      %v3479 = vadd.f32 %v3160, %v3327
      %v3480 = vadd.f32 %v3161, %v3332
      %v3481 = vadd.f32 %v3162, %v3335
      %v3482 = vadd.f32 %v3163, %v3340
      %v3483 = vadd.f32 %v3164, %v3343
      %v3484 = vadd.f32 %v3165, %v3348
      %v3485 = vadd.f32 %v3166, %v3351
      %v3486 = vadd.f32 %v3167, %v3356
      %v3487 = vadd.f32 %v3168, %v3359
      %v3488 = vadd.f32 %v3169, %v3364
      %v3489 = vadd.f32 %v3170, %v3367
      %v3490 = vadd.f32 %v3171, %v3372
      %v3491 = vadd.f32 %v3172, %v3375
      %v3492 = vadd.f32 %v3173, %v3380
      %v3493 = vadd.f32 %v3174, %v3383
      %v3494 = vadd.f32 %v3175, %v3388
      %v3495 = vadd.f32 %v3176, %v3391
      %v3496 = vadd.f32 %v3177, %v3396
      %v3497 = vadd.f32 %v3178, %v3399
      %v3498 = vadd.f32 %v3179, %v3404
      %v3499 = vadd.f32 %v3180, %v3407
      %v3500 = vadd.f32 %v3181, %v3412
      %v3501 = vadd.f32 %v3182, %v3415
      %v3502 = vadd.f32 %v3183, %v3420
      %v3503 = vadd.f32 %v3184, %v3423
      %v3504 = vadd.f32 %v3185, %v3428
      %v3505 = vadd.f32 %v3186, %v3431
      %v3506 = vadd.f32 %v3187, %v3436
      %v3507 = vadd.f32 %v3188, %v3439
      %v3508 = vadd.f32 %v3189, %v3444
      %v3509 = vadd.f32 %v3190, %v3447
      %v3510 = vadd.f32 %v3191, %v3452
      %v3511 = vadd.f32 %v3192, %v3455
      %v3512 = vadd.f32 %v3193, %v3460
      %v3513 = vadd.f32 %v3194, %v3463
      %s3514 = scalar_lea.vmem %s232, 32
      %v3515 = vld [vmem:[%s3514] sm:$0xf]
      %v3516 = vrot.slane %v2907, 1
      %v3517 = vsel %vm1201, %v1247, %v3516
      %v3518 = vrot.slane %v2908, 1
      %v3519 = vsel %vm1201, %v3516, %v3518
      %v3520 = vrot.slane %v2909, 1
      %v3521 = vsel %vm1201, %v3518, %v3520
      %v3522 = vrot.slane %v3199, 1
      %v3523 = vsel %vm1201, %v3520, %v3522
      %v3525 = vsel %vm621, %v3517, 0
      %v3528 = vsel %vm621, %v3519, 0
      %v3531 = vsel %vm621, %v3521, 0
      %v3534 = vsel %vm621, %v3523, 0
      %v3537 = vsel %vm694, %v3515, 0
      %3539 = vmatprep.subr.bf16.mxu0 0
      %3540 = vmatpush1.bf16.msra.mxu0 %v3537
      %3541 = vmatprep.subr.bf16.mxu0 0
      %3542 = vmatpush1.bf16.msra.mxu0 0
      %3543 = vmatprep.subr.bf16.mxu0 0
      %3544 = vmatpush1.bf16.msra.mxu0 0
      %3545 = vmatprep.subr.bf16.mxu0 0
      %3546 = vmatpush1.bf16.msra.mxu0 0
      %3547 = vmatprep.subr.bf16.mxu0 0
      %3548 = vmatpush1.bf16.msra.mxu0 0
      %3549 = vmatprep.subr.bf16.mxu0 0
      %3550 = vmatpush1.bf16.msra.mxu0 0
      %3551 = vmatprep.subr.bf16.mxu0 0
      %3552 = vmatpush1.bf16.msra.mxu0 0
      %3553 = vmatprep.subr.bf16.mxu0 0
      %3554 = vmatpush1.bf16.msra.mxu0 0
      %3555 = vmatprep.subr.bf16.mxu0 0
      %3556 = vmatpush1.bf16.msra.mxu0 0
      %3557 = vmatprep.subr.bf16.mxu0 0
      %3558 = vmatpush1.bf16.msra.mxu0 0
      %3559 = vmatprep.subr.bf16.mxu0 0
      %3560 = vmatpush1.bf16.msra.mxu0 0
      %3561 = vmatprep.subr.bf16.mxu0 0
      %3562 = vmatpush1.bf16.msra.mxu0 0
      %3563 = vmatprep.subr.bf16.mxu0 0
      %3564 = vmatpush1.bf16.msra.mxu0 0
      %3565 = vmatprep.subr.bf16.mxu0 0
      %3566 = vmatpush1.bf16.msra.mxu0 0
      %3567 = vmatprep.subr.bf16.mxu0 0
      %3568 = vmatpush1.bf16.msra.mxu0 0
      %3569 = vmatprep.subr.bf16.mxu0 0
      %3570 = vmatpush1.bf16.msra.mxu0 0
      %3571 = vmatprep.mubr.bf16.mxu0 0
      %3572 = vmatmul.mubr.bf16.gmra.mrb[0].mxu0 %v1261
      %v3573 = vpop.f32.mrb[0].mxu0
      %v3574 = vadd.f32 0.0, %v3573
      %v3575 = vpop.f32.mrb[0].mxu0
      %v3576 = vpop.f32.mrb[0].mxu0
      %v3577 = vadd.f32 0.0, %v3576
      %v3578 = vpop.f32.mrb[0].mxu0
      %3579 = vmatprep.mubr.bf16.mxu0 0
      %3580 = vmatmul.mubr.bf16.gmra.mrb[0].mxu0 %v1264
      %v3581 = vpop.f32.mrb[0].mxu0
      %v3582 = vadd.f32 0.0, %v3581
      %v3583 = vpop.f32.mrb[0].mxu0
      %v3584 = vpop.f32.mrb[0].mxu0
      %v3585 = vadd.f32 0.0, %v3584
      %v3586 = vpop.f32.mrb[0].mxu0
      %3587 = vmatprep.mubr.bf16.mxu0 0
      %3588 = vmatmul.mubr.bf16.gmra.mrb[0].mxu0 %v1267
      %v3589 = vpop.f32.mrb[0].mxu0
      %v3590 = vadd.f32 0.0, %v3589
      %v3591 = vpop.f32.mrb[0].mxu0
      %v3592 = vpop.f32.mrb[0].mxu0
      %v3593 = vadd.f32 0.0, %v3592
      %v3594 = vpop.f32.mrb[0].mxu0
      %3595 = vmatprep.mubr.bf16.mxu0 0
      %3596 = vmatmul.mubr.bf16.gmra.mrb[0].mxu0 %v1270
      %v3597 = vpop.f32.mrb[0].mxu0
      %v3598 = vadd.f32 0.0, %v3597
      %v3599 = vpop.f32.mrb[0].mxu0
      %v3600 = vpop.f32.mrb[0].mxu0
      %v3601 = vadd.f32 0.0, %v3600
      %v3602 = vpop.f32.mrb[0].mxu0
      %3603 = vmatprep.mubr.bf16.mxu0 0
      %3604 = vmatmul.mubr.bf16.gmra.mrb[0].mxu0 %v1273
      %v3605 = vpop.f32.mrb[0].mxu0
      %v3606 = vadd.f32 0.0, %v3605
      %v3607 = vpop.f32.mrb[0].mxu0
      %v3608 = vpop.f32.mrb[0].mxu0
      %v3609 = vadd.f32 0.0, %v3608
      %v3610 = vpop.f32.mrb[0].mxu0
      %3611 = vmatprep.mubr.bf16.mxu0 0
      %3612 = vmatmul.mubr.bf16.gmra.mrb[0].mxu0 %v1276
      %v3613 = vpop.f32.mrb[0].mxu0
      %v3614 = vadd.f32 0.0, %v3613
      %v3615 = vpop.f32.mrb[0].mxu0
      %v3616 = vpop.f32.mrb[0].mxu0
      %v3617 = vadd.f32 0.0, %v3616
      %v3618 = vpop.f32.mrb[0].mxu0
      %3619 = vmatprep.mubr.bf16.mxu0 0
      %3620 = vmatmul.mubr.bf16.gmra.mrb[0].mxu0 %v1279
      %v3621 = vpop.f32.mrb[0].mxu0
      %v3622 = vadd.f32 0.0, %v3621
      %v3623 = vpop.f32.mrb[0].mxu0
      %v3624 = vpop.f32.mrb[0].mxu0
      %v3625 = vadd.f32 0.0, %v3624
      %v3626 = vpop.f32.mrb[0].mxu0
      %3627 = vmatprep.mubr.bf16.mxu0 0
      %3628 = vmatmul.mubr.bf16.gmra.mrb[0].mxu0 %v1282
      %v3629 = vpop.f32.mrb[0].mxu0
      %v3630 = vadd.f32 0.0, %v3629
      %v3631 = vpop.f32.mrb[0].mxu0
      %v3632 = vpop.f32.mrb[0].mxu0
      %v3633 = vadd.f32 0.0, %v3632
      %v3634 = vpop.f32.mrb[0].mxu0
      %3635 = vmatprep.mubr.bf16.mxu0 0
      %3636 = vmatmul.mubr.bf16.gmra.mrb[0].mxu0 %v1285
      %v3637 = vpop.f32.mrb[0].mxu0
      %v3638 = vadd.f32 0.0, %v3637
      %v3639 = vpop.f32.mrb[0].mxu0
      %v3640 = vpop.f32.mrb[0].mxu0
      %v3641 = vadd.f32 0.0, %v3640
      %v3642 = vpop.f32.mrb[0].mxu0
      %3643 = vmatprep.mubr.bf16.mxu0 0
      %3644 = vmatmul.mubr.bf16.gmra.mrb[0].mxu0 %v1288
      %v3645 = vpop.f32.mrb[0].mxu0
      %v3646 = vadd.f32 0.0, %v3645
      %v3647 = vpop.f32.mrb[0].mxu0
      %v3648 = vpop.f32.mrb[0].mxu0
      %v3649 = vadd.f32 0.0, %v3648
      %v3650 = vpop.f32.mrb[0].mxu0
      %3651 = vmatprep.mubr.bf16.mxu0 0
      %3652 = vmatmul.mubr.bf16.gmra.mrb[0].mxu0 %v1291
      %v3653 = vpop.f32.mrb[0].mxu0
      %v3654 = vadd.f32 0.0, %v3653
      %v3655 = vpop.f32.mrb[0].mxu0
      %v3656 = vpop.f32.mrb[0].mxu0
      %v3657 = vadd.f32 0.0, %v3656
      %v3658 = vpop.f32.mrb[0].mxu0
      %3659 = vmatprep.mubr.bf16.mxu0 0
      %3660 = vmatmul.mubr.bf16.gmra.mrb[0].mxu0 %v1294
      %v3661 = vpop.f32.mrb[0].mxu0
      %v3662 = vadd.f32 0.0, %v3661
      %v3663 = vpop.f32.mrb[0].mxu0
      %v3664 = vpop.f32.mrb[0].mxu0
      %v3665 = vadd.f32 0.0, %v3664
      %v3666 = vpop.f32.mrb[0].mxu0
      %3667 = vmatprep.mubr.bf16.mxu0 0
      %3668 = vmatmul.mubr.bf16.gmra.mrb[0].mxu0 %v1297
      %v3669 = vpop.f32.mrb[0].mxu0
      %v3670 = vadd.f32 0.0, %v3669
      %v3671 = vpop.f32.mrb[0].mxu0
      %v3672 = vpop.f32.mrb[0].mxu0
      %v3673 = vadd.f32 0.0, %v3672
      %v3674 = vpop.f32.mrb[0].mxu0
      %3675 = vmatprep.mubr.bf16.mxu0 0
      %3676 = vmatmul.mubr.bf16.gmra.mrb[0].mxu0 %v1300
      %v3677 = vpop.f32.mrb[0].mxu0
      %v3678 = vadd.f32 0.0, %v3677
      %v3679 = vpop.f32.mrb[0].mxu0
      %v3680 = vpop.f32.mrb[0].mxu0
      %v3681 = vadd.f32 0.0, %v3680
      %v3682 = vpop.f32.mrb[0].mxu0
      %3683 = vmatprep.mubr.bf16.mxu0 0
      %3684 = vmatmul.mubr.bf16.gmra.mrb[0].mxu0 %v1303
      %v3685 = vpop.f32.mrb[0].mxu0
      %v3686 = vadd.f32 0.0, %v3685
      %v3687 = vpop.f32.mrb[0].mxu0
      %v3688 = vpop.f32.mrb[0].mxu0
      %v3689 = vadd.f32 0.0, %v3688
      %v3690 = vpop.f32.mrb[0].mxu0
      %3691 = vmatprep.mubr.bf16.mxu0 0
      %3692 = vmatmul.mubr.bf16.gmra.mrb[0].mxu0 %v1306
      %v3693 = vpop.f32.mrb[0].mxu0
      %v3694 = vadd.f32 0.0, %v3693
      %v3695 = vpop.f32.mrb[0].mxu0
      %v3696 = vpop.f32.mrb[0].mxu0
      %v3697 = vadd.f32 0.0, %v3696
      %v3698 = vpop.f32.mrb[0].mxu0
      %3699 = vmatprep.mubr.bf16.mxu0 0
      %3700 = vmatmul.mubr.bf16.gmra.mrb[0].mxu0 %v1309
      %v3701 = vpop.f32.mrb[0].mxu0
      %v3702 = vadd.f32 0.0, %v3701
      %v3703 = vpop.f32.mrb[0].mxu0
      %v3704 = vpop.f32.mrb[0].mxu0
      %v3705 = vadd.f32 0.0, %v3704
      %v3706 = vpop.f32.mrb[0].mxu0
      %3707 = vmatprep.mubr.bf16.mxu0 0
      %3708 = vmatmul.mubr.bf16.gmra.mrb[0].mxu0 %v1312
      %v3709 = vpop.f32.mrb[0].mxu0
      %v3710 = vadd.f32 0.0, %v3709
      %v3711 = vpop.f32.mrb[0].mxu0
      %v3712 = vpop.f32.mrb[0].mxu0
      %v3713 = vadd.f32 0.0, %v3712
      %v3714 = vpop.f32.mrb[0].mxu0
      %3715 = vmatprep.mubr.bf16.mxu0 0
      %3716 = vmatmul.mubr.bf16.gmra.mrb[0].mxu0 %v1315
      %v3717 = vpop.f32.mrb[0].mxu0
      %v3718 = vadd.f32 0.0, %v3717
      %v3719 = vpop.f32.mrb[0].mxu0
      %v3720 = vpop.f32.mrb[0].mxu0
      %v3721 = vadd.f32 0.0, %v3720
      %v3722 = vpop.f32.mrb[0].mxu0
      %3723 = vmatprep.mubr.bf16.mxu0 0
      %3724 = vmatmul.mubr.bf16.gmra.mrb[0].mxu0 %v1318
      %v3725 = vpop.f32.mrb[0].mxu0
      %v3726 = vadd.f32 0.0, %v3725
      %v3727 = vpop.f32.mrb[0].mxu0
      %v3728 = vpop.f32.mrb[0].mxu0
      %v3729 = vadd.f32 0.0, %v3728
      %v3730 = vpop.f32.mrb[0].mxu0
      %3731 = vmatprep.mubr.bf16.mxu0 0
      %3732 = vmatmul.mubr.bf16.gmra.mrb[0].mxu0 %v3525
      %v3733 = vpop.f32.mrb[0].mxu0
      %v3734 = vadd.f32 0.0, %v3733
      %v3735 = vpop.f32.mrb[0].mxu0
      %v3736 = vpop.f32.mrb[0].mxu0
      %v3737 = vadd.f32 0.0, %v3736
      %v3738 = vpop.f32.mrb[0].mxu0
      %3739 = vmatprep.mubr.bf16.mxu0 0
      %3740 = vmatmul.mubr.bf16.gmra.mrb[0].mxu0 %v3528
      %v3741 = vpop.f32.mrb[0].mxu0
      %v3742 = vadd.f32 0.0, %v3741
      %v3743 = vpop.f32.mrb[0].mxu0
      %v3744 = vpop.f32.mrb[0].mxu0
      %v3745 = vadd.f32 0.0, %v3744
      %v3746 = vpop.f32.mrb[0].mxu0
      %3747 = vmatprep.mubr.bf16.mxu0 0
      %3748 = vmatmul.mubr.bf16.gmra.mrb[0].mxu0 %v3531
      %v3749 = vpop.f32.mrb[0].mxu0
      %v3750 = vadd.f32 0.0, %v3749
      %v3751 = vpop.f32.mrb[0].mxu0
      %v3752 = vpop.f32.mrb[0].mxu0
      %v3753 = vadd.f32 0.0, %v3752
      %v3754 = vpop.f32.mrb[0].mxu0
      %3755 = vmatprep.mubr.bf16.mxu0 0
      %3756 = vmatmul.mubr.bf16.gmra.mrb[0].mxu0 %v3534
      %v3757 = vpop.f32.mrb[0].mxu0
      %v3758 = vadd.f32 0.0, %v3757
      %v3759 = vpop.f32.mrb[0].mxu0
      %v3760 = vpop.f32.mrb[0].mxu0
      %v3761 = vadd.f32 0.0, %v3760
      %v3762 = vpop.f32.mrb[0].mxu0
      %3763 = vdwg.mxu0
      %v3764 = vadd.f32 %v3466, %v3574
      %v3765 = vadd.f32 %v3467, %v3577
      %v3766 = vadd.f32 %v3468, %v3582
      %v3767 = vadd.f32 %v3469, %v3585
      %v3768 = vadd.f32 %v3470, %v3590
      %v3769 = vadd.f32 %v3471, %v3593
      %v3770 = vadd.f32 %v3472, %v3598
      %v3771 = vadd.f32 %v3473, %v3601
      %v3772 = vadd.f32 %v3474, %v3606
      %v3773 = vadd.f32 %v3475, %v3609
      %v3774 = vadd.f32 %v3476, %v3614
      %v3775 = vadd.f32 %v3477, %v3617
      %v3776 = vadd.f32 %v3478, %v3622
      %v3777 = vadd.f32 %v3479, %v3625
      %v3778 = vadd.f32 %v3480, %v3630
      %v3779 = vadd.f32 %v3481, %v3633
      %v3780 = vadd.f32 %v3482, %v3638
      %v3781 = vadd.f32 %v3483, %v3641
      %v3782 = vadd.f32 %v3484, %v3646
      %v3783 = vadd.f32 %v3485, %v3649
      %v3784 = vadd.f32 %v3486, %v3654
      %v3785 = vadd.f32 %v3487, %v3657
      %v3786 = vadd.f32 %v3488, %v3662
      %v3787 = vadd.f32 %v3489, %v3665
      %v3788 = vadd.f32 %v3490, %v3670
      %v3789 = vadd.f32 %v3491, %v3673
      %v3790 = vadd.f32 %v3492, %v3678
      %v3791 = vadd.f32 %v3493, %v3681
      %v3792 = vadd.f32 %v3494, %v3686
      %v3793 = vadd.f32 %v3495, %v3689
      %v3794 = vadd.f32 %v3496, %v3694
      %v3795 = vadd.f32 %v3497, %v3697
      %v3796 = vadd.f32 %v3498, %v3702
      %v3797 = vadd.f32 %v3499, %v3705
      %v3798 = vadd.f32 %v3500, %v3710
      %v3799 = vadd.f32 %v3501, %v3713
      %v3800 = vadd.f32 %v3502, %v3718
      %v3801 = vadd.f32 %v3503, %v3721
      %v3802 = vadd.f32 %v3504, %v3726
      %v3803 = vadd.f32 %v3505, %v3729
      %v3804 = vadd.f32 %v3506, %v3734
      %v3805 = vadd.f32 %v3507, %v3737
      %v3806 = vadd.f32 %v3508, %v3742
      %v3807 = vadd.f32 %v3509, %v3745
      %v3808 = vadd.f32 %v3510, %v3750
      %v3809 = vadd.f32 %v3511, %v3753
      %v3810 = vadd.f32 %v3512, %v3758
      %v3811 = vadd.f32 %v3513, %v3761
      %v3812 = vld [vmem:[%s2] sm:$0x1]
      %v3814 = vlaneseq
      %v3815 = vshrl.u32 %v3814, 7
      %v3816 = vsub.s32 0, %v3815
      %v3817 = vrot.slane %v3812, %v3816
      %v3819 = vadd.f32 %v3764, %v3817
      %v3820 = vadd.f32 %v3765, %v3817
      %v3821 = vadd.f32 %v3766, %v3817
      %v3822 = vadd.f32 %v3767, %v3817
      %v3823 = vadd.f32 %v3768, %v3817
      %v3824 = vadd.f32 %v3769, %v3817
      %v3825 = vadd.f32 %v3770, %v3817
      %v3826 = vadd.f32 %v3771, %v3817
      %v3827 = vadd.f32 %v3772, %v3817
      %v3828 = vadd.f32 %v3773, %v3817
      %v3829 = vadd.f32 %v3774, %v3817
      %v3830 = vadd.f32 %v3775, %v3817
      %v3831 = vadd.f32 %v3776, %v3817
      %v3832 = vadd.f32 %v3777, %v3817
      %v3833 = vadd.f32 %v3778, %v3817
      %v3834 = vadd.f32 %v3779, %v3817
      %v3835 = vadd.f32 %v3780, %v3817
      %v3836 = vadd.f32 %v3781, %v3817
      %v3837 = vadd.f32 %v3782, %v3817
      %v3838 = vadd.f32 %v3783, %v3817
      %v3839 = vadd.f32 %v3784, %v3817
      %v3840 = vadd.f32 %v3785, %v3817
      %v3841 = vadd.f32 %v3786, %v3817
      %v3842 = vadd.f32 %v3787, %v3817
      %v3843 = vadd.f32 %v3788, %v3817
      %v3844 = vadd.f32 %v3789, %v3817
      %v3845 = vadd.f32 %v3790, %v3817
      %v3846 = vadd.f32 %v3791, %v3817
      %v3847 = vadd.f32 %v3792, %v3817
      %v3848 = vadd.f32 %v3793, %v3817
      %v3849 = vadd.f32 %v3794, %v3817
      %v3850 = vadd.f32 %v3795, %v3817
      %v3851 = vadd.f32 %v3796, %v3817
      %v3852 = vadd.f32 %v3797, %v3817
      %v3853 = vadd.f32 %v3798, %v3817
      %v3854 = vadd.f32 %v3799, %v3817
      %v3855 = vadd.f32 %v3800, %v3817
      %v3856 = vadd.f32 %v3801, %v3817
      %v3857 = vadd.f32 %v3802, %v3817
      %v3858 = vadd.f32 %v3803, %v3817
      %v3859 = vadd.f32 %v3804, %v3817
      %v3860 = vadd.f32 %v3805, %v3817
      %v3861 = vadd.f32 %v3806, %v3817
      %v3862 = vadd.f32 %v3807, %v3817
      %v3863 = vadd.f32 %v3808, %v3817
      %v3864 = vadd.f32 %v3809, %v3817
      %v3865 = vadd.f32 %v3810, %v3817
      %v3866 = vadd.f32 %v3811, %v3817
      %v3867 = vmax.f32 %v3819, 0.0
      %v3868 = vmax.f32 %v3820, 0.0
      %v3869 = vmax.f32 %v3821, 0.0
      %v3870 = vmax.f32 %v3822, 0.0
      %v3871 = vmax.f32 %v3823, 0.0
      %v3872 = vmax.f32 %v3824, 0.0
      %v3873 = vmax.f32 %v3825, 0.0
      %v3874 = vmax.f32 %v3826, 0.0
      %v3875 = vmax.f32 %v3827, 0.0
      %v3876 = vmax.f32 %v3828, 0.0
      %v3877 = vmax.f32 %v3829, 0.0
      %v3878 = vmax.f32 %v3830, 0.0
      %v3879 = vmax.f32 %v3831, 0.0
      %v3880 = vmax.f32 %v3832, 0.0
      %v3881 = vmax.f32 %v3833, 0.0
      %v3882 = vmax.f32 %v3834, 0.0
      %v3883 = vmax.f32 %v3835, 0.0
      %v3884 = vmax.f32 %v3836, 0.0
      %v3885 = vmax.f32 %v3837, 0.0
      %v3886 = vmax.f32 %v3838, 0.0
      %v3887 = vmax.f32 %v3839, 0.0
      %v3888 = vmax.f32 %v3840, 0.0
      %v3889 = vmax.f32 %v3841, 0.0
      %v3890 = vmax.f32 %v3842, 0.0
      %v3891 = vmax.f32 %v3843, 0.0
      %v3892 = vmax.f32 %v3844, 0.0
      %v3893 = vmax.f32 %v3845, 0.0
      %v3894 = vmax.f32 %v3846, 0.0
      %v3895 = vmax.f32 %v3847, 0.0
      %v3896 = vmax.f32 %v3848, 0.0
      %v3897 = vmax.f32 %v3849, 0.0
      %v3898 = vmax.f32 %v3850, 0.0
      %v3899 = vmax.f32 %v3851, 0.0
      %v3900 = vmax.f32 %v3852, 0.0
      %v3901 = vmax.f32 %v3853, 0.0
      %v3902 = vmax.f32 %v3854, 0.0
      %v3903 = vmax.f32 %v3855, 0.0
      %v3904 = vmax.f32 %v3856, 0.0
      %v3905 = vmax.f32 %v3857, 0.0
      %v3906 = vmax.f32 %v3858, 0.0
      %v3907 = vmax.f32 %v3859, 0.0
      %v3908 = vmax.f32 %v3860, 0.0
      %v3909 = vmax.f32 %v3861, 0.0
      %v3910 = vmax.f32 %v3862, 0.0
      %v3911 = vmax.f32 %v3863, 0.0
      %v3912 = vmax.f32 %v3864, 0.0
      %v3913 = vmax.f32 %v3865, 0.0
      %v3914 = vmax.f32 %v3866, 0.0
      %v3915 = vpack.c.bf16 %v3868, %v3867
      %v3916 = vpack.c.bf16 %v3870, %v3869
      %v3917 = vpack.c.bf16 %v3872, %v3871
      %v3918 = vpack.c.bf16 %v3874, %v3873
      %v3919 = vpack.c.bf16 %v3876, %v3875
      %v3920 = vpack.c.bf16 %v3878, %v3877
      %v3921 = vpack.c.bf16 %v3880, %v3879
      %v3922 = vpack.c.bf16 %v3882, %v3881
      %v3923 = vpack.c.bf16 %v3884, %v3883
      %v3924 = vpack.c.bf16 %v3886, %v3885
      %v3925 = vpack.c.bf16 %v3888, %v3887
      %v3926 = vpack.c.bf16 %v3890, %v3889
      %v3927 = vpack.c.bf16 %v3892, %v3891
      %v3928 = vpack.c.bf16 %v3894, %v3893
      %v3929 = vpack.c.bf16 %v3896, %v3895
      %v3930 = vpack.c.bf16 %v3898, %v3897
      %v3931 = vpack.c.bf16 %v3900, %v3899
      %v3932 = vpack.c.bf16 %v3902, %v3901
      %v3933 = vpack.c.bf16 %v3904, %v3903
      %v3934 = vpack.c.bf16 %v3906, %v3905
      %v3935 = vpack.c.bf16 %v3908, %v3907
      %v3936 = vpack.c.bf16 %v3910, %v3909
      %v3937 = vpack.c.bf16 %v3912, %v3911
      %v3938 = vpack.c.bf16 %v3914, %v3913
      %v3963 = vunpack.c.l.b16 %v3915
      %v3964 = vunpack.c.h.b16 %v3915
      %v3965 = vunpack.c.l.b16 %v3916
      %v3966 = vunpack.c.h.b16 %v3916
      %v3967 = vunpack.c.l.b16 %v3917
      %v3968 = vunpack.c.h.b16 %v3917
      %v3969 = vunpack.c.l.b16 %v3918
      %v3970 = vunpack.c.h.b16 %v3918
      %v3971 = vunpack.c.l.b16 %v3919
      %v3972 = vunpack.c.h.b16 %v3919
      %v3973 = vunpack.c.l.b16 %v3920
      %v3974 = vunpack.c.h.b16 %v3920
      %v3975 = vunpack.c.l.b16 %v3921
      %v3976 = vunpack.c.h.b16 %v3921
      %v3977 = vunpack.c.l.b16 %v3922
      %v3978 = vunpack.c.h.b16 %v3922
      %v3979 = vunpack.c.l.b16 %v3923
      %v3980 = vunpack.c.h.b16 %v3923
      %v3981 = vunpack.c.l.b16 %v3924
      %v3982 = vunpack.c.h.b16 %v3924
      %v3983 = vunpack.c.l.b16 %v3925
      %v3984 = vunpack.c.h.b16 %v3925
      %v3985 = vunpack.c.l.b16 %v3926
      %v3986 = vunpack.c.h.b16 %v3926
      %v3987 = vunpack.c.l.b16 %v3927
      %v3988 = vunpack.c.h.b16 %v3927
      %v3989 = vunpack.c.l.b16 %v3928
      %v3990 = vunpack.c.h.b16 %v3928
      %v3991 = vunpack.c.l.b16 %v3929
      %v3992 = vunpack.c.h.b16 %v3929
      %v3993 = vunpack.c.l.b16 %v3930
      %v3994 = vunpack.c.h.b16 %v3930
      %v3995 = vunpack.c.l.b16 %v3931
      %v3996 = vunpack.c.h.b16 %v3931
      %v3997 = vunpack.c.l.b16 %v3932
      %v3998 = vunpack.c.h.b16 %v3932
      %v3999 = vunpack.c.l.b16 %v3933
      %v4000 = vunpack.c.h.b16 %v3933
      %v4001 = vunpack.c.l.b16 %v3934
      %v4002 = vunpack.c.h.b16 %v3934
      %v4003 = vunpack.c.l.b16 %v3935
      %v4004 = vunpack.c.h.b16 %v3935
      %v4005 = vunpack.c.l.b16 %v3936
      %v4006 = vunpack.c.h.b16 %v3936
      %v4007 = vunpack.c.l.b16 %v3937
      %v4008 = vunpack.c.h.b16 %v3937
      %v4009 = vunpack.c.l.b16 %v3938
      %v4010 = vunpack.c.h.b16 %v3938
      %v4011 = vpack.c.b16 %v3963, %v3963
      %v4012 = vpack.c.b16 %v3964, %v3964
      %v4013 = vpack.c.b16 %v3965, %v3965
      %v4014 = vpack.c.b16 %v3966, %v3966
      %v4015 = vpack.c.b16 %v3967, %v3967
      %v4016 = vpack.c.b16 %v3968, %v3968
      %v4017 = vpack.c.b16 %v3969, %v3969
      %v4018 = vpack.c.b16 %v3970, %v3970
      %v4019 = vpack.c.b16 %v3971, %v3971
      %v4020 = vpack.c.b16 %v3972, %v3972
      %v4021 = vpack.c.b16 %v3973, %v3973
      %v4022 = vpack.c.b16 %v3974, %v3974
      %v4023 = vpack.c.b16 %v3975, %v3975
      %v4024 = vpack.c.b16 %v3976, %v3976
      %v4025 = vpack.c.b16 %v3977, %v3977
      %v4026 = vpack.c.b16 %v3978, %v3978
      %v4027 = vpack.c.b16 %v3979, %v3979
      %v4028 = vpack.c.b16 %v3980, %v3980
      %v4029 = vpack.c.b16 %v3981, %v3981
      %v4030 = vpack.c.b16 %v3982, %v3982
      %v4031 = vpack.c.b16 %v3983, %v3983
      %v4032 = vpack.c.b16 %v3984, %v3984
      %v4033 = vpack.c.b16 %v3985, %v3985
      %v4034 = vpack.c.b16 %v3986, %v3986
      %v4035 = vpack.c.b16 %v3987, %v3987
      %v4036 = vpack.c.b16 %v3988, %v3988
      %v4037 = vpack.c.b16 %v3989, %v3989
      %v4038 = vpack.c.b16 %v3990, %v3990
      %v4039 = vpack.c.b16 %v3991, %v3991
      %v4040 = vpack.c.b16 %v3992, %v3992
      %v4041 = vpack.c.b16 %v3993, %v3993
      %v4042 = vpack.c.b16 %v3994, %v3994
      %v4043 = vpack.c.b16 %v3995, %v3995
      %v4044 = vpack.c.b16 %v3996, %v3996
      %v4045 = vpack.c.b16 %v3997, %v3997
      %v4046 = vpack.c.b16 %v3998, %v3998
      %v4047 = vpack.c.b16 %v3999, %v3999
      %v4048 = vpack.c.b16 %v4000, %v4000
      %v4049 = vpack.c.b16 %v4001, %v4001
      %v4050 = vpack.c.b16 %v4002, %v4002
      %v4051 = vpack.c.b16 %v4003, %v4003
      %v4052 = vpack.c.b16 %v4004, %v4004
      %v4053 = vpack.c.b16 %v4005, %v4005
      %v4054 = vpack.c.b16 %v4006, %v4006
      %v4055 = vpack.c.b16 %v4007, %v4007
      %v4056 = vpack.c.b16 %v4008, %v4008
      %v4057 = vpack.c.b16 %v4009, %v4009
      %v4058 = vpack.c.b16 %v4010, %v4010
      %vm4107 = vcmask 60416
      %4108 = vst.msk [vmem:[%s241] sm:$0xf] %vm4107, %v4011
      %4109 = vst.msk [vmem:[%s241 + $0x4] sm:$0xf] %vm4107, %v4012
      %4110 = vst.msk [vmem:[%s241 + $0x8] sm:$0xf] %vm4107, %v4013
      %4111 = vst.msk [vmem:[%s241 + $0xc] sm:$0xf] %vm4107, %v4014
      %4112 = vst.msk [vmem:[%s241 + $0x10] sm:$0xf] %vm4107, %v4015
      %4113 = vst.msk [vmem:[%s241 + $0x14] sm:$0xf] %vm4107, %v4016
      %4114 = vst.msk [vmem:[%s241 + $0x18] sm:$0xf] %vm4107, %v4017
      %4115 = vst.msk [vmem:[%s241 + $0x1c] sm:$0xf] %vm4107, %v4018
      %4116 = vst.msk [vmem:[%s241 + $0x20] sm:$0xf] %vm4107, %v4019
      %4117 = vst.msk [vmem:[%s241 + $0x24] sm:$0xf] %vm4107, %v4020
      %4118 = vst.msk [vmem:[%s241 + $0x28] sm:$0xf] %vm4107, %v4021
      %4119 = vst.msk [vmem:[%s241 + $0x2c] sm:$0xf] %vm4107, %v4022
      %4120 = vst.msk [vmem:[%s241 + $0x30] sm:$0xf] %vm4107, %v4023
      %4121 = vst.msk [vmem:[%s241 + $0x34] sm:$0xf] %vm4107, %v4024
      %4122 = vst.msk [vmem:[%s241 + $0x38] sm:$0xf] %vm4107, %v4025
      %4123 = vst.msk [vmem:[%s241 + $0x3c] sm:$0xf] %vm4107, %v4026
      %4124 = vst.msk [vmem:[%s241 + $0x40] sm:$0xf] %vm4107, %v4027
      %4125 = vst.msk [vmem:[%s241 + $0x44] sm:$0xf] %vm4107, %v4028
      %4126 = vst.msk [vmem:[%s241 + $0x48] sm:$0xf] %vm4107, %v4029
      %4127 = vst.msk [vmem:[%s241 + $0x4c] sm:$0xf] %vm4107, %v4030
      %4128 = vst.msk [vmem:[%s241 + $0x50] sm:$0xf] %vm4107, %v4031
      %4129 = vst.msk [vmem:[%s241 + $0x54] sm:$0xf] %vm4107, %v4032
      %4130 = vst.msk [vmem:[%s241 + $0x58] sm:$0xf] %vm4107, %v4033
      %4131 = vst.msk [vmem:[%s241 + $0x5c] sm:$0xf] %vm4107, %v4034
      %4132 = vst.msk [vmem:[%s241 + $0x60] sm:$0xf] %vm4107, %v4035
      %4133 = vst.msk [vmem:[%s241 + $0x64] sm:$0xf] %vm4107, %v4036
      %4134 = vst.msk [vmem:[%s241 + $0x68] sm:$0xf] %vm4107, %v4037
      %4135 = vst.msk [vmem:[%s241 + $0x6c] sm:$0xf] %vm4107, %v4038
      %4136 = vst.msk [vmem:[%s241 + $0x70] sm:$0xf] %vm4107, %v4039
      %4137 = vst.msk [vmem:[%s241 + $0x74] sm:$0xf] %vm4107, %v4040
      %4138 = vst.msk [vmem:[%s241 + $0x78] sm:$0xf] %vm4107, %v4041
      %4139 = vst.msk [vmem:[%s241 + $0x7c] sm:$0xf] %vm4107, %v4042
      %4140 = vst.msk [vmem:[%s241 + $0x80] sm:$0xf] %vm4107, %v4043
      %4141 = vst.msk [vmem:[%s241 + $0x84] sm:$0xf] %vm4107, %v4044
      %4142 = vst.msk [vmem:[%s241 + $0x88] sm:$0xf] %vm4107, %v4045
      %4143 = vst.msk [vmem:[%s241 + $0x8c] sm:$0xf] %vm4107, %v4046
      %4144 = vst.msk [vmem:[%s241 + $0x90] sm:$0xf] %vm4107, %v4047
      %4145 = vst.msk [vmem:[%s241 + $0x94] sm:$0xf] %vm4107, %v4048
      %4146 = vst.msk [vmem:[%s241 + $0x98] sm:$0xf] %vm4107, %v4049
      %4147 = vst.msk [vmem:[%s241 + $0x9c] sm:$0xf] %vm4107, %v4050
      %4148 = vst.msk [vmem:[%s241 + $0xa0] sm:$0xf] %vm4107, %v4051
      %4149 = vst.msk [vmem:[%s241 + $0xa4] sm:$0xf] %vm4107, %v4052
      %4150 = vst.msk [vmem:[%s241 + $0xa8] sm:$0xf] %vm4107, %v4053
      %4151 = vst.msk [vmem:[%s241 + $0xac] sm:$0xf] %vm4107, %v4054
      %4152 = vst.msk [vmem:[%s241 + $0xb0] sm:$0xf] %vm4107, %v4055
      %4153 = vst.msk [vmem:[%s241 + $0xb4] sm:$0xf] %vm4107, %v4056
      %4154 = vst.msk [vmem:[%s241 + $0xb8] sm:$0xf] %vm4107, %v4057
      %4155 = vst.msk [vmem:[%s241 + $0xbc] sm:$0xf] %vm4107, %v4058
      %p4156 = scmp.lt.s32.totalorder %s19, 1
      %s4157 = scalar_select %p4156, %s19, 1
      %p4158 = scmp.lt.s32.totalorder %s20, 0
      %s4159 = scalar_select %p4158, %s20, 0
      %s4160 = smul.addr %s4159, 48
      %s4161 = smul.addr %s4157, 48
      %s4162 = sadd.s32 %s4160, %s4161
      %s4163 = smul.addr %s4162, 4
      %s4164 = scalar_lea.vmem %s3, %s4163
      // Predicated region
      $region33: #{up_cat_forward.2} parent=31 // pred_check
        %p4165 = pneg %p130
      $region34: #{up_cat_forward.2} parent=31 // pred_check_branch
        %4167 = sbr.rel (%p4165) target = $region36
      $region35: #{up_cat_forward.2} parent=31 // pred_region
        _
      $region36: #{up_cat_forward.2} parent=31 // pred_fallthru
        _
    $region32: #{up_cat_forward.2} parent=5 // pred_fallthru
      _
    %p4168 = scmp.le.s32.totalorder 2, %s9
    // Predicated region
    $region37: #{up_cat_forward.2} parent=5 // pred_check
      %p4169 = pneg %p4168
    $region38: #{up_cat_forward.2} parent=5 // pred_check_branch
      %4171 = sbr.rel (%p4169) target = $region40
    $region39: #{up_cat_forward.2} parent=5 // pred_region
      %s4172 = ssub.s32 %s9, 2
      // Predicated region
      $region41: #{up_cat_forward.2} parent=39 // pred_check
        %p4173 = pneg %p136
      $region42: #{up_cat_forward.2} parent=39 // pred_check_branch
        %4175 = sbr.rel (%p4173) target = $region44
      $region43: #{up_cat_forward.2} parent=39 // pred_region
        %p4176 = scmp.lt.s32.totalorder %s22, 1
        %s4177 = scalar_select %p4176, %s22, 1
        %p4178 = scmp.lt.s32.totalorder %s23, 0
        %s4179 = scalar_select %p4178, %s23, 0
        %s4180 = smul.addr %s4179, 48
        %s4181 = smul.addr %s4177, 48
        %s4182 = sadd.s32 %s4180, %s4181
        %s4183 = smul.addr %s4182, 4
        %s4184 = scalar_lea.vmem %s3, %s4183
      $region44: #{up_cat_forward.2} parent=39 // pred_fallthru
        _
    $region40: #{up_cat_forward.2} parent=5 // pred_fallthru
      _
  $region6: #{up_cat_forward.2} parent=0 // loop_footer
    %s13 = sadd.s32 1, %s9
  $region7: #{up_cat_forward.2} parent=0 // loop_footer_branch
    %8 = sbr.rel target = $region3
  $region8: #{up_cat_forward.2} parent=0 // loop_exit
    _

</llo_original>
